<compile_context>
chip_gen: v6e
topology: v6e:2x2x1
jax: 0.10.0
libtpu: 0.0.40
codegen_flags: <defaults>
</compile_context>

<pallas_src>
from functools import partial

import jax
import jax.numpy as jnp
from jax.experimental import pallas as pl
from jax.experimental.pallas import tpu as pltpu

STATE_DIM = 24      # environment_dim (20) + robot_dim (4)
ACTION_DIM = 2
H1 = 800
H2 = 600

STATE_PAD = 32      # 24  -> 32
H1P = 896           # 800 -> 7 * 128
H2P = 640           # 600 -> 5 * 128
EXT = 128           # augmentation columns: [a0, a1, 1, 0...]
H1A = H1P + EXT     # 1024 = augmented contraction depth for layer 2


# -----------------------------------------------------------------------------
# Kernel
# -----------------------------------------------------------------------------
def critic_kernel(s_ref, a_ref,
                  w14_ref, b14_ref,
                  w2aug_ref, w5aug_ref,
                  w3_ref, w6_ref, b36_ref,
                  q_ref, *, fold_actions, bf16_epilogue):
    bf16 = jnp.bfloat16

    # ---- fused layer_1 / layer_4 (one MXU matmul for both heads) ----
    sb = s_ref[...].astype(bf16)                                   # (TB, 32)
    acc = jnp.dot(sb, w14_ref[...],
                  preferred_element_type=jnp.float32)              # (TB, 1792)
    if bf16_epilogue:
        # bias + ReLU at bf16 width (>=v6e: bf16 VALUs) -> half the VPU passes.
        hg = jnp.maximum(acc.astype(bf16) + b14_ref[...].astype(bf16), 0.0)
    else:
        # v5e: no bf16 VPU datapath -> keep the epilogue in f32, cast last.
        hg = jnp.maximum(acc + b14_ref[...], 0.0).astype(bf16)
    h = hg[:, :H1P]                                                # Q1 branch
    g = hg[:, H1P:]                                                # Q2 branch

    a = a_ref[...]                                                 # (TB, 2) f32
    tb = a.shape[0]

    if fold_actions:
        # ---- fold action + bias into the layer-2 contraction (free K on
        #      256-deep MXUs: ceil(896/256) == ceil(1024/256) == 4) ----
        lane = jax.lax.broadcasted_iota(jnp.int32, (tb, EXT), 1)
        ext = jnp.where(lane == 0, a[:, 0:1],
              jnp.where(lane == 1, a[:, 1:2],
              jnp.where(lane == 2, 1.0, 0.0))).astype(bf16)        # (TB, 128)
        h_aug = jnp.concatenate([h, ext], axis=1)                  # (TB, 1024)
        g_aug = jnp.concatenate([g, ext], axis=1)
        h2 = jnp.maximum(jnp.dot(h_aug, w2aug_ref[...],
                                 preferred_element_type=jnp.float32), 0.0)
        g2 = jnp.maximum(jnp.dot(g_aug, w5aug_ref[...],
                                 preferred_element_type=jnp.float32), 0.0)
    else:
        # ---- v5e path: K=2 action matmuls + bias as VPU broadcast mul-adds,
        #      matmul only over the state rows of the augmented weight ----
        a0 = a[:, 0:1]
        a1 = a[:, 1:2]
        ext2 = w2aug_ref[pl.ds(H1P, 8), :].astype(jnp.float32)     # rows 896..903
        ext5 = w5aug_ref[pl.ds(H1P, 8), :].astype(jnp.float32)
        act2 = a0 * ext2[0:1, :] + a1 * ext2[1:2, :] + ext2[2:3, :]
        act5 = a0 * ext5[0:1, :] + a1 * ext5[1:2, :] + ext5[2:3, :]
        h2 = jnp.maximum(jnp.dot(h, w2aug_ref[0:H1P, :],
                                 preferred_element_type=jnp.float32) + act2, 0.0)
        g2 = jnp.maximum(jnp.dot(g, w5aug_ref[0:H1P, :],
                                 preferred_element_type=jnp.float32) + act5, 0.0)

    # ---- layer_3 / layer_6 off the MXU: VPU multiply + XLU lane reduce ----
    q1 = jnp.sum(h2 * w3_ref[...], axis=-1, keepdims=True)         # (TB, 1)
    q2 = jnp.sum(g2 * w6_ref[...], axis=-1, keepdims=True)         # (TB, 1)

    # ---- single lane-packed output store ----
    q_ref[...] = (jnp.concatenate([q1, q2], axis=1)
                  + b36_ref[...]).astype(q_ref.dtype)


# -----------------------------------------------------------------------------
# Per-generation static flags / tiling
# -----------------------------------------------------------------------------
def _tpu_flags():
    kind = ""
    try:
        kind = jax.devices()[0].device_kind.lower()
    except Exception:
        pass
    is_v5 = "v5" in kind                       # 128-deep MXU, no bf16 VPU
    dual_tc = ("v7" in kind) or ("7x" in kind)  # 2 TensorCores per chip
    return dict(bf16_epilogue=not is_v5,
                fold_actions=not is_v5,
                dual_tc=dual_tc)


def _pick_block_b(B, dual_tc):
    if dual_tc and B >= 16:
        bb = -(-B // 2)          # 2 tiles -> one per TensorCore
    else:
        bb = B                   # single-TC chips: one tile, weights DMA'd once
    bb = min(bb, 512)            # cap activation VMEM per step
    return max(8, -(-bb // 8) * 8)


# -----------------------------------------------------------------------------
# Wrapper
# -----------------------------------------------------------------------------
def critic_forward(s, a, pk, block_b=None, flags=None):
    """s: (B, 24) f32, a: (B, 2) f32, pk: packed params. Returns (q1, q2)."""
    if flags is None:
        flags = _tpu_flags()
    B = s.shape[0]
    if block_b is None:
        block_b = _pick_block_b(B, flags["dual_tc"])
    n_tiles = -(-B // block_b)
    Bp = n_tiles * block_b

    # TODO(synk): in a real TD3 training step, pre-pad s once outside the hot
    # loop and batch critic + target-critic evaluations into one call to
    # amortize the one-shot ~2.6 MiB weight DMA.
    sp = jnp.zeros((Bp, STATE_PAD), jnp.float32).at[:B, :STATE_DIM].set(s)
    ap = jnp.zeros((Bp, ACTION_DIM), jnp.float32).at[:B, :].set(a)

    kern = partial(critic_kernel,
                   fold_actions=flags["fold_actions"],
                   bf16_epilogue=flags["bf16_epilogue"])

    def wspec(arr):
        nd = arr.ndim
        # Full-array block with a constant index map -> the weight block stays
        # VMEM-resident across batch tiles (fetched once per core per call).
        return pl.BlockSpec(arr.shape, lambda i: (0,) * nd)

    out = pl.pallas_call(
        kern,
        out_shape=jax.ShapeDtypeStruct((Bp, 2), jnp.float32),
        grid=(n_tiles,),
        in_specs=[
            pl.BlockSpec((block_b, STATE_PAD), lambda i: (i, 0)),
            pl.BlockSpec((block_b, ACTION_DIM), lambda i: (i, 0)),
            wspec(pk["w14"]), wspec(pk["b14"]),
            wspec(pk["w2aug"]), wspec(pk["w5aug"]),
            wspec(pk["w3"]), wspec(pk["w6"]), wspec(pk["b36"]),
        ],
        out_specs=pl.BlockSpec((block_b, 2), lambda i: (i, 0)),
        compiler_params=pltpu.CompilerParams(
            dimension_semantics=("parallel",),
            vmem_limit_bytes=32 * 1024 * 1024,
        ),
    )(sp, ap,
      pk["w14"], pk["b14"],
      pk["w2aug"], pk["w5aug"],
      pk["w3"], pk["w6"], pk["b36"])

    q = out[:B]
    return q[:, 0:1], q[:, 1:2]


# -----------------------------------------------------------------------------
# Parameter construction (PyTorch Linear shapes, stored as (in, out)) + packing
# -----------------------------------------------------------------------------
def init_raw_params(key):
    def lin(k, fan_in, fan_out):
        kw, kb = jax.random.split(k)
        bound = 1.0 / jnp.sqrt(fan_in)
        w = jax.random.uniform(kw, (fan_in, fan_out), jnp.float32, -bound, bound)
        b = jax.random.uniform(kb, (1, fan_out), jnp.float32, -bound, bound)
        return w, b

    keys = jax.random.split(key, 8)
    w1, b1 = lin(keys[0], STATE_DIM, H1)
    w2s, _ = lin(keys[1], H1, H2)          # layer_2_s bias never used
    w2a, b2a = lin(keys[2], ACTION_DIM, H2)
    w3, b3 = lin(keys[3], H2, 1)
    w4, b4 = lin(keys[4], STATE_DIM, H1)
    w5s, _ = lin(keys[5], H1, H2)          # layer_5_s bias never used
    w5a, b5a = lin(keys[6], ACTION_DIM, H2)
    w6, b6 = lin(keys[7], H2, 1)
    return dict(w1=w1, b1=b1, w2s=w2s, w2a=w2a, b2a=b2a, w3=w3, b3=b3,
                w4=w4, b4=b4, w5s=w5s, w5a=w5a, b5a=b5a, w6=w6, b6=b6)


def pack_params(p):
    """Zero-pad to lane-dense shapes, fuse layer_1/4, stack [W2s;W2a;b2a] into an
    augmented (1024, 640) layer-2 weight, store big mats in bf16, and pack the
    final-layer columns as lane rows (for the VPU+XLU reduction)."""
    bf = jnp.bfloat16

    w14 = jnp.zeros((STATE_PAD, 2 * H1P), jnp.float32)
    w14 = w14.at[:STATE_DIM, :H1].set(p["w1"])
    w14 = w14.at[:STATE_DIM, H1P:H1P + H1].set(p["w4"])
    b14 = jnp.zeros((1, 2 * H1P), jnp.float32)
    b14 = b14.at[:, :H1].set(p["b1"]).at[:, H1P:H1P + H1].set(p["b4"])

    def aug(ws, wa, ba):
        w = jnp.zeros((H1A, H2P), jnp.float32)
        w = w.at[:H1, :H2].set(ws)                       # state rows
        w = w.at[H1P:H1P + ACTION_DIM, :H2].set(wa)      # action rows (K fold)
        w = w.at[H1P + ACTION_DIM, :H2].set(ba[0])       # bias row (ones column)
        return w.astype(bf)

    def row(wcol):                                       # (H2, 1) -> (1, H2P)
        return jnp.zeros((1, H2P), jnp.float32).at[0, :H2].set(wcol[:, 0])

    return dict(
        w14=w14.astype(bf), b14=b14,
        w2aug=aug(p["w2s"], p["w2a"], p["b2a"]),
        w5aug=aug(p["w5s"], p["w5a"], p["b5a"]),
        w3=row(p["w3"]), w6=row(p["w6"]),
        b36=jnp.concatenate([p["b3"], p["b6"]], axis=1),  # (1, 2)
    )


# -----------------------------------------------------------------------------
# References for validation
# -----------------------------------------------------------------------------
def critic_ref_fp32(s, a, p):
    """Pure f32 JAX reference mirroring the PyTorch forward."""
    h = jnp.maximum(s @ p["w1"] + p["b1"], 0.0)
    h = jnp.maximum(h @ p["w2s"] + a @ p["w2a"] + p["b2a"], 0.0)
    q1 = h @ p["w3"] + p["b3"]
    g = jnp.maximum(s @ p["w4"] + p["b4"], 0.0)
    g = jnp.maximum(g @ p["w5s"] + a @ p["w5a"] + p["b5a"], 0.0)
    q2 = g @ p["w6"] + p["b6"]
    return q1, q2


def critic_ref_packed(s, a, pk, *, fold_actions, bf16_epilogue):
    """JAX reference that mirrors the kernel's packed/bf16 arithmetic."""
    B = s.shape[0]
    bf = jnp.bfloat16
    sp = jnp.zeros((B, STATE_PAD), jnp.float32).at[:, :STATE_DIM].set(s)
    acc = jnp.dot(sp.astype(bf), pk["w14"], preferred_element_type=jnp.float32)
    if bf16_epilogue:
        hg = jnp.maximum(acc.astype(bf) + pk["b14"].astype(bf), 0.0)
    else:
        hg = jnp.maximum(acc + pk["b14"], 0.0).astype(bf)
    h, g = hg[:, :H1P], hg[:, H1P:]

    if fold_actions:
        ext = jnp.zeros((B, EXT), jnp.float32).at[:, :ACTION_DIM].set(a)
        ext = ext.at[:, ACTION_DIM].set(1.0).astype(bf)
        h_aug = jnp.concatenate([h, ext], axis=1)
        g_aug = jnp.concatenate([g, ext], axis=1)
        h2 = jnp.maximum(jnp.dot(h_aug, pk["w2aug"],
                                 preferred_element_type=jnp.float32), 0.0)
        g2 = jnp.maximum(jnp.dot(g_aug, pk["w5aug"],
                                 preferred_element_type=jnp.float32), 0.0)
    else:
        ext2 = pk["w2aug"][H1P:H1P + 8].astype(jnp.float32)
        ext5 = pk["w5aug"][H1P:H1P + 8].astype(jnp.float32)
        a0, a1 = a[:, 0:1], a[:, 1:2]
        act2 = a0 * ext2[0:1] + a1 * ext2[1:2] + ext2[2:3]
        act5 = a0 * ext5[0:1] + a1 * ext5[1:2] + ext5[2:3]
        h2 = jnp.maximum(jnp.dot(h, pk["w2aug"][:H1P],
                                 preferred_element_type=jnp.float32) + act2, 0.0)
        g2 = jnp.maximum(jnp.dot(g, pk["w5aug"][:H1P],
                                 preferred_element_type=jnp.float32) + act5, 0.0)

    q1 = jnp.sum(h2 * pk["w3"], axis=-1, keepdims=True) + pk["b36"][:, 0:1]
    q2 = jnp.sum(g2 * pk["w6"], axis=-1, keepdims=True) + pk["b36"][:, 1:2]
    return q1, q2


if __name__ == "__main__":
    key = jax.random.PRNGKey(0)
    kp, ks, ka = jax.random.split(key, 3)

    B = 256
    raw = init_raw_params(kp)
    packed = pack_params(raw)
    s = jax.random.normal(ks, (B, STATE_DIM), jnp.float32)
    a = jax.random.uniform(ka, (B, ACTION_DIM), jnp.float32, -1.0, 1.0)

    flags = _tpu_flags()
    q1, q2 = critic_forward(s, a, packed, flags=flags)
    q1 = jax.block_until_ready(q1)
    q2 = jax.block_until_ready(q2)
    assert q1.shape == (B, 1) and q2.shape == (B, 1)

    # Exact-scheme check (same padded/bf16 math as the kernel).
    q1p, q2p = critic_ref_packed(s, a, packed,
                                 fold_actions=flags["fold_actions"],
                                 bf16_epilogue=flags["bf16_epilogue"])
    assert jnp.allclose(q1, q1p, atol=2e-3, rtol=2e-3)
    assert jnp.allclose(q2, q2p, atol=2e-3, rtol=2e-3)

    # Loose check against the full-precision PyTorch-semantics reference
    # (bf16 weight/activation storage -> ~1e-3-level differences, intentional).
    q1f, q2f = critic_ref_fp32(s, a, raw)
    assert jnp.allclose(q1, q1f, atol=5e-2, rtol=5e-2)
    assert jnp.allclose(q2, q2f, atol=5e-2, rtol=5e-2)

    print("KERNEL_OK")
</pallas_src>

<mosaic_0001>
module attributes {stable_mosaic.version = 11 : i64} {
  func.func @critic_kernel(%arg0: i32, %arg1: memref<256x32xf32, #tpu.memory_space<vmem>>, %arg2: memref<256x2xf32, #tpu.memory_space<vmem>>, %arg3: memref<32x1792xbf16, #tpu.memory_space<vmem>>, %arg4: memref<1x1792xf32, #tpu.memory_space<vmem>>, %arg5: memref<1024x640xbf16, #tpu.memory_space<vmem>>, %arg6: memref<1024x640xbf16, #tpu.memory_space<vmem>>, %arg7: memref<1x640xf32, #tpu.memory_space<vmem>>, %arg8: memref<1x640xf32, #tpu.memory_space<vmem>>, %arg9: memref<1x2xf32, #tpu.memory_space<vmem>>, %arg10: memref<256x2xf32, #tpu.memory_space<vmem>>) attributes {dimension_semantics = [#tpu.dimension_semantics<parallel>], iteration_bounds = array<i64: 1>, scalar_prefetch = 0 : i64, scratch_operands = 0 : i64, tpu.core_type = #tpu.core_type<tc>, window_params = [{transform_indices = @transform_0, window_bounds = array<i64: 256, 32>}, {transform_indices = @transform_1, window_bounds = array<i64: 256, 2>}, {pipeline_mode = #tpu.pipeline_mode<synchronous>, transform_indices = @transform_2, window_bounds = array<i64: 32, 1792>}, {pipeline_mode = #tpu.pipeline_mode<synchronous>, transform_indices = @transform_3, window_bounds = array<i64: 1, 1792>}, {pipeline_mode = #tpu.pipeline_mode<synchronous>, transform_indices = @transform_4, window_bounds = array<i64: 1024, 640>}, {pipeline_mode = #tpu.pipeline_mode<synchronous>, transform_indices = @transform_5, window_bounds = array<i64: 1024, 640>}, {pipeline_mode = #tpu.pipeline_mode<synchronous>, transform_indices = @transform_6, window_bounds = array<i64: 1, 640>}, {pipeline_mode = #tpu.pipeline_mode<synchronous>, transform_indices = @transform_7, window_bounds = array<i64: 1, 640>}, {pipeline_mode = #tpu.pipeline_mode<synchronous>, transform_indices = @transform_8, window_bounds = array<i64: 1, 2>}, {transform_indices = @transform_9, window_bounds = array<i64: 256, 2>}]} {
    %c0 = arith.constant 0 : index
    %c0_0 = arith.constant 0 : index
    %0 = vector.load %arg1[%c0, %c0_0] : memref<256x32xf32, #tpu.memory_space<vmem>>, vector<256x32xf32>
    %1 = arith.truncf %0 : vector<256x32xf32> to vector<256x32xbf16>
    %c0_1 = arith.constant 0 : index
    %c0_2 = arith.constant 0 : index
    %2 = vector.load %arg3[%c0_1, %c0_2] : memref<32x1792xbf16, #tpu.memory_space<vmem>>, vector<32x1792xbf16>
    %cst = arith.constant dense<0.000000e+00> : vector<256x1792xf32>
    %3 = tpu.matmul %1, %2, %cst {dimension_numbers = #tpu.dot_dimension_numbers<[1], [0], [0], [1], [0, 0, 1, 1], [], []>} : vector<256x32xbf16>, vector<32x1792xbf16>, vector<256x1792xf32> -> vector<256x1792xf32>
    %4 = arith.truncf %3 : vector<256x1792xf32> to vector<256x1792xbf16>
    %c0_3 = arith.constant 0 : index
    %c0_4 = arith.constant 0 : index
    %5 = vector.load %arg4[%c0_3, %c0_4] : memref<1x1792xf32, #tpu.memory_space<vmem>>, vector<1x1792xf32>
    %6 = arith.truncf %5 : vector<1x1792xf32> to vector<1x1792xbf16>
    %7 = vector.broadcast %6 : vector<1x1792xbf16> to vector<256x1792xbf16>
    %8 = arith.addf %4, %7 : vector<256x1792xbf16>
    %cst_5 = arith.constant 0.000000e+00 : bf16
    %9 = vector.broadcast %cst_5 : bf16 to vector<256x1792xbf16>
    %10 = arith.maximumf %8, %9 : vector<256x1792xbf16>
    %11 = vector.extract_strided_slice %10 {offsets = [0, 0], sizes = [256, 896], strides = [1, 1]} : vector<256x1792xbf16> to vector<256x896xbf16>
    %12 = vector.extract_strided_slice %10 {offsets = [0, 896], sizes = [256, 896], strides = [1, 1]} : vector<256x1792xbf16> to vector<256x896xbf16>
    %c0_6 = arith.constant 0 : index
    %c0_7 = arith.constant 0 : index
    %13 = vector.load %arg2[%c0_6, %c0_7] : memref<256x2xf32, #tpu.memory_space<vmem>>, vector<256x2xf32>
    %14 = tpu.iota {dimensions = array<i32: 1>} : vector<256x128xi32>
    %c0_i32 = arith.constant 0 : i32
    %15 = vector.broadcast %c0_i32 : i32 to vector<256x128xi32>
    %16 = arith.cmpi eq, %14, %15 : vector<256x128xi32>
    %17 = vector.extract_strided_slice %13 {offsets = [0, 0], sizes = [256, 1], strides = [1, 1]} : vector<256x2xf32> to vector<256x1xf32>
    %c1_i32 = arith.constant 1 : i32
    %18 = vector.broadcast %c1_i32 : i32 to vector<256x128xi32>
    %19 = arith.cmpi eq, %14, %18 : vector<256x128xi32>
    %20 = vector.extract_strided_slice %13 {offsets = [0, 1], sizes = [256, 1], strides = [1, 1]} : vector<256x2xf32> to vector<256x1xf32>
    %c2_i32 = arith.constant 2 : i32
    %21 = vector.broadcast %c2_i32 : i32 to vector<256x128xi32>
    %22 = arith.cmpi eq, %14, %21 : vector<256x128xi32>
    %cst_8 = arith.constant 1.000000e+00 : f32
    %cst_9 = arith.constant 0.000000e+00 : f32
    %23 = vector.broadcast %cst_8 : f32 to vector<256x128xf32>
    %24 = vector.broadcast %cst_9 : f32 to vector<256x128xf32>
    %25 = arith.select %22, %23, %24 : vector<256x128xi1>, vector<256x128xf32>
    %26 = vector.shape_cast %20 : vector<256x1xf32> to vector<256x1xf32>
    %27 = vector.broadcast %26 : vector<256x1xf32> to vector<256x128xf32>
    %28 = arith.select %19, %27, %25 : vector<256x128xi1>, vector<256x128xf32>
    %29 = vector.shape_cast %17 : vector<256x1xf32> to vector<256x1xf32>
    %30 = vector.broadcast %29 : vector<256x1xf32> to vector<256x128xf32>
    %31 = arith.select %16, %30, %28 : vector<256x128xi1>, vector<256x128xf32>
    %32 = arith.truncf %31 : vector<256x128xf32> to vector<256x128xbf16>
    %33 = tpu.concatenate %11, %32 in 1 : vector<256x896xbf16>, vector<256x128xbf16> -> vector<256x1024xbf16>
    %34 = tpu.concatenate %12, %32 in 1 : vector<256x896xbf16>, vector<256x128xbf16> -> vector<256x1024xbf16>
    %c0_10 = arith.constant 0 : index
    %c0_11 = arith.constant 0 : index
    %35 = vector.load %arg5[%c0_10, %c0_11] : memref<1024x640xbf16, #tpu.memory_space<vmem>>, vector<1024x640xbf16>
    %cst_12 = arith.constant dense<0.000000e+00> : vector<256x640xf32>
    %36 = tpu.matmul %33, %35, %cst_12 {dimension_numbers = #tpu.dot_dimension_numbers<[1], [0], [0], [1], [0, 0, 1, 1], [], []>} : vector<256x1024xbf16>, vector<1024x640xbf16>, vector<256x640xf32> -> vector<256x640xf32>
    %cst_13 = arith.constant 0.000000e+00 : f32
    %37 = vector.broadcast %cst_13 : f32 to vector<256x640xf32>
    %38 = arith.maximumf %36, %37 : vector<256x640xf32>
    %c0_14 = arith.constant 0 : index
    %c0_15 = arith.constant 0 : index
    %39 = vector.load %arg6[%c0_14, %c0_15] : memref<1024x640xbf16, #tpu.memory_space<vmem>>, vector<1024x640xbf16>
    %cst_16 = arith.constant dense<0.000000e+00> : vector<256x640xf32>
    %40 = tpu.matmul %34, %39, %cst_16 {dimension_numbers = #tpu.dot_dimension_numbers<[1], [0], [0], [1], [0, 0, 1, 1], [], []>} : vector<256x1024xbf16>, vector<1024x640xbf16>, vector<256x640xf32> -> vector<256x640xf32>
    %cst_17 = arith.constant 0.000000e+00 : f32
    %41 = vector.broadcast %cst_17 : f32 to vector<256x640xf32>
    %42 = arith.maximumf %40, %41 : vector<256x640xf32>
    %c0_18 = arith.constant 0 : index
    %c0_19 = arith.constant 0 : index
    %43 = vector.load %arg7[%c0_18, %c0_19] : memref<1x640xf32, #tpu.memory_space<vmem>>, vector<1x640xf32>
    %44 = vector.broadcast %43 : vector<1x640xf32> to vector<256x640xf32>
    %45 = arith.mulf %38, %44 : vector<256x640xf32>
    %cst_20 = arith.constant dense<0.000000e+00> : vector<256xf32>
    %46 = vector.multi_reduction <add>, %45, %cst_20 [1] : vector<256x640xf32> to vector<256xf32>
    %47 = vector.shape_cast %46 : vector<256xf32> to vector<256x1xf32>
    %c0_21 = arith.constant 0 : index
    %c0_22 = arith.constant 0 : index
    %48 = vector.load %arg8[%c0_21, %c0_22] : memref<1x640xf32, #tpu.memory_space<vmem>>, vector<1x640xf32>
    %49 = vector.broadcast %48 : vector<1x640xf32> to vector<256x640xf32>
    %50 = arith.mulf %42, %49 : vector<256x640xf32>
    %cst_23 = arith.constant dense<0.000000e+00> : vector<256xf32>
    %51 = vector.multi_reduction <add>, %50, %cst_23 [1] : vector<256x640xf32> to vector<256xf32>
    %52 = vector.shape_cast %51 : vector<256xf32> to vector<256x1xf32>
    %53 = tpu.concatenate %47, %52 in 1 : vector<256x1xf32>, vector<256x1xf32> -> vector<256x2xf32>
    %c0_24 = arith.constant 0 : index
    %c0_25 = arith.constant 0 : index
    %54 = vector.load %arg9[%c0_24, %c0_25] : memref<1x2xf32, #tpu.memory_space<vmem>>, vector<1x2xf32>
    %55 = vector.broadcast %54 : vector<1x2xf32> to vector<256x2xf32>
    %56 = arith.addf %53, %55 : vector<256x2xf32>
    %c0_26 = arith.constant 0 : index
    %c0_27 = arith.constant 0 : index
    %57 = vector.load %arg10[%c0_26, %c0_27] : memref<256x2xf32, #tpu.memory_space<vmem>>, vector<256x2xf32>
    tpu.vector_store %arg10[%c0_26, %c0_27], %56 {strides = array<i32>} : memref<256x2xf32, #tpu.memory_space<vmem>>, vector<256x2xf32>,
    return
  }
  func.func @transform_0(%arg0: i32) -> (i32, i32) {
    %c0_i32 = arith.constant 0 : i32
    %c0_i32_0 = arith.constant 0 : i32
    return %arg0, %c0_i32 : i32, i32
  }
  func.func @transform_1(%arg0: i32) -> (i32, i32) {
    %c0_i32 = arith.constant 0 : i32
    %c0_i32_0 = arith.constant 0 : i32
    return %arg0, %c0_i32 : i32, i32
  }
  func.func @transform_2(%arg0: i32) -> (i32, i32) {
    %c0_i32 = arith.constant 0 : i32
    %c0_i32_0 = arith.constant 0 : i32
    %c0_i32_1 = arith.constant 0 : i32
    return %c0_i32, %c0_i32_0 : i32, i32
  }
  func.func @transform_3(%arg0: i32) -> (i32, i32) {
    %c0_i32 = arith.constant 0 : i32
    %c0_i32_0 = arith.constant 0 : i32
    %c0_i32_1 = arith.constant 0 : i32
    return %c0_i32, %c0_i32_0 : i32, i32
  }
  func.func @transform_4(%arg0: i32) -> (i32, i32) {
    %c0_i32 = arith.constant 0 : i32
    %c0_i32_0 = arith.constant 0 : i32
    %c0_i32_1 = arith.constant 0 : i32
    return %c0_i32, %c0_i32_0 : i32, i32
  }
  func.func @transform_5(%arg0: i32) -> (i32, i32) {
    %c0_i32 = arith.constant 0 : i32
    %c0_i32_0 = arith.constant 0 : i32
    %c0_i32_1 = arith.constant 0 : i32
    return %c0_i32, %c0_i32_0 : i32, i32
  }
  func.func @transform_6(%arg0: i32) -> (i32, i32) {
    %c0_i32 = arith.constant 0 : i32
    %c0_i32_0 = arith.constant 0 : i32
    %c0_i32_1 = arith.constant 0 : i32
    return %c0_i32, %c0_i32_0 : i32, i32
  }
  func.func @transform_7(%arg0: i32) -> (i32, i32) {
    %c0_i32 = arith.constant 0 : i32
    %c0_i32_0 = arith.constant 0 : i32
    %c0_i32_1 = arith.constant 0 : i32
    return %c0_i32, %c0_i32_0 : i32, i32
  }
  func.func @transform_8(%arg0: i32) -> (i32, i32) {
    %c0_i32 = arith.constant 0 : i32
    %c0_i32_0 = arith.constant 0 : i32
    %c0_i32_1 = arith.constant 0 : i32
    return %c0_i32, %c0_i32_0 : i32, i32
  }
  func.func @transform_9(%arg0: i32) -> (i32, i32) {
    %c0_i32 = arith.constant 0 : i32
    %c0_i32_0 = arith.constant 0 : i32
    return %arg0, %c0_i32 : i32, i32
  }
}

</mosaic_0001>

<llo_original>
// kernel: tpu_custom_call.1
$region0: #{tpu_custom_call.1}
  #allocation0 [shape = 'u32[]', space=smem, size = 0x4, offset = 0x4, fixed_abs, tag = 'smem constant byte address 0x4 - core index']
  #allocation1 [shape = 'u32[144,128]{1,0:T(1,128)}', space=vmem, size = 0x12000, scoped, tag = 'internal scratch']
  %s0 = inlined_call_operand.vmem [shape: f32[256,32], index: 0, kind: input, shape index: {}]
  %s1 = inlined_call_operand.vmem [shape: f32[256,2], index: 1, kind: input, shape index: {}]
  %s2 = inlined_call_operand.hbm [shape: bf16[32,1792], index: 2, kind: input, shape index: {}]
  %s3 = inlined_call_operand.hbm [shape: f32[1,1792], index: 3, kind: input, shape index: {}]
  %s4 = inlined_call_operand.hbm [shape: bf16[1024,640], index: 4, kind: input, shape index: {}]
  %s5 = inlined_call_operand.hbm [shape: bf16[1024,640], index: 5, kind: input, shape index: {}]
  %s6 = inlined_call_operand.hbm [shape: f32[1,640], index: 6, kind: input, shape index: {}]
  %s7 = inlined_call_operand.hbm [shape: f32[1,640], index: 7, kind: input, shape index: {}]
  %s8 = inlined_call_operand.hbm [shape: f32[1,2], index: 8, kind: input, shape index: {}]
  %s9 = inlined_call_operand.vmem [shape: f32[256,2], index: 9, kind: output, shape index: {}]
  %s10 = sld [smem:[#allocation0]]
  $region74: #{tpu_custom_call.1} parent=0
    _
  %s12 = ssub.s32 1, %s10
  %s13 = scalar_select 0, %s12, %s10
  $region1: #{tpu_custom_call.1} parent=0
    #allocation2 [shape = 'u8[114688]{0}', space=vmem, size = 0x1c000, scoped, tag = 'input window, operand 2, single buffered']
    #allocation3 [shape = 's32[1]{0}', space=sflag, size = 0x4, scoped, tag = 'scoped memory for tpu_custom_call.1']
    #allocation4 [shape = 'u8[7168]{0}', space=vmem, size = 0x1c00, scoped, tag = 'input window, operand 3, single buffered']
    #allocation5 [shape = 's32[1]{0}', space=sflag, size = 0x4, scoped, tag = 'scoped memory for tpu_custom_call.1']
    #allocation6 [shape = 'u8[1310720]{0}', space=vmem, size = 0x140000, scoped, tag = 'input window, operand 4, single buffered']
    #allocation7 [shape = 'u8[1310720]{0}', space=vmem, size = 0x140000, scoped, tag = 'input window, operand 5, single buffered']
    #allocation8 [shape = 's32[1]{0}', space=sflag, size = 0x4, scoped, tag = 'scoped memory for tpu_custom_call.1']
    #allocation9 [shape = 'u8[2560]{0}', space=vmem, size = 0xc00, scoped, tag = 'input window, operand 6, single buffered']
    #allocation10 [shape = 'u8[2560]{0}', space=vmem, size = 0xc00, scoped, tag = 'input window, operand 7, single buffered']
    #allocation11 [shape = 's32[1]{0}', space=sflag, size = 0x4, scoped, tag = 'scoped memory for tpu_custom_call.1']
    #allocation12 [shape = 'u8[512]{0}', space=vmem, size = 0x400, scoped, tag = 'input window, operand 8, single buffered']
    %14 = vsyncpa [#allocation3], 0
    %15 = vsyncpa [#allocation5], 0
    %16 = vsyncpa [#allocation8], 0
    %17 = vsyncpa [#allocation11], 0
    // Predicated region
    $region2: #{tpu_custom_call.1} parent=1 // pred_check
      _
    $region3: #{tpu_custom_call.1} parent=1 // pred_check_branch
      %19 = sbr.rel (0) target = $region5
    $region4: #{tpu_custom_call.1} parent=1 // pred_region
      _
    $region5: #{tpu_custom_call.1} parent=1 // pred_fallthru
      _
    // Predicated region
    $region6: #{tpu_custom_call.1} parent=1 // pred_check
      _
    $region7: #{tpu_custom_call.1} parent=1 // pred_check_branch
      %21 = sbr.rel (0) target = $region9
    $region8: #{tpu_custom_call.1} parent=1 // pred_region
      _
    $region9: #{tpu_custom_call.1} parent=1 // pred_fallthru
      _
    // Predicated region
    $region10: #{tpu_custom_call.1} parent=1 // pred_check
      _
    $region11: #{tpu_custom_call.1} parent=1 // pred_check_branch
      %23 = sbr.rel (0) target = $region13
    $region12: #{tpu_custom_call.1} parent=1 // pred_region
      %s25 = ssub.s32 3584, 3584
      %26 = vsyncadd [#allocation3], %s25
      %s27 = sshll.u32 [#allocation2], 4
      %s28 = int_to_ptr.vmem [resolvable:$true] %s27
      %33 = dma.hbm_to_vmem [thread:$0]  %s2, 3584, %s28, [#allocation3], 896, 896, 56
    $region13: #{tpu_custom_call.1} parent=1 // pred_fallthru
      _
    // Predicated region
    $region14: #{tpu_custom_call.1} parent=1 // pred_check
      _
    $region15: #{tpu_custom_call.1} parent=1 // pred_check_branch
      %35 = sbr.rel (0) target = $region17
    $region16: #{tpu_custom_call.1} parent=1 // pred_region
      %s37 = ssub.s32 224, 224
      %38 = vsyncadd [#allocation5], %s37
      %s40 = sshll.u32 [#allocation4], 4
      %s41 = int_to_ptr.vmem [resolvable:$true] %s40
      %43 = dma.hbm_to_vmem [thread:$0]  %s3, 224, %s41, [#allocation5]
    $region17: #{tpu_custom_call.1} parent=1 // pred_fallthru
      _
    // Predicated region
    $region18: #{tpu_custom_call.1} parent=1 // pred_check
      _
    $region19: #{tpu_custom_call.1} parent=1 // pred_check_branch
      %45 = sbr.rel (0) target = $region21
    $region20: #{tpu_custom_call.1} parent=1 // pred_region
      %s47 = ssub.s32 40960, 40960
      %48 = vsyncadd [#allocation5], %s47
      %s49 = sshll.u32 [#allocation6], 4
      %s50 = int_to_ptr.vmem [resolvable:$true] %s49
      %55 = dma.hbm_to_vmem [thread:$0]  %s4, 40960, %s50, [#allocation5], 320, 320, 20
    $region21: #{tpu_custom_call.1} parent=1 // pred_fallthru
      _
    // Predicated region
    $region22: #{tpu_custom_call.1} parent=1 // pred_check
      _
    $region23: #{tpu_custom_call.1} parent=1 // pred_check_branch
      %57 = sbr.rel (0) target = $region25
    $region24: #{tpu_custom_call.1} parent=1 // pred_region
      %s59 = ssub.s32 40960, 40960
      %60 = vsyncadd [#allocation8], %s59
      %s61 = sshll.u32 [#allocation7], 4
      %s62 = int_to_ptr.vmem [resolvable:$true] %s61
      %67 = dma.hbm_to_vmem [thread:$0]  %s5, 40960, %s62, [#allocation8], 320, 320, 20
    $region25: #{tpu_custom_call.1} parent=1 // pred_fallthru
      _
    // Predicated region
    $region26: #{tpu_custom_call.1} parent=1 // pred_check
      _
    $region27: #{tpu_custom_call.1} parent=1 // pred_check_branch
      %69 = sbr.rel (0) target = $region29
    $region28: #{tpu_custom_call.1} parent=1 // pred_region
      %s71 = ssub.s32 80, 80
      %72 = vsyncadd [#allocation8], %s71
      %s74 = sshll.u32 [#allocation9], 4
      %s75 = int_to_ptr.vmem [resolvable:$true] %s74
      %77 = dma.hbm_to_vmem [thread:$0]  %s6, 80, %s75, [#allocation8]
    $region29: #{tpu_custom_call.1} parent=1 // pred_fallthru
      _
    // Predicated region
    $region30: #{tpu_custom_call.1} parent=1 // pred_check
      _
    $region31: #{tpu_custom_call.1} parent=1 // pred_check_branch
      %79 = sbr.rel (0) target = $region33
    $region32: #{tpu_custom_call.1} parent=1 // pred_region
      %s81 = ssub.s32 80, 80
      %82 = vsyncadd [#allocation11], %s81
      %s84 = sshll.u32 [#allocation10], 4
      %s85 = int_to_ptr.vmem [resolvable:$true] %s84
      %87 = dma.hbm_to_vmem [thread:$0]  %s7, 80, %s85, [#allocation11]
    $region33: #{tpu_custom_call.1} parent=1 // pred_fallthru
      _
    // Predicated region
    $region34: #{tpu_custom_call.1} parent=1 // pred_check
      _
    $region35: #{tpu_custom_call.1} parent=1 // pred_check_branch
      %89 = sbr.rel (0) target = $region37
    $region36: #{tpu_custom_call.1} parent=1 // pred_region
      %s91 = ssub.s32 16, 16
      %92 = vsyncadd [#allocation11], %s91
      %s94 = sshll.u32 [#allocation12], 4
      %s95 = int_to_ptr.vmem [resolvable:$true] %s94
      %97 = dma.hbm_to_vmem [thread:$0]  %s8, 16, %s95, [#allocation11]
    $region37: #{tpu_custom_call.1} parent=1 // pred_fallthru
      _
    // Predicated region
    $region38: #{tpu_custom_call.1} parent=1 // pred_check
      _
    $region39: #{tpu_custom_call.1} parent=1 // pred_check_branch
      %99 = sbr.rel (0) target = $region41
    $region40: #{tpu_custom_call.1} parent=1 // pred_region
      %100 = dma.done [#allocation3], 3584
    $region41: #{tpu_custom_call.1} parent=1 // pred_fallthru
      _
    // Predicated region
    $region42: #{tpu_custom_call.1} parent=1 // pred_check
      _
    $region43: #{tpu_custom_call.1} parent=1 // pred_check_branch
      %102 = sbr.rel (0) target = $region45
    $region44: #{tpu_custom_call.1} parent=1 // pred_region
      %103 = dma.done [#allocation5], 224
    $region45: #{tpu_custom_call.1} parent=1 // pred_fallthru
      _
    // Predicated region
    $region46: #{tpu_custom_call.1} parent=1 // pred_check
      _
    $region47: #{tpu_custom_call.1} parent=1 // pred_check_branch
      %105 = sbr.rel (0) target = $region49
    $region48: #{tpu_custom_call.1} parent=1 // pred_region
      %106 = dma.done [#allocation5], 40960
    $region49: #{tpu_custom_call.1} parent=1 // pred_fallthru
      _
    // Predicated region
    $region50: #{tpu_custom_call.1} parent=1 // pred_check
      _
    $region51: #{tpu_custom_call.1} parent=1 // pred_check_branch
      %108 = sbr.rel (0) target = $region53
    $region52: #{tpu_custom_call.1} parent=1 // pred_region
      %109 = dma.done [#allocation8], 40960
    $region53: #{tpu_custom_call.1} parent=1 // pred_fallthru
      _
    // Predicated region
    $region54: #{tpu_custom_call.1} parent=1 // pred_check
      _
    $region55: #{tpu_custom_call.1} parent=1 // pred_check_branch
      %111 = sbr.rel (0) target = $region57
    $region56: #{tpu_custom_call.1} parent=1 // pred_region
      %112 = dma.done [#allocation8], 80
    $region57: #{tpu_custom_call.1} parent=1 // pred_fallthru
      _
    // Predicated region
    $region58: #{tpu_custom_call.1} parent=1 // pred_check
      _
    $region59: #{tpu_custom_call.1} parent=1 // pred_check_branch
      %114 = sbr.rel (0) target = $region61
    $region60: #{tpu_custom_call.1} parent=1 // pred_region
      %115 = dma.done [#allocation11], 80
    $region61: #{tpu_custom_call.1} parent=1 // pred_fallthru
      _
    // Predicated region
    $region62: #{tpu_custom_call.1} parent=1 // pred_check
      _
    $region63: #{tpu_custom_call.1} parent=1 // pred_check_branch
      %117 = sbr.rel (0) target = $region65
    $region64: #{tpu_custom_call.1} parent=1 // pred_region
      %118 = dma.done [#allocation11], 16
    $region65: #{tpu_custom_call.1} parent=1 // pred_fallthru
      _
    %v120 = vld [vmem:[%s0] sm:$0xff]
    %v121 = vld [vmem:[%s0 + $0x8] sm:$0xff]
    %v122 = vld [vmem:[%s0 + $0x10] sm:$0xff]
    %v123 = vld [vmem:[%s0 + $0x18] sm:$0xff]
    %v124 = vld [vmem:[%s0 + $0x20] sm:$0xff]
    %v125 = vld [vmem:[%s0 + $0x28] sm:$0xff]
    %v126 = vld [vmem:[%s0 + $0x30] sm:$0xff]
    %v127 = vld [vmem:[%s0 + $0x38] sm:$0xff]
    %v128 = vld [vmem:[%s0 + $0x40] sm:$0xff]
    %v129 = vld [vmem:[%s0 + $0x48] sm:$0xff]
    %v130 = vld [vmem:[%s0 + $0x50] sm:$0xff]
    %v131 = vld [vmem:[%s0 + $0x58] sm:$0xff]
    %v132 = vld [vmem:[%s0 + $0x60] sm:$0xff]
    %v133 = vld [vmem:[%s0 + $0x68] sm:$0xff]
    %v134 = vld [vmem:[%s0 + $0x70] sm:$0xff]
    %v135 = vld [vmem:[%s0 + $0x78] sm:$0xff]
    %v136 = vld [vmem:[%s0 + $0x80] sm:$0xff]
    %v137 = vld [vmem:[%s0 + $0x88] sm:$0xff]
    %v138 = vld [vmem:[%s0 + $0x90] sm:$0xff]
    %v139 = vld [vmem:[%s0 + $0x98] sm:$0xff]
    %v140 = vld [vmem:[%s0 + $0xa0] sm:$0xff]
    %v141 = vld [vmem:[%s0 + $0xa8] sm:$0xff]
    %v142 = vld [vmem:[%s0 + $0xb0] sm:$0xff]
    %v143 = vld [vmem:[%s0 + $0xb8] sm:$0xff]
    %v144 = vld [vmem:[%s0 + $0xc0] sm:$0xff]
    %v145 = vld [vmem:[%s0 + $0xc8] sm:$0xff]
    %v146 = vld [vmem:[%s0 + $0xd0] sm:$0xff]
    %v147 = vld [vmem:[%s0 + $0xd8] sm:$0xff]
    %v148 = vld [vmem:[%s0 + $0xe0] sm:$0xff]
    %v149 = vld [vmem:[%s0 + $0xe8] sm:$0xff]
    %v150 = vld [vmem:[%s0 + $0xf0] sm:$0xff]
    %v151 = vld [vmem:[%s0 + $0xf8] sm:$0xff]
    %v152 = vpack.c.bf16 %v121, %v120
    %v153 = vpack.c.bf16 %v123, %v122
    %v154 = vpack.c.bf16 %v125, %v124
    %v155 = vpack.c.bf16 %v127, %v126
    %v156 = vpack.c.bf16 %v129, %v128
    %v157 = vpack.c.bf16 %v131, %v130
    %v158 = vpack.c.bf16 %v133, %v132
    %v159 = vpack.c.bf16 %v135, %v134
    %v160 = vpack.c.bf16 %v137, %v136
    %v161 = vpack.c.bf16 %v139, %v138
    %v162 = vpack.c.bf16 %v141, %v140
    %v163 = vpack.c.bf16 %v143, %v142
    %v164 = vpack.c.bf16 %v145, %v144
    %v165 = vpack.c.bf16 %v147, %v146
    %v166 = vpack.c.bf16 %v149, %v148
    %v167 = vpack.c.bf16 %v151, %v150
    %v168 = vld [vmem:[#allocation2] sm:$0xff]
    %v169 = vld [vmem:[#allocation2 + $0x8] sm:$0xff]
    %v170 = vld [vmem:[#allocation2 + $0x10] sm:$0xff]
    %v171 = vld [vmem:[#allocation2 + $0x18] sm:$0xff]
    %v172 = vld [vmem:[#allocation2 + $0x20] sm:$0xff]
    %v173 = vld [vmem:[#allocation2 + $0x28] sm:$0xff]
    %v174 = vld [vmem:[#allocation2 + $0x30] sm:$0xff]
    %v175 = vld [vmem:[#allocation2 + $0x38] sm:$0xff]
    %v176 = vld [vmem:[#allocation2 + $0x40] sm:$0xff]
    %v177 = vld [vmem:[#allocation2 + $0x48] sm:$0xff]
    %v178 = vld [vmem:[#allocation2 + $0x50] sm:$0xff]
    %v179 = vld [vmem:[#allocation2 + $0x58] sm:$0xff]
    %v180 = vld [vmem:[#allocation2 + $0x60] sm:$0xff]
    %v181 = vld [vmem:[#allocation2 + $0x68] sm:$0xff]
    %v182 = vld [vmem:[#allocation2 + $0x70] sm:$0xff]
    %v183 = vld [vmem:[#allocation2 + $0x78] sm:$0xff]
    %v184 = vld [vmem:[#allocation2 + $0x80] sm:$0xff]
    %v185 = vld [vmem:[#allocation2 + $0x88] sm:$0xff]
    %v186 = vld [vmem:[#allocation2 + $0x90] sm:$0xff]
    %v187 = vld [vmem:[#allocation2 + $0x98] sm:$0xff]
    %v188 = vld [vmem:[#allocation2 + $0xa0] sm:$0xff]
    %v189 = vld [vmem:[#allocation2 + $0xa8] sm:$0xff]
    %v190 = vld [vmem:[#allocation2 + $0xb0] sm:$0xff]
    %v191 = vld [vmem:[#allocation2 + $0xb8] sm:$0xff]
    %v192 = vld [vmem:[#allocation2 + $0xc0] sm:$0xff]
    %v193 = vld [vmem:[#allocation2 + $0xc8] sm:$0xff]
    %v194 = vld [vmem:[#allocation2 + $0xd0] sm:$0xff]
    %v195 = vld [vmem:[#allocation2 + $0xd8] sm:$0xff]
    %v224 = vunpack.c.l.b16 %v168
    %v225 = vunpack.c.h.b16 %v168
    %v226 = vunpack.c.l.b16 %v169
    %v227 = vunpack.c.h.b16 %v169
    %v228 = vunpack.c.l.b16 %v170
    %v229 = vunpack.c.h.b16 %v170
    %v230 = vunpack.c.l.b16 %v171
    %v231 = vunpack.c.h.b16 %v171
    %v232 = vunpack.c.l.b16 %v172
    %v233 = vunpack.c.h.b16 %v172
    %v234 = vunpack.c.l.b16 %v173
    %v235 = vunpack.c.h.b16 %v173
    %v236 = vunpack.c.l.b16 %v174
    %v237 = vunpack.c.h.b16 %v174
    %v238 = vunpack.c.l.b16 %v175
    %v239 = vunpack.c.h.b16 %v175
    %v240 = vunpack.c.l.b16 %v176
    %v241 = vunpack.c.h.b16 %v176
    %v242 = vunpack.c.l.b16 %v177
    %v243 = vunpack.c.h.b16 %v177
    %v244 = vunpack.c.l.b16 %v178
    %v245 = vunpack.c.h.b16 %v178
    %v246 = vunpack.c.l.b16 %v179
    %v247 = vunpack.c.h.b16 %v179
    %v248 = vunpack.c.l.b16 %v180
    %v249 = vunpack.c.h.b16 %v180
    %v250 = vunpack.c.l.b16 %v181
    %v251 = vunpack.c.h.b16 %v181
    %v252 = vunpack.c.l.b16 %v182
    %v253 = vunpack.c.h.b16 %v182
    %v254 = vunpack.c.l.b16 %v183
    %v255 = vunpack.c.h.b16 %v183
    %v256 = vunpack.c.l.b16 %v184
    %v257 = vunpack.c.h.b16 %v184
    %v258 = vunpack.c.l.b16 %v185
    %v259 = vunpack.c.h.b16 %v185
    %v260 = vunpack.c.l.b16 %v186
    %v261 = vunpack.c.h.b16 %v186
    %v262 = vunpack.c.l.b16 %v187
    %v263 = vunpack.c.h.b16 %v187
    %v264 = vunpack.c.l.b16 %v188
    %v265 = vunpack.c.h.b16 %v188
    %v266 = vunpack.c.l.b16 %v189
    %v267 = vunpack.c.h.b16 %v189
    %v268 = vunpack.c.l.b16 %v190
    %v269 = vunpack.c.h.b16 %v190
    %v270 = vunpack.c.l.b16 %v191
    %v271 = vunpack.c.h.b16 %v191
    %v272 = vunpack.c.l.b16 %v192
    %v273 = vunpack.c.h.b16 %v192
    %v274 = vunpack.c.l.b16 %v193
    %v275 = vunpack.c.h.b16 %v193
    %v276 = vunpack.c.l.b16 %v194
    %v277 = vunpack.c.h.b16 %v194
    %v278 = vunpack.c.l.b16 %v195
    %v279 = vunpack.c.h.b16 %v195
    %v280 = vpack.c.b16 %v238, %v224
    %v281 = vpack.c.b16 %v239, %v225
    %v282 = vpack.c.b16 %v240, %v226
    %v283 = vpack.c.b16 %v241, %v227
    %v284 = vpack.c.b16 %v242, %v228
    %v285 = vpack.c.b16 %v243, %v229
    %v286 = vpack.c.b16 %v244, %v230
    %v287 = vpack.c.b16 %v245, %v231
    %v288 = vpack.c.b16 %v246, %v232
    %v289 = vpack.c.b16 %v247, %v233
    %v290 = vpack.c.b16 %v248, %v234
    %v291 = vpack.c.b16 %v249, %v235
    %v292 = vpack.c.b16 %v250, %v236
    %v293 = vpack.c.b16 %v251, %v237
    %v294 = vpack.c.b16 %v266, %v252
    %v295 = vpack.c.b16 %v267, %v253
    %v296 = vpack.c.b16 %v268, %v254
    %v297 = vpack.c.b16 %v269, %v255
    %v298 = vpack.c.b16 %v270, %v256
    %v299 = vpack.c.b16 %v271, %v257
    %v300 = vpack.c.b16 %v272, %v258
    %v301 = vpack.c.b16 %v273, %v259
    %v302 = vpack.c.b16 %v274, %v260
    %v303 = vpack.c.b16 %v275, %v261
    %v304 = vpack.c.b16 %v276, %v262
    %v305 = vpack.c.b16 %v277, %v263
    %v306 = vpack.c.b16 %v278, %v264
    %v307 = vpack.c.b16 %v279, %v265
    %vm336 = vcmask 261120
    %v338 = vsel %vm336, %v152, 0
    %v341 = vsel %vm336, %v153, 0
    %v344 = vsel %vm336, %v154, 0
    %v347 = vsel %vm336, %v155, 0
    %v350 = vsel %vm336, %v156, 0
    %v353 = vsel %vm336, %v157, 0
    %v356 = vsel %vm336, %v158, 0
    %v359 = vsel %vm336, %v159, 0
    %v362 = vsel %vm336, %v160, 0
    %v365 = vsel %vm336, %v161, 0
    %v368 = vsel %vm336, %v162, 0
    %v371 = vsel %vm336, %v163, 0
    %v374 = vsel %vm336, %v164, 0
    %v377 = vsel %vm336, %v165, 0
    %v380 = vsel %vm336, %v166, 0
    %v383 = vsel %vm336, %v167, 0
    %385 = vmatprep.subr.bf16.mxu0 0
    %386 = vmatpush1.bf16.msra.mxu0 0
    %387 = vmatprep.subr.bf16.mxu0 0
    %388 = vmatpush1.bf16.msra.mxu0 0
    %389 = vmatprep.subr.bf16.mxu0 0
    %390 = vmatpush1.bf16.msra.mxu0 0
    %391 = vmatprep.subr.bf16.mxu0 0
    %392 = vmatpush1.bf16.msra.mxu0 0
    %393 = vmatprep.subr.bf16.mxu0 0
    %394 = vmatpush1.bf16.msra.mxu0 0
    %395 = vmatprep.subr.bf16.mxu0 0
    %396 = vmatpush1.bf16.msra.mxu0 0
    %397 = vmatprep.subr.bf16.mxu0 %v295
    %398 = vmatpush1.bf16.msra.mxu0 %v294
    %399 = vmatprep.subr.bf16.mxu0 %v281
    %400 = vmatpush1.bf16.msra.mxu0 %v280
    %401 = vmatprep.subr.bf16.mxu0 0
    %402 = vmatpush2.bf16.msra.mxu0 0
    %403 = vmatprep.subr.bf16.mxu0 0
    %404 = vmatpush2.bf16.msra.mxu0 0
    %405 = vmatprep.subr.bf16.mxu0 0
    %406 = vmatpush2.bf16.msra.mxu0 0
    %407 = vmatprep.subr.bf16.mxu0 0
    %408 = vmatpush2.bf16.msra.mxu0 0
    %409 = vmatprep.subr.bf16.mxu0 0
    %410 = vmatpush2.bf16.msra.mxu0 0
    %411 = vmatprep.subr.bf16.mxu0 0
    %412 = vmatpush2.bf16.msra.mxu0 0
    %413 = vmatprep.subr.bf16.mxu0 0
    %414 = vmatpush2.bf16.msra.mxu0 0
    %415 = vmatprep.subr.bf16.mxu0 0
    %416 = vmatpush2.bf16.msra.mxu0 0
    %417 = vmatprep.mubr.bf16.mxu0 0
    %418 = vmatmul.mubr.bf16.gmra.mxu0 %v338
    %v419 = vpop.f32.mrf.mxu0
    %v420 = vadd.f32 0.0, %v419
    %v421 = vpop.f32.mrf.mxu0
    %v422 = vadd.f32 0.0, %v421
    %v423 = vpop.f32.mrf.mxu0
    %v424 = vadd.f32 0.0, %v423
    %v425 = vpop.f32.mrf.mxu0
    %v426 = vadd.f32 0.0, %v425
    %427 = vmatprep.mubr.bf16.mxu0 0
    %428 = vmatmul.mubr.bf16.gmra.mxu0 %v341
    %v429 = vpop.f32.mrf.mxu0
    %v430 = vadd.f32 0.0, %v429
    %v431 = vpop.f32.mrf.mxu0
    %v432 = vadd.f32 0.0, %v431
    %v433 = vpop.f32.mrf.mxu0
    %v434 = vadd.f32 0.0, %v433
    %v435 = vpop.f32.mrf.mxu0
    %v436 = vadd.f32 0.0, %v435
    %437 = vmatprep.mubr.bf16.mxu0 0
    %438 = vmatmul.mubr.bf16.gmra.mxu0 %v344
    %v439 = vpop.f32.mrf.mxu0
    %v440 = vadd.f32 0.0, %v439
    %v441 = vpop.f32.mrf.mxu0
    %v442 = vadd.f32 0.0, %v441
    %v443 = vpop.f32.mrf.mxu0
    %v444 = vadd.f32 0.0, %v443
    %v445 = vpop.f32.mrf.mxu0
    %v446 = vadd.f32 0.0, %v445
    %447 = vmatprep.mubr.bf16.mxu0 0
    %448 = vmatmul.mubr.bf16.gmra.mxu0 %v347
    %v449 = vpop.f32.mrf.mxu0
    %v450 = vadd.f32 0.0, %v449
    %v451 = vpop.f32.mrf.mxu0
    %v452 = vadd.f32 0.0, %v451
    %v453 = vpop.f32.mrf.mxu0
    %v454 = vadd.f32 0.0, %v453
    %v455 = vpop.f32.mrf.mxu0
    %v456 = vadd.f32 0.0, %v455
    %457 = vmatprep.mubr.bf16.mxu0 0
    %458 = vmatmul.mubr.bf16.gmra.mxu0 %v350
    %v459 = vpop.f32.mrf.mxu0
    %v460 = vadd.f32 0.0, %v459
    %v461 = vpop.f32.mrf.mxu0
    %v462 = vadd.f32 0.0, %v461
    %v463 = vpop.f32.mrf.mxu0
    %v464 = vadd.f32 0.0, %v463
    %v465 = vpop.f32.mrf.mxu0
    %v466 = vadd.f32 0.0, %v465
    %467 = vmatprep.mubr.bf16.mxu0 0
    %468 = vmatmul.mubr.bf16.gmra.mxu0 %v353
    %v469 = vpop.f32.mrf.mxu0
    %v470 = vadd.f32 0.0, %v469
    %v471 = vpop.f32.mrf.mxu0
    %v472 = vadd.f32 0.0, %v471
    %v473 = vpop.f32.mrf.mxu0
    %v474 = vadd.f32 0.0, %v473
    %v475 = vpop.f32.mrf.mxu0
    %v476 = vadd.f32 0.0, %v475
    %477 = vmatprep.mubr.bf16.mxu0 0
    %478 = vmatmul.mubr.bf16.gmra.mxu0 %v356
    %v479 = vpop.f32.mrf.mxu0
    %v480 = vadd.f32 0.0, %v479
    %v481 = vpop.f32.mrf.mxu0
    %v482 = vadd.f32 0.0, %v481
    %v483 = vpop.f32.mrf.mxu0
    %v484 = vadd.f32 0.0, %v483
    %v485 = vpop.f32.mrf.mxu0
    %v486 = vadd.f32 0.0, %v485
    %487 = vmatprep.mubr.bf16.mxu0 0
    %488 = vmatmul.mubr.bf16.gmra.mxu0 %v359
    %v489 = vpop.f32.mrf.mxu0
    %v490 = vadd.f32 0.0, %v489
    %v491 = vpop.f32.mrf.mxu0
    %v492 = vadd.f32 0.0, %v491
    %v493 = vpop.f32.mrf.mxu0
    %v494 = vadd.f32 0.0, %v493
    %v495 = vpop.f32.mrf.mxu0
    %v496 = vadd.f32 0.0, %v495
    %497 = vmatprep.mubr.bf16.mxu0 0
    %498 = vmatmul.mubr.bf16.gmra.mxu0 %v362
    %v499 = vpop.f32.mrf.mxu0
    %v500 = vadd.f32 0.0, %v499
    %v501 = vpop.f32.mrf.mxu0
    %v502 = vadd.f32 0.0, %v501
    %v503 = vpop.f32.mrf.mxu0
    %v504 = vadd.f32 0.0, %v503
    %v505 = vpop.f32.mrf.mxu0
    %v506 = vadd.f32 0.0, %v505
    %507 = vmatprep.mubr.bf16.mxu0 0
    %508 = vmatmul.mubr.bf16.gmra.mxu0 %v365
    %v509 = vpop.f32.mrf.mxu0
    %v510 = vadd.f32 0.0, %v509
    %v511 = vpop.f32.mrf.mxu0
    %v512 = vadd.f32 0.0, %v511
    %v513 = vpop.f32.mrf.mxu0
    %v514 = vadd.f32 0.0, %v513
    %v515 = vpop.f32.mrf.mxu0
    %v516 = vadd.f32 0.0, %v515
    %517 = vmatprep.mubr.bf16.mxu0 0
    %518 = vmatmul.mubr.bf16.gmra.mxu0 %v368
    %v519 = vpop.f32.mrf.mxu0
    %v520 = vadd.f32 0.0, %v519
    %v521 = vpop.f32.mrf.mxu0
    %v522 = vadd.f32 0.0, %v521
    %v523 = vpop.f32.mrf.mxu0
    %v524 = vadd.f32 0.0, %v523
    %v525 = vpop.f32.mrf.mxu0
    %v526 = vadd.f32 0.0, %v525
    %527 = vmatprep.mubr.bf16.mxu0 0
    %528 = vmatmul.mubr.bf16.gmra.mxu0 %v371
    %v529 = vpop.f32.mrf.mxu0
    %v530 = vadd.f32 0.0, %v529
    %v531 = vpop.f32.mrf.mxu0
    %v532 = vadd.f32 0.0, %v531
    %v533 = vpop.f32.mrf.mxu0
    %v534 = vadd.f32 0.0, %v533
    %v535 = vpop.f32.mrf.mxu0
    %v536 = vadd.f32 0.0, %v535
    %537 = vmatprep.mubr.bf16.mxu0 0
    %538 = vmatmul.mubr.bf16.gmra.mxu0 %v374
    %v539 = vpop.f32.mrf.mxu0
    %v540 = vadd.f32 0.0, %v539
    %v541 = vpop.f32.mrf.mxu0
    %v542 = vadd.f32 0.0, %v541
    %v543 = vpop.f32.mrf.mxu0
    %v544 = vadd.f32 0.0, %v543
    %v545 = vpop.f32.mrf.mxu0
    %v546 = vadd.f32 0.0, %v545
    %547 = vmatprep.mubr.bf16.mxu0 0
    %548 = vmatmul.mubr.bf16.gmra.mxu0 %v377
    %v549 = vpop.f32.mrf.mxu0
    %v550 = vadd.f32 0.0, %v549
    %v551 = vpop.f32.mrf.mxu0
    %v552 = vadd.f32 0.0, %v551
    %v553 = vpop.f32.mrf.mxu0
    %v554 = vadd.f32 0.0, %v553
    %v555 = vpop.f32.mrf.mxu0
    %v556 = vadd.f32 0.0, %v555
    %557 = vmatprep.mubr.bf16.mxu0 0
    %558 = vmatmul.mubr.bf16.gmra.mxu0 %v380
    %v559 = vpop.f32.mrf.mxu0
    %v560 = vadd.f32 0.0, %v559
    %v561 = vpop.f32.mrf.mxu0
    %v562 = vadd.f32 0.0, %v561
    %v563 = vpop.f32.mrf.mxu0
    %v564 = vadd.f32 0.0, %v563
    %v565 = vpop.f32.mrf.mxu0
    %v566 = vadd.f32 0.0, %v565
    %567 = vmatprep.mubr.bf16.mxu0 0
    %568 = vmatmul.mubr.bf16.gmra.mxu0 %v383
    %v569 = vpop.f32.mrf.mxu0
    %v570 = vadd.f32 0.0, %v569
    %v571 = vpop.f32.mrf.mxu0
    %v572 = vadd.f32 0.0, %v571
    %v573 = vpop.f32.mrf.mxu0
    %v574 = vadd.f32 0.0, %v573
    %v575 = vpop.f32.mrf.mxu0
    %v576 = vadd.f32 0.0, %v575
    %577 = vdwg.mxu0
    %578 = vmatprep.subr.bf16.mxu0 0
    %579 = vmatpush1.bf16.msra.mxu0 0
    %580 = vmatprep.subr.bf16.mxu0 0
    %581 = vmatpush1.bf16.msra.mxu0 0
    %582 = vmatprep.subr.bf16.mxu0 0
    %583 = vmatpush1.bf16.msra.mxu0 0
    %584 = vmatprep.subr.bf16.mxu0 0
    %585 = vmatpush1.bf16.msra.mxu0 0
    %586 = vmatprep.subr.bf16.mxu0 0
    %587 = vmatpush1.bf16.msra.mxu0 0
    %588 = vmatprep.subr.bf16.mxu0 0
    %589 = vmatpush1.bf16.msra.mxu0 0
    %590 = vmatprep.subr.bf16.mxu0 %v297
    %591 = vmatpush1.bf16.msra.mxu0 %v296
    %592 = vmatprep.subr.bf16.mxu0 %v283
    %593 = vmatpush1.bf16.msra.mxu0 %v282
    %594 = vmatprep.subr.bf16.mxu0 0
    %595 = vmatpush2.bf16.msra.mxu0 0
    %596 = vmatprep.subr.bf16.mxu0 0
    %597 = vmatpush2.bf16.msra.mxu0 0
    %598 = vmatprep.subr.bf16.mxu0 0
    %599 = vmatpush2.bf16.msra.mxu0 0
    %600 = vmatprep.subr.bf16.mxu0 0
    %601 = vmatpush2.bf16.msra.mxu0 0
    %602 = vmatprep.subr.bf16.mxu0 0
    %603 = vmatpush2.bf16.msra.mxu0 0
    %604 = vmatprep.subr.bf16.mxu0 0
    %605 = vmatpush2.bf16.msra.mxu0 0
    %606 = vmatprep.subr.bf16.mxu0 0
    %607 = vmatpush2.bf16.msra.mxu0 0
    %608 = vmatprep.subr.bf16.mxu0 0
    %609 = vmatpush2.bf16.msra.mxu0 0
    %610 = vmatprep.mubr.bf16.mxu0 0
    %611 = vmatmul.mubr.bf16.gmra.mxu0 %v338
    %v612 = vpop.f32.mrf.mxu0
    %v613 = vadd.f32 0.0, %v612
    %v614 = vpop.f32.mrf.mxu0
    %v615 = vadd.f32 0.0, %v614
    %v616 = vpop.f32.mrf.mxu0
    %v617 = vadd.f32 0.0, %v616
    %v618 = vpop.f32.mrf.mxu0
    %v619 = vadd.f32 0.0, %v618
    %620 = vmatprep.mubr.bf16.mxu0 0
    %621 = vmatmul.mubr.bf16.gmra.mxu0 %v341
    %v622 = vpop.f32.mrf.mxu0
    %v623 = vadd.f32 0.0, %v622
    %v624 = vpop.f32.mrf.mxu0
    %v625 = vadd.f32 0.0, %v624
    %v626 = vpop.f32.mrf.mxu0
    %v627 = vadd.f32 0.0, %v626
    %v628 = vpop.f32.mrf.mxu0
    %v629 = vadd.f32 0.0, %v628
    %630 = vmatprep.mubr.bf16.mxu0 0
    %631 = vmatmul.mubr.bf16.gmra.mxu0 %v344
    %v632 = vpop.f32.mrf.mxu0
    %v633 = vadd.f32 0.0, %v632
    %v634 = vpop.f32.mrf.mxu0
    %v635 = vadd.f32 0.0, %v634
    %v636 = vpop.f32.mrf.mxu0
    %v637 = vadd.f32 0.0, %v636
    %v638 = vpop.f32.mrf.mxu0
    %v639 = vadd.f32 0.0, %v638
    %640 = vmatprep.mubr.bf16.mxu0 0
    %641 = vmatmul.mubr.bf16.gmra.mxu0 %v347
    %v642 = vpop.f32.mrf.mxu0
    %v643 = vadd.f32 0.0, %v642
    %v644 = vpop.f32.mrf.mxu0
    %v645 = vadd.f32 0.0, %v644
    %v646 = vpop.f32.mrf.mxu0
    %v647 = vadd.f32 0.0, %v646
    %v648 = vpop.f32.mrf.mxu0
    %v649 = vadd.f32 0.0, %v648
    %650 = vmatprep.mubr.bf16.mxu0 0
    %651 = vmatmul.mubr.bf16.gmra.mxu0 %v350
    %v652 = vpop.f32.mrf.mxu0
    %v653 = vadd.f32 0.0, %v652
    %v654 = vpop.f32.mrf.mxu0
    %v655 = vadd.f32 0.0, %v654
    %v656 = vpop.f32.mrf.mxu0
    %v657 = vadd.f32 0.0, %v656
    %v658 = vpop.f32.mrf.mxu0
    %v659 = vadd.f32 0.0, %v658
    %660 = vmatprep.mubr.bf16.mxu0 0
    %661 = vmatmul.mubr.bf16.gmra.mxu0 %v353
    %v662 = vpop.f32.mrf.mxu0
    %v663 = vadd.f32 0.0, %v662
    %v664 = vpop.f32.mrf.mxu0
    %v665 = vadd.f32 0.0, %v664
    %v666 = vpop.f32.mrf.mxu0
    %v667 = vadd.f32 0.0, %v666
    %v668 = vpop.f32.mrf.mxu0
    %v669 = vadd.f32 0.0, %v668
    %670 = vmatprep.mubr.bf16.mxu0 0
    %671 = vmatmul.mubr.bf16.gmra.mxu0 %v356
    %v672 = vpop.f32.mrf.mxu0
    %v673 = vadd.f32 0.0, %v672
    %v674 = vpop.f32.mrf.mxu0
    %v675 = vadd.f32 0.0, %v674
    %v676 = vpop.f32.mrf.mxu0
    %v677 = vadd.f32 0.0, %v676
    %v678 = vpop.f32.mrf.mxu0
    %v679 = vadd.f32 0.0, %v678
    %680 = vmatprep.mubr.bf16.mxu0 0
    %681 = vmatmul.mubr.bf16.gmra.mxu0 %v359
    %v682 = vpop.f32.mrf.mxu0
    %v683 = vadd.f32 0.0, %v682
    %v684 = vpop.f32.mrf.mxu0
    %v685 = vadd.f32 0.0, %v684
    %v686 = vpop.f32.mrf.mxu0
    %v687 = vadd.f32 0.0, %v686
    %v688 = vpop.f32.mrf.mxu0
    %v689 = vadd.f32 0.0, %v688
    %690 = vmatprep.mubr.bf16.mxu0 0
    %691 = vmatmul.mubr.bf16.gmra.mxu0 %v362
    %v692 = vpop.f32.mrf.mxu0
    %v693 = vadd.f32 0.0, %v692
    %v694 = vpop.f32.mrf.mxu0
    %v695 = vadd.f32 0.0, %v694
    %v696 = vpop.f32.mrf.mxu0
    %v697 = vadd.f32 0.0, %v696
    %v698 = vpop.f32.mrf.mxu0
    %v699 = vadd.f32 0.0, %v698
    %700 = vmatprep.mubr.bf16.mxu0 0
    %701 = vmatmul.mubr.bf16.gmra.mxu0 %v365
    %v702 = vpop.f32.mrf.mxu0
    %v703 = vadd.f32 0.0, %v702
    %v704 = vpop.f32.mrf.mxu0
    %v705 = vadd.f32 0.0, %v704
    %v706 = vpop.f32.mrf.mxu0
    %v707 = vadd.f32 0.0, %v706
    %v708 = vpop.f32.mrf.mxu0
    %v709 = vadd.f32 0.0, %v708
    %710 = vmatprep.mubr.bf16.mxu0 0
    %711 = vmatmul.mubr.bf16.gmra.mxu0 %v368
    %v712 = vpop.f32.mrf.mxu0
    %v713 = vadd.f32 0.0, %v712
    %v714 = vpop.f32.mrf.mxu0
    %v715 = vadd.f32 0.0, %v714
    %v716 = vpop.f32.mrf.mxu0
    %v717 = vadd.f32 0.0, %v716
    %v718 = vpop.f32.mrf.mxu0
    %v719 = vadd.f32 0.0, %v718
    %720 = vmatprep.mubr.bf16.mxu0 0
    %721 = vmatmul.mubr.bf16.gmra.mxu0 %v371
    %v722 = vpop.f32.mrf.mxu0
    %v723 = vadd.f32 0.0, %v722
    %v724 = vpop.f32.mrf.mxu0
    %v725 = vadd.f32 0.0, %v724
    %v726 = vpop.f32.mrf.mxu0
    %v727 = vadd.f32 0.0, %v726
    %v728 = vpop.f32.mrf.mxu0
    %v729 = vadd.f32 0.0, %v728
    %730 = vmatprep.mubr.bf16.mxu0 0
    %731 = vmatmul.mubr.bf16.gmra.mxu0 %v374
    %v732 = vpop.f32.mrf.mxu0
    %v733 = vadd.f32 0.0, %v732
    %v734 = vpop.f32.mrf.mxu0
    %v735 = vadd.f32 0.0, %v734
    %v736 = vpop.f32.mrf.mxu0
    %v737 = vadd.f32 0.0, %v736
    %v738 = vpop.f32.mrf.mxu0
    %v739 = vadd.f32 0.0, %v738
    %740 = vmatprep.mubr.bf16.mxu0 0
    %741 = vmatmul.mubr.bf16.gmra.mxu0 %v377
    %v742 = vpop.f32.mrf.mxu0
    %v743 = vadd.f32 0.0, %v742
    %v744 = vpop.f32.mrf.mxu0
    %v745 = vadd.f32 0.0, %v744
    %v746 = vpop.f32.mrf.mxu0
    %v747 = vadd.f32 0.0, %v746
    %v748 = vpop.f32.mrf.mxu0
    %v749 = vadd.f32 0.0, %v748
    %750 = vmatprep.mubr.bf16.mxu0 0
    %751 = vmatmul.mubr.bf16.gmra.mxu0 %v380
    %v752 = vpop.f32.mrf.mxu0
    %v753 = vadd.f32 0.0, %v752
    %v754 = vpop.f32.mrf.mxu0
    %v755 = vadd.f32 0.0, %v754
    %v756 = vpop.f32.mrf.mxu0
    %v757 = vadd.f32 0.0, %v756
    %v758 = vpop.f32.mrf.mxu0
    %v759 = vadd.f32 0.0, %v758
    %760 = vmatprep.mubr.bf16.mxu0 0
    %761 = vmatmul.mubr.bf16.gmra.mxu0 %v383
    %v762 = vpop.f32.mrf.mxu0
    %v763 = vadd.f32 0.0, %v762
    %v764 = vpop.f32.mrf.mxu0
    %v765 = vadd.f32 0.0, %v764
    %v766 = vpop.f32.mrf.mxu0
    %v767 = vadd.f32 0.0, %v766
    %v768 = vpop.f32.mrf.mxu0
    %v769 = vadd.f32 0.0, %v768
    %770 = vdwg.mxu0
    %771 = vmatprep.subr.bf16.mxu0 0
    %772 = vmatpush1.bf16.msra.mxu0 0
    %773 = vmatprep.subr.bf16.mxu0 0
    %774 = vmatpush1.bf16.msra.mxu0 0
    %775 = vmatprep.subr.bf16.mxu0 0
    %776 = vmatpush1.bf16.msra.mxu0 0
    %777 = vmatprep.subr.bf16.mxu0 0
    %778 = vmatpush1.bf16.msra.mxu0 0
    %779 = vmatprep.subr.bf16.mxu0 0
    %780 = vmatpush1.bf16.msra.mxu0 0
    %781 = vmatprep.subr.bf16.mxu0 0
    %782 = vmatpush1.bf16.msra.mxu0 0
    %783 = vmatprep.subr.bf16.mxu0 %v299
    %784 = vmatpush1.bf16.msra.mxu0 %v298
    %785 = vmatprep.subr.bf16.mxu0 %v285
    %786 = vmatpush1.bf16.msra.mxu0 %v284
    %787 = vmatprep.subr.bf16.mxu0 0
    %788 = vmatpush2.bf16.msra.mxu0 0
    %789 = vmatprep.subr.bf16.mxu0 0
    %790 = vmatpush2.bf16.msra.mxu0 0
    %791 = vmatprep.subr.bf16.mxu0 0
    %792 = vmatpush2.bf16.msra.mxu0 0
    %793 = vmatprep.subr.bf16.mxu0 0
    %794 = vmatpush2.bf16.msra.mxu0 0
    %795 = vmatprep.subr.bf16.mxu0 0
    %796 = vmatpush2.bf16.msra.mxu0 0
    %797 = vmatprep.subr.bf16.mxu0 0
    %798 = vmatpush2.bf16.msra.mxu0 0
    %799 = vmatprep.subr.bf16.mxu0 0
    %800 = vmatpush2.bf16.msra.mxu0 0
    %801 = vmatprep.subr.bf16.mxu0 0
    %802 = vmatpush2.bf16.msra.mxu0 0
    %803 = vmatprep.mubr.bf16.mxu0 0
    %804 = vmatmul.mubr.bf16.gmra.mxu0 %v338
    %v805 = vpop.f32.mrf.mxu0
    %v806 = vadd.f32 0.0, %v805
    %v807 = vpop.f32.mrf.mxu0
    %v808 = vadd.f32 0.0, %v807
    %v809 = vpop.f32.mrf.mxu0
    %v810 = vadd.f32 0.0, %v809
    %v811 = vpop.f32.mrf.mxu0
    %v812 = vadd.f32 0.0, %v811
    %813 = vmatprep.mubr.bf16.mxu0 0
    %814 = vmatmul.mubr.bf16.gmra.mxu0 %v341
    %v815 = vpop.f32.mrf.mxu0
    %v816 = vadd.f32 0.0, %v815
    %v817 = vpop.f32.mrf.mxu0
    %v818 = vadd.f32 0.0, %v817
    %v819 = vpop.f32.mrf.mxu0
    %v820 = vadd.f32 0.0, %v819
    %v821 = vpop.f32.mrf.mxu0
    %v822 = vadd.f32 0.0, %v821
    %823 = vmatprep.mubr.bf16.mxu0 0
    %824 = vmatmul.mubr.bf16.gmra.mxu0 %v344
    %v825 = vpop.f32.mrf.mxu0
    %v826 = vadd.f32 0.0, %v825
    %v827 = vpop.f32.mrf.mxu0
    %v828 = vadd.f32 0.0, %v827
    %v829 = vpop.f32.mrf.mxu0
    %v830 = vadd.f32 0.0, %v829
    %v831 = vpop.f32.mrf.mxu0
    %v832 = vadd.f32 0.0, %v831
    %833 = vmatprep.mubr.bf16.mxu0 0
    %834 = vmatmul.mubr.bf16.gmra.mxu0 %v347
    %v835 = vpop.f32.mrf.mxu0
    %v836 = vadd.f32 0.0, %v835
    %v837 = vpop.f32.mrf.mxu0
    %v838 = vadd.f32 0.0, %v837
    %v839 = vpop.f32.mrf.mxu0
    %v840 = vadd.f32 0.0, %v839
    %v841 = vpop.f32.mrf.mxu0
    %v842 = vadd.f32 0.0, %v841
    %843 = vmatprep.mubr.bf16.mxu0 0
    %844 = vmatmul.mubr.bf16.gmra.mxu0 %v350
    %v845 = vpop.f32.mrf.mxu0
    %v846 = vadd.f32 0.0, %v845
    %v847 = vpop.f32.mrf.mxu0
    %v848 = vadd.f32 0.0, %v847
    %v849 = vpop.f32.mrf.mxu0
    %v850 = vadd.f32 0.0, %v849
    %v851 = vpop.f32.mrf.mxu0
    %v852 = vadd.f32 0.0, %v851
    %853 = vmatprep.mubr.bf16.mxu0 0
    %854 = vmatmul.mubr.bf16.gmra.mxu0 %v353
    %v855 = vpop.f32.mrf.mxu0
    %v856 = vadd.f32 0.0, %v855
    %v857 = vpop.f32.mrf.mxu0
    %v858 = vadd.f32 0.0, %v857
    %v859 = vpop.f32.mrf.mxu0
    %v860 = vadd.f32 0.0, %v859
    %v861 = vpop.f32.mrf.mxu0
    %v862 = vadd.f32 0.0, %v861
    %863 = vmatprep.mubr.bf16.mxu0 0
    %864 = vmatmul.mubr.bf16.gmra.mxu0 %v356
    %v865 = vpop.f32.mrf.mxu0
    %v866 = vadd.f32 0.0, %v865
    %v867 = vpop.f32.mrf.mxu0
    %v868 = vadd.f32 0.0, %v867
    %v869 = vpop.f32.mrf.mxu0
    %v870 = vadd.f32 0.0, %v869
    %v871 = vpop.f32.mrf.mxu0
    %v872 = vadd.f32 0.0, %v871
    %873 = vmatprep.mubr.bf16.mxu0 0
    %874 = vmatmul.mubr.bf16.gmra.mxu0 %v359
    %v875 = vpop.f32.mrf.mxu0
    %v876 = vadd.f32 0.0, %v875
    %v877 = vpop.f32.mrf.mxu0
    %v878 = vadd.f32 0.0, %v877
    %v879 = vpop.f32.mrf.mxu0
    %v880 = vadd.f32 0.0, %v879
    %v881 = vpop.f32.mrf.mxu0
    %v882 = vadd.f32 0.0, %v881
    %883 = vmatprep.mubr.bf16.mxu0 0
    %884 = vmatmul.mubr.bf16.gmra.mxu0 %v362
    %v885 = vpop.f32.mrf.mxu0
    %v886 = vadd.f32 0.0, %v885
    %v887 = vpop.f32.mrf.mxu0
    %v888 = vadd.f32 0.0, %v887
    %v889 = vpop.f32.mrf.mxu0
    %v890 = vadd.f32 0.0, %v889
    %v891 = vpop.f32.mrf.mxu0
    %v892 = vadd.f32 0.0, %v891
    %893 = vmatprep.mubr.bf16.mxu0 0
    %894 = vmatmul.mubr.bf16.gmra.mxu0 %v365
    %v895 = vpop.f32.mrf.mxu0
    %v896 = vadd.f32 0.0, %v895
    %v897 = vpop.f32.mrf.mxu0
    %v898 = vadd.f32 0.0, %v897
    %v899 = vpop.f32.mrf.mxu0
    %v900 = vadd.f32 0.0, %v899
    %v901 = vpop.f32.mrf.mxu0
    %v902 = vadd.f32 0.0, %v901
    %903 = vmatprep.mubr.bf16.mxu0 0
    %904 = vmatmul.mubr.bf16.gmra.mxu0 %v368
    %v905 = vpop.f32.mrf.mxu0
    %v906 = vadd.f32 0.0, %v905
    %v907 = vpop.f32.mrf.mxu0
    %v908 = vadd.f32 0.0, %v907
    %v909 = vpop.f32.mrf.mxu0
    %v910 = vadd.f32 0.0, %v909
    %v911 = vpop.f32.mrf.mxu0
    %v912 = vadd.f32 0.0, %v911
    %913 = vmatprep.mubr.bf16.mxu0 0
    %914 = vmatmul.mubr.bf16.gmra.mxu0 %v371
    %v915 = vpop.f32.mrf.mxu0
    %v916 = vadd.f32 0.0, %v915
    %v917 = vpop.f32.mrf.mxu0
    %v918 = vadd.f32 0.0, %v917
    %v919 = vpop.f32.mrf.mxu0
    %v920 = vadd.f32 0.0, %v919
    %v921 = vpop.f32.mrf.mxu0
    %v922 = vadd.f32 0.0, %v921
    %923 = vmatprep.mubr.bf16.mxu0 0
    %924 = vmatmul.mubr.bf16.gmra.mxu0 %v374
    %v925 = vpop.f32.mrf.mxu0
    %v926 = vadd.f32 0.0, %v925
    %v927 = vpop.f32.mrf.mxu0
    %v928 = vadd.f32 0.0, %v927
    %v929 = vpop.f32.mrf.mxu0
    %v930 = vadd.f32 0.0, %v929
    %v931 = vpop.f32.mrf.mxu0
    %v932 = vadd.f32 0.0, %v931
    %933 = vmatprep.mubr.bf16.mxu0 0
    %934 = vmatmul.mubr.bf16.gmra.mxu0 %v377
    %v935 = vpop.f32.mrf.mxu0
    %v936 = vadd.f32 0.0, %v935
    %v937 = vpop.f32.mrf.mxu0
    %v938 = vadd.f32 0.0, %v937
    %v939 = vpop.f32.mrf.mxu0
    %v940 = vadd.f32 0.0, %v939
    %v941 = vpop.f32.mrf.mxu0
    %v942 = vadd.f32 0.0, %v941
    %943 = vmatprep.mubr.bf16.mxu0 0
    %944 = vmatmul.mubr.bf16.gmra.mxu0 %v380
    %v945 = vpop.f32.mrf.mxu0
    %v946 = vadd.f32 0.0, %v945
    %v947 = vpop.f32.mrf.mxu0
    %v948 = vadd.f32 0.0, %v947
    %v949 = vpop.f32.mrf.mxu0
    %v950 = vadd.f32 0.0, %v949
    %v951 = vpop.f32.mrf.mxu0
    %v952 = vadd.f32 0.0, %v951
    %953 = vmatprep.mubr.bf16.mxu0 0
    %954 = vmatmul.mubr.bf16.gmra.mxu0 %v383
    %v955 = vpop.f32.mrf.mxu0
    %v956 = vadd.f32 0.0, %v955
    %v957 = vpop.f32.mrf.mxu0
    %v958 = vadd.f32 0.0, %v957
    %v959 = vpop.f32.mrf.mxu0
    %v960 = vadd.f32 0.0, %v959
    %v961 = vpop.f32.mrf.mxu0
    %v962 = vadd.f32 0.0, %v961
    %963 = vdwg.mxu0
    %964 = vmatprep.subr.bf16.mxu0 0
    %965 = vmatpush1.bf16.msra.mxu0 0
    %966 = vmatprep.subr.bf16.mxu0 0
    %967 = vmatpush1.bf16.msra.mxu0 0
    %968 = vmatprep.subr.bf16.mxu0 0
    %969 = vmatpush1.bf16.msra.mxu0 0
    %970 = vmatprep.subr.bf16.mxu0 0
    %971 = vmatpush1.bf16.msra.mxu0 0
    %972 = vmatprep.subr.bf16.mxu0 0
    %973 = vmatpush1.bf16.msra.mxu0 0
    %974 = vmatprep.subr.bf16.mxu0 0
    %975 = vmatpush1.bf16.msra.mxu0 0
    %976 = vmatprep.subr.bf16.mxu0 %v301
    %977 = vmatpush1.bf16.msra.mxu0 %v300
    %978 = vmatprep.subr.bf16.mxu0 %v287
    %979 = vmatpush1.bf16.msra.mxu0 %v286
    %980 = vmatprep.subr.bf16.mxu0 0
    %981 = vmatpush2.bf16.msra.mxu0 0
    %982 = vmatprep.subr.bf16.mxu0 0
    %983 = vmatpush2.bf16.msra.mxu0 0
    %984 = vmatprep.subr.bf16.mxu0 0
    %985 = vmatpush2.bf16.msra.mxu0 0
    %986 = vmatprep.subr.bf16.mxu0 0
    %987 = vmatpush2.bf16.msra.mxu0 0
    %988 = vmatprep.subr.bf16.mxu0 0
    %989 = vmatpush2.bf16.msra.mxu0 0
    %990 = vmatprep.subr.bf16.mxu0 0
    %991 = vmatpush2.bf16.msra.mxu0 0
    %992 = vmatprep.subr.bf16.mxu0 0
    %993 = vmatpush2.bf16.msra.mxu0 0
    %994 = vmatprep.subr.bf16.mxu0 0
    %995 = vmatpush2.bf16.msra.mxu0 0
    %996 = vmatprep.mubr.bf16.mxu0 0
    %997 = vmatmul.mubr.bf16.gmra.mxu0 %v338
    %v998 = vpop.f32.mrf.mxu0
    %v999 = vadd.f32 0.0, %v998
    %v1000 = vpop.f32.mrf.mxu0
    %v1001 = vadd.f32 0.0, %v1000
    %v1002 = vpop.f32.mrf.mxu0
    %v1003 = vadd.f32 0.0, %v1002
    %v1004 = vpop.f32.mrf.mxu0
    %v1005 = vadd.f32 0.0, %v1004
    %1006 = vmatprep.mubr.bf16.mxu0 0
    %1007 = vmatmul.mubr.bf16.gmra.mxu0 %v341
    %v1008 = vpop.f32.mrf.mxu0
    %v1009 = vadd.f32 0.0, %v1008
    %v1010 = vpop.f32.mrf.mxu0
    %v1011 = vadd.f32 0.0, %v1010
    %v1012 = vpop.f32.mrf.mxu0
    %v1013 = vadd.f32 0.0, %v1012
    %v1014 = vpop.f32.mrf.mxu0
    %v1015 = vadd.f32 0.0, %v1014
    %1016 = vmatprep.mubr.bf16.mxu0 0
    %1017 = vmatmul.mubr.bf16.gmra.mxu0 %v344
    %v1018 = vpop.f32.mrf.mxu0
    %v1019 = vadd.f32 0.0, %v1018
    %v1020 = vpop.f32.mrf.mxu0
    %v1021 = vadd.f32 0.0, %v1020
    %v1022 = vpop.f32.mrf.mxu0
    %v1023 = vadd.f32 0.0, %v1022
    %v1024 = vpop.f32.mrf.mxu0
    %v1025 = vadd.f32 0.0, %v1024
    %1026 = vmatprep.mubr.bf16.mxu0 0
    %1027 = vmatmul.mubr.bf16.gmra.mxu0 %v347
    %v1028 = vpop.f32.mrf.mxu0
    %v1029 = vadd.f32 0.0, %v1028
    %v1030 = vpop.f32.mrf.mxu0
    %v1031 = vadd.f32 0.0, %v1030
    %v1032 = vpop.f32.mrf.mxu0
    %v1033 = vadd.f32 0.0, %v1032
    %v1034 = vpop.f32.mrf.mxu0
    %v1035 = vadd.f32 0.0, %v1034
    %1036 = vmatprep.mubr.bf16.mxu0 0
    %1037 = vmatmul.mubr.bf16.gmra.mxu0 %v350
    %v1038 = vpop.f32.mrf.mxu0
    %v1039 = vadd.f32 0.0, %v1038
    %v1040 = vpop.f32.mrf.mxu0
    %v1041 = vadd.f32 0.0, %v1040
    %v1042 = vpop.f32.mrf.mxu0
    %v1043 = vadd.f32 0.0, %v1042
    %v1044 = vpop.f32.mrf.mxu0
    %v1045 = vadd.f32 0.0, %v1044
    %1046 = vmatprep.mubr.bf16.mxu0 0
    %1047 = vmatmul.mubr.bf16.gmra.mxu0 %v353
    %v1048 = vpop.f32.mrf.mxu0
    %v1049 = vadd.f32 0.0, %v1048
    %v1050 = vpop.f32.mrf.mxu0
    %v1051 = vadd.f32 0.0, %v1050
    %v1052 = vpop.f32.mrf.mxu0
    %v1053 = vadd.f32 0.0, %v1052
    %v1054 = vpop.f32.mrf.mxu0
    %v1055 = vadd.f32 0.0, %v1054
    %1056 = vmatprep.mubr.bf16.mxu0 0
    %1057 = vmatmul.mubr.bf16.gmra.mxu0 %v356
    %v1058 = vpop.f32.mrf.mxu0
    %v1059 = vadd.f32 0.0, %v1058
    %v1060 = vpop.f32.mrf.mxu0
    %v1061 = vadd.f32 0.0, %v1060
    %v1062 = vpop.f32.mrf.mxu0
    %v1063 = vadd.f32 0.0, %v1062
    %v1064 = vpop.f32.mrf.mxu0
    %v1065 = vadd.f32 0.0, %v1064
    %1066 = vmatprep.mubr.bf16.mxu0 0
    %1067 = vmatmul.mubr.bf16.gmra.mxu0 %v359
    %v1068 = vpop.f32.mrf.mxu0
    %v1069 = vadd.f32 0.0, %v1068
    %v1070 = vpop.f32.mrf.mxu0
    %v1071 = vadd.f32 0.0, %v1070
    %v1072 = vpop.f32.mrf.mxu0
    %v1073 = vadd.f32 0.0, %v1072
    %v1074 = vpop.f32.mrf.mxu0
    %v1075 = vadd.f32 0.0, %v1074
    %1076 = vmatprep.mubr.bf16.mxu0 0
    %1077 = vmatmul.mubr.bf16.gmra.mxu0 %v362
    %v1078 = vpop.f32.mrf.mxu0
    %v1079 = vadd.f32 0.0, %v1078
    %v1080 = vpop.f32.mrf.mxu0
    %v1081 = vadd.f32 0.0, %v1080
    %v1082 = vpop.f32.mrf.mxu0
    %v1083 = vadd.f32 0.0, %v1082
    %v1084 = vpop.f32.mrf.mxu0
    %v1085 = vadd.f32 0.0, %v1084
    %1086 = vmatprep.mubr.bf16.mxu0 0
    %1087 = vmatmul.mubr.bf16.gmra.mxu0 %v365
    %v1088 = vpop.f32.mrf.mxu0
    %v1089 = vadd.f32 0.0, %v1088
    %v1090 = vpop.f32.mrf.mxu0
    %v1091 = vadd.f32 0.0, %v1090
    %v1092 = vpop.f32.mrf.mxu0
    %v1093 = vadd.f32 0.0, %v1092
    %v1094 = vpop.f32.mrf.mxu0
    %v1095 = vadd.f32 0.0, %v1094
    %1096 = vmatprep.mubr.bf16.mxu0 0
    %1097 = vmatmul.mubr.bf16.gmra.mxu0 %v368
    %v1098 = vpop.f32.mrf.mxu0
    %v1099 = vadd.f32 0.0, %v1098
    %v1100 = vpop.f32.mrf.mxu0
    %v1101 = vadd.f32 0.0, %v1100
    %v1102 = vpop.f32.mrf.mxu0
    %v1103 = vadd.f32 0.0, %v1102
    %v1104 = vpop.f32.mrf.mxu0
    %v1105 = vadd.f32 0.0, %v1104
    %1106 = vmatprep.mubr.bf16.mxu0 0
    %1107 = vmatmul.mubr.bf16.gmra.mxu0 %v371
    %v1108 = vpop.f32.mrf.mxu0
    %v1109 = vadd.f32 0.0, %v1108
    %v1110 = vpop.f32.mrf.mxu0
    %v1111 = vadd.f32 0.0, %v1110
    %v1112 = vpop.f32.mrf.mxu0
    %v1113 = vadd.f32 0.0, %v1112
    %v1114 = vpop.f32.mrf.mxu0
    %v1115 = vadd.f32 0.0, %v1114
    %1116 = vmatprep.mubr.bf16.mxu0 0
    %1117 = vmatmul.mubr.bf16.gmra.mxu0 %v374
    %v1118 = vpop.f32.mrf.mxu0
    %v1119 = vadd.f32 0.0, %v1118
    %v1120 = vpop.f32.mrf.mxu0
    %v1121 = vadd.f32 0.0, %v1120
    %v1122 = vpop.f32.mrf.mxu0
    %v1123 = vadd.f32 0.0, %v1122
    %v1124 = vpop.f32.mrf.mxu0
    %v1125 = vadd.f32 0.0, %v1124
    %1126 = vmatprep.mubr.bf16.mxu0 0
    %1127 = vmatmul.mubr.bf16.gmra.mxu0 %v377
    %v1128 = vpop.f32.mrf.mxu0
    %v1129 = vadd.f32 0.0, %v1128
    %v1130 = vpop.f32.mrf.mxu0
    %v1131 = vadd.f32 0.0, %v1130
    %v1132 = vpop.f32.mrf.mxu0
    %v1133 = vadd.f32 0.0, %v1132
    %v1134 = vpop.f32.mrf.mxu0
    %v1135 = vadd.f32 0.0, %v1134
    %1136 = vmatprep.mubr.bf16.mxu0 0
    %1137 = vmatmul.mubr.bf16.gmra.mxu0 %v380
    %v1138 = vpop.f32.mrf.mxu0
    %v1139 = vadd.f32 0.0, %v1138
    %v1140 = vpop.f32.mrf.mxu0
    %v1141 = vadd.f32 0.0, %v1140
    %v1142 = vpop.f32.mrf.mxu0
    %v1143 = vadd.f32 0.0, %v1142
    %v1144 = vpop.f32.mrf.mxu0
    %v1145 = vadd.f32 0.0, %v1144
    %1146 = vmatprep.mubr.bf16.mxu0 0
    %1147 = vmatmul.mubr.bf16.gmra.mxu0 %v383
    %v1148 = vpop.f32.mrf.mxu0
    %v1149 = vadd.f32 0.0, %v1148
    %v1150 = vpop.f32.mrf.mxu0
    %v1151 = vadd.f32 0.0, %v1150
    %v1152 = vpop.f32.mrf.mxu0
    %v1153 = vadd.f32 0.0, %v1152
    %v1154 = vpop.f32.mrf.mxu0
    %v1155 = vadd.f32 0.0, %v1154
    %1156 = vdwg.mxu0
    %1157 = vmatprep.subr.bf16.mxu0 0
    %1158 = vmatpush1.bf16.msra.mxu0 0
    %1159 = vmatprep.subr.bf16.mxu0 0
    %1160 = vmatpush1.bf16.msra.mxu0 0
    %1161 = vmatprep.subr.bf16.mxu0 0
    %1162 = vmatpush1.bf16.msra.mxu0 0
    %1163 = vmatprep.subr.bf16.mxu0 0
    %1164 = vmatpush1.bf16.msra.mxu0 0
    %1165 = vmatprep.subr.bf16.mxu0 0
    %1166 = vmatpush1.bf16.msra.mxu0 0
    %1167 = vmatprep.subr.bf16.mxu0 0
    %1168 = vmatpush1.bf16.msra.mxu0 0
    %1169 = vmatprep.subr.bf16.mxu0 %v303
    %1170 = vmatpush1.bf16.msra.mxu0 %v302
    %1171 = vmatprep.subr.bf16.mxu0 %v289
    %1172 = vmatpush1.bf16.msra.mxu0 %v288
    %1173 = vmatprep.subr.bf16.mxu0 0
    %1174 = vmatpush2.bf16.msra.mxu0 0
    %1175 = vmatprep.subr.bf16.mxu0 0
    %1176 = vmatpush2.bf16.msra.mxu0 0
    %1177 = vmatprep.subr.bf16.mxu0 0
    %1178 = vmatpush2.bf16.msra.mxu0 0
    %1179 = vmatprep.subr.bf16.mxu0 0
    %1180 = vmatpush2.bf16.msra.mxu0 0
    %1181 = vmatprep.subr.bf16.mxu0 0
    %1182 = vmatpush2.bf16.msra.mxu0 0
    %1183 = vmatprep.subr.bf16.mxu0 0
    %1184 = vmatpush2.bf16.msra.mxu0 0
    %1185 = vmatprep.subr.bf16.mxu0 0
    %1186 = vmatpush2.bf16.msra.mxu0 0
    %1187 = vmatprep.subr.bf16.mxu0 0
    %1188 = vmatpush2.bf16.msra.mxu0 0
    %1189 = vmatprep.mubr.bf16.mxu0 0
    %1190 = vmatmul.mubr.bf16.gmra.mxu0 %v338
    %v1191 = vpop.f32.mrf.mxu0
    %v1192 = vadd.f32 0.0, %v1191
    %v1193 = vpop.f32.mrf.mxu0
    %v1194 = vadd.f32 0.0, %v1193
    %v1195 = vpop.f32.mrf.mxu0
    %v1196 = vadd.f32 0.0, %v1195
    %v1197 = vpop.f32.mrf.mxu0
    %v1198 = vadd.f32 0.0, %v1197
    %1199 = vmatprep.mubr.bf16.mxu0 0
    %1200 = vmatmul.mubr.bf16.gmra.mxu0 %v341
    %v1201 = vpop.f32.mrf.mxu0
    %v1202 = vadd.f32 0.0, %v1201
    %v1203 = vpop.f32.mrf.mxu0
    %v1204 = vadd.f32 0.0, %v1203
    %v1205 = vpop.f32.mrf.mxu0
    %v1206 = vadd.f32 0.0, %v1205
    %v1207 = vpop.f32.mrf.mxu0
    %v1208 = vadd.f32 0.0, %v1207
    %1209 = vmatprep.mubr.bf16.mxu0 0
    %1210 = vmatmul.mubr.bf16.gmra.mxu0 %v344
    %v1211 = vpop.f32.mrf.mxu0
    %v1212 = vadd.f32 0.0, %v1211
    %v1213 = vpop.f32.mrf.mxu0
    %v1214 = vadd.f32 0.0, %v1213
    %v1215 = vpop.f32.mrf.mxu0
    %v1216 = vadd.f32 0.0, %v1215
    %v1217 = vpop.f32.mrf.mxu0
    %v1218 = vadd.f32 0.0, %v1217
    %1219 = vmatprep.mubr.bf16.mxu0 0
    %1220 = vmatmul.mubr.bf16.gmra.mxu0 %v347
    %v1221 = vpop.f32.mrf.mxu0
    %v1222 = vadd.f32 0.0, %v1221
    %v1223 = vpop.f32.mrf.mxu0
    %v1224 = vadd.f32 0.0, %v1223
    %v1225 = vpop.f32.mrf.mxu0
    %v1226 = vadd.f32 0.0, %v1225
    %v1227 = vpop.f32.mrf.mxu0
    %v1228 = vadd.f32 0.0, %v1227
    %1229 = vmatprep.mubr.bf16.mxu0 0
    %1230 = vmatmul.mubr.bf16.gmra.mxu0 %v350
    %v1231 = vpop.f32.mrf.mxu0
    %v1232 = vadd.f32 0.0, %v1231
    %v1233 = vpop.f32.mrf.mxu0
    %v1234 = vadd.f32 0.0, %v1233
    %v1235 = vpop.f32.mrf.mxu0
    %v1236 = vadd.f32 0.0, %v1235
    %v1237 = vpop.f32.mrf.mxu0
    %v1238 = vadd.f32 0.0, %v1237
    %1239 = vmatprep.mubr.bf16.mxu0 0
    %1240 = vmatmul.mubr.bf16.gmra.mxu0 %v353
    %v1241 = vpop.f32.mrf.mxu0
    %v1242 = vadd.f32 0.0, %v1241
    %v1243 = vpop.f32.mrf.mxu0
    %v1244 = vadd.f32 0.0, %v1243
    %v1245 = vpop.f32.mrf.mxu0
    %v1246 = vadd.f32 0.0, %v1245
    %v1247 = vpop.f32.mrf.mxu0
    %v1248 = vadd.f32 0.0, %v1247
    %1249 = vmatprep.mubr.bf16.mxu0 0
    %1250 = vmatmul.mubr.bf16.gmra.mxu0 %v356
    %v1251 = vpop.f32.mrf.mxu0
    %v1252 = vadd.f32 0.0, %v1251
    %v1253 = vpop.f32.mrf.mxu0
    %v1254 = vadd.f32 0.0, %v1253
    %v1255 = vpop.f32.mrf.mxu0
    %v1256 = vadd.f32 0.0, %v1255
    %v1257 = vpop.f32.mrf.mxu0
    %v1258 = vadd.f32 0.0, %v1257
    %1259 = vmatprep.mubr.bf16.mxu0 0
    %1260 = vmatmul.mubr.bf16.gmra.mxu0 %v359
    %v1261 = vpop.f32.mrf.mxu0
    %v1262 = vadd.f32 0.0, %v1261
    %v1263 = vpop.f32.mrf.mxu0
    %v1264 = vadd.f32 0.0, %v1263
    %v1265 = vpop.f32.mrf.mxu0
    %v1266 = vadd.f32 0.0, %v1265
    %v1267 = vpop.f32.mrf.mxu0
    %v1268 = vadd.f32 0.0, %v1267
    %1269 = vmatprep.mubr.bf16.mxu0 0
    %1270 = vmatmul.mubr.bf16.gmra.mxu0 %v362
    %v1271 = vpop.f32.mrf.mxu0
    %v1272 = vadd.f32 0.0, %v1271
    %v1273 = vpop.f32.mrf.mxu0
    %v1274 = vadd.f32 0.0, %v1273
    %v1275 = vpop.f32.mrf.mxu0
    %v1276 = vadd.f32 0.0, %v1275
    %v1277 = vpop.f32.mrf.mxu0
    %v1278 = vadd.f32 0.0, %v1277
    %1279 = vmatprep.mubr.bf16.mxu0 0
    %1280 = vmatmul.mubr.bf16.gmra.mxu0 %v365
    %v1281 = vpop.f32.mrf.mxu0
    %v1282 = vadd.f32 0.0, %v1281
    %v1283 = vpop.f32.mrf.mxu0
    %v1284 = vadd.f32 0.0, %v1283
    %v1285 = vpop.f32.mrf.mxu0
    %v1286 = vadd.f32 0.0, %v1285
    %v1287 = vpop.f32.mrf.mxu0
    %v1288 = vadd.f32 0.0, %v1287
    %1289 = vmatprep.mubr.bf16.mxu0 0
    %1290 = vmatmul.mubr.bf16.gmra.mxu0 %v368
    %v1291 = vpop.f32.mrf.mxu0
    %v1292 = vadd.f32 0.0, %v1291
    %v1293 = vpop.f32.mrf.mxu0
    %v1294 = vadd.f32 0.0, %v1293
    %v1295 = vpop.f32.mrf.mxu0
    %v1296 = vadd.f32 0.0, %v1295
    %v1297 = vpop.f32.mrf.mxu0
    %v1298 = vadd.f32 0.0, %v1297
    %1299 = vmatprep.mubr.bf16.mxu0 0
    %1300 = vmatmul.mubr.bf16.gmra.mxu0 %v371
    %v1301 = vpop.f32.mrf.mxu0
    %v1302 = vadd.f32 0.0, %v1301
    %v1303 = vpop.f32.mrf.mxu0
    %v1304 = vadd.f32 0.0, %v1303
    %v1305 = vpop.f32.mrf.mxu0
    %v1306 = vadd.f32 0.0, %v1305
    %v1307 = vpop.f32.mrf.mxu0
    %v1308 = vadd.f32 0.0, %v1307
    %1309 = vmatprep.mubr.bf16.mxu0 0
    %1310 = vmatmul.mubr.bf16.gmra.mxu0 %v374
    %v1311 = vpop.f32.mrf.mxu0
    %v1312 = vadd.f32 0.0, %v1311
    %v1313 = vpop.f32.mrf.mxu0
    %v1314 = vadd.f32 0.0, %v1313
    %v1315 = vpop.f32.mrf.mxu0
    %v1316 = vadd.f32 0.0, %v1315
    %v1317 = vpop.f32.mrf.mxu0
    %v1318 = vadd.f32 0.0, %v1317
    %1319 = vmatprep.mubr.bf16.mxu0 0
    %1320 = vmatmul.mubr.bf16.gmra.mxu0 %v377
    %v1321 = vpop.f32.mrf.mxu0
    %v1322 = vadd.f32 0.0, %v1321
    %v1323 = vpop.f32.mrf.mxu0
    %v1324 = vadd.f32 0.0, %v1323
    %v1325 = vpop.f32.mrf.mxu0
    %v1326 = vadd.f32 0.0, %v1325
    %v1327 = vpop.f32.mrf.mxu0
    %v1328 = vadd.f32 0.0, %v1327
    %1329 = vmatprep.mubr.bf16.mxu0 0
    %1330 = vmatmul.mubr.bf16.gmra.mxu0 %v380
    %v1331 = vpop.f32.mrf.mxu0
    %v1332 = vadd.f32 0.0, %v1331
    %v1333 = vpop.f32.mrf.mxu0
    %v1334 = vadd.f32 0.0, %v1333
    %v1335 = vpop.f32.mrf.mxu0
    %v1336 = vadd.f32 0.0, %v1335
    %v1337 = vpop.f32.mrf.mxu0
    %v1338 = vadd.f32 0.0, %v1337
    %1339 = vmatprep.mubr.bf16.mxu0 0
    %1340 = vmatmul.mubr.bf16.gmra.mxu0 %v383
    %v1341 = vpop.f32.mrf.mxu0
    %v1342 = vadd.f32 0.0, %v1341
    %v1343 = vpop.f32.mrf.mxu0
    %v1344 = vadd.f32 0.0, %v1343
    %v1345 = vpop.f32.mrf.mxu0
    %v1346 = vadd.f32 0.0, %v1345
    %v1347 = vpop.f32.mrf.mxu0
    %v1348 = vadd.f32 0.0, %v1347
    %1349 = vdwg.mxu0
    %1350 = vmatprep.subr.bf16.mxu0 0
    %1351 = vmatpush1.bf16.msra.mxu0 0
    %1352 = vmatprep.subr.bf16.mxu0 0
    %1353 = vmatpush1.bf16.msra.mxu0 0
    %1354 = vmatprep.subr.bf16.mxu0 0
    %1355 = vmatpush1.bf16.msra.mxu0 0
    %1356 = vmatprep.subr.bf16.mxu0 0
    %1357 = vmatpush1.bf16.msra.mxu0 0
    %1358 = vmatprep.subr.bf16.mxu0 0
    %1359 = vmatpush1.bf16.msra.mxu0 0
    %1360 = vmatprep.subr.bf16.mxu0 0
    %1361 = vmatpush1.bf16.msra.mxu0 0
    %1362 = vmatprep.subr.bf16.mxu0 %v305
    %1363 = vmatpush1.bf16.msra.mxu0 %v304
    %1364 = vmatprep.subr.bf16.mxu0 %v291
    %1365 = vmatpush1.bf16.msra.mxu0 %v290
    %1366 = vmatprep.subr.bf16.mxu0 0
    %1367 = vmatpush2.bf16.msra.mxu0 0
    %1368 = vmatprep.subr.bf16.mxu0 0
    %1369 = vmatpush2.bf16.msra.mxu0 0
    %1370 = vmatprep.subr.bf16.mxu0 0
    %1371 = vmatpush2.bf16.msra.mxu0 0
    %1372 = vmatprep.subr.bf16.mxu0 0
    %1373 = vmatpush2.bf16.msra.mxu0 0
    %1374 = vmatprep.subr.bf16.mxu0 0
    %1375 = vmatpush2.bf16.msra.mxu0 0
    %1376 = vmatprep.subr.bf16.mxu0 0
    %1377 = vmatpush2.bf16.msra.mxu0 0
    %1378 = vmatprep.subr.bf16.mxu0 0
    %1379 = vmatpush2.bf16.msra.mxu0 0
    %1380 = vmatprep.subr.bf16.mxu0 0
    %1381 = vmatpush2.bf16.msra.mxu0 0
    %1382 = vmatprep.mubr.bf16.mxu0 0
    %1383 = vmatmul.mubr.bf16.gmra.mxu0 %v338
    %v1384 = vpop.f32.mrf.mxu0
    %v1385 = vadd.f32 0.0, %v1384
    %v1386 = vpop.f32.mrf.mxu0
    %v1387 = vadd.f32 0.0, %v1386
    %v1388 = vpop.f32.mrf.mxu0
    %v1389 = vadd.f32 0.0, %v1388
    %v1390 = vpop.f32.mrf.mxu0
    %v1391 = vadd.f32 0.0, %v1390
    %1392 = vmatprep.mubr.bf16.mxu0 0
    %1393 = vmatmul.mubr.bf16.gmra.mxu0 %v341
    %v1394 = vpop.f32.mrf.mxu0
    %v1395 = vadd.f32 0.0, %v1394
    %v1396 = vpop.f32.mrf.mxu0
    %v1397 = vadd.f32 0.0, %v1396
    %v1398 = vpop.f32.mrf.mxu0
    %v1399 = vadd.f32 0.0, %v1398
    %v1400 = vpop.f32.mrf.mxu0
    %v1401 = vadd.f32 0.0, %v1400
    %1402 = vmatprep.mubr.bf16.mxu0 0
    %1403 = vmatmul.mubr.bf16.gmra.mxu0 %v344
    %v1404 = vpop.f32.mrf.mxu0
    %v1405 = vadd.f32 0.0, %v1404
    %v1406 = vpop.f32.mrf.mxu0
    %v1407 = vadd.f32 0.0, %v1406
    %v1408 = vpop.f32.mrf.mxu0
    %v1409 = vadd.f32 0.0, %v1408
    %v1410 = vpop.f32.mrf.mxu0
    %v1411 = vadd.f32 0.0, %v1410
    %1412 = vmatprep.mubr.bf16.mxu0 0
    %1413 = vmatmul.mubr.bf16.gmra.mxu0 %v347
    %v1414 = vpop.f32.mrf.mxu0
    %v1415 = vadd.f32 0.0, %v1414
    %v1416 = vpop.f32.mrf.mxu0
    %v1417 = vadd.f32 0.0, %v1416
    %v1418 = vpop.f32.mrf.mxu0
    %v1419 = vadd.f32 0.0, %v1418
    %v1420 = vpop.f32.mrf.mxu0
    %v1421 = vadd.f32 0.0, %v1420
    %1422 = vmatprep.mubr.bf16.mxu0 0
    %1423 = vmatmul.mubr.bf16.gmra.mxu0 %v350
    %v1424 = vpop.f32.mrf.mxu0
    %v1425 = vadd.f32 0.0, %v1424
    %v1426 = vpop.f32.mrf.mxu0
    %v1427 = vadd.f32 0.0, %v1426
    %v1428 = vpop.f32.mrf.mxu0
    %v1429 = vadd.f32 0.0, %v1428
    %v1430 = vpop.f32.mrf.mxu0
    %v1431 = vadd.f32 0.0, %v1430
    %1432 = vmatprep.mubr.bf16.mxu0 0
    %1433 = vmatmul.mubr.bf16.gmra.mxu0 %v353
    %v1434 = vpop.f32.mrf.mxu0
    %v1435 = vadd.f32 0.0, %v1434
    %v1436 = vpop.f32.mrf.mxu0
    %v1437 = vadd.f32 0.0, %v1436
    %v1438 = vpop.f32.mrf.mxu0
    %v1439 = vadd.f32 0.0, %v1438
    %v1440 = vpop.f32.mrf.mxu0
    %v1441 = vadd.f32 0.0, %v1440
    %1442 = vmatprep.mubr.bf16.mxu0 0
    %1443 = vmatmul.mubr.bf16.gmra.mxu0 %v356
    %v1444 = vpop.f32.mrf.mxu0
    %v1445 = vadd.f32 0.0, %v1444
    %v1446 = vpop.f32.mrf.mxu0
    %v1447 = vadd.f32 0.0, %v1446
    %v1448 = vpop.f32.mrf.mxu0
    %v1449 = vadd.f32 0.0, %v1448
    %v1450 = vpop.f32.mrf.mxu0
    %v1451 = vadd.f32 0.0, %v1450
    %1452 = vmatprep.mubr.bf16.mxu0 0
    %1453 = vmatmul.mubr.bf16.gmra.mxu0 %v359
    %v1454 = vpop.f32.mrf.mxu0
    %v1455 = vadd.f32 0.0, %v1454
    %v1456 = vpop.f32.mrf.mxu0
    %v1457 = vadd.f32 0.0, %v1456
    %v1458 = vpop.f32.mrf.mxu0
    %v1459 = vadd.f32 0.0, %v1458
    %v1460 = vpop.f32.mrf.mxu0
    %v1461 = vadd.f32 0.0, %v1460
    %1462 = vmatprep.mubr.bf16.mxu0 0
    %1463 = vmatmul.mubr.bf16.gmra.mxu0 %v362
    %v1464 = vpop.f32.mrf.mxu0
    %v1465 = vadd.f32 0.0, %v1464
    %v1466 = vpop.f32.mrf.mxu0
    %v1467 = vadd.f32 0.0, %v1466
    %v1468 = vpop.f32.mrf.mxu0
    %v1469 = vadd.f32 0.0, %v1468
    %v1470 = vpop.f32.mrf.mxu0
    %v1471 = vadd.f32 0.0, %v1470
    %1472 = vmatprep.mubr.bf16.mxu0 0
    %1473 = vmatmul.mubr.bf16.gmra.mxu0 %v365
    %v1474 = vpop.f32.mrf.mxu0
    %v1475 = vadd.f32 0.0, %v1474
    %v1476 = vpop.f32.mrf.mxu0
    %v1477 = vadd.f32 0.0, %v1476
    %v1478 = vpop.f32.mrf.mxu0
    %v1479 = vadd.f32 0.0, %v1478
    %v1480 = vpop.f32.mrf.mxu0
    %v1481 = vadd.f32 0.0, %v1480
    %1482 = vmatprep.mubr.bf16.mxu0 0
    %1483 = vmatmul.mubr.bf16.gmra.mxu0 %v368
    %v1484 = vpop.f32.mrf.mxu0
    %v1485 = vadd.f32 0.0, %v1484
    %v1486 = vpop.f32.mrf.mxu0
    %v1487 = vadd.f32 0.0, %v1486
    %v1488 = vpop.f32.mrf.mxu0
    %v1489 = vadd.f32 0.0, %v1488
    %v1490 = vpop.f32.mrf.mxu0
    %v1491 = vadd.f32 0.0, %v1490
    %1492 = vmatprep.mubr.bf16.mxu0 0
    %1493 = vmatmul.mubr.bf16.gmra.mxu0 %v371
    %v1494 = vpop.f32.mrf.mxu0
    %v1495 = vadd.f32 0.0, %v1494
    %v1496 = vpop.f32.mrf.mxu0
    %v1497 = vadd.f32 0.0, %v1496
    %v1498 = vpop.f32.mrf.mxu0
    %v1499 = vadd.f32 0.0, %v1498
    %v1500 = vpop.f32.mrf.mxu0
    %v1501 = vadd.f32 0.0, %v1500
    %1502 = vmatprep.mubr.bf16.mxu0 0
    %1503 = vmatmul.mubr.bf16.gmra.mxu0 %v374
    %v1504 = vpop.f32.mrf.mxu0
    %v1505 = vadd.f32 0.0, %v1504
    %v1506 = vpop.f32.mrf.mxu0
    %v1507 = vadd.f32 0.0, %v1506
    %v1508 = vpop.f32.mrf.mxu0
    %v1509 = vadd.f32 0.0, %v1508
    %v1510 = vpop.f32.mrf.mxu0
    %v1511 = vadd.f32 0.0, %v1510
    %1512 = vmatprep.mubr.bf16.mxu0 0
    %1513 = vmatmul.mubr.bf16.gmra.mxu0 %v377
    %v1514 = vpop.f32.mrf.mxu0
    %v1515 = vadd.f32 0.0, %v1514
    %v1516 = vpop.f32.mrf.mxu0
    %v1517 = vadd.f32 0.0, %v1516
    %v1518 = vpop.f32.mrf.mxu0
    %v1519 = vadd.f32 0.0, %v1518
    %v1520 = vpop.f32.mrf.mxu0
    %v1521 = vadd.f32 0.0, %v1520
    %1522 = vmatprep.mubr.bf16.mxu0 0
    %1523 = vmatmul.mubr.bf16.gmra.mxu0 %v380
    %v1524 = vpop.f32.mrf.mxu0
    %v1525 = vadd.f32 0.0, %v1524
    %v1526 = vpop.f32.mrf.mxu0
    %v1527 = vadd.f32 0.0, %v1526
    %v1528 = vpop.f32.mrf.mxu0
    %v1529 = vadd.f32 0.0, %v1528
    %v1530 = vpop.f32.mrf.mxu0
    %v1531 = vadd.f32 0.0, %v1530
    %1532 = vmatprep.mubr.bf16.mxu0 0
    %1533 = vmatmul.mubr.bf16.gmra.mxu0 %v383
    %v1534 = vpop.f32.mrf.mxu0
    %v1535 = vadd.f32 0.0, %v1534
    %v1536 = vpop.f32.mrf.mxu0
    %v1537 = vadd.f32 0.0, %v1536
    %v1538 = vpop.f32.mrf.mxu0
    %v1539 = vadd.f32 0.0, %v1538
    %v1540 = vpop.f32.mrf.mxu0
    %v1541 = vadd.f32 0.0, %v1540
    %1542 = vdwg.mxu0
    %1543 = vmatprep.subr.bf16.mxu0 0
    %1544 = vmatpush1.bf16.msra.mxu0 0
    %1545 = vmatprep.subr.bf16.mxu0 0
    %1546 = vmatpush1.bf16.msra.mxu0 0
    %1547 = vmatprep.subr.bf16.mxu0 0
    %1548 = vmatpush1.bf16.msra.mxu0 0
    %1549 = vmatprep.subr.bf16.mxu0 0
    %1550 = vmatpush1.bf16.msra.mxu0 0
    %1551 = vmatprep.subr.bf16.mxu0 0
    %1552 = vmatpush1.bf16.msra.mxu0 0
    %1553 = vmatprep.subr.bf16.mxu0 0
    %1554 = vmatpush1.bf16.msra.mxu0 0
    %1555 = vmatprep.subr.bf16.mxu0 %v307
    %1556 = vmatpush1.bf16.msra.mxu0 %v306
    %1557 = vmatprep.subr.bf16.mxu0 %v293
    %1558 = vmatpush1.bf16.msra.mxu0 %v292
    %1559 = vmatprep.subr.bf16.mxu0 0
    %1560 = vmatpush2.bf16.msra.mxu0 0
    %1561 = vmatprep.subr.bf16.mxu0 0
    %1562 = vmatpush2.bf16.msra.mxu0 0
    %1563 = vmatprep.subr.bf16.mxu0 0
    %1564 = vmatpush2.bf16.msra.mxu0 0
    %1565 = vmatprep.subr.bf16.mxu0 0
    %1566 = vmatpush2.bf16.msra.mxu0 0
    %1567 = vmatprep.subr.bf16.mxu0 0
    %1568 = vmatpush2.bf16.msra.mxu0 0
    %1569 = vmatprep.subr.bf16.mxu0 0
    %1570 = vmatpush2.bf16.msra.mxu0 0
    %1571 = vmatprep.subr.bf16.mxu0 0
    %1572 = vmatpush2.bf16.msra.mxu0 0
    %1573 = vmatprep.subr.bf16.mxu0 0
    %1574 = vmatpush2.bf16.msra.mxu0 0
    %1575 = vmatprep.mubr.bf16.mxu0 0
    %1576 = vmatmul.mubr.bf16.gmra.mxu0 %v338
    %v1577 = vpop.f32.mrf.mxu0
    %v1578 = vadd.f32 0.0, %v1577
    %v1579 = vpop.f32.mrf.mxu0
    %v1580 = vadd.f32 0.0, %v1579
    %v1581 = vpop.f32.mrf.mxu0
    %v1582 = vadd.f32 0.0, %v1581
    %v1583 = vpop.f32.mrf.mxu0
    %v1584 = vadd.f32 0.0, %v1583
    %1585 = vmatprep.mubr.bf16.mxu0 0
    %1586 = vmatmul.mubr.bf16.gmra.mxu0 %v341
    %v1587 = vpop.f32.mrf.mxu0
    %v1588 = vadd.f32 0.0, %v1587
    %v1589 = vpop.f32.mrf.mxu0
    %v1590 = vadd.f32 0.0, %v1589
    %v1591 = vpop.f32.mrf.mxu0
    %v1592 = vadd.f32 0.0, %v1591
    %v1593 = vpop.f32.mrf.mxu0
    %v1594 = vadd.f32 0.0, %v1593
    %1595 = vmatprep.mubr.bf16.mxu0 0
    %1596 = vmatmul.mubr.bf16.gmra.mxu0 %v344
    %v1597 = vpop.f32.mrf.mxu0
    %v1598 = vadd.f32 0.0, %v1597
    %v1599 = vpop.f32.mrf.mxu0
    %v1600 = vadd.f32 0.0, %v1599
    %v1601 = vpop.f32.mrf.mxu0
    %v1602 = vadd.f32 0.0, %v1601
    %v1603 = vpop.f32.mrf.mxu0
    %v1604 = vadd.f32 0.0, %v1603
    %1605 = vmatprep.mubr.bf16.mxu0 0
    %1606 = vmatmul.mubr.bf16.gmra.mxu0 %v347
    %v1607 = vpop.f32.mrf.mxu0
    %v1608 = vadd.f32 0.0, %v1607
    %v1609 = vpop.f32.mrf.mxu0
    %v1610 = vadd.f32 0.0, %v1609
    %v1611 = vpop.f32.mrf.mxu0
    %v1612 = vadd.f32 0.0, %v1611
    %v1613 = vpop.f32.mrf.mxu0
    %v1614 = vadd.f32 0.0, %v1613
    %1615 = vmatprep.mubr.bf16.mxu0 0
    %1616 = vmatmul.mubr.bf16.gmra.mxu0 %v350
    %v1617 = vpop.f32.mrf.mxu0
    %v1618 = vadd.f32 0.0, %v1617
    %v1619 = vpop.f32.mrf.mxu0
    %v1620 = vadd.f32 0.0, %v1619
    %v1621 = vpop.f32.mrf.mxu0
    %v1622 = vadd.f32 0.0, %v1621
    %v1623 = vpop.f32.mrf.mxu0
    %v1624 = vadd.f32 0.0, %v1623
    %1625 = vmatprep.mubr.bf16.mxu0 0
    %1626 = vmatmul.mubr.bf16.gmra.mxu0 %v353
    %v1627 = vpop.f32.mrf.mxu0
    %v1628 = vadd.f32 0.0, %v1627
    %v1629 = vpop.f32.mrf.mxu0
    %v1630 = vadd.f32 0.0, %v1629
    %v1631 = vpop.f32.mrf.mxu0
    %v1632 = vadd.f32 0.0, %v1631
    %v1633 = vpop.f32.mrf.mxu0
    %v1634 = vadd.f32 0.0, %v1633
    %1635 = vmatprep.mubr.bf16.mxu0 0
    %1636 = vmatmul.mubr.bf16.gmra.mxu0 %v356
    %v1637 = vpop.f32.mrf.mxu0
    %v1638 = vadd.f32 0.0, %v1637
    %v1639 = vpop.f32.mrf.mxu0
    %v1640 = vadd.f32 0.0, %v1639
    %v1641 = vpop.f32.mrf.mxu0
    %v1642 = vadd.f32 0.0, %v1641
    %v1643 = vpop.f32.mrf.mxu0
    %v1644 = vadd.f32 0.0, %v1643
    %1645 = vmatprep.mubr.bf16.mxu0 0
    %1646 = vmatmul.mubr.bf16.gmra.mxu0 %v359
    %v1647 = vpop.f32.mrf.mxu0
    %v1648 = vadd.f32 0.0, %v1647
    %v1649 = vpop.f32.mrf.mxu0
    %v1650 = vadd.f32 0.0, %v1649
    %v1651 = vpop.f32.mrf.mxu0
    %v1652 = vadd.f32 0.0, %v1651
    %v1653 = vpop.f32.mrf.mxu0
    %v1654 = vadd.f32 0.0, %v1653
    %1655 = vmatprep.mubr.bf16.mxu0 0
    %1656 = vmatmul.mubr.bf16.gmra.mxu0 %v362
    %v1657 = vpop.f32.mrf.mxu0
    %v1658 = vadd.f32 0.0, %v1657
    %v1659 = vpop.f32.mrf.mxu0
    %v1660 = vadd.f32 0.0, %v1659
    %v1661 = vpop.f32.mrf.mxu0
    %v1662 = vadd.f32 0.0, %v1661
    %v1663 = vpop.f32.mrf.mxu0
    %v1664 = vadd.f32 0.0, %v1663
    %1665 = vmatprep.mubr.bf16.mxu0 0
    %1666 = vmatmul.mubr.bf16.gmra.mxu0 %v365
    %v1667 = vpop.f32.mrf.mxu0
    %v1668 = vadd.f32 0.0, %v1667
    %v1669 = vpop.f32.mrf.mxu0
    %v1670 = vadd.f32 0.0, %v1669
    %v1671 = vpop.f32.mrf.mxu0
    %v1672 = vadd.f32 0.0, %v1671
    %v1673 = vpop.f32.mrf.mxu0
    %v1674 = vadd.f32 0.0, %v1673
    %1675 = vmatprep.mubr.bf16.mxu0 0
    %1676 = vmatmul.mubr.bf16.gmra.mxu0 %v368
    %v1677 = vpop.f32.mrf.mxu0
    %v1678 = vadd.f32 0.0, %v1677
    %v1679 = vpop.f32.mrf.mxu0
    %v1680 = vadd.f32 0.0, %v1679
    %v1681 = vpop.f32.mrf.mxu0
    %v1682 = vadd.f32 0.0, %v1681
    %v1683 = vpop.f32.mrf.mxu0
    %v1684 = vadd.f32 0.0, %v1683
    %1685 = vmatprep.mubr.bf16.mxu0 0
    %1686 = vmatmul.mubr.bf16.gmra.mxu0 %v371
    %v1687 = vpop.f32.mrf.mxu0
    %v1688 = vadd.f32 0.0, %v1687
    %v1689 = vpop.f32.mrf.mxu0
    %v1690 = vadd.f32 0.0, %v1689
    %v1691 = vpop.f32.mrf.mxu0
    %v1692 = vadd.f32 0.0, %v1691
    %v1693 = vpop.f32.mrf.mxu0
    %v1694 = vadd.f32 0.0, %v1693
    %1695 = vmatprep.mubr.bf16.mxu0 0
    %1696 = vmatmul.mubr.bf16.gmra.mxu0 %v374
    %v1697 = vpop.f32.mrf.mxu0
    %v1698 = vadd.f32 0.0, %v1697
    %v1699 = vpop.f32.mrf.mxu0
    %v1700 = vadd.f32 0.0, %v1699
    %v1701 = vpop.f32.mrf.mxu0
    %v1702 = vadd.f32 0.0, %v1701
    %v1703 = vpop.f32.mrf.mxu0
    %v1704 = vadd.f32 0.0, %v1703
    %1705 = vmatprep.mubr.bf16.mxu0 0
    %1706 = vmatmul.mubr.bf16.gmra.mxu0 %v377
    %v1707 = vpop.f32.mrf.mxu0
    %v1708 = vadd.f32 0.0, %v1707
    %v1709 = vpop.f32.mrf.mxu0
    %v1710 = vadd.f32 0.0, %v1709
    %v1711 = vpop.f32.mrf.mxu0
    %v1712 = vadd.f32 0.0, %v1711
    %v1713 = vpop.f32.mrf.mxu0
    %v1714 = vadd.f32 0.0, %v1713
    %1715 = vmatprep.mubr.bf16.mxu0 0
    %1716 = vmatmul.mubr.bf16.gmra.mxu0 %v380
    %v1717 = vpop.f32.mrf.mxu0
    %v1718 = vadd.f32 0.0, %v1717
    %v1719 = vpop.f32.mrf.mxu0
    %v1720 = vadd.f32 0.0, %v1719
    %v1721 = vpop.f32.mrf.mxu0
    %v1722 = vadd.f32 0.0, %v1721
    %v1723 = vpop.f32.mrf.mxu0
    %v1724 = vadd.f32 0.0, %v1723
    %1725 = vmatprep.mubr.bf16.mxu0 0
    %1726 = vmatmul.mubr.bf16.gmra.mxu0 %v383
    %v1727 = vpop.f32.mrf.mxu0
    %v1728 = vadd.f32 0.0, %v1727
    %v1729 = vpop.f32.mrf.mxu0
    %v1730 = vadd.f32 0.0, %v1729
    %v1731 = vpop.f32.mrf.mxu0
    %v1732 = vadd.f32 0.0, %v1731
    %v1733 = vpop.f32.mrf.mxu0
    %v1734 = vadd.f32 0.0, %v1733
    %1735 = vdwg.mxu0
    %v1736 = vpack.c.bf16 %v424, %v420
    %v1737 = vpack.c.bf16 %v426, %v422
    %v1738 = vpack.c.bf16 %v617, %v613
    %v1739 = vpack.c.bf16 %v619, %v615
    %v1740 = vpack.c.bf16 %v810, %v806
    %v1741 = vpack.c.bf16 %v812, %v808
    %v1742 = vpack.c.bf16 %v1003, %v999
    %v1743 = vpack.c.bf16 %v1005, %v1001
    %v1744 = vpack.c.bf16 %v1196, %v1192
    %v1745 = vpack.c.bf16 %v1198, %v1194
    %v1746 = vpack.c.bf16 %v1389, %v1385
    %v1747 = vpack.c.bf16 %v1391, %v1387
    %v1748 = vpack.c.bf16 %v1582, %v1578
    %v1749 = vpack.c.bf16 %v1584, %v1580
    %v1750 = vpack.c.bf16 %v434, %v430
    %v1751 = vpack.c.bf16 %v436, %v432
    %v1752 = vpack.c.bf16 %v627, %v623
    %v1753 = vpack.c.bf16 %v629, %v625
    %v1754 = vpack.c.bf16 %v820, %v816
    %v1755 = vpack.c.bf16 %v822, %v818
    %v1756 = vpack.c.bf16 %v1013, %v1009
    %v1757 = vpack.c.bf16 %v1015, %v1011
    %v1758 = vpack.c.bf16 %v1206, %v1202
    %v1759 = vpack.c.bf16 %v1208, %v1204
    %v1760 = vpack.c.bf16 %v1399, %v1395
    %v1761 = vpack.c.bf16 %v1401, %v1397
    %v1762 = vpack.c.bf16 %v1592, %v1588
    %v1763 = vpack.c.bf16 %v1594, %v1590
    %v1764 = vpack.c.bf16 %v444, %v440
    %v1765 = vpack.c.bf16 %v446, %v442
    %v1766 = vpack.c.bf16 %v637, %v633
    %v1767 = vpack.c.bf16 %v639, %v635
    %v1768 = vpack.c.bf16 %v830, %v826
    %v1769 = vpack.c.bf16 %v832, %v828
    %v1770 = vpack.c.bf16 %v1023, %v1019
    %v1771 = vpack.c.bf16 %v1025, %v1021
    %v1772 = vpack.c.bf16 %v1216, %v1212
    %v1773 = vpack.c.bf16 %v1218, %v1214
    %v1774 = vpack.c.bf16 %v1409, %v1405
    %v1775 = vpack.c.bf16 %v1411, %v1407
    %v1776 = vpack.c.bf16 %v1602, %v1598
    %v1777 = vpack.c.bf16 %v1604, %v1600
    %v1778 = vpack.c.bf16 %v454, %v450
    %v1779 = vpack.c.bf16 %v456, %v452
    %v1780 = vpack.c.bf16 %v647, %v643
    %v1781 = vpack.c.bf16 %v649, %v645
    %v1782 = vpack.c.bf16 %v840, %v836
    %v1783 = vpack.c.bf16 %v842, %v838
    %v1784 = vpack.c.bf16 %v1033, %v1029
    %v1785 = vpack.c.bf16 %v1035, %v1031
    %v1786 = vpack.c.bf16 %v1226, %v1222
    %v1787 = vpack.c.bf16 %v1228, %v1224
    %v1788 = vpack.c.bf16 %v1419, %v1415
    %v1789 = vpack.c.bf16 %v1421, %v1417
    %v1790 = vpack.c.bf16 %v1612, %v1608
    %v1791 = vpack.c.bf16 %v1614, %v1610
    %v1792 = vpack.c.bf16 %v464, %v460
    %v1793 = vpack.c.bf16 %v466, %v462
    %v1794 = vpack.c.bf16 %v657, %v653
    %v1795 = vpack.c.bf16 %v659, %v655
    %v1796 = vpack.c.bf16 %v850, %v846
    %v1797 = vpack.c.bf16 %v852, %v848
    %v1798 = vpack.c.bf16 %v1043, %v1039
    %v1799 = vpack.c.bf16 %v1045, %v1041
    %v1800 = vpack.c.bf16 %v1236, %v1232
    %v1801 = vpack.c.bf16 %v1238, %v1234
    %v1802 = vpack.c.bf16 %v1429, %v1425
    %v1803 = vpack.c.bf16 %v1431, %v1427
    %v1804 = vpack.c.bf16 %v1622, %v1618
    %v1805 = vpack.c.bf16 %v1624, %v1620
    %v1806 = vpack.c.bf16 %v474, %v470
    %v1807 = vpack.c.bf16 %v476, %v472
    %v1808 = vpack.c.bf16 %v667, %v663
    %v1809 = vpack.c.bf16 %v669, %v665
    %v1810 = vpack.c.bf16 %v860, %v856
    %v1811 = vpack.c.bf16 %v862, %v858
    %v1812 = vpack.c.bf16 %v1053, %v1049
    %v1813 = vpack.c.bf16 %v1055, %v1051
    %v1814 = vpack.c.bf16 %v1246, %v1242
    %v1815 = vpack.c.bf16 %v1248, %v1244
    %v1816 = vpack.c.bf16 %v1439, %v1435
    %v1817 = vpack.c.bf16 %v1441, %v1437
    %v1818 = vpack.c.bf16 %v1632, %v1628
    %v1819 = vpack.c.bf16 %v1634, %v1630
    %v1820 = vpack.c.bf16 %v484, %v480
    %v1821 = vpack.c.bf16 %v486, %v482
    %v1822 = vpack.c.bf16 %v677, %v673
    %v1823 = vpack.c.bf16 %v679, %v675
    %v1824 = vpack.c.bf16 %v870, %v866
    %v1825 = vpack.c.bf16 %v872, %v868
    %v1826 = vpack.c.bf16 %v1063, %v1059
    %v1827 = vpack.c.bf16 %v1065, %v1061
    %v1828 = vpack.c.bf16 %v1256, %v1252
    %v1829 = vpack.c.bf16 %v1258, %v1254
    %v1830 = vpack.c.bf16 %v1449, %v1445
    %v1831 = vpack.c.bf16 %v1451, %v1447
    %v1832 = vpack.c.bf16 %v1642, %v1638
    %v1833 = vpack.c.bf16 %v1644, %v1640
    %v1834 = vpack.c.bf16 %v494, %v490
    %v1835 = vpack.c.bf16 %v496, %v492
    %v1836 = vpack.c.bf16 %v687, %v683
    %v1837 = vpack.c.bf16 %v689, %v685
    %v1838 = vpack.c.bf16 %v880, %v876
    %v1839 = vpack.c.bf16 %v882, %v878
    %v1840 = vpack.c.bf16 %v1073, %v1069
    %v1841 = vpack.c.bf16 %v1075, %v1071
    %v1842 = vpack.c.bf16 %v1266, %v1262
    %v1843 = vpack.c.bf16 %v1268, %v1264
    %v1844 = vpack.c.bf16 %v1459, %v1455
    %v1845 = vpack.c.bf16 %v1461, %v1457
    %v1846 = vpack.c.bf16 %v1652, %v1648
    %v1847 = vpack.c.bf16 %v1654, %v1650
    %v1848 = vpack.c.bf16 %v504, %v500
    %v1849 = vpack.c.bf16 %v506, %v502
    %v1850 = vpack.c.bf16 %v697, %v693
    %v1851 = vpack.c.bf16 %v699, %v695
    %v1852 = vpack.c.bf16 %v890, %v886
    %v1853 = vpack.c.bf16 %v892, %v888
    %v1854 = vpack.c.bf16 %v1083, %v1079
    %v1855 = vpack.c.bf16 %v1085, %v1081
    %v1856 = vpack.c.bf16 %v1276, %v1272
    %v1857 = vpack.c.bf16 %v1278, %v1274
    %v1858 = vpack.c.bf16 %v1469, %v1465
    %v1859 = vpack.c.bf16 %v1471, %v1467
    %v1860 = vpack.c.bf16 %v1662, %v1658
    %v1861 = vpack.c.bf16 %v1664, %v1660
    %v1862 = vpack.c.bf16 %v514, %v510
    %v1863 = vpack.c.bf16 %v516, %v512
    %v1864 = vpack.c.bf16 %v707, %v703
    %v1865 = vpack.c.bf16 %v709, %v705
    %v1866 = vpack.c.bf16 %v900, %v896
    %v1867 = vpack.c.bf16 %v902, %v898
    %v1868 = vpack.c.bf16 %v1093, %v1089
    %v1869 = vpack.c.bf16 %v1095, %v1091
    %v1870 = vpack.c.bf16 %v1286, %v1282
    %v1871 = vpack.c.bf16 %v1288, %v1284
    %v1872 = vpack.c.bf16 %v1479, %v1475
    %v1873 = vpack.c.bf16 %v1481, %v1477
    %v1874 = vpack.c.bf16 %v1672, %v1668
    %v1875 = vpack.c.bf16 %v1674, %v1670
    %v1876 = vpack.c.bf16 %v524, %v520
    %v1877 = vpack.c.bf16 %v526, %v522
    %v1878 = vpack.c.bf16 %v717, %v713
    %v1879 = vpack.c.bf16 %v719, %v715
    %v1880 = vpack.c.bf16 %v910, %v906
    %v1881 = vpack.c.bf16 %v912, %v908
    %v1882 = vpack.c.bf16 %v1103, %v1099
    %v1883 = vpack.c.bf16 %v1105, %v1101
    %v1884 = vpack.c.bf16 %v1296, %v1292
    %v1885 = vpack.c.bf16 %v1298, %v1294
    %v1886 = vpack.c.bf16 %v1489, %v1485
    %v1887 = vpack.c.bf16 %v1491, %v1487
    %v1888 = vpack.c.bf16 %v1682, %v1678
    %v1889 = vpack.c.bf16 %v1684, %v1680
    %v1890 = vpack.c.bf16 %v534, %v530
    %v1891 = vpack.c.bf16 %v536, %v532
    %v1892 = vpack.c.bf16 %v727, %v723
    %v1893 = vpack.c.bf16 %v729, %v725
    %v1894 = vpack.c.bf16 %v920, %v916
    %v1895 = vpack.c.bf16 %v922, %v918
    %v1896 = vpack.c.bf16 %v1113, %v1109
    %v1897 = vpack.c.bf16 %v1115, %v1111
    %v1898 = vpack.c.bf16 %v1306, %v1302
    %v1899 = vpack.c.bf16 %v1308, %v1304
    %v1900 = vpack.c.bf16 %v1499, %v1495
    %v1901 = vpack.c.bf16 %v1501, %v1497
    %v1902 = vpack.c.bf16 %v1692, %v1688
    %v1903 = vpack.c.bf16 %v1694, %v1690
    %v1904 = vpack.c.bf16 %v544, %v540
    %v1905 = vpack.c.bf16 %v546, %v542
    %v1906 = vpack.c.bf16 %v737, %v733
    %v1907 = vpack.c.bf16 %v739, %v735
    %v1908 = vpack.c.bf16 %v930, %v926
    %v1909 = vpack.c.bf16 %v932, %v928
    %v1910 = vpack.c.bf16 %v1123, %v1119
    %v1911 = vpack.c.bf16 %v1125, %v1121
    %v1912 = vpack.c.bf16 %v1316, %v1312
    %v1913 = vpack.c.bf16 %v1318, %v1314
    %v1914 = vpack.c.bf16 %v1509, %v1505
    %v1915 = vpack.c.bf16 %v1511, %v1507
    %v1916 = vpack.c.bf16 %v1702, %v1698
    %v1917 = vpack.c.bf16 %v1704, %v1700
    %v1918 = vpack.c.bf16 %v554, %v550
    %v1919 = vpack.c.bf16 %v556, %v552
    %v1920 = vpack.c.bf16 %v747, %v743
    %v1921 = vpack.c.bf16 %v749, %v745
    %v1922 = vpack.c.bf16 %v940, %v936
    %v1923 = vpack.c.bf16 %v942, %v938
    %v1924 = vpack.c.bf16 %v1133, %v1129
    %v1925 = vpack.c.bf16 %v1135, %v1131
    %v1926 = vpack.c.bf16 %v1326, %v1322
    %v1927 = vpack.c.bf16 %v1328, %v1324
    %v1928 = vpack.c.bf16 %v1519, %v1515
    %v1929 = vpack.c.bf16 %v1521, %v1517
    %v1930 = vpack.c.bf16 %v1712, %v1708
    %v1931 = vpack.c.bf16 %v1714, %v1710
    %v1932 = vpack.c.bf16 %v564, %v560
    %v1933 = vpack.c.bf16 %v566, %v562
    %v1934 = vpack.c.bf16 %v757, %v753
    %v1935 = vpack.c.bf16 %v759, %v755
    %v1936 = vpack.c.bf16 %v950, %v946
    %v1937 = vpack.c.bf16 %v952, %v948
    %v1938 = vpack.c.bf16 %v1143, %v1139
    %v1939 = vpack.c.bf16 %v1145, %v1141
    %v1940 = vpack.c.bf16 %v1336, %v1332
    %v1941 = vpack.c.bf16 %v1338, %v1334
    %v1942 = vpack.c.bf16 %v1529, %v1525
    %v1943 = vpack.c.bf16 %v1531, %v1527
    %v1944 = vpack.c.bf16 %v1722, %v1718
    %v1945 = vpack.c.bf16 %v1724, %v1720
    %v1946 = vpack.c.bf16 %v574, %v570
    %v1947 = vpack.c.bf16 %v576, %v572
    %v1948 = vpack.c.bf16 %v767, %v763
    %v1949 = vpack.c.bf16 %v769, %v765
    %v1950 = vpack.c.bf16 %v960, %v956
    %v1951 = vpack.c.bf16 %v962, %v958
    %v1952 = vpack.c.bf16 %v1153, %v1149
    %v1953 = vpack.c.bf16 %v1155, %v1151
    %v1954 = vpack.c.bf16 %v1346, %v1342
    %v1955 = vpack.c.bf16 %v1348, %v1344
    %v1956 = vpack.c.bf16 %v1539, %v1535
    %v1957 = vpack.c.bf16 %v1541, %v1537
    %v1958 = vpack.c.bf16 %v1732, %v1728
    %v1959 = vpack.c.bf16 %v1734, %v1730
    %v1960 = vld [vmem:[#allocation4] sm:$0xff]
    %v1961 = vld [vmem:[#allocation4 + $0x8] sm:$0x3f]
    %v1964 = vlaneseq
    %v1965 = vshrl.u32 %v1964, 7
    %v1966 = vsub.s32 0, %v1965
    %v1967 = vrot.slane %v1960, %v1966
    %v1968 = vlaneseq
    %v1969 = vshrl.u32 %v1968, 7
    %v1970 = vsub.s32 1, %v1969
    %v1971 = vrot.slane %v1960, %v1970
    %v1972 = vlaneseq
    %v1973 = vshrl.u32 %v1972, 7
    %v1974 = vsub.s32 2, %v1973
    %v1975 = vrot.slane %v1960, %v1974
    %v1976 = vlaneseq
    %v1977 = vshrl.u32 %v1976, 7
    %v1978 = vsub.s32 3, %v1977
    %v1979 = vrot.slane %v1960, %v1978
    %v1980 = vlaneseq
    %v1981 = vshrl.u32 %v1980, 7
    %v1982 = vsub.s32 4, %v1981
    %v1983 = vrot.slane %v1960, %v1982
    %v1984 = vlaneseq
    %v1985 = vshrl.u32 %v1984, 7
    %v1986 = vsub.s32 5, %v1985
    %v1987 = vrot.slane %v1960, %v1986
    %v1988 = vlaneseq
    %v1989 = vshrl.u32 %v1988, 7
    %v1990 = vsub.s32 6, %v1989
    %v1991 = vrot.slane %v1960, %v1990
    %v1992 = vlaneseq
    %v1993 = vshrl.u32 %v1992, 7
    %v1994 = vsub.s32 7, %v1993
    %v1995 = vrot.slane %v1960, %v1994
    %v1996 = vlaneseq
    %v1997 = vshrl.u32 %v1996, 7
    %v1998 = vsub.s32 0, %v1997
    %v1999 = vrot.slane %v1961, %v1998
    %v2000 = vlaneseq
    %v2001 = vshrl.u32 %v2000, 7
    %v2002 = vsub.s32 1, %v2001
    %v2003 = vrot.slane %v1961, %v2002
    %v2004 = vlaneseq
    %v2005 = vshrl.u32 %v2004, 7
    %v2006 = vsub.s32 2, %v2005
    %v2007 = vrot.slane %v1961, %v2006
    %v2008 = vlaneseq
    %v2009 = vshrl.u32 %v2008, 7
    %v2010 = vsub.s32 3, %v2009
    %v2011 = vrot.slane %v1961, %v2010
    %v2012 = vlaneseq
    %v2013 = vshrl.u32 %v2012, 7
    %v2014 = vsub.s32 4, %v2013
    %v2015 = vrot.slane %v1961, %v2014
    %v2016 = vlaneseq
    %v2017 = vshrl.u32 %v2016, 7
    %v2018 = vsub.s32 5, %v2017
    %v2019 = vrot.slane %v1961, %v2018
    %v2034 = vpack.c.bf16 %v1967, %v1967
    %v2035 = vpack.c.bf16 %v1971, %v1971
    %v2036 = vpack.c.bf16 %v1975, %v1975
    %v2037 = vpack.c.bf16 %v1979, %v1979
    %v2038 = vpack.c.bf16 %v1983, %v1983
    %v2039 = vpack.c.bf16 %v1987, %v1987
    %v2040 = vpack.c.bf16 %v1991, %v1991
    %v2041 = vpack.c.bf16 %v1995, %v1995
    %v2042 = vpack.c.bf16 %v1999, %v1999
    %v2043 = vpack.c.bf16 %v2003, %v2003
    %v2044 = vpack.c.bf16 %v2007, %v2007
    %v2045 = vpack.c.bf16 %v2011, %v2011
    %v2046 = vpack.c.bf16 %v2015, %v2015
    %v2047 = vpack.c.bf16 %v2019, %v2019
    %v2049 = vpack.i.b16 %v2034, %v2034
    %v2051 = vlaneseq
    %v2052 = vshrl.u32 %v2051, 7
    %v2053 = vsub.s32 0, %v2052
    %v2054 = vrot.slane %v2049, %v2053
    %v2056 = vpack.i.b16 %v2035, %v2035
    %v2058 = vlaneseq
    %v2059 = vshrl.u32 %v2058, 7
    %v2060 = vsub.s32 0, %v2059
    %v2061 = vrot.slane %v2056, %v2060
    %v2063 = vpack.i.b16 %v2036, %v2036
    %v2065 = vlaneseq
    %v2066 = vshrl.u32 %v2065, 7
    %v2067 = vsub.s32 0, %v2066
    %v2068 = vrot.slane %v2063, %v2067
    %v2070 = vpack.i.b16 %v2037, %v2037
    %v2072 = vlaneseq
    %v2073 = vshrl.u32 %v2072, 7
    %v2074 = vsub.s32 0, %v2073
    %v2075 = vrot.slane %v2070, %v2074
    %v2077 = vpack.i.b16 %v2038, %v2038
    %v2079 = vlaneseq
    %v2080 = vshrl.u32 %v2079, 7
    %v2081 = vsub.s32 0, %v2080
    %v2082 = vrot.slane %v2077, %v2081
    %v2084 = vpack.i.b16 %v2039, %v2039
    %v2086 = vlaneseq
    %v2087 = vshrl.u32 %v2086, 7
    %v2088 = vsub.s32 0, %v2087
    %v2089 = vrot.slane %v2084, %v2088
    %v2091 = vpack.i.b16 %v2040, %v2040
    %v2093 = vlaneseq
    %v2094 = vshrl.u32 %v2093, 7
    %v2095 = vsub.s32 0, %v2094
    %v2096 = vrot.slane %v2091, %v2095
    %v2098 = vpack.i.b16 %v2041, %v2041
    %v2100 = vlaneseq
    %v2101 = vshrl.u32 %v2100, 7
    %v2102 = vsub.s32 0, %v2101
    %v2103 = vrot.slane %v2098, %v2102
    %v2105 = vpack.i.b16 %v2042, %v2042
    %v2107 = vlaneseq
    %v2108 = vshrl.u32 %v2107, 7
    %v2109 = vsub.s32 0, %v2108
    %v2110 = vrot.slane %v2105, %v2109
    %v2112 = vpack.i.b16 %v2043, %v2043
    %v2114 = vlaneseq
    %v2115 = vshrl.u32 %v2114, 7
    %v2116 = vsub.s32 0, %v2115
    %v2117 = vrot.slane %v2112, %v2116
    %v2119 = vpack.i.b16 %v2044, %v2044
    %v2121 = vlaneseq
    %v2122 = vshrl.u32 %v2121, 7
    %v2123 = vsub.s32 0, %v2122
    %v2124 = vrot.slane %v2119, %v2123
    %v2126 = vpack.i.b16 %v2045, %v2045
    %v2128 = vlaneseq
    %v2129 = vshrl.u32 %v2128, 7
    %v2130 = vsub.s32 0, %v2129
    %v2131 = vrot.slane %v2126, %v2130
    %v2133 = vpack.i.b16 %v2046, %v2046
    %v2135 = vlaneseq
    %v2136 = vshrl.u32 %v2135, 7
    %v2137 = vsub.s32 0, %v2136
    %v2138 = vrot.slane %v2133, %v2137
    %v2140 = vpack.i.b16 %v2047, %v2047
    %v2142 = vlaneseq
    %v2143 = vshrl.u32 %v2142, 7
    %v2144 = vsub.s32 0, %v2143
    %v2145 = vrot.slane %v2140, %v2144
    %v2146 = vadd.bf16 %v1736, %v2054
    %v2147 = vadd.bf16 %v1737, %v2061
    %v2148 = vadd.bf16 %v1738, %v2068
    %v2149 = vadd.bf16 %v1739, %v2075
    %v2150 = vadd.bf16 %v1740, %v2082
    %v2151 = vadd.bf16 %v1741, %v2089
    %v2152 = vadd.bf16 %v1742, %v2096
    %v2153 = vadd.bf16 %v1743, %v2103
    %v2154 = vadd.bf16 %v1744, %v2110
    %v2155 = vadd.bf16 %v1745, %v2117
    %v2156 = vadd.bf16 %v1746, %v2124
    %v2157 = vadd.bf16 %v1747, %v2131
    %v2158 = vadd.bf16 %v1748, %v2138
    %v2159 = vadd.bf16 %v1749, %v2145
    %v2160 = vadd.bf16 %v1750, %v2054
    %v2161 = vadd.bf16 %v1751, %v2061
    %v2162 = vadd.bf16 %v1752, %v2068
    %v2163 = vadd.bf16 %v1753, %v2075
    %v2164 = vadd.bf16 %v1754, %v2082
    %v2165 = vadd.bf16 %v1755, %v2089
    %v2166 = vadd.bf16 %v1756, %v2096
    %v2167 = vadd.bf16 %v1757, %v2103
    %v2168 = vadd.bf16 %v1758, %v2110
    %v2169 = vadd.bf16 %v1759, %v2117
    %v2170 = vadd.bf16 %v1760, %v2124
    %v2171 = vadd.bf16 %v1761, %v2131
    %v2172 = vadd.bf16 %v1762, %v2138
    %v2173 = vadd.bf16 %v1763, %v2145
    %v2174 = vadd.bf16 %v1764, %v2054
    %v2175 = vadd.bf16 %v1765, %v2061
    %v2176 = vadd.bf16 %v1766, %v2068
    %v2177 = vadd.bf16 %v1767, %v2075
    %v2178 = vadd.bf16 %v1768, %v2082
    %v2179 = vadd.bf16 %v1769, %v2089
    %v2180 = vadd.bf16 %v1770, %v2096
    %v2181 = vadd.bf16 %v1771, %v2103
    %v2182 = vadd.bf16 %v1772, %v2110
    %v2183 = vadd.bf16 %v1773, %v2117
    %v2184 = vadd.bf16 %v1774, %v2124
    %v2185 = vadd.bf16 %v1775, %v2131
    %v2186 = vadd.bf16 %v1776, %v2138
    %v2187 = vadd.bf16 %v1777, %v2145
    %v2188 = vadd.bf16 %v1778, %v2054
    %v2189 = vadd.bf16 %v1779, %v2061
    %v2190 = vadd.bf16 %v1780, %v2068
    %v2191 = vadd.bf16 %v1781, %v2075
    %v2192 = vadd.bf16 %v1782, %v2082
    %v2193 = vadd.bf16 %v1783, %v2089
    %v2194 = vadd.bf16 %v1784, %v2096
    %v2195 = vadd.bf16 %v1785, %v2103
    %v2196 = vadd.bf16 %v1786, %v2110
    %v2197 = vadd.bf16 %v1787, %v2117
    %v2198 = vadd.bf16 %v1788, %v2124
    %v2199 = vadd.bf16 %v1789, %v2131
    %v2200 = vadd.bf16 %v1790, %v2138
    %v2201 = vadd.bf16 %v1791, %v2145
    %v2202 = vadd.bf16 %v1792, %v2054
    %v2203 = vadd.bf16 %v1793, %v2061
    %v2204 = vadd.bf16 %v1794, %v2068
    %v2205 = vadd.bf16 %v1795, %v2075
    %v2206 = vadd.bf16 %v1796, %v2082
    %v2207 = vadd.bf16 %v1797, %v2089
    %v2208 = vadd.bf16 %v1798, %v2096
    %v2209 = vadd.bf16 %v1799, %v2103
    %v2210 = vadd.bf16 %v1800, %v2110
    %v2211 = vadd.bf16 %v1801, %v2117
    %v2212 = vadd.bf16 %v1802, %v2124
    %v2213 = vadd.bf16 %v1803, %v2131
    %v2214 = vadd.bf16 %v1804, %v2138
    %v2215 = vadd.bf16 %v1805, %v2145
    %v2216 = vadd.bf16 %v1806, %v2054
    %v2217 = vadd.bf16 %v1807, %v2061
    %v2218 = vadd.bf16 %v1808, %v2068
    %v2219 = vadd.bf16 %v1809, %v2075
    %v2220 = vadd.bf16 %v1810, %v2082
    %v2221 = vadd.bf16 %v1811, %v2089
    %v2222 = vadd.bf16 %v1812, %v2096
    %v2223 = vadd.bf16 %v1813, %v2103
    %v2224 = vadd.bf16 %v1814, %v2110
    %v2225 = vadd.bf16 %v1815, %v2117
    %v2226 = vadd.bf16 %v1816, %v2124
    %v2227 = vadd.bf16 %v1817, %v2131
    %v2228 = vadd.bf16 %v1818, %v2138
    %v2229 = vadd.bf16 %v1819, %v2145
    %v2230 = vadd.bf16 %v1820, %v2054
    %v2231 = vadd.bf16 %v1821, %v2061
    %v2232 = vadd.bf16 %v1822, %v2068
    %v2233 = vadd.bf16 %v1823, %v2075
    %v2234 = vadd.bf16 %v1824, %v2082
    %v2235 = vadd.bf16 %v1825, %v2089
    %v2236 = vadd.bf16 %v1826, %v2096
    %v2237 = vadd.bf16 %v1827, %v2103
    %v2238 = vadd.bf16 %v1828, %v2110
    %v2239 = vadd.bf16 %v1829, %v2117
    %v2240 = vadd.bf16 %v1830, %v2124
    %v2241 = vadd.bf16 %v1831, %v2131
    %v2242 = vadd.bf16 %v1832, %v2138
    %v2243 = vadd.bf16 %v1833, %v2145
    %v2244 = vadd.bf16 %v1834, %v2054
    %v2245 = vadd.bf16 %v1835, %v2061
    %v2246 = vadd.bf16 %v1836, %v2068
    %v2247 = vadd.bf16 %v1837, %v2075
    %v2248 = vadd.bf16 %v1838, %v2082
    %v2249 = vadd.bf16 %v1839, %v2089
    %v2250 = vadd.bf16 %v1840, %v2096
    %v2251 = vadd.bf16 %v1841, %v2103
    %v2252 = vadd.bf16 %v1842, %v2110
    %v2253 = vadd.bf16 %v1843, %v2117
    %v2254 = vadd.bf16 %v1844, %v2124
    %v2255 = vadd.bf16 %v1845, %v2131
    %v2256 = vadd.bf16 %v1846, %v2138
    %v2257 = vadd.bf16 %v1847, %v2145
    %v2258 = vadd.bf16 %v1848, %v2054
    %v2259 = vadd.bf16 %v1849, %v2061
    %v2260 = vadd.bf16 %v1850, %v2068
    %v2261 = vadd.bf16 %v1851, %v2075
    %v2262 = vadd.bf16 %v1852, %v2082
    %v2263 = vadd.bf16 %v1853, %v2089
    %v2264 = vadd.bf16 %v1854, %v2096
    %v2265 = vadd.bf16 %v1855, %v2103
    %v2266 = vadd.bf16 %v1856, %v2110
    %v2267 = vadd.bf16 %v1857, %v2117
    %v2268 = vadd.bf16 %v1858, %v2124
    %v2269 = vadd.bf16 %v1859, %v2131
    %v2270 = vadd.bf16 %v1860, %v2138
    %v2271 = vadd.bf16 %v1861, %v2145
    %v2272 = vadd.bf16 %v1862, %v2054
    %v2273 = vadd.bf16 %v1863, %v2061
    %v2274 = vadd.bf16 %v1864, %v2068
    %v2275 = vadd.bf16 %v1865, %v2075
    %v2276 = vadd.bf16 %v1866, %v2082
    %v2277 = vadd.bf16 %v1867, %v2089
    %v2278 = vadd.bf16 %v1868, %v2096
    %v2279 = vadd.bf16 %v1869, %v2103
    %v2280 = vadd.bf16 %v1870, %v2110
    %v2281 = vadd.bf16 %v1871, %v2117
    %v2282 = vadd.bf16 %v1872, %v2124
    %v2283 = vadd.bf16 %v1873, %v2131
    %v2284 = vadd.bf16 %v1874, %v2138
    %v2285 = vadd.bf16 %v1875, %v2145
    %v2286 = vadd.bf16 %v1876, %v2054
    %v2287 = vadd.bf16 %v1877, %v2061
    %v2288 = vadd.bf16 %v1878, %v2068
    %v2289 = vadd.bf16 %v1879, %v2075
    %v2290 = vadd.bf16 %v1880, %v2082
    %v2291 = vadd.bf16 %v1881, %v2089
    %v2292 = vadd.bf16 %v1882, %v2096
    %v2293 = vadd.bf16 %v1883, %v2103
    %v2294 = vadd.bf16 %v1884, %v2110
    %v2295 = vadd.bf16 %v1885, %v2117
    %v2296 = vadd.bf16 %v1886, %v2124
    %v2297 = vadd.bf16 %v1887, %v2131
    %v2298 = vadd.bf16 %v1888, %v2138
    %v2299 = vadd.bf16 %v1889, %v2145
    %v2300 = vadd.bf16 %v1890, %v2054
    %v2301 = vadd.bf16 %v1891, %v2061
    %v2302 = vadd.bf16 %v1892, %v2068
    %v2303 = vadd.bf16 %v1893, %v2075
    %v2304 = vadd.bf16 %v1894, %v2082
    %v2305 = vadd.bf16 %v1895, %v2089
    %v2306 = vadd.bf16 %v1896, %v2096
    %v2307 = vadd.bf16 %v1897, %v2103
    %v2308 = vadd.bf16 %v1898, %v2110
    %v2309 = vadd.bf16 %v1899, %v2117
    %v2310 = vadd.bf16 %v1900, %v2124
    %v2311 = vadd.bf16 %v1901, %v2131
    %v2312 = vadd.bf16 %v1902, %v2138
    %v2313 = vadd.bf16 %v1903, %v2145
    %v2314 = vadd.bf16 %v1904, %v2054
    %v2315 = vadd.bf16 %v1905, %v2061
    %v2316 = vadd.bf16 %v1906, %v2068
    %v2317 = vadd.bf16 %v1907, %v2075
    %v2318 = vadd.bf16 %v1908, %v2082
    %v2319 = vadd.bf16 %v1909, %v2089
    %v2320 = vadd.bf16 %v1910, %v2096
    %v2321 = vadd.bf16 %v1911, %v2103
    %v2322 = vadd.bf16 %v1912, %v2110
    %v2323 = vadd.bf16 %v1913, %v2117
    %v2324 = vadd.bf16 %v1914, %v2124
    %v2325 = vadd.bf16 %v1915, %v2131
    %v2326 = vadd.bf16 %v1916, %v2138
    %v2327 = vadd.bf16 %v1917, %v2145
    %v2328 = vadd.bf16 %v1918, %v2054
    %v2329 = vadd.bf16 %v1919, %v2061
    %v2330 = vadd.bf16 %v1920, %v2068
    %v2331 = vadd.bf16 %v1921, %v2075
    %v2332 = vadd.bf16 %v1922, %v2082
    %v2333 = vadd.bf16 %v1923, %v2089
    %v2334 = vadd.bf16 %v1924, %v2096
    %v2335 = vadd.bf16 %v1925, %v2103
    %v2336 = vadd.bf16 %v1926, %v2110
    %v2337 = vadd.bf16 %v1927, %v2117
    %v2338 = vadd.bf16 %v1928, %v2124
    %v2339 = vadd.bf16 %v1929, %v2131
    %v2340 = vadd.bf16 %v1930, %v2138
    %v2341 = vadd.bf16 %v1931, %v2145
    %v2342 = vadd.bf16 %v1932, %v2054
    %v2343 = vadd.bf16 %v1933, %v2061
    %v2344 = vadd.bf16 %v1934, %v2068
    %v2345 = vadd.bf16 %v1935, %v2075
    %v2346 = vadd.bf16 %v1936, %v2082
    %v2347 = vadd.bf16 %v1937, %v2089
    %v2348 = vadd.bf16 %v1938, %v2096
    %v2349 = vadd.bf16 %v1939, %v2103
    %v2350 = vadd.bf16 %v1940, %v2110
    %v2351 = vadd.bf16 %v1941, %v2117
    %v2352 = vadd.bf16 %v1942, %v2124
    %v2353 = vadd.bf16 %v1943, %v2131
    %v2354 = vadd.bf16 %v1944, %v2138
    %v2355 = vadd.bf16 %v1945, %v2145
    %v2356 = vadd.bf16 %v1946, %v2054
    %v2357 = vadd.bf16 %v1947, %v2061
    %v2358 = vadd.bf16 %v1948, %v2068
    %v2359 = vadd.bf16 %v1949, %v2075
    %v2360 = vadd.bf16 %v1950, %v2082
    %v2361 = vadd.bf16 %v1951, %v2089
    %v2362 = vadd.bf16 %v1952, %v2096
    %v2363 = vadd.bf16 %v1953, %v2103
    %v2364 = vadd.bf16 %v1954, %v2110
    %v2365 = vadd.bf16 %v1955, %v2117
    %v2366 = vadd.bf16 %v1956, %v2124
    %v2367 = vadd.bf16 %v1957, %v2131
    %v2368 = vadd.bf16 %v1958, %v2138
    %v2369 = vadd.bf16 %v1959, %v2145
    %v2370 = vmax.bf16 %v2146, 0
    %v2371 = vmax.bf16 %v2147, 0
    %v2372 = vmax.bf16 %v2148, 0
    %v2373 = vmax.bf16 %v2149, 0
    %v2374 = vmax.bf16 %v2150, 0
    %v2375 = vmax.bf16 %v2151, 0
    %v2376 = vmax.bf16 %v2152, 0
    %v2377 = vmax.bf16 %v2153, 0
    %v2378 = vmax.bf16 %v2154, 0
    %v2379 = vmax.bf16 %v2155, 0
    %v2380 = vmax.bf16 %v2156, 0
    %v2381 = vmax.bf16 %v2157, 0
    %v2382 = vmax.bf16 %v2158, 0
    %v2383 = vmax.bf16 %v2159, 0
    %v2384 = vmax.bf16 %v2160, 0
    %v2385 = vmax.bf16 %v2161, 0
    %v2386 = vmax.bf16 %v2162, 0
    %v2387 = vmax.bf16 %v2163, 0
    %v2388 = vmax.bf16 %v2164, 0
    %v2389 = vmax.bf16 %v2165, 0
    %v2390 = vmax.bf16 %v2166, 0
    %v2391 = vmax.bf16 %v2167, 0
    %v2392 = vmax.bf16 %v2168, 0
    %v2393 = vmax.bf16 %v2169, 0
    %v2394 = vmax.bf16 %v2170, 0
    %v2395 = vmax.bf16 %v2171, 0
    %v2396 = vmax.bf16 %v2172, 0
    %v2397 = vmax.bf16 %v2173, 0
    %v2398 = vmax.bf16 %v2174, 0
    %v2399 = vmax.bf16 %v2175, 0
    %v2400 = vmax.bf16 %v2176, 0
    %v2401 = vmax.bf16 %v2177, 0
    %v2402 = vmax.bf16 %v2178, 0
    %v2403 = vmax.bf16 %v2179, 0
    %v2404 = vmax.bf16 %v2180, 0
    %v2405 = vmax.bf16 %v2181, 0
    %v2406 = vmax.bf16 %v2182, 0
    %v2407 = vmax.bf16 %v2183, 0
    %v2408 = vmax.bf16 %v2184, 0
    %v2409 = vmax.bf16 %v2185, 0
    %v2410 = vmax.bf16 %v2186, 0
    %v2411 = vmax.bf16 %v2187, 0
    %v2412 = vmax.bf16 %v2188, 0
    %v2413 = vmax.bf16 %v2189, 0
    %v2414 = vmax.bf16 %v2190, 0
    %v2415 = vmax.bf16 %v2191, 0
    %v2416 = vmax.bf16 %v2192, 0
    %v2417 = vmax.bf16 %v2193, 0
    %v2418 = vmax.bf16 %v2194, 0
    %v2419 = vmax.bf16 %v2195, 0
    %v2420 = vmax.bf16 %v2196, 0
    %v2421 = vmax.bf16 %v2197, 0
    %v2422 = vmax.bf16 %v2198, 0
    %v2423 = vmax.bf16 %v2199, 0
    %v2424 = vmax.bf16 %v2200, 0
    %v2425 = vmax.bf16 %v2201, 0
    %v2426 = vmax.bf16 %v2202, 0
    %v2427 = vmax.bf16 %v2203, 0
    %v2428 = vmax.bf16 %v2204, 0
    %v2429 = vmax.bf16 %v2205, 0
    %v2430 = vmax.bf16 %v2206, 0
    %v2431 = vmax.bf16 %v2207, 0
    %v2432 = vmax.bf16 %v2208, 0
    %v2433 = vmax.bf16 %v2209, 0
    %v2434 = vmax.bf16 %v2210, 0
    %v2435 = vmax.bf16 %v2211, 0
    %v2436 = vmax.bf16 %v2212, 0
    %v2437 = vmax.bf16 %v2213, 0
    %v2438 = vmax.bf16 %v2214, 0
    %v2439 = vmax.bf16 %v2215, 0
    %v2440 = vmax.bf16 %v2216, 0
    %v2441 = vmax.bf16 %v2217, 0
    %v2442 = vmax.bf16 %v2218, 0
    %v2443 = vmax.bf16 %v2219, 0
    %v2444 = vmax.bf16 %v2220, 0
    %v2445 = vmax.bf16 %v2221, 0
    %v2446 = vmax.bf16 %v2222, 0
    %v2447 = vmax.bf16 %v2223, 0
    %v2448 = vmax.bf16 %v2224, 0
    %v2449 = vmax.bf16 %v2225, 0
    %v2450 = vmax.bf16 %v2226, 0
    %v2451 = vmax.bf16 %v2227, 0
    %v2452 = vmax.bf16 %v2228, 0
    %v2453 = vmax.bf16 %v2229, 0
    %v2454 = vmax.bf16 %v2230, 0
    %v2455 = vmax.bf16 %v2231, 0
    %v2456 = vmax.bf16 %v2232, 0
    %v2457 = vmax.bf16 %v2233, 0
    %v2458 = vmax.bf16 %v2234, 0
    %v2459 = vmax.bf16 %v2235, 0
    %v2460 = vmax.bf16 %v2236, 0
    %v2461 = vmax.bf16 %v2237, 0
    %v2462 = vmax.bf16 %v2238, 0
    %v2463 = vmax.bf16 %v2239, 0
    %v2464 = vmax.bf16 %v2240, 0
    %v2465 = vmax.bf16 %v2241, 0
    %v2466 = vmax.bf16 %v2242, 0
    %v2467 = vmax.bf16 %v2243, 0
    %v2468 = vmax.bf16 %v2244, 0
    %v2469 = vmax.bf16 %v2245, 0
    %v2470 = vmax.bf16 %v2246, 0
    %v2471 = vmax.bf16 %v2247, 0
    %v2472 = vmax.bf16 %v2248, 0
    %v2473 = vmax.bf16 %v2249, 0
    %v2474 = vmax.bf16 %v2250, 0
    %v2475 = vmax.bf16 %v2251, 0
    %v2476 = vmax.bf16 %v2252, 0
    %v2477 = vmax.bf16 %v2253, 0
    %v2478 = vmax.bf16 %v2254, 0
    %v2479 = vmax.bf16 %v2255, 0
    %v2480 = vmax.bf16 %v2256, 0
    %v2481 = vmax.bf16 %v2257, 0
    %v2482 = vmax.bf16 %v2258, 0
    %v2483 = vmax.bf16 %v2259, 0
    %v2484 = vmax.bf16 %v2260, 0
    %v2485 = vmax.bf16 %v2261, 0
    %v2486 = vmax.bf16 %v2262, 0
    %v2487 = vmax.bf16 %v2263, 0
    %v2488 = vmax.bf16 %v2264, 0
    %v2489 = vmax.bf16 %v2265, 0
    %v2490 = vmax.bf16 %v2266, 0
    %v2491 = vmax.bf16 %v2267, 0
    %v2492 = vmax.bf16 %v2268, 0
    %v2493 = vmax.bf16 %v2269, 0
    %v2494 = vmax.bf16 %v2270, 0
    %v2495 = vmax.bf16 %v2271, 0
    %v2496 = vmax.bf16 %v2272, 0
    %v2497 = vmax.bf16 %v2273, 0
    %v2498 = vmax.bf16 %v2274, 0
    %v2499 = vmax.bf16 %v2275, 0
    %v2500 = vmax.bf16 %v2276, 0
    %v2501 = vmax.bf16 %v2277, 0
    %v2502 = vmax.bf16 %v2278, 0
    %v2503 = vmax.bf16 %v2279, 0
    %v2504 = vmax.bf16 %v2280, 0
    %v2505 = vmax.bf16 %v2281, 0
    %v2506 = vmax.bf16 %v2282, 0
    %v2507 = vmax.bf16 %v2283, 0
    %v2508 = vmax.bf16 %v2284, 0
    %v2509 = vmax.bf16 %v2285, 0
    %v2510 = vmax.bf16 %v2286, 0
    %v2511 = vmax.bf16 %v2287, 0
    %v2512 = vmax.bf16 %v2288, 0
    %v2513 = vmax.bf16 %v2289, 0
    %v2514 = vmax.bf16 %v2290, 0
    %v2515 = vmax.bf16 %v2291, 0
    %v2516 = vmax.bf16 %v2292, 0
    %v2517 = vmax.bf16 %v2293, 0
    %v2518 = vmax.bf16 %v2294, 0
    %v2519 = vmax.bf16 %v2295, 0
    %v2520 = vmax.bf16 %v2296, 0
    %v2521 = vmax.bf16 %v2297, 0
    %v2522 = vmax.bf16 %v2298, 0
    %v2523 = vmax.bf16 %v2299, 0
    %v2524 = vmax.bf16 %v2300, 0
    %v2525 = vmax.bf16 %v2301, 0
    %v2526 = vmax.bf16 %v2302, 0
    %v2527 = vmax.bf16 %v2303, 0
    %v2528 = vmax.bf16 %v2304, 0
    %v2529 = vmax.bf16 %v2305, 0
    %v2530 = vmax.bf16 %v2306, 0
    %v2531 = vmax.bf16 %v2307, 0
    %v2532 = vmax.bf16 %v2308, 0
    %v2533 = vmax.bf16 %v2309, 0
    %v2534 = vmax.bf16 %v2310, 0
    %v2535 = vmax.bf16 %v2311, 0
    %v2536 = vmax.bf16 %v2312, 0
    %v2537 = vmax.bf16 %v2313, 0
    %v2538 = vmax.bf16 %v2314, 0
    %v2539 = vmax.bf16 %v2315, 0
    %v2540 = vmax.bf16 %v2316, 0
    %v2541 = vmax.bf16 %v2317, 0
    %v2542 = vmax.bf16 %v2318, 0
    %v2543 = vmax.bf16 %v2319, 0
    %v2544 = vmax.bf16 %v2320, 0
    %v2545 = vmax.bf16 %v2321, 0
    %v2546 = vmax.bf16 %v2322, 0
    %v2547 = vmax.bf16 %v2323, 0
    %v2548 = vmax.bf16 %v2324, 0
    %v2549 = vmax.bf16 %v2325, 0
    %v2550 = vmax.bf16 %v2326, 0
    %v2551 = vmax.bf16 %v2327, 0
    %v2552 = vmax.bf16 %v2328, 0
    %v2553 = vmax.bf16 %v2329, 0
    %v2554 = vmax.bf16 %v2330, 0
    %v2555 = vmax.bf16 %v2331, 0
    %v2556 = vmax.bf16 %v2332, 0
    %v2557 = vmax.bf16 %v2333, 0
    %v2558 = vmax.bf16 %v2334, 0
    %v2559 = vmax.bf16 %v2335, 0
    %v2560 = vmax.bf16 %v2336, 0
    %v2561 = vmax.bf16 %v2337, 0
    %v2562 = vmax.bf16 %v2338, 0
    %v2563 = vmax.bf16 %v2339, 0
    %v2564 = vmax.bf16 %v2340, 0
    %v2565 = vmax.bf16 %v2341, 0
    %v2566 = vmax.bf16 %v2342, 0
    %v2567 = vmax.bf16 %v2343, 0
    %v2568 = vmax.bf16 %v2344, 0
    %v2569 = vmax.bf16 %v2345, 0
    %v2570 = vmax.bf16 %v2346, 0
    %v2571 = vmax.bf16 %v2347, 0
    %v2572 = vmax.bf16 %v2348, 0
    %v2573 = vmax.bf16 %v2349, 0
    %v2574 = vmax.bf16 %v2350, 0
    %v2575 = vmax.bf16 %v2351, 0
    %v2576 = vmax.bf16 %v2352, 0
    %v2577 = vmax.bf16 %v2353, 0
    %v2578 = vmax.bf16 %v2354, 0
    %v2579 = vmax.bf16 %v2355, 0
    %v2580 = vmax.bf16 %v2356, 0
    %v2581 = vmax.bf16 %v2357, 0
    %v2582 = vmax.bf16 %v2358, 0
    %v2583 = vmax.bf16 %v2359, 0
    %v2584 = vmax.bf16 %v2360, 0
    %v2585 = vmax.bf16 %v2361, 0
    %v2586 = vmax.bf16 %v2362, 0
    %v2587 = vmax.bf16 %v2363, 0
    %v2588 = vmax.bf16 %v2364, 0
    %v2589 = vmax.bf16 %v2365, 0
    %v2590 = vmax.bf16 %v2366, 0
    %v2591 = vmax.bf16 %v2367, 0
    %v2592 = vmax.bf16 %v2368, 0
    %v2593 = vmax.bf16 %v2369, 0
    %v2594 = vld [vmem:[%s1] sm:$0xff]
    %v2595 = vld [vmem:[%s1 + $0x8] sm:$0xff]
    %v2596 = vld [vmem:[%s1 + $0x10] sm:$0xff]
    %v2597 = vld [vmem:[%s1 + $0x18] sm:$0xff]
    %v2598 = vld [vmem:[%s1 + $0x20] sm:$0xff]
    %v2599 = vld [vmem:[%s1 + $0x28] sm:$0xff]
    %v2600 = vld [vmem:[%s1 + $0x30] sm:$0xff]
    %v2601 = vld [vmem:[%s1 + $0x38] sm:$0xff]
    %v2602 = vld [vmem:[%s1 + $0x40] sm:$0xff]
    %v2603 = vld [vmem:[%s1 + $0x48] sm:$0xff]
    %v2604 = vld [vmem:[%s1 + $0x50] sm:$0xff]
    %v2605 = vld [vmem:[%s1 + $0x58] sm:$0xff]
    %v2606 = vld [vmem:[%s1 + $0x60] sm:$0xff]
    %v2607 = vld [vmem:[%s1 + $0x68] sm:$0xff]
    %v2608 = vld [vmem:[%s1 + $0x70] sm:$0xff]
    %v2609 = vld [vmem:[%s1 + $0x78] sm:$0xff]
    %v2610 = vld [vmem:[%s1 + $0x80] sm:$0xff]
    %v2611 = vld [vmem:[%s1 + $0x88] sm:$0xff]
    %v2612 = vld [vmem:[%s1 + $0x90] sm:$0xff]
    %v2613 = vld [vmem:[%s1 + $0x98] sm:$0xff]
    %v2614 = vld [vmem:[%s1 + $0xa0] sm:$0xff]
    %v2615 = vld [vmem:[%s1 + $0xa8] sm:$0xff]
    %v2616 = vld [vmem:[%s1 + $0xb0] sm:$0xff]
    %v2617 = vld [vmem:[%s1 + $0xb8] sm:$0xff]
    %v2618 = vld [vmem:[%s1 + $0xc0] sm:$0xff]
    %v2619 = vld [vmem:[%s1 + $0xc8] sm:$0xff]
    %v2620 = vld [vmem:[%s1 + $0xd0] sm:$0xff]
    %v2621 = vld [vmem:[%s1 + $0xd8] sm:$0xff]
    %v2622 = vld [vmem:[%s1 + $0xe0] sm:$0xff]
    %v2623 = vld [vmem:[%s1 + $0xe8] sm:$0xff]
    %v2624 = vld [vmem:[%s1 + $0xf0] sm:$0xff]
    %v2625 = vld [vmem:[%s1 + $0xf8] sm:$0xff]
    %v2626 = vlaneseq
    %v2627 = vand.u32 %v2626, 127
    %vm2628 = vcmp.eq.s32.totalorder %v2627, 0
    %vm2629 = vcmp.eq.s32.totalorder %v2627, 1
    %vm2630 = vcmp.eq.s32.totalorder %v2627, 2
    %v2631 = vsel %vm2630, 1.0, 0.0
    %2633 = vset.pattern.permute.xlu0 1
    %2634 = vperm.xlu0 %2633, %v2594
    %v2635 = vpop.permute.xlu0 %2634
    %2638 = vset.pattern.permute.xlu0 1
    %2639 = vperm.xlu0 %2638, %v2595
    %v2640 = vpop.permute.xlu0 %2639
    %2643 = vset.pattern.permute.xlu0 1
    %2644 = vperm.xlu0 %2643, %v2596
    %v2645 = vpop.permute.xlu0 %2644
    %2648 = vset.pattern.permute.xlu0 1
    %2649 = vperm.xlu0 %2648, %v2597
    %v2650 = vpop.permute.xlu0 %2649
    %2653 = vset.pattern.permute.xlu0 1
    %2654 = vperm.xlu0 %2653, %v2598
    %v2655 = vpop.permute.xlu0 %2654
    %2658 = vset.pattern.permute.xlu0 1
    %2659 = vperm.xlu0 %2658, %v2599
    %v2660 = vpop.permute.xlu0 %2659
    %2663 = vset.pattern.permute.xlu0 1
    %2664 = vperm.xlu0 %2663, %v2600
    %v2665 = vpop.permute.xlu0 %2664
    %2668 = vset.pattern.permute.xlu0 1
    %2669 = vperm.xlu0 %2668, %v2601
    %v2670 = vpop.permute.xlu0 %2669
    %2673 = vset.pattern.permute.xlu0 1
    %2674 = vperm.xlu0 %2673, %v2602
    %v2675 = vpop.permute.xlu0 %2674
    %2678 = vset.pattern.permute.xlu0 1
    %2679 = vperm.xlu0 %2678, %v2603
    %v2680 = vpop.permute.xlu0 %2679
    %2683 = vset.pattern.permute.xlu0 1
    %2684 = vperm.xlu0 %2683, %v2604
    %v2685 = vpop.permute.xlu0 %2684
    %2688 = vset.pattern.permute.xlu0 1
    %2689 = vperm.xlu0 %2688, %v2605
    %v2690 = vpop.permute.xlu0 %2689
    %2693 = vset.pattern.permute.xlu0 1
    %2694 = vperm.xlu0 %2693, %v2606
    %v2695 = vpop.permute.xlu0 %2694
    %2698 = vset.pattern.permute.xlu0 1
    %2699 = vperm.xlu0 %2698, %v2607
    %v2700 = vpop.permute.xlu0 %2699
    %2703 = vset.pattern.permute.xlu0 1
    %2704 = vperm.xlu0 %2703, %v2608
    %v2705 = vpop.permute.xlu0 %2704
    %2708 = vset.pattern.permute.xlu0 1
    %2709 = vperm.xlu0 %2708, %v2609
    %v2710 = vpop.permute.xlu0 %2709
    %2713 = vset.pattern.permute.xlu0 1
    %2714 = vperm.xlu0 %2713, %v2610
    %v2715 = vpop.permute.xlu0 %2714
    %2718 = vset.pattern.permute.xlu0 1
    %2719 = vperm.xlu0 %2718, %v2611
    %v2720 = vpop.permute.xlu0 %2719
    %2723 = vset.pattern.permute.xlu0 1
    %2724 = vperm.xlu0 %2723, %v2612
    %v2725 = vpop.permute.xlu0 %2724
    %2728 = vset.pattern.permute.xlu0 1
    %2729 = vperm.xlu0 %2728, %v2613
    %v2730 = vpop.permute.xlu0 %2729
    %2733 = vset.pattern.permute.xlu0 1
    %2734 = vperm.xlu0 %2733, %v2614
    %v2735 = vpop.permute.xlu0 %2734
    %2738 = vset.pattern.permute.xlu0 1
    %2739 = vperm.xlu0 %2738, %v2615
    %v2740 = vpop.permute.xlu0 %2739
    %2743 = vset.pattern.permute.xlu0 1
    %2744 = vperm.xlu0 %2743, %v2616
    %v2745 = vpop.permute.xlu0 %2744
    %2748 = vset.pattern.permute.xlu0 1
    %2749 = vperm.xlu0 %2748, %v2617
    %v2750 = vpop.permute.xlu0 %2749
    %2753 = vset.pattern.permute.xlu0 1
    %2754 = vperm.xlu0 %2753, %v2618
    %v2755 = vpop.permute.xlu0 %2754
    %2758 = vset.pattern.permute.xlu0 1
    %2759 = vperm.xlu0 %2758, %v2619
    %v2760 = vpop.permute.xlu0 %2759
    %2763 = vset.pattern.permute.xlu0 1
    %2764 = vperm.xlu0 %2763, %v2620
    %v2765 = vpop.permute.xlu0 %2764
    %2768 = vset.pattern.permute.xlu0 1
    %2769 = vperm.xlu0 %2768, %v2621
    %v2770 = vpop.permute.xlu0 %2769
    %2773 = vset.pattern.permute.xlu0 1
    %2774 = vperm.xlu0 %2773, %v2622
    %v2775 = vpop.permute.xlu0 %2774
    %2778 = vset.pattern.permute.xlu0 1
    %2779 = vperm.xlu0 %2778, %v2623
    %v2780 = vpop.permute.xlu0 %2779
    %2783 = vset.pattern.permute.xlu0 1
    %2784 = vperm.xlu0 %2783, %v2624
    %v2785 = vpop.permute.xlu0 %2784
    %2788 = vset.pattern.permute.xlu0 1
    %2789 = vperm.xlu0 %2788, %v2625
    %v2790 = vpop.permute.xlu0 %2789
    %v2792 = vsel %vm2629, %v2635, %v2631
    %v2793 = vsel %vm2629, %v2640, %v2631
    %v2794 = vsel %vm2629, %v2645, %v2631
    %v2795 = vsel %vm2629, %v2650, %v2631
    %v2796 = vsel %vm2629, %v2655, %v2631
    %v2797 = vsel %vm2629, %v2660, %v2631
    %v2798 = vsel %vm2629, %v2665, %v2631
    %v2799 = vsel %vm2629, %v2670, %v2631
    %v2800 = vsel %vm2629, %v2675, %v2631
    %v2801 = vsel %vm2629, %v2680, %v2631
    %v2802 = vsel %vm2629, %v2685, %v2631
    %v2803 = vsel %vm2629, %v2690, %v2631
    %v2804 = vsel %vm2629, %v2695, %v2631
    %v2805 = vsel %vm2629, %v2700, %v2631
    %v2806 = vsel %vm2629, %v2705, %v2631
    %v2807 = vsel %vm2629, %v2710, %v2631
    %v2808 = vsel %vm2629, %v2715, %v2631
    %v2809 = vsel %vm2629, %v2720, %v2631
    %v2810 = vsel %vm2629, %v2725, %v2631
    %v2811 = vsel %vm2629, %v2730, %v2631
    %v2812 = vsel %vm2629, %v2735, %v2631
    %v2813 = vsel %vm2629, %v2740, %v2631
    %v2814 = vsel %vm2629, %v2745, %v2631
    %v2815 = vsel %vm2629, %v2750, %v2631
    %v2816 = vsel %vm2629, %v2755, %v2631
    %v2817 = vsel %vm2629, %v2760, %v2631
    %v2818 = vsel %vm2629, %v2765, %v2631
    %v2819 = vsel %vm2629, %v2770, %v2631
    %v2820 = vsel %vm2629, %v2775, %v2631
    %v2821 = vsel %vm2629, %v2780, %v2631
    %v2822 = vsel %vm2629, %v2785, %v2631
    %v2823 = vsel %vm2629, %v2790, %v2631
    %2824 = vset.pattern.permute.xlu0 0
    %2825 = vperm.xlu0 %2824, %v2594
    %v2826 = vpop.permute.xlu0 %2825
    %2828 = vset.pattern.permute.xlu0 0
    %2829 = vperm.xlu0 %2828, %v2595
    %v2830 = vpop.permute.xlu0 %2829
    %2832 = vset.pattern.permute.xlu0 0
    %2833 = vperm.xlu0 %2832, %v2596
    %v2834 = vpop.permute.xlu0 %2833
    %2836 = vset.pattern.permute.xlu0 0
    %2837 = vperm.xlu0 %2836, %v2597
    %v2838 = vpop.permute.xlu0 %2837
    %2840 = vset.pattern.permute.xlu0 0
    %2841 = vperm.xlu0 %2840, %v2598
    %v2842 = vpop.permute.xlu0 %2841
    %2844 = vset.pattern.permute.xlu0 0
    %2845 = vperm.xlu0 %2844, %v2599
    %v2846 = vpop.permute.xlu0 %2845
    %2848 = vset.pattern.permute.xlu0 0
    %2849 = vperm.xlu0 %2848, %v2600
    %v2850 = vpop.permute.xlu0 %2849
    %2852 = vset.pattern.permute.xlu0 0
    %2853 = vperm.xlu0 %2852, %v2601
    %v2854 = vpop.permute.xlu0 %2853
    %2856 = vset.pattern.permute.xlu0 0
    %2857 = vperm.xlu0 %2856, %v2602
    %v2858 = vpop.permute.xlu0 %2857
    %2860 = vset.pattern.permute.xlu0 0
    %2861 = vperm.xlu0 %2860, %v2603
    %v2862 = vpop.permute.xlu0 %2861
    %2864 = vset.pattern.permute.xlu0 0
    %2865 = vperm.xlu0 %2864, %v2604
    %v2866 = vpop.permute.xlu0 %2865
    %2868 = vset.pattern.permute.xlu0 0
    %2869 = vperm.xlu0 %2868, %v2605
    %v2870 = vpop.permute.xlu0 %2869
    %2872 = vset.pattern.permute.xlu0 0
    %2873 = vperm.xlu0 %2872, %v2606
    %v2874 = vpop.permute.xlu0 %2873
    %2876 = vset.pattern.permute.xlu0 0
    %2877 = vperm.xlu0 %2876, %v2607
    %v2878 = vpop.permute.xlu0 %2877
    %2880 = vset.pattern.permute.xlu0 0
    %2881 = vperm.xlu0 %2880, %v2608
    %v2882 = vpop.permute.xlu0 %2881
    %2884 = vset.pattern.permute.xlu0 0
    %2885 = vperm.xlu0 %2884, %v2609
    %v2886 = vpop.permute.xlu0 %2885
    %2888 = vset.pattern.permute.xlu0 0
    %2889 = vperm.xlu0 %2888, %v2610
    %v2890 = vpop.permute.xlu0 %2889
    %2892 = vset.pattern.permute.xlu0 0
    %2893 = vperm.xlu0 %2892, %v2611
    %v2894 = vpop.permute.xlu0 %2893
    %2896 = vset.pattern.permute.xlu0 0
    %2897 = vperm.xlu0 %2896, %v2612
    %v2898 = vpop.permute.xlu0 %2897
    %2900 = vset.pattern.permute.xlu0 0
    %2901 = vperm.xlu0 %2900, %v2613
    %v2902 = vpop.permute.xlu0 %2901
    %2904 = vset.pattern.permute.xlu0 0
    %2905 = vperm.xlu0 %2904, %v2614
    %v2906 = vpop.permute.xlu0 %2905
    %2908 = vset.pattern.permute.xlu0 0
    %2909 = vperm.xlu0 %2908, %v2615
    %v2910 = vpop.permute.xlu0 %2909
    %2912 = vset.pattern.permute.xlu0 0
    %2913 = vperm.xlu0 %2912, %v2616
    %v2914 = vpop.permute.xlu0 %2913
    %2916 = vset.pattern.permute.xlu0 0
    %2917 = vperm.xlu0 %2916, %v2617
    %v2918 = vpop.permute.xlu0 %2917
    %2920 = vset.pattern.permute.xlu0 0
    %2921 = vperm.xlu0 %2920, %v2618
    %v2922 = vpop.permute.xlu0 %2921
    %2924 = vset.pattern.permute.xlu0 0
    %2925 = vperm.xlu0 %2924, %v2619
    %v2926 = vpop.permute.xlu0 %2925
    %2928 = vset.pattern.permute.xlu0 0
    %2929 = vperm.xlu0 %2928, %v2620
    %v2930 = vpop.permute.xlu0 %2929
    %2932 = vset.pattern.permute.xlu0 0
    %2933 = vperm.xlu0 %2932, %v2621
    %v2934 = vpop.permute.xlu0 %2933
    %2936 = vset.pattern.permute.xlu0 0
    %2937 = vperm.xlu0 %2936, %v2622
    %v2938 = vpop.permute.xlu0 %2937
    %2940 = vset.pattern.permute.xlu0 0
    %2941 = vperm.xlu0 %2940, %v2623
    %v2942 = vpop.permute.xlu0 %2941
    %2944 = vset.pattern.permute.xlu0 0
    %2945 = vperm.xlu0 %2944, %v2624
    %v2946 = vpop.permute.xlu0 %2945
    %2948 = vset.pattern.permute.xlu0 0
    %2949 = vperm.xlu0 %2948, %v2625
    %v2950 = vpop.permute.xlu0 %2949
    %v2952 = vsel %vm2628, %v2826, %v2792
    %v2953 = vsel %vm2628, %v2830, %v2793
    %v2954 = vsel %vm2628, %v2834, %v2794
    %v2955 = vsel %vm2628, %v2838, %v2795
    %v2956 = vsel %vm2628, %v2842, %v2796
    %v2957 = vsel %vm2628, %v2846, %v2797
    %v2958 = vsel %vm2628, %v2850, %v2798
    %v2959 = vsel %vm2628, %v2854, %v2799
    %v2960 = vsel %vm2628, %v2858, %v2800
    %v2961 = vsel %vm2628, %v2862, %v2801
    %v2962 = vsel %vm2628, %v2866, %v2802
    %v2963 = vsel %vm2628, %v2870, %v2803
    %v2964 = vsel %vm2628, %v2874, %v2804
    %v2965 = vsel %vm2628, %v2878, %v2805
    %v2966 = vsel %vm2628, %v2882, %v2806
    %v2967 = vsel %vm2628, %v2886, %v2807
    %v2968 = vsel %vm2628, %v2890, %v2808
    %v2969 = vsel %vm2628, %v2894, %v2809
    %v2970 = vsel %vm2628, %v2898, %v2810
    %v2971 = vsel %vm2628, %v2902, %v2811
    %v2972 = vsel %vm2628, %v2906, %v2812
    %v2973 = vsel %vm2628, %v2910, %v2813
    %v2974 = vsel %vm2628, %v2914, %v2814
    %v2975 = vsel %vm2628, %v2918, %v2815
    %v2976 = vsel %vm2628, %v2922, %v2816
    %v2977 = vsel %vm2628, %v2926, %v2817
    %v2978 = vsel %vm2628, %v2930, %v2818
    %v2979 = vsel %vm2628, %v2934, %v2819
    %v2980 = vsel %vm2628, %v2938, %v2820
    %v2981 = vsel %vm2628, %v2942, %v2821
    %v2982 = vsel %vm2628, %v2946, %v2822
    %v2983 = vsel %vm2628, %v2950, %v2823
    %v2984 = vpack.c.bf16 %v2953, %v2952
    %v2985 = vpack.c.bf16 %v2955, %v2954
    %v2986 = vpack.c.bf16 %v2957, %v2956
    %v2987 = vpack.c.bf16 %v2959, %v2958
    %v2988 = vpack.c.bf16 %v2961, %v2960
    %v2989 = vpack.c.bf16 %v2963, %v2962
    %v2990 = vpack.c.bf16 %v2965, %v2964
    %v2991 = vpack.c.bf16 %v2967, %v2966
    %v2992 = vpack.c.bf16 %v2969, %v2968
    %v2993 = vpack.c.bf16 %v2971, %v2970
    %v2994 = vpack.c.bf16 %v2973, %v2972
    %v2995 = vpack.c.bf16 %v2975, %v2974
    %v2996 = vpack.c.bf16 %v2977, %v2976
    %v2997 = vpack.c.bf16 %v2979, %v2978
    %v2998 = vpack.c.bf16 %v2981, %v2980
    %v2999 = vpack.c.bf16 %v2983, %v2982
    %v3000 = vld [vmem:[#allocation6] sm:$0xff]
    %v3001 = vld [vmem:[#allocation6 + $0x8] sm:$0xff]
    %v3002 = vld [vmem:[#allocation6 + $0x10] sm:$0xf]
    %v3003 = vld [vmem:[#allocation6 + $0x14] sm:$0xff]
    %v3004 = vld [vmem:[#allocation6 + $0x1c] sm:$0xff]
    %v3005 = vld [vmem:[#allocation6 + $0x24] sm:$0xf]
    %v3006 = vld [vmem:[#allocation6 + $0x28] sm:$0xff]
    %v3007 = vld [vmem:[#allocation6 + $0x30] sm:$0xff]
    %v3008 = vld [vmem:[#allocation6 + $0x38] sm:$0xf]
    %v3009 = vld [vmem:[#allocation6 + $0x3c] sm:$0xff]
    %v3010 = vld [vmem:[#allocation6 + $0x44] sm:$0xff]
    %v3011 = vld [vmem:[#allocation6 + $0x4c] sm:$0xf]
    %v3012 = vld [vmem:[#allocation6 + $0x50] sm:$0xff]
    %v3013 = vld [vmem:[#allocation6 + $0x58] sm:$0xff]
    %v3014 = vld [vmem:[#allocation6 + $0x60] sm:$0xf]
    %v3015 = vld [vmem:[#allocation6 + $0x64] sm:$0xff]
    %v3016 = vld [vmem:[#allocation6 + $0x6c] sm:$0xff]
    %v3017 = vld [vmem:[#allocation6 + $0x74] sm:$0xf]
    %v3018 = vld [vmem:[#allocation6 + $0x78] sm:$0xff]
    %v3019 = vld [vmem:[#allocation6 + $0x80] sm:$0xff]
    %v3020 = vld [vmem:[#allocation6 + $0x88] sm:$0xf]
    %v3021 = vld [vmem:[#allocation6 + $0x8c] sm:$0xff]
    %v3022 = vld [vmem:[#allocation6 + $0x94] sm:$0xff]
    %v3023 = vld [vmem:[#allocation6 + $0x9c] sm:$0xf]
    %v3024 = vld [vmem:[#allocation6 + $0xa0] sm:$0xff]
    %v3025 = vld [vmem:[#allocation6 + $0xa8] sm:$0xff]
    %v3026 = vld [vmem:[#allocation6 + $0xb0] sm:$0xf]
    %v3027 = vld [vmem:[#allocation6 + $0xb4] sm:$0xff]
    %v3028 = vld [vmem:[#allocation6 + $0xbc] sm:$0xff]
    %v3029 = vld [vmem:[#allocation6 + $0xc4] sm:$0xf]
    %v3030 = vld [vmem:[#allocation6 + $0xc8] sm:$0xff]
    %v3031 = vld [vmem:[#allocation6 + $0xd0] sm:$0xff]
    %v3032 = vld [vmem:[#allocation6 + $0xd8] sm:$0xf]
    %v3033 = vld [vmem:[#allocation6 + $0xdc] sm:$0xff]
    %v3034 = vld [vmem:[#allocation6 + $0xe4] sm:$0xff]
    %v3035 = vld [vmem:[#allocation6 + $0xec] sm:$0xf]
    %v3036 = vld [vmem:[#allocation6 + $0xf0] sm:$0xff]
    %v3037 = vld [vmem:[#allocation6 + $0xf8] sm:$0xff]
    %v3038 = vld [vmem:[#allocation6 + $0x100] sm:$0xf]
    %v3039 = vld [vmem:[#allocation6 + $0x104] sm:$0xff]
    %v3040 = vld [vmem:[#allocation6 + $0x10c] sm:$0xff]
    %v3041 = vld [vmem:[#allocation6 + $0x114] sm:$0xf]
    %v3042 = vld [vmem:[#allocation6 + $0x118] sm:$0xff]
    %v3043 = vld [vmem:[#allocation6 + $0x120] sm:$0xff]
    %v3044 = vld [vmem:[#allocation6 + $0x128] sm:$0xf]
    %v3045 = vld [vmem:[#allocation6 + $0x12c] sm:$0xff]
    %v3046 = vld [vmem:[#allocation6 + $0x134] sm:$0xff]
    %v3047 = vld [vmem:[#allocation6 + $0x13c] sm:$0xf]
    %v3048 = vld [vmem:[#allocation6 + $0x140] sm:$0xff]
    %v3049 = vld [vmem:[#allocation6 + $0x148] sm:$0xff]
    %v3050 = vld [vmem:[#allocation6 + $0x150] sm:$0xf]
    %v3051 = vld [vmem:[#allocation6 + $0x154] sm:$0xff]
    %v3052 = vld [vmem:[#allocation6 + $0x15c] sm:$0xff]
    %v3053 = vld [vmem:[#allocation6 + $0x164] sm:$0xf]
    %v3054 = vld [vmem:[#allocation6 + $0x168] sm:$0xff]
    %v3055 = vld [vmem:[#allocation6 + $0x170] sm:$0xff]
    %v3056 = vld [vmem:[#allocation6 + $0x178] sm:$0xf]
    %v3057 = vld [vmem:[#allocation6 + $0x17c] sm:$0xff]
    %v3058 = vld [vmem:[#allocation6 + $0x184] sm:$0xff]
    %v3059 = vld [vmem:[#allocation6 + $0x18c] sm:$0xf]
    %v3060 = vld [vmem:[#allocation6 + $0x190] sm:$0xff]
    %v3061 = vld [vmem:[#allocation6 + $0x198] sm:$0xff]
    %v3062 = vld [vmem:[#allocation6 + $0x1a0] sm:$0xf]
    %v3063 = vld [vmem:[#allocation6 + $0x1a4] sm:$0xff]
    %v3064 = vld [vmem:[#allocation6 + $0x1ac] sm:$0xff]
    %v3065 = vld [vmem:[#allocation6 + $0x1b4] sm:$0xf]
    %v3066 = vld [vmem:[#allocation6 + $0x1b8] sm:$0xff]
    %v3067 = vld [vmem:[#allocation6 + $0x1c0] sm:$0xff]
    %v3068 = vld [vmem:[#allocation6 + $0x1c8] sm:$0xf]
    %v3069 = vld [vmem:[#allocation6 + $0x1cc] sm:$0xff]
    %v3070 = vld [vmem:[#allocation6 + $0x1d4] sm:$0xff]
    %v3071 = vld [vmem:[#allocation6 + $0x1dc] sm:$0xf]
    %v3072 = vld [vmem:[#allocation6 + $0x1e0] sm:$0xff]
    %v3073 = vld [vmem:[#allocation6 + $0x1e8] sm:$0xff]
    %v3074 = vld [vmem:[#allocation6 + $0x1f0] sm:$0xf]
    %v3075 = vld [vmem:[#allocation6 + $0x1f4] sm:$0xff]
    %v3076 = vld [vmem:[#allocation6 + $0x1fc] sm:$0xff]
    %v3077 = vld [vmem:[#allocation6 + $0x204] sm:$0xf]
    %v3078 = vld [vmem:[#allocation6 + $0x208] sm:$0xff]
    %v3079 = vld [vmem:[#allocation6 + $0x210] sm:$0xff]
    %v3080 = vld [vmem:[#allocation6 + $0x218] sm:$0xf]
    %v3081 = vld [vmem:[#allocation6 + $0x21c] sm:$0xff]
    %v3082 = vld [vmem:[#allocation6 + $0x224] sm:$0xff]
    %v3083 = vld [vmem:[#allocation6 + $0x22c] sm:$0xf]
    %v3084 = vld [vmem:[#allocation6 + $0x230] sm:$0xff]
    %v3085 = vld [vmem:[#allocation6 + $0x238] sm:$0xff]
    %v3086 = vld [vmem:[#allocation6 + $0x240] sm:$0xf]
    %v3087 = vld [vmem:[#allocation6 + $0x244] sm:$0xff]
    %v3088 = vld [vmem:[#allocation6 + $0x24c] sm:$0xff]
    %v3089 = vld [vmem:[#allocation6 + $0x254] sm:$0xf]
    %v3090 = vld [vmem:[#allocation6 + $0x258] sm:$0xff]
    %v3091 = vld [vmem:[#allocation6 + $0x260] sm:$0xff]
    %v3092 = vld [vmem:[#allocation6 + $0x268] sm:$0xf]
    %v3093 = vld [vmem:[#allocation6 + $0x26c] sm:$0xff]
    %v3094 = vld [vmem:[#allocation6 + $0x274] sm:$0xff]
    %v3095 = vld [vmem:[#allocation6 + $0x27c] sm:$0xf]
    %v3096 = vld [vmem:[#allocation6 + $0x280] sm:$0xff]
    %v3097 = vld [vmem:[#allocation6 + $0x288] sm:$0xff]
    %v3098 = vld [vmem:[#allocation6 + $0x290] sm:$0xf]
    %v3099 = vld [vmem:[#allocation6 + $0x294] sm:$0xff]
    %v3100 = vld [vmem:[#allocation6 + $0x29c] sm:$0xff]
    %v3101 = vld [vmem:[#allocation6 + $0x2a4] sm:$0xf]
    %v3102 = vld [vmem:[#allocation6 + $0x2a8] sm:$0xff]
    %v3103 = vld [vmem:[#allocation6 + $0x2b0] sm:$0xff]
    %v3104 = vld [vmem:[#allocation6 + $0x2b8] sm:$0xf]
    %v3105 = vld [vmem:[#allocation6 + $0x2bc] sm:$0xff]
    %v3106 = vld [vmem:[#allocation6 + $0x2c4] sm:$0xff]
    %v3107 = vld [vmem:[#allocation6 + $0x2cc] sm:$0xf]
    %v3108 = vld [vmem:[#allocation6 + $0x2d0] sm:$0xff]
    %v3109 = vld [vmem:[#allocation6 + $0x2d8] sm:$0xff]
    %v3110 = vld [vmem:[#allocation6 + $0x2e0] sm:$0xf]
    %v3111 = vld [vmem:[#allocation6 + $0x2e4] sm:$0xff]
    %v3112 = vld [vmem:[#allocation6 + $0x2ec] sm:$0xff]
    %v3113 = vld [vmem:[#allocation6 + $0x2f4] sm:$0xf]
    %v3114 = vld [vmem:[#allocation6 + $0x2f8] sm:$0xff]
    %v3115 = vld [vmem:[#allocation6 + $0x300] sm:$0xff]
    %v3116 = vld [vmem:[#allocation6 + $0x308] sm:$0xf]
    %v3117 = vld [vmem:[#allocation6 + $0x30c] sm:$0xff]
    %v3118 = vld [vmem:[#allocation6 + $0x314] sm:$0xff]
    %v3119 = vld [vmem:[#allocation6 + $0x31c] sm:$0xf]
    %v3120 = vld [vmem:[#allocation6 + $0x320] sm:$0xff]
    %v3121 = vld [vmem:[#allocation6 + $0x328] sm:$0xff]
    %v3122 = vld [vmem:[#allocation6 + $0x330] sm:$0xf]
    %v3123 = vld [vmem:[#allocation6 + $0x334] sm:$0xff]
    %v3124 = vld [vmem:[#allocation6 + $0x33c] sm:$0xff]
    %v3125 = vld [vmem:[#allocation6 + $0x344] sm:$0xf]
    %v3126 = vld [vmem:[#allocation6 + $0x348] sm:$0xff]
    %v3127 = vld [vmem:[#allocation6 + $0x350] sm:$0xff]
    %v3128 = vld [vmem:[#allocation6 + $0x358] sm:$0xf]
    %v3129 = vld [vmem:[#allocation6 + $0x35c] sm:$0xff]
    %v3130 = vld [vmem:[#allocation6 + $0x364] sm:$0xff]
    %v3131 = vld [vmem:[#allocation6 + $0x36c] sm:$0xf]
    %v3132 = vld [vmem:[#allocation6 + $0x370] sm:$0xff]
    %v3133 = vld [vmem:[#allocation6 + $0x378] sm:$0xff]
    %v3134 = vld [vmem:[#allocation6 + $0x380] sm:$0xf]
    %v3135 = vld [vmem:[#allocation6 + $0x384] sm:$0xff]
    %v3136 = vld [vmem:[#allocation6 + $0x38c] sm:$0xff]
    %v3137 = vld [vmem:[#allocation6 + $0x394] sm:$0xf]
    %v3138 = vld [vmem:[#allocation6 + $0x398] sm:$0xff]
    %v3139 = vld [vmem:[#allocation6 + $0x3a0] sm:$0xff]
    %v3140 = vld [vmem:[#allocation6 + $0x3a8] sm:$0xf]
    %v3141 = vld [vmem:[#allocation6 + $0x3ac] sm:$0xff]
    %v3142 = vld [vmem:[#allocation6 + $0x3b4] sm:$0xff]
    %v3143 = vld [vmem:[#allocation6 + $0x3bc] sm:$0xf]
    %v3144 = vld [vmem:[#allocation6 + $0x3c0] sm:$0xff]
    %v3145 = vld [vmem:[#allocation6 + $0x3c8] sm:$0xff]
    %v3146 = vld [vmem:[#allocation6 + $0x3d0] sm:$0xf]
    %v3147 = vld [vmem:[#allocation6 + $0x3d4] sm:$0xff]
    %v3148 = vld [vmem:[#allocation6 + $0x3dc] sm:$0xff]
    %v3149 = vld [vmem:[#allocation6 + $0x3e4] sm:$0xf]
    %v3150 = vld [vmem:[#allocation6 + $0x3e8] sm:$0xff]
    %v3151 = vld [vmem:[#allocation6 + $0x3f0] sm:$0xff]
    %v3152 = vld [vmem:[#allocation6 + $0x3f8] sm:$0xf]
    %v3153 = vld [vmem:[#allocation6 + $0x3fc] sm:$0xff]
    %v3154 = vld [vmem:[#allocation6 + $0x404] sm:$0xff]
    %v3155 = vld [vmem:[#allocation6 + $0x40c] sm:$0xf]
    %v3156 = vld [vmem:[#allocation6 + $0x410] sm:$0xff]
    %v3157 = vld [vmem:[#allocation6 + $0x418] sm:$0xff]
    %v3158 = vld [vmem:[#allocation6 + $0x420] sm:$0xf]
    %v3159 = vld [vmem:[#allocation6 + $0x424] sm:$0xff]
    %v3160 = vld [vmem:[#allocation6 + $0x42c] sm:$0xff]
    %v3161 = vld [vmem:[#allocation6 + $0x434] sm:$0xf]
    %v3162 = vld [vmem:[#allocation6 + $0x438] sm:$0xff]
    %v3163 = vld [vmem:[#allocation6 + $0x440] sm:$0xff]
    %v3164 = vld [vmem:[#allocation6 + $0x448] sm:$0xf]
    %v3165 = vld [vmem:[#allocation6 + $0x44c] sm:$0xff]
    %v3166 = vld [vmem:[#allocation6 + $0x454] sm:$0xff]
    %v3167 = vld [vmem:[#allocation6 + $0x45c] sm:$0xf]
    %v3168 = vld [vmem:[#allocation6 + $0x460] sm:$0xff]
    %v3169 = vld [vmem:[#allocation6 + $0x468] sm:$0xff]
    %v3170 = vld [vmem:[#allocation6 + $0x470] sm:$0xf]
    %v3171 = vld [vmem:[#allocation6 + $0x474] sm:$0xff]
    %v3172 = vld [vmem:[#allocation6 + $0x47c] sm:$0xff]
    %v3173 = vld [vmem:[#allocation6 + $0x484] sm:$0xf]
    %v3174 = vld [vmem:[#allocation6 + $0x488] sm:$0xff]
    %v3175 = vld [vmem:[#allocation6 + $0x490] sm:$0xff]
    %v3176 = vld [vmem:[#allocation6 + $0x498] sm:$0xf]
    %v3177 = vld [vmem:[#allocation6 + $0x49c] sm:$0xff]
    %v3178 = vld [vmem:[#allocation6 + $0x4a4] sm:$0xff]
    %v3179 = vld [vmem:[#allocation6 + $0x4ac] sm:$0xf]
    %v3180 = vld [vmem:[#allocation6 + $0x4b0] sm:$0xff]
    %v3181 = vld [vmem:[#allocation6 + $0x4b8] sm:$0xff]
    %v3182 = vld [vmem:[#allocation6 + $0x4c0] sm:$0xf]
    %v3183 = vld [vmem:[#allocation6 + $0x4c4] sm:$0xff]
    %v3184 = vld [vmem:[#allocation6 + $0x4cc] sm:$0xff]
    %v3185 = vld [vmem:[#allocation6 + $0x4d4] sm:$0xf]
    %v3186 = vld [vmem:[#allocation6 + $0x4d8] sm:$0xff]
    %v3187 = vld [vmem:[#allocation6 + $0x4e0] sm:$0xff]
    %v3188 = vld [vmem:[#allocation6 + $0x4e8] sm:$0xf]
    %v3189 = vld [vmem:[#allocation6 + $0x4ec] sm:$0xff]
    %v3190 = vld [vmem:[#allocation6 + $0x4f4] sm:$0xff]
    %v3191 = vld [vmem:[#allocation6 + $0x4fc] sm:$0xf]
    %v3192 = vld [vmem:[#allocation6 + $0x500] sm:$0xff]
    %v3193 = vld [vmem:[#allocation6 + $0x508] sm:$0xff]
    %v3194 = vld [vmem:[#allocation6 + $0x510] sm:$0xf]
    %v3195 = vld [vmem:[#allocation6 + $0x514] sm:$0xff]
    %v3196 = vld [vmem:[#allocation6 + $0x51c] sm:$0xff]
    %v3197 = vld [vmem:[#allocation6 + $0x524] sm:$0xf]
    %v3198 = vld [vmem:[#allocation6 + $0x528] sm:$0xff]
    %v3199 = vld [vmem:[#allocation6 + $0x530] sm:$0xff]
    %v3200 = vld [vmem:[#allocation6 + $0x538] sm:$0xf]
    %v3201 = vld [vmem:[#allocation6 + $0x53c] sm:$0xff]
    %v3202 = vld [vmem:[#allocation6 + $0x544] sm:$0xff]
    %v3203 = vld [vmem:[#allocation6 + $0x54c] sm:$0xf]
    %v3204 = vld [vmem:[#allocation6 + $0x550] sm:$0xff]
    %v3205 = vld [vmem:[#allocation6 + $0x558] sm:$0xff]
    %v3206 = vld [vmem:[#allocation6 + $0x560] sm:$0xf]
    %v3207 = vld [vmem:[#allocation6 + $0x564] sm:$0xff]
    %v3208 = vld [vmem:[#allocation6 + $0x56c] sm:$0xff]
    %v3209 = vld [vmem:[#allocation6 + $0x574] sm:$0xf]
    %v3210 = vld [vmem:[#allocation6 + $0x578] sm:$0xff]
    %v3211 = vld [vmem:[#allocation6 + $0x580] sm:$0xff]
    %v3212 = vld [vmem:[#allocation6 + $0x588] sm:$0xf]
    %v3213 = vld [vmem:[#allocation6 + $0x58c] sm:$0xff]
    %v3214 = vld [vmem:[#allocation6 + $0x594] sm:$0xff]
    %v3215 = vld [vmem:[#allocation6 + $0x59c] sm:$0xf]
    %v3216 = vld [vmem:[#allocation6 + $0x5a0] sm:$0xff]
    %v3217 = vld [vmem:[#allocation6 + $0x5a8] sm:$0xff]
    %v3218 = vld [vmem:[#allocation6 + $0x5b0] sm:$0xf]
    %v3219 = vld [vmem:[#allocation6 + $0x5b4] sm:$0xff]
    %v3220 = vld [vmem:[#allocation6 + $0x5bc] sm:$0xff]
    %v3221 = vld [vmem:[#allocation6 + $0x5c4] sm:$0xf]
    %v3222 = vld [vmem:[#allocation6 + $0x5c8] sm:$0xff]
    %v3223 = vld [vmem:[#allocation6 + $0x5d0] sm:$0xff]
    %v3224 = vld [vmem:[#allocation6 + $0x5d8] sm:$0xf]
    %v3225 = vld [vmem:[#allocation6 + $0x5dc] sm:$0xff]
    %v3226 = vld [vmem:[#allocation6 + $0x5e4] sm:$0xff]
    %v3227 = vld [vmem:[#allocation6 + $0x5ec] sm:$0xf]
    %v3228 = vld [vmem:[#allocation6 + $0x5f0] sm:$0xff]
    %v3229 = vld [vmem:[#allocation6 + $0x5f8] sm:$0xff]
    %v3230 = vld [vmem:[#allocation6 + $0x600] sm:$0xf]
    %v3231 = vld [vmem:[#allocation6 + $0x604] sm:$0xff]
    %v3232 = vld [vmem:[#allocation6 + $0x60c] sm:$0xff]
    %v3233 = vld [vmem:[#allocation6 + $0x614] sm:$0xf]
    %v3234 = vld [vmem:[#allocation6 + $0x618] sm:$0xff]
    %v3235 = vld [vmem:[#allocation6 + $0x620] sm:$0xff]
    %v3236 = vld [vmem:[#allocation6 + $0x628] sm:$0xf]
    %v3237 = vld [vmem:[#allocation6 + $0x62c] sm:$0xff]
    %v3238 = vld [vmem:[#allocation6 + $0x634] sm:$0xff]
    %v3239 = vld [vmem:[#allocation6 + $0x63c] sm:$0xf]
    %v3240 = vld [vmem:[#allocation6 + $0x640] sm:$0xff]
    %v3241 = vld [vmem:[#allocation6 + $0x648] sm:$0xff]
    %v3242 = vld [vmem:[#allocation6 + $0x650] sm:$0xf]
    %v3243 = vld [vmem:[#allocation6 + $0x654] sm:$0xff]
    %v3244 = vld [vmem:[#allocation6 + $0x65c] sm:$0xff]
    %v3245 = vld [vmem:[#allocation6 + $0x664] sm:$0xf]
    %v3246 = vld [vmem:[#allocation6 + $0x668] sm:$0xff]
    %v3247 = vld [vmem:[#allocation6 + $0x670] sm:$0xff]
    %v3248 = vld [vmem:[#allocation6 + $0x678] sm:$0xf]
    %v3249 = vld [vmem:[#allocation6 + $0x67c] sm:$0xff]
    %v3250 = vld [vmem:[#allocation6 + $0x684] sm:$0xff]
    %v3251 = vld [vmem:[#allocation6 + $0x68c] sm:$0xf]
    %v3252 = vld [vmem:[#allocation6 + $0x690] sm:$0xff]
    %v3253 = vld [vmem:[#allocation6 + $0x698] sm:$0xff]
    %v3254 = vld [vmem:[#allocation6 + $0x6a0] sm:$0xf]
    %v3255 = vld [vmem:[#allocation6 + $0x6a4] sm:$0xff]
    %v3256 = vld [vmem:[#allocation6 + $0x6ac] sm:$0xff]
    %v3257 = vld [vmem:[#allocation6 + $0x6b4] sm:$0xf]
    %v3258 = vld [vmem:[#allocation6 + $0x6b8] sm:$0xff]
    %v3259 = vld [vmem:[#allocation6 + $0x6c0] sm:$0xff]
    %v3260 = vld [vmem:[#allocation6 + $0x6c8] sm:$0xf]
    %v3261 = vld [vmem:[#allocation6 + $0x6cc] sm:$0xff]
    %v3262 = vld [vmem:[#allocation6 + $0x6d4] sm:$0xff]
    %v3263 = vld [vmem:[#allocation6 + $0x6dc] sm:$0xf]
    %v3264 = vld [vmem:[#allocation6 + $0x6e0] sm:$0xff]
    %v3265 = vld [vmem:[#allocation6 + $0x6e8] sm:$0xff]
    %v3266 = vld [vmem:[#allocation6 + $0x6f0] sm:$0xf]
    %v3267 = vld [vmem:[#allocation6 + $0x6f4] sm:$0xff]
    %v3268 = vld [vmem:[#allocation6 + $0x6fc] sm:$0xff]
    %v3269 = vld [vmem:[#allocation6 + $0x704] sm:$0xf]
    %v3270 = vld [vmem:[#allocation6 + $0x708] sm:$0xff]
    %v3271 = vld [vmem:[#allocation6 + $0x710] sm:$0xff]
    %v3272 = vld [vmem:[#allocation6 + $0x718] sm:$0xf]
    %v3273 = vld [vmem:[#allocation6 + $0x71c] sm:$0xff]
    %v3274 = vld [vmem:[#allocation6 + $0x724] sm:$0xff]
    %v3275 = vld [vmem:[#allocation6 + $0x72c] sm:$0xf]
    %v3276 = vld [vmem:[#allocation6 + $0x730] sm:$0xff]
    %v3277 = vld [vmem:[#allocation6 + $0x738] sm:$0xff]
    %v3278 = vld [vmem:[#allocation6 + $0x740] sm:$0xf]
    %v3279 = vld [vmem:[#allocation6 + $0x744] sm:$0xff]
    %v3280 = vld [vmem:[#allocation6 + $0x74c] sm:$0xff]
    %v3281 = vld [vmem:[#allocation6 + $0x754] sm:$0xf]
    %v3282 = vld [vmem:[#allocation6 + $0x758] sm:$0xff]
    %v3283 = vld [vmem:[#allocation6 + $0x760] sm:$0xff]
    %v3284 = vld [vmem:[#allocation6 + $0x768] sm:$0xf]
    %v3285 = vld [vmem:[#allocation6 + $0x76c] sm:$0xff]
    %v3286 = vld [vmem:[#allocation6 + $0x774] sm:$0xff]
    %v3287 = vld [vmem:[#allocation6 + $0x77c] sm:$0xf]
    %v3288 = vld [vmem:[#allocation6 + $0x780] sm:$0xff]
    %v3289 = vld [vmem:[#allocation6 + $0x788] sm:$0xff]
    %v3290 = vld [vmem:[#allocation6 + $0x790] sm:$0xf]
    %v3291 = vld [vmem:[#allocation6 + $0x794] sm:$0xff]
    %v3292 = vld [vmem:[#allocation6 + $0x79c] sm:$0xff]
    %v3293 = vld [vmem:[#allocation6 + $0x7a4] sm:$0xf]
    %v3294 = vld [vmem:[#allocation6 + $0x7a8] sm:$0xff]
    %v3295 = vld [vmem:[#allocation6 + $0x7b0] sm:$0xff]
    %v3296 = vld [vmem:[#allocation6 + $0x7b8] sm:$0xf]
    %v3297 = vld [vmem:[#allocation6 + $0x7bc] sm:$0xff]
    %v3298 = vld [vmem:[#allocation6 + $0x7c4] sm:$0xff]
    %v3299 = vld [vmem:[#allocation6 + $0x7cc] sm:$0xf]
    %v3300 = vld [vmem:[#allocation6 + $0x7d0] sm:$0xff]
    %v3301 = vld [vmem:[#allocation6 + $0x7d8] sm:$0xff]
    %v3302 = vld [vmem:[#allocation6 + $0x7e0] sm:$0xf]
    %v3303 = vld [vmem:[#allocation6 + $0x7e4] sm:$0xff]
    %v3304 = vld [vmem:[#allocation6 + $0x7ec] sm:$0xff]
    %v3305 = vld [vmem:[#allocation6 + $0x7f4] sm:$0xf]
    %v3306 = vld [vmem:[#allocation6 + $0x7f8] sm:$0xff]
    %v3307 = vld [vmem:[#allocation6 + $0x800] sm:$0xff]
    %v3308 = vld [vmem:[#allocation6 + $0x808] sm:$0xf]
    %v3309 = vld [vmem:[#allocation6 + $0x80c] sm:$0xff]
    %v3310 = vld [vmem:[#allocation6 + $0x814] sm:$0xff]
    %v3311 = vld [vmem:[#allocation6 + $0x81c] sm:$0xf]
    %v3312 = vld [vmem:[#allocation6 + $0x820] sm:$0xff]
    %v3313 = vld [vmem:[#allocation6 + $0x828] sm:$0xff]
    %v3314 = vld [vmem:[#allocation6 + $0x830] sm:$0xf]
    %v3315 = vld [vmem:[#allocation6 + $0x834] sm:$0xff]
    %v3316 = vld [vmem:[#allocation6 + $0x83c] sm:$0xff]
    %v3317 = vld [vmem:[#allocation6 + $0x844] sm:$0xf]
    %v3318 = vld [vmem:[#allocation6 + $0x848] sm:$0xff]
    %v3319 = vld [vmem:[#allocation6 + $0x850] sm:$0xff]
    %v3320 = vld [vmem:[#allocation6 + $0x858] sm:$0xf]
    %v3321 = vld [vmem:[#allocation6 + $0x85c] sm:$0xff]
    %v3322 = vld [vmem:[#allocation6 + $0x864] sm:$0xff]
    %v3323 = vld [vmem:[#allocation6 + $0x86c] sm:$0xf]
    %v3324 = vld [vmem:[#allocation6 + $0x870] sm:$0xff]
    %v3325 = vld [vmem:[#allocation6 + $0x878] sm:$0xff]
    %v3326 = vld [vmem:[#allocation6 + $0x880] sm:$0xf]
    %v3327 = vld [vmem:[#allocation6 + $0x884] sm:$0xff]
    %v3328 = vld [vmem:[#allocation6 + $0x88c] sm:$0xff]
    %v3329 = vld [vmem:[#allocation6 + $0x894] sm:$0xf]
    %v3330 = vld [vmem:[#allocation6 + $0x898] sm:$0xff]
    %v3331 = vld [vmem:[#allocation6 + $0x8a0] sm:$0xff]
    %v3332 = vld [vmem:[#allocation6 + $0x8a8] sm:$0xf]
    %v3333 = vld [vmem:[#allocation6 + $0x8ac] sm:$0xff]
    %v3334 = vld [vmem:[#allocation6 + $0x8b4] sm:$0xff]
    %v3335 = vld [vmem:[#allocation6 + $0x8bc] sm:$0xf]
    %v3336 = vld [vmem:[#allocation6 + $0x8c0] sm:$0xff]
    %v3337 = vld [vmem:[#allocation6 + $0x8c8] sm:$0xff]
    %v3338 = vld [vmem:[#allocation6 + $0x8d0] sm:$0xf]
    %v3339 = vld [vmem:[#allocation6 + $0x8d4] sm:$0xff]
    %v3340 = vld [vmem:[#allocation6 + $0x8dc] sm:$0xff]
    %v3341 = vld [vmem:[#allocation6 + $0x8e4] sm:$0xf]
    %v3342 = vld [vmem:[#allocation6 + $0x8e8] sm:$0xff]
    %v3343 = vld [vmem:[#allocation6 + $0x8f0] sm:$0xff]
    %v3344 = vld [vmem:[#allocation6 + $0x8f8] sm:$0xf]
    %v3345 = vld [vmem:[#allocation6 + $0x8fc] sm:$0xff]
    %v3346 = vld [vmem:[#allocation6 + $0x904] sm:$0xff]
    %v3347 = vld [vmem:[#allocation6 + $0x90c] sm:$0xf]
    %v3348 = vld [vmem:[#allocation6 + $0x910] sm:$0xff]
    %v3349 = vld [vmem:[#allocation6 + $0x918] sm:$0xff]
    %v3350 = vld [vmem:[#allocation6 + $0x920] sm:$0xf]
    %v3351 = vld [vmem:[#allocation6 + $0x924] sm:$0xff]
    %v3352 = vld [vmem:[#allocation6 + $0x92c] sm:$0xff]
    %v3353 = vld [vmem:[#allocation6 + $0x934] sm:$0xf]
    %v3354 = vld [vmem:[#allocation6 + $0x938] sm:$0xff]
    %v3355 = vld [vmem:[#allocation6 + $0x940] sm:$0xff]
    %v3356 = vld [vmem:[#allocation6 + $0x948] sm:$0xf]
    %v3357 = vld [vmem:[#allocation6 + $0x94c] sm:$0xff]
    %v3358 = vld [vmem:[#allocation6 + $0x954] sm:$0xff]
    %v3359 = vld [vmem:[#allocation6 + $0x95c] sm:$0xf]
    %v3360 = vld [vmem:[#allocation6 + $0x960] sm:$0xff]
    %v3361 = vld [vmem:[#allocation6 + $0x968] sm:$0xff]
    %v3362 = vld [vmem:[#allocation6 + $0x970] sm:$0xf]
    %v3363 = vld [vmem:[#allocation6 + $0x974] sm:$0xff]
    %v3364 = vld [vmem:[#allocation6 + $0x97c] sm:$0xff]
    %v3365 = vld [vmem:[#allocation6 + $0x984] sm:$0xf]
    %v3366 = vld [vmem:[#allocation6 + $0x988] sm:$0xff]
    %v3367 = vld [vmem:[#allocation6 + $0x990] sm:$0xff]
    %v3368 = vld [vmem:[#allocation6 + $0x998] sm:$0xf]
    %v3369 = vld [vmem:[#allocation6 + $0x99c] sm:$0xff]
    %v3370 = vld [vmem:[#allocation6 + $0x9a4] sm:$0xff]
    %v3371 = vld [vmem:[#allocation6 + $0x9ac] sm:$0xf]
    %v3372 = vld [vmem:[#allocation6 + $0x9b0] sm:$0xff]
    %v3373 = vld [vmem:[#allocation6 + $0x9b8] sm:$0xff]
    %v3374 = vld [vmem:[#allocation6 + $0x9c0] sm:$0xf]
    %v3375 = vld [vmem:[#allocation6 + $0x9c4] sm:$0xff]
    %v3376 = vld [vmem:[#allocation6 + $0x9cc] sm:$0xff]
    %v3377 = vld [vmem:[#allocation6 + $0x9d4] sm:$0xf]
    %v3378 = vld [vmem:[#allocation6 + $0x9d8] sm:$0xff]
    %v3379 = vld [vmem:[#allocation6 + $0x9e0] sm:$0xff]
    %v3380 = vld [vmem:[#allocation6 + $0x9e8] sm:$0xf]
    %v3381 = vld [vmem:[#allocation6 + $0x9ec] sm:$0xff]
    %v3382 = vld [vmem:[#allocation6 + $0x9f4] sm:$0xff]
    %v3383 = vld [vmem:[#allocation6 + $0x9fc] sm:$0xf]
    %v3768 = vunpack.c.l.b16 %v3000
    %v3769 = vunpack.c.h.b16 %v3000
    %v3770 = vunpack.c.l.b16 %v3001
    %v3771 = vunpack.c.h.b16 %v3001
    %v3772 = vunpack.c.l.b16 %v3002
    %v3773 = vunpack.c.l.b16 %v3003
    %v3774 = vunpack.c.h.b16 %v3003
    %v3775 = vunpack.c.l.b16 %v3004
    %v3776 = vunpack.c.h.b16 %v3004
    %v3777 = vunpack.c.l.b16 %v3005
    %v3778 = vunpack.c.l.b16 %v3006
    %v3779 = vunpack.c.h.b16 %v3006
    %v3780 = vunpack.c.l.b16 %v3007
    %v3781 = vunpack.c.h.b16 %v3007
    %v3782 = vunpack.c.l.b16 %v3008
    %v3783 = vunpack.c.l.b16 %v3009
    %v3784 = vunpack.c.h.b16 %v3009
    %v3785 = vunpack.c.l.b16 %v3010
    %v3786 = vunpack.c.h.b16 %v3010
    %v3787 = vunpack.c.l.b16 %v3011
    %v3788 = vunpack.c.l.b16 %v3012
    %v3789 = vunpack.c.h.b16 %v3012
    %v3790 = vunpack.c.l.b16 %v3013
    %v3791 = vunpack.c.h.b16 %v3013
    %v3792 = vunpack.c.l.b16 %v3014
    %v3793 = vunpack.c.l.b16 %v3015
    %v3794 = vunpack.c.h.b16 %v3015
    %v3795 = vunpack.c.l.b16 %v3016
    %v3796 = vunpack.c.h.b16 %v3016
    %v3797 = vunpack.c.l.b16 %v3017
    %v3798 = vunpack.c.l.b16 %v3018
    %v3799 = vunpack.c.h.b16 %v3018
    %v3800 = vunpack.c.l.b16 %v3019
    %v3801 = vunpack.c.h.b16 %v3019
    %v3802 = vunpack.c.l.b16 %v3020
    %v3803 = vunpack.c.l.b16 %v3021
    %v3804 = vunpack.c.h.b16 %v3021
    %v3805 = vunpack.c.l.b16 %v3022
    %v3806 = vunpack.c.h.b16 %v3022
    %v3807 = vunpack.c.l.b16 %v3023
    %v3808 = vunpack.c.l.b16 %v3024
    %v3809 = vunpack.c.h.b16 %v3024
    %v3810 = vunpack.c.l.b16 %v3025
    %v3811 = vunpack.c.h.b16 %v3025
    %v3812 = vunpack.c.l.b16 %v3026
    %v3813 = vunpack.c.l.b16 %v3027
    %v3814 = vunpack.c.h.b16 %v3027
    %v3815 = vunpack.c.l.b16 %v3028
    %v3816 = vunpack.c.h.b16 %v3028
    %v3817 = vunpack.c.l.b16 %v3029
    %v3818 = vunpack.c.l.b16 %v3030
    %v3819 = vunpack.c.h.b16 %v3030
    %v3820 = vunpack.c.l.b16 %v3031
    %v3821 = vunpack.c.h.b16 %v3031
    %v3822 = vunpack.c.l.b16 %v3032
    %v3823 = vunpack.c.l.b16 %v3033
    %v3824 = vunpack.c.h.b16 %v3033
    %v3825 = vunpack.c.l.b16 %v3034
    %v3826 = vunpack.c.h.b16 %v3034
    %v3827 = vunpack.c.l.b16 %v3035
    %v3828 = vunpack.c.l.b16 %v3036
    %v3829 = vunpack.c.h.b16 %v3036
    %v3830 = vunpack.c.l.b16 %v3037
    %v3831 = vunpack.c.h.b16 %v3037
    %v3832 = vunpack.c.l.b16 %v3038
    %v3833 = vunpack.c.l.b16 %v3039
    %v3834 = vunpack.c.h.b16 %v3039
    %v3835 = vunpack.c.l.b16 %v3040
    %v3836 = vunpack.c.h.b16 %v3040
    %v3837 = vunpack.c.l.b16 %v3041
    %v3838 = vunpack.c.l.b16 %v3042
    %v3839 = vunpack.c.h.b16 %v3042
    %v3840 = vunpack.c.l.b16 %v3043
    %v3841 = vunpack.c.h.b16 %v3043
    %v3842 = vunpack.c.l.b16 %v3044
    %v3843 = vunpack.c.l.b16 %v3045
    %v3844 = vunpack.c.h.b16 %v3045
    %v3845 = vunpack.c.l.b16 %v3046
    %v3846 = vunpack.c.h.b16 %v3046
    %v3847 = vunpack.c.l.b16 %v3047
    %v3848 = vunpack.c.l.b16 %v3048
    %v3849 = vunpack.c.h.b16 %v3048
    %v3850 = vunpack.c.l.b16 %v3049
    %v3851 = vunpack.c.h.b16 %v3049
    %v3852 = vunpack.c.l.b16 %v3050
    %v3853 = vunpack.c.l.b16 %v3051
    %v3854 = vunpack.c.h.b16 %v3051
    %v3855 = vunpack.c.l.b16 %v3052
    %v3856 = vunpack.c.h.b16 %v3052
    %v3857 = vunpack.c.l.b16 %v3053
    %v3858 = vunpack.c.l.b16 %v3054
    %v3859 = vunpack.c.h.b16 %v3054
    %v3860 = vunpack.c.l.b16 %v3055
    %v3861 = vunpack.c.h.b16 %v3055
    %v3862 = vunpack.c.l.b16 %v3056
    %v3863 = vunpack.c.l.b16 %v3057
    %v3864 = vunpack.c.h.b16 %v3057
    %v3865 = vunpack.c.l.b16 %v3058
    %v3866 = vunpack.c.h.b16 %v3058
    %v3867 = vunpack.c.l.b16 %v3059
    %v3868 = vunpack.c.l.b16 %v3060
    %v3869 = vunpack.c.h.b16 %v3060
    %v3870 = vunpack.c.l.b16 %v3061
    %v3871 = vunpack.c.h.b16 %v3061
    %v3872 = vunpack.c.l.b16 %v3062
    %v3873 = vunpack.c.l.b16 %v3063
    %v3874 = vunpack.c.h.b16 %v3063
    %v3875 = vunpack.c.l.b16 %v3064
    %v3876 = vunpack.c.h.b16 %v3064
    %v3877 = vunpack.c.l.b16 %v3065
    %v3878 = vunpack.c.l.b16 %v3066
    %v3879 = vunpack.c.h.b16 %v3066
    %v3880 = vunpack.c.l.b16 %v3067
    %v3881 = vunpack.c.h.b16 %v3067
    %v3882 = vunpack.c.l.b16 %v3068
    %v3883 = vunpack.c.l.b16 %v3069
    %v3884 = vunpack.c.h.b16 %v3069
    %v3885 = vunpack.c.l.b16 %v3070
    %v3886 = vunpack.c.h.b16 %v3070
    %v3887 = vunpack.c.l.b16 %v3071
    %v3888 = vunpack.c.l.b16 %v3072
    %v3889 = vunpack.c.h.b16 %v3072
    %v3890 = vunpack.c.l.b16 %v3073
    %v3891 = vunpack.c.h.b16 %v3073
    %v3892 = vunpack.c.l.b16 %v3074
    %v3893 = vunpack.c.l.b16 %v3075
    %v3894 = vunpack.c.h.b16 %v3075
    %v3895 = vunpack.c.l.b16 %v3076
    %v3896 = vunpack.c.h.b16 %v3076
    %v3897 = vunpack.c.l.b16 %v3077
    %v3898 = vunpack.c.l.b16 %v3078
    %v3899 = vunpack.c.h.b16 %v3078
    %v3900 = vunpack.c.l.b16 %v3079
    %v3901 = vunpack.c.h.b16 %v3079
    %v3902 = vunpack.c.l.b16 %v3080
    %v3903 = vunpack.c.l.b16 %v3081
    %v3904 = vunpack.c.h.b16 %v3081
    %v3905 = vunpack.c.l.b16 %v3082
    %v3906 = vunpack.c.h.b16 %v3082
    %v3907 = vunpack.c.l.b16 %v3083
    %v3908 = vunpack.c.l.b16 %v3084
    %v3909 = vunpack.c.h.b16 %v3084
    %v3910 = vunpack.c.l.b16 %v3085
    %v3911 = vunpack.c.h.b16 %v3085
    %v3912 = vunpack.c.l.b16 %v3086
    %v3913 = vunpack.c.l.b16 %v3087
    %v3914 = vunpack.c.h.b16 %v3087
    %v3915 = vunpack.c.l.b16 %v3088
    %v3916 = vunpack.c.h.b16 %v3088
    %v3917 = vunpack.c.l.b16 %v3089
    %v3918 = vunpack.c.l.b16 %v3090
    %v3919 = vunpack.c.h.b16 %v3090
    %v3920 = vunpack.c.l.b16 %v3091
    %v3921 = vunpack.c.h.b16 %v3091
    %v3922 = vunpack.c.l.b16 %v3092
    %v3923 = vunpack.c.l.b16 %v3093
    %v3924 = vunpack.c.h.b16 %v3093
    %v3925 = vunpack.c.l.b16 %v3094
    %v3926 = vunpack.c.h.b16 %v3094
    %v3927 = vunpack.c.l.b16 %v3095
    %v3928 = vunpack.c.l.b16 %v3096
    %v3929 = vunpack.c.h.b16 %v3096
    %v3930 = vunpack.c.l.b16 %v3097
    %v3931 = vunpack.c.h.b16 %v3097
    %v3932 = vunpack.c.l.b16 %v3098
    %v3933 = vunpack.c.l.b16 %v3099
    %v3934 = vunpack.c.h.b16 %v3099
    %v3935 = vunpack.c.l.b16 %v3100
    %v3936 = vunpack.c.h.b16 %v3100
    %v3937 = vunpack.c.l.b16 %v3101
    %v3938 = vunpack.c.l.b16 %v3102
    %v3939 = vunpack.c.h.b16 %v3102
    %v3940 = vunpack.c.l.b16 %v3103
    %v3941 = vunpack.c.h.b16 %v3103
    %v3942 = vunpack.c.l.b16 %v3104
    %v3943 = vunpack.c.l.b16 %v3105
    %v3944 = vunpack.c.h.b16 %v3105
    %v3945 = vunpack.c.l.b16 %v3106
    %v3946 = vunpack.c.h.b16 %v3106
    %v3947 = vunpack.c.l.b16 %v3107
    %v3948 = vunpack.c.l.b16 %v3108
    %v3949 = vunpack.c.h.b16 %v3108
    %v3950 = vunpack.c.l.b16 %v3109
    %v3951 = vunpack.c.h.b16 %v3109
    %v3952 = vunpack.c.l.b16 %v3110
    %v3953 = vunpack.c.l.b16 %v3111
    %v3954 = vunpack.c.h.b16 %v3111
    %v3955 = vunpack.c.l.b16 %v3112
    %v3956 = vunpack.c.h.b16 %v3112
    %v3957 = vunpack.c.l.b16 %v3113
    %v3958 = vunpack.c.l.b16 %v3114
    %v3959 = vunpack.c.h.b16 %v3114
    %v3960 = vunpack.c.l.b16 %v3115
    %v3961 = vunpack.c.h.b16 %v3115
    %v3962 = vunpack.c.l.b16 %v3116
    %v3963 = vunpack.c.l.b16 %v3117
    %v3964 = vunpack.c.h.b16 %v3117
    %v3965 = vunpack.c.l.b16 %v3118
    %v3966 = vunpack.c.h.b16 %v3118
    %v3967 = vunpack.c.l.b16 %v3119
    %v3968 = vunpack.c.l.b16 %v3120
    %v3969 = vunpack.c.h.b16 %v3120
    %v3970 = vunpack.c.l.b16 %v3121
    %v3971 = vunpack.c.h.b16 %v3121
    %v3972 = vunpack.c.l.b16 %v3122
    %v3973 = vunpack.c.l.b16 %v3123
    %v3974 = vunpack.c.h.b16 %v3123
    %v3975 = vunpack.c.l.b16 %v3124
    %v3976 = vunpack.c.h.b16 %v3124
    %v3977 = vunpack.c.l.b16 %v3125
    %v3978 = vunpack.c.l.b16 %v3126
    %v3979 = vunpack.c.h.b16 %v3126
    %v3980 = vunpack.c.l.b16 %v3127
    %v3981 = vunpack.c.h.b16 %v3127
    %v3982 = vunpack.c.l.b16 %v3128
    %v3983 = vunpack.c.l.b16 %v3129
    %v3984 = vunpack.c.h.b16 %v3129
    %v3985 = vunpack.c.l.b16 %v3130
    %v3986 = vunpack.c.h.b16 %v3130
    %v3987 = vunpack.c.l.b16 %v3131
    %v3988 = vunpack.c.l.b16 %v3132
    %v3989 = vunpack.c.h.b16 %v3132
    %v3990 = vunpack.c.l.b16 %v3133
    %v3991 = vunpack.c.h.b16 %v3133
    %v3992 = vunpack.c.l.b16 %v3134
    %v3993 = vunpack.c.l.b16 %v3135
    %v3994 = vunpack.c.h.b16 %v3135
    %v3995 = vunpack.c.l.b16 %v3136
    %v3996 = vunpack.c.h.b16 %v3136
    %v3997 = vunpack.c.l.b16 %v3137
    %v3998 = vunpack.c.l.b16 %v3138
    %v3999 = vunpack.c.h.b16 %v3138
    %v4000 = vunpack.c.l.b16 %v3139
    %v4001 = vunpack.c.h.b16 %v3139
    %v4002 = vunpack.c.l.b16 %v3140
    %v4003 = vunpack.c.l.b16 %v3141
    %v4004 = vunpack.c.h.b16 %v3141
    %v4005 = vunpack.c.l.b16 %v3142
    %v4006 = vunpack.c.h.b16 %v3142
    %v4007 = vunpack.c.l.b16 %v3143
    %v4008 = vunpack.c.l.b16 %v3144
    %v4009 = vunpack.c.h.b16 %v3144
    %v4010 = vunpack.c.l.b16 %v3145
    %v4011 = vunpack.c.h.b16 %v3145
    %v4012 = vunpack.c.l.b16 %v3146
    %v4013 = vunpack.c.l.b16 %v3147
    %v4014 = vunpack.c.h.b16 %v3147
    %v4015 = vunpack.c.l.b16 %v3148
    %v4016 = vunpack.c.h.b16 %v3148
    %v4017 = vunpack.c.l.b16 %v3149
    %v4018 = vunpack.c.l.b16 %v3150
    %v4019 = vunpack.c.h.b16 %v3150
    %v4020 = vunpack.c.l.b16 %v3151
    %v4021 = vunpack.c.h.b16 %v3151
    %v4022 = vunpack.c.l.b16 %v3152
    %v4023 = vunpack.c.l.b16 %v3153
    %v4024 = vunpack.c.h.b16 %v3153
    %v4025 = vunpack.c.l.b16 %v3154
    %v4026 = vunpack.c.h.b16 %v3154
    %v4027 = vunpack.c.l.b16 %v3155
    %v4028 = vunpack.c.l.b16 %v3156
    %v4029 = vunpack.c.h.b16 %v3156
    %v4030 = vunpack.c.l.b16 %v3157
    %v4031 = vunpack.c.h.b16 %v3157
    %v4032 = vunpack.c.l.b16 %v3158
    %v4033 = vunpack.c.l.b16 %v3159
    %v4034 = vunpack.c.h.b16 %v3159
    %v4035 = vunpack.c.l.b16 %v3160
    %v4036 = vunpack.c.h.b16 %v3160
    %v4037 = vunpack.c.l.b16 %v3161
    %v4038 = vunpack.c.l.b16 %v3162
    %v4039 = vunpack.c.h.b16 %v3162
    %v4040 = vunpack.c.l.b16 %v3163
    %v4041 = vunpack.c.h.b16 %v3163
    %v4042 = vunpack.c.l.b16 %v3164
    %v4043 = vunpack.c.l.b16 %v3165
    %v4044 = vunpack.c.h.b16 %v3165
    %v4045 = vunpack.c.l.b16 %v3166
    %v4046 = vunpack.c.h.b16 %v3166
    %v4047 = vunpack.c.l.b16 %v3167
    %v4048 = vunpack.c.l.b16 %v3168
    %v4049 = vunpack.c.h.b16 %v3168
    %v4050 = vunpack.c.l.b16 %v3169
    %v4051 = vunpack.c.h.b16 %v3169
    %v4052 = vunpack.c.l.b16 %v3170
    %v4053 = vunpack.c.l.b16 %v3171
    %v4054 = vunpack.c.h.b16 %v3171
    %v4055 = vunpack.c.l.b16 %v3172
    %v4056 = vunpack.c.h.b16 %v3172
    %v4057 = vunpack.c.l.b16 %v3173
    %v4058 = vunpack.c.l.b16 %v3174
    %v4059 = vunpack.c.h.b16 %v3174
    %v4060 = vunpack.c.l.b16 %v3175
    %v4061 = vunpack.c.h.b16 %v3175
    %v4062 = vunpack.c.l.b16 %v3176
    %v4063 = vunpack.c.l.b16 %v3177
    %v4064 = vunpack.c.h.b16 %v3177
    %v4065 = vunpack.c.l.b16 %v3178
    %v4066 = vunpack.c.h.b16 %v3178
    %v4067 = vunpack.c.l.b16 %v3179
    %v4068 = vunpack.c.l.b16 %v3180
    %v4069 = vunpack.c.h.b16 %v3180
    %v4070 = vunpack.c.l.b16 %v3181
    %v4071 = vunpack.c.h.b16 %v3181
    %v4072 = vunpack.c.l.b16 %v3182
    %v4073 = vunpack.c.l.b16 %v3183
    %v4074 = vunpack.c.h.b16 %v3183
    %v4075 = vunpack.c.l.b16 %v3184
    %v4076 = vunpack.c.h.b16 %v3184
    %v4077 = vunpack.c.l.b16 %v3185
    %v4078 = vunpack.c.l.b16 %v3186
    %v4079 = vunpack.c.h.b16 %v3186
    %v4080 = vunpack.c.l.b16 %v3187
    %v4081 = vunpack.c.h.b16 %v3187
    %v4082 = vunpack.c.l.b16 %v3188
    %v4083 = vunpack.c.l.b16 %v3189
    %v4084 = vunpack.c.h.b16 %v3189
    %v4085 = vunpack.c.l.b16 %v3190
    %v4086 = vunpack.c.h.b16 %v3190
    %v4087 = vunpack.c.l.b16 %v3191
    %v4088 = vunpack.c.l.b16 %v3192
    %v4089 = vunpack.c.h.b16 %v3192
    %v4090 = vunpack.c.l.b16 %v3193
    %v4091 = vunpack.c.h.b16 %v3193
    %v4092 = vunpack.c.l.b16 %v3194
    %v4093 = vunpack.c.l.b16 %v3195
    %v4094 = vunpack.c.h.b16 %v3195
    %v4095 = vunpack.c.l.b16 %v3196
    %v4096 = vunpack.c.h.b16 %v3196
    %v4097 = vunpack.c.l.b16 %v3197
    %v4098 = vunpack.c.l.b16 %v3198
    %v4099 = vunpack.c.h.b16 %v3198
    %v4100 = vunpack.c.l.b16 %v3199
    %v4101 = vunpack.c.h.b16 %v3199
    %v4102 = vunpack.c.l.b16 %v3200
    %v4103 = vunpack.c.l.b16 %v3201
    %v4104 = vunpack.c.h.b16 %v3201
    %v4105 = vunpack.c.l.b16 %v3202
    %v4106 = vunpack.c.h.b16 %v3202
    %v4107 = vunpack.c.l.b16 %v3203
    %v4108 = vunpack.c.l.b16 %v3204
    %v4109 = vunpack.c.h.b16 %v3204
    %v4110 = vunpack.c.l.b16 %v3205
    %v4111 = vunpack.c.h.b16 %v3205
    %v4112 = vunpack.c.l.b16 %v3206
    %v4113 = vunpack.c.l.b16 %v3207
    %v4114 = vunpack.c.h.b16 %v3207
    %v4115 = vunpack.c.l.b16 %v3208
    %v4116 = vunpack.c.h.b16 %v3208
    %v4117 = vunpack.c.l.b16 %v3209
    %v4118 = vunpack.c.l.b16 %v3210
    %v4119 = vunpack.c.h.b16 %v3210
    %v4120 = vunpack.c.l.b16 %v3211
    %v4121 = vunpack.c.h.b16 %v3211
    %v4122 = vunpack.c.l.b16 %v3212
    %v4123 = vunpack.c.l.b16 %v3213
    %v4124 = vunpack.c.h.b16 %v3213
    %v4125 = vunpack.c.l.b16 %v3214
    %v4126 = vunpack.c.h.b16 %v3214
    %v4127 = vunpack.c.l.b16 %v3215
    %v4128 = vunpack.c.l.b16 %v3216
    %v4129 = vunpack.c.h.b16 %v3216
    %v4130 = vunpack.c.l.b16 %v3217
    %v4131 = vunpack.c.h.b16 %v3217
    %v4132 = vunpack.c.l.b16 %v3218
    %v4133 = vunpack.c.l.b16 %v3219
    %v4134 = vunpack.c.h.b16 %v3219
    %v4135 = vunpack.c.l.b16 %v3220
    %v4136 = vunpack.c.h.b16 %v3220
    %v4137 = vunpack.c.l.b16 %v3221
    %v4138 = vunpack.c.l.b16 %v3222
    %v4139 = vunpack.c.h.b16 %v3222
    %v4140 = vunpack.c.l.b16 %v3223
    %v4141 = vunpack.c.h.b16 %v3223
    %v4142 = vunpack.c.l.b16 %v3224
    %v4143 = vunpack.c.l.b16 %v3225
    %v4144 = vunpack.c.h.b16 %v3225
    %v4145 = vunpack.c.l.b16 %v3226
    %v4146 = vunpack.c.h.b16 %v3226
    %v4147 = vunpack.c.l.b16 %v3227
    %v4148 = vunpack.c.l.b16 %v3228
    %v4149 = vunpack.c.h.b16 %v3228
    %v4150 = vunpack.c.l.b16 %v3229
    %v4151 = vunpack.c.h.b16 %v3229
    %v4152 = vunpack.c.l.b16 %v3230
    %v4153 = vunpack.c.l.b16 %v3231
    %v4154 = vunpack.c.h.b16 %v3231
    %v4155 = vunpack.c.l.b16 %v3232
    %v4156 = vunpack.c.h.b16 %v3232
    %v4157 = vunpack.c.l.b16 %v3233
    %v4158 = vunpack.c.l.b16 %v3234
    %v4159 = vunpack.c.h.b16 %v3234
    %v4160 = vunpack.c.l.b16 %v3235
    %v4161 = vunpack.c.h.b16 %v3235
    %v4162 = vunpack.c.l.b16 %v3236
    %v4163 = vunpack.c.l.b16 %v3237
    %v4164 = vunpack.c.h.b16 %v3237
    %v4165 = vunpack.c.l.b16 %v3238
    %v4166 = vunpack.c.h.b16 %v3238
    %v4167 = vunpack.c.l.b16 %v3239
    %v4168 = vunpack.c.l.b16 %v3240
    %v4169 = vunpack.c.h.b16 %v3240
    %v4170 = vunpack.c.l.b16 %v3241
    %v4171 = vunpack.c.h.b16 %v3241
    %v4172 = vunpack.c.l.b16 %v3242
    %v4173 = vunpack.c.l.b16 %v3243
    %v4174 = vunpack.c.h.b16 %v3243
    %v4175 = vunpack.c.l.b16 %v3244
    %v4176 = vunpack.c.h.b16 %v3244
    %v4177 = vunpack.c.l.b16 %v3245
    %v4178 = vunpack.c.l.b16 %v3246
    %v4179 = vunpack.c.h.b16 %v3246
    %v4180 = vunpack.c.l.b16 %v3247
    %v4181 = vunpack.c.h.b16 %v3247
    %v4182 = vunpack.c.l.b16 %v3248
    %v4183 = vunpack.c.l.b16 %v3249
    %v4184 = vunpack.c.h.b16 %v3249
    %v4185 = vunpack.c.l.b16 %v3250
    %v4186 = vunpack.c.h.b16 %v3250
    %v4187 = vunpack.c.l.b16 %v3251
    %v4188 = vunpack.c.l.b16 %v3252
    %v4189 = vunpack.c.h.b16 %v3252
    %v4190 = vunpack.c.l.b16 %v3253
    %v4191 = vunpack.c.h.b16 %v3253
    %v4192 = vunpack.c.l.b16 %v3254
    %v4193 = vunpack.c.l.b16 %v3255
    %v4194 = vunpack.c.h.b16 %v3255
    %v4195 = vunpack.c.l.b16 %v3256
    %v4196 = vunpack.c.h.b16 %v3256
    %v4197 = vunpack.c.l.b16 %v3257
    %v4198 = vunpack.c.l.b16 %v3258
    %v4199 = vunpack.c.h.b16 %v3258
    %v4200 = vunpack.c.l.b16 %v3259
    %v4201 = vunpack.c.h.b16 %v3259
    %v4202 = vunpack.c.l.b16 %v3260
    %v4203 = vunpack.c.l.b16 %v3261
    %v4204 = vunpack.c.h.b16 %v3261
    %v4205 = vunpack.c.l.b16 %v3262
    %v4206 = vunpack.c.h.b16 %v3262
    %v4207 = vunpack.c.l.b16 %v3263
    %v4208 = vunpack.c.l.b16 %v3264
    %v4209 = vunpack.c.h.b16 %v3264
    %v4210 = vunpack.c.l.b16 %v3265
    %v4211 = vunpack.c.h.b16 %v3265
    %v4212 = vunpack.c.l.b16 %v3266
    %v4213 = vunpack.c.l.b16 %v3267
    %v4214 = vunpack.c.h.b16 %v3267
    %v4215 = vunpack.c.l.b16 %v3268
    %v4216 = vunpack.c.h.b16 %v3268
    %v4217 = vunpack.c.l.b16 %v3269
    %v4218 = vunpack.c.l.b16 %v3270
    %v4219 = vunpack.c.h.b16 %v3270
    %v4220 = vunpack.c.l.b16 %v3271
    %v4221 = vunpack.c.h.b16 %v3271
    %v4222 = vunpack.c.l.b16 %v3272
    %v4223 = vunpack.c.l.b16 %v3273
    %v4224 = vunpack.c.h.b16 %v3273
    %v4225 = vunpack.c.l.b16 %v3274
    %v4226 = vunpack.c.h.b16 %v3274
    %v4227 = vunpack.c.l.b16 %v3275
    %v4228 = vunpack.c.l.b16 %v3276
    %v4229 = vunpack.c.h.b16 %v3276
    %v4230 = vunpack.c.l.b16 %v3277
    %v4231 = vunpack.c.h.b16 %v3277
    %v4232 = vunpack.c.l.b16 %v3278
    %v4233 = vunpack.c.l.b16 %v3279
    %v4234 = vunpack.c.h.b16 %v3279
    %v4235 = vunpack.c.l.b16 %v3280
    %v4236 = vunpack.c.h.b16 %v3280
    %v4237 = vunpack.c.l.b16 %v3281
    %v4238 = vunpack.c.l.b16 %v3282
    %v4239 = vunpack.c.h.b16 %v3282
    %v4240 = vunpack.c.l.b16 %v3283
    %v4241 = vunpack.c.h.b16 %v3283
    %v4242 = vunpack.c.l.b16 %v3284
    %v4243 = vunpack.c.l.b16 %v3285
    %v4244 = vunpack.c.h.b16 %v3285
    %v4245 = vunpack.c.l.b16 %v3286
    %v4246 = vunpack.c.h.b16 %v3286
    %v4247 = vunpack.c.l.b16 %v3287
    %v4248 = vunpack.c.l.b16 %v3288
    %v4249 = vunpack.c.h.b16 %v3288
    %v4250 = vunpack.c.l.b16 %v3289
    %v4251 = vunpack.c.h.b16 %v3289
    %v4252 = vunpack.c.l.b16 %v3290
    %v4253 = vunpack.c.l.b16 %v3291
    %v4254 = vunpack.c.h.b16 %v3291
    %v4255 = vunpack.c.l.b16 %v3292
    %v4256 = vunpack.c.h.b16 %v3292
    %v4257 = vunpack.c.l.b16 %v3293
    %v4258 = vunpack.c.l.b16 %v3294
    %v4259 = vunpack.c.h.b16 %v3294
    %v4260 = vunpack.c.l.b16 %v3295
    %v4261 = vunpack.c.h.b16 %v3295
    %v4262 = vunpack.c.l.b16 %v3296
    %v4263 = vunpack.c.l.b16 %v3297
    %v4264 = vunpack.c.h.b16 %v3297
    %v4265 = vunpack.c.l.b16 %v3298
    %v4266 = vunpack.c.h.b16 %v3298
    %v4267 = vunpack.c.l.b16 %v3299
    %v4268 = vunpack.c.l.b16 %v3300
    %v4269 = vunpack.c.h.b16 %v3300
    %v4270 = vunpack.c.l.b16 %v3301
    %v4271 = vunpack.c.h.b16 %v3301
    %v4272 = vunpack.c.l.b16 %v3302
    %v4273 = vunpack.c.l.b16 %v3303
    %v4274 = vunpack.c.h.b16 %v3303
    %v4275 = vunpack.c.l.b16 %v3304
    %v4276 = vunpack.c.h.b16 %v3304
    %v4277 = vunpack.c.l.b16 %v3305
    %v4278 = vunpack.c.l.b16 %v3306
    %v4279 = vunpack.c.h.b16 %v3306
    %v4280 = vunpack.c.l.b16 %v3307
    %v4281 = vunpack.c.h.b16 %v3307
    %v4282 = vunpack.c.l.b16 %v3308
    %v4283 = vunpack.c.l.b16 %v3309
    %v4284 = vunpack.c.h.b16 %v3309
    %v4285 = vunpack.c.l.b16 %v3310
    %v4286 = vunpack.c.h.b16 %v3310
    %v4287 = vunpack.c.l.b16 %v3311
    %v4288 = vunpack.c.l.b16 %v3312
    %v4289 = vunpack.c.h.b16 %v3312
    %v4290 = vunpack.c.l.b16 %v3313
    %v4291 = vunpack.c.h.b16 %v3313
    %v4292 = vunpack.c.l.b16 %v3314
    %v4293 = vunpack.c.l.b16 %v3315
    %v4294 = vunpack.c.h.b16 %v3315
    %v4295 = vunpack.c.l.b16 %v3316
    %v4296 = vunpack.c.h.b16 %v3316
    %v4297 = vunpack.c.l.b16 %v3317
    %v4298 = vunpack.c.l.b16 %v3318
    %v4299 = vunpack.c.h.b16 %v3318
    %v4300 = vunpack.c.l.b16 %v3319
    %v4301 = vunpack.c.h.b16 %v3319
    %v4302 = vunpack.c.l.b16 %v3320
    %v4303 = vunpack.c.l.b16 %v3321
    %v4304 = vunpack.c.h.b16 %v3321
    %v4305 = vunpack.c.l.b16 %v3322
    %v4306 = vunpack.c.h.b16 %v3322
    %v4307 = vunpack.c.l.b16 %v3323
    %v4308 = vunpack.c.l.b16 %v3324
    %v4309 = vunpack.c.h.b16 %v3324
    %v4310 = vunpack.c.l.b16 %v3325
    %v4311 = vunpack.c.h.b16 %v3325
    %v4312 = vunpack.c.l.b16 %v3326
    %v4313 = vunpack.c.l.b16 %v3327
    %v4314 = vunpack.c.h.b16 %v3327
    %v4315 = vunpack.c.l.b16 %v3328
    %v4316 = vunpack.c.h.b16 %v3328
    %v4317 = vunpack.c.l.b16 %v3329
    %v4318 = vunpack.c.l.b16 %v3330
    %v4319 = vunpack.c.h.b16 %v3330
    %v4320 = vunpack.c.l.b16 %v3331
    %v4321 = vunpack.c.h.b16 %v3331
    %v4322 = vunpack.c.l.b16 %v3332
    %v4323 = vunpack.c.l.b16 %v3333
    %v4324 = vunpack.c.h.b16 %v3333
    %v4325 = vunpack.c.l.b16 %v3334
    %v4326 = vunpack.c.h.b16 %v3334
    %v4327 = vunpack.c.l.b16 %v3335
    %v4328 = vunpack.c.l.b16 %v3336
    %v4329 = vunpack.c.h.b16 %v3336
    %v4330 = vunpack.c.l.b16 %v3337
    %v4331 = vunpack.c.h.b16 %v3337
    %v4332 = vunpack.c.l.b16 %v3338
    %v4333 = vunpack.c.l.b16 %v3339
    %v4334 = vunpack.c.h.b16 %v3339
    %v4335 = vunpack.c.l.b16 %v3340
    %v4336 = vunpack.c.h.b16 %v3340
    %v4337 = vunpack.c.l.b16 %v3341
    %v4338 = vunpack.c.l.b16 %v3342
    %v4339 = vunpack.c.h.b16 %v3342
    %v4340 = vunpack.c.l.b16 %v3343
    %v4341 = vunpack.c.h.b16 %v3343
    %v4342 = vunpack.c.l.b16 %v3344
    %v4343 = vunpack.c.l.b16 %v3345
    %v4344 = vunpack.c.h.b16 %v3345
    %v4345 = vunpack.c.l.b16 %v3346
    %v4346 = vunpack.c.h.b16 %v3346
    %v4347 = vunpack.c.l.b16 %v3347
    %v4348 = vunpack.c.l.b16 %v3348
    %v4349 = vunpack.c.h.b16 %v3348
    %v4350 = vunpack.c.l.b16 %v3349
    %v4351 = vunpack.c.h.b16 %v3349
    %v4352 = vunpack.c.l.b16 %v3350
    %v4353 = vunpack.c.l.b16 %v3351
    %v4354 = vunpack.c.h.b16 %v3351
    %v4355 = vunpack.c.l.b16 %v3352
    %v4356 = vunpack.c.h.b16 %v3352
    %v4357 = vunpack.c.l.b16 %v3353
    %v4358 = vunpack.c.l.b16 %v3354
    %v4359 = vunpack.c.h.b16 %v3354
    %v4360 = vunpack.c.l.b16 %v3355
    %v4361 = vunpack.c.h.b16 %v3355
    %v4362 = vunpack.c.l.b16 %v3356
    %v4363 = vunpack.c.l.b16 %v3357
    %v4364 = vunpack.c.h.b16 %v3357
    %v4365 = vunpack.c.l.b16 %v3358
    %v4366 = vunpack.c.h.b16 %v3358
    %v4367 = vunpack.c.l.b16 %v3359
    %v4368 = vunpack.c.l.b16 %v3360
    %v4369 = vunpack.c.h.b16 %v3360
    %v4370 = vunpack.c.l.b16 %v3361
    %v4371 = vunpack.c.h.b16 %v3361
    %v4372 = vunpack.c.l.b16 %v3362
    %v4373 = vunpack.c.l.b16 %v3363
    %v4374 = vunpack.c.h.b16 %v3363
    %v4375 = vunpack.c.l.b16 %v3364
    %v4376 = vunpack.c.h.b16 %v3364
    %v4377 = vunpack.c.l.b16 %v3365
    %v4378 = vunpack.c.l.b16 %v3366
    %v4379 = vunpack.c.h.b16 %v3366
    %v4380 = vunpack.c.l.b16 %v3367
    %v4381 = vunpack.c.h.b16 %v3367
    %v4382 = vunpack.c.l.b16 %v3368
    %v4383 = vunpack.c.l.b16 %v3369
    %v4384 = vunpack.c.h.b16 %v3369
    %v4385 = vunpack.c.l.b16 %v3370
    %v4386 = vunpack.c.h.b16 %v3370
    %v4387 = vunpack.c.l.b16 %v3371
    %v4388 = vunpack.c.l.b16 %v3372
    %v4389 = vunpack.c.h.b16 %v3372
    %v4390 = vunpack.c.l.b16 %v3373
    %v4391 = vunpack.c.h.b16 %v3373
    %v4392 = vunpack.c.l.b16 %v3374
    %v4393 = vunpack.c.l.b16 %v3375
    %v4394 = vunpack.c.h.b16 %v3375
    %v4395 = vunpack.c.l.b16 %v3376
    %v4396 = vunpack.c.h.b16 %v3376
    %v4397 = vunpack.c.l.b16 %v3377
    %v4398 = vunpack.c.l.b16 %v3378
    %v4399 = vunpack.c.h.b16 %v3378
    %v4400 = vunpack.c.l.b16 %v3379
    %v4401 = vunpack.c.h.b16 %v3379
    %v4402 = vunpack.c.l.b16 %v3380
    %v4403 = vunpack.c.l.b16 %v3381
    %v4404 = vunpack.c.h.b16 %v3381
    %v4405 = vunpack.c.l.b16 %v3382
    %v4406 = vunpack.c.h.b16 %v3382
    %v4407 = vunpack.c.l.b16 %v3383
    %v4408 = vpack.c.b16 %v3773, %v3768
    %v4409 = vpack.c.b16 %v3774, %v3769
    %v4410 = vpack.c.b16 %v3775, %v3770
    %v4411 = vpack.c.b16 %v3776, %v3771
    %v4412 = vpack.c.b16 %v3777, %v3772
    %v4413 = vpack.c.b16 %v3783, %v3778
    %v4414 = vpack.c.b16 %v3784, %v3779
    %v4415 = vpack.c.b16 %v3785, %v3780
    %v4416 = vpack.c.b16 %v3786, %v3781
    %v4417 = vpack.c.b16 %v3787, %v3782
    %v4418 = vpack.c.b16 %v3793, %v3788
    %v4419 = vpack.c.b16 %v3794, %v3789
    %v4420 = vpack.c.b16 %v3795, %v3790
    %v4421 = vpack.c.b16 %v3796, %v3791
    %v4422 = vpack.c.b16 %v3797, %v3792
    %v4423 = vpack.c.b16 %v3803, %v3798
    %v4424 = vpack.c.b16 %v3804, %v3799
    %v4425 = vpack.c.b16 %v3805, %v3800
    %v4426 = vpack.c.b16 %v3806, %v3801
    %v4427 = vpack.c.b16 %v3807, %v3802
    %v4428 = vpack.c.b16 %v3813, %v3808
    %v4429 = vpack.c.b16 %v3814, %v3809
    %v4430 = vpack.c.b16 %v3815, %v3810
    %v4431 = vpack.c.b16 %v3816, %v3811
    %v4432 = vpack.c.b16 %v3817, %v3812
    %v4433 = vpack.c.b16 %v3823, %v3818
    %v4434 = vpack.c.b16 %v3824, %v3819
    %v4435 = vpack.c.b16 %v3825, %v3820
    %v4436 = vpack.c.b16 %v3826, %v3821
    %v4437 = vpack.c.b16 %v3827, %v3822
    %v4438 = vpack.c.b16 %v3833, %v3828
    %v4439 = vpack.c.b16 %v3834, %v3829
    %v4440 = vpack.c.b16 %v3835, %v3830
    %v4441 = vpack.c.b16 %v3836, %v3831
    %v4442 = vpack.c.b16 %v3837, %v3832
    %v4443 = vpack.c.b16 %v3843, %v3838
    %v4444 = vpack.c.b16 %v3844, %v3839
    %v4445 = vpack.c.b16 %v3845, %v3840
    %v4446 = vpack.c.b16 %v3846, %v3841
    %v4447 = vpack.c.b16 %v3847, %v3842
    %v4448 = vpack.c.b16 %v3853, %v3848
    %v4449 = vpack.c.b16 %v3854, %v3849
    %v4450 = vpack.c.b16 %v3855, %v3850
    %v4451 = vpack.c.b16 %v3856, %v3851
    %v4452 = vpack.c.b16 %v3857, %v3852
    %v4453 = vpack.c.b16 %v3863, %v3858
    %v4454 = vpack.c.b16 %v3864, %v3859
    %v4455 = vpack.c.b16 %v3865, %v3860
    %v4456 = vpack.c.b16 %v3866, %v3861
    %v4457 = vpack.c.b16 %v3867, %v3862
    %v4458 = vpack.c.b16 %v3873, %v3868
    %v4459 = vpack.c.b16 %v3874, %v3869
    %v4460 = vpack.c.b16 %v3875, %v3870
    %v4461 = vpack.c.b16 %v3876, %v3871
    %v4462 = vpack.c.b16 %v3877, %v3872
    %v4463 = vpack.c.b16 %v3883, %v3878
    %v4464 = vpack.c.b16 %v3884, %v3879
    %v4465 = vpack.c.b16 %v3885, %v3880
    %v4466 = vpack.c.b16 %v3886, %v3881
    %v4467 = vpack.c.b16 %v3887, %v3882
    %v4468 = vpack.c.b16 %v3893, %v3888
    %v4469 = vpack.c.b16 %v3894, %v3889
    %v4470 = vpack.c.b16 %v3895, %v3890
    %v4471 = vpack.c.b16 %v3896, %v3891
    %v4472 = vpack.c.b16 %v3897, %v3892
    %v4473 = vpack.c.b16 %v3903, %v3898
    %v4474 = vpack.c.b16 %v3904, %v3899
    %v4475 = vpack.c.b16 %v3905, %v3900
    %v4476 = vpack.c.b16 %v3906, %v3901
    %v4477 = vpack.c.b16 %v3907, %v3902
    %v4478 = vpack.c.b16 %v3913, %v3908
    %v4479 = vpack.c.b16 %v3914, %v3909
    %v4480 = vpack.c.b16 %v3915, %v3910
    %v4481 = vpack.c.b16 %v3916, %v3911
    %v4482 = vpack.c.b16 %v3917, %v3912
    %v4483 = vpack.c.b16 %v3923, %v3918
    %v4484 = vpack.c.b16 %v3924, %v3919
    %v4485 = vpack.c.b16 %v3925, %v3920
    %v4486 = vpack.c.b16 %v3926, %v3921
    %v4487 = vpack.c.b16 %v3927, %v3922
    %v4488 = vpack.c.b16 %v3933, %v3928
    %v4489 = vpack.c.b16 %v3934, %v3929
    %v4490 = vpack.c.b16 %v3935, %v3930
    %v4491 = vpack.c.b16 %v3936, %v3931
    %v4492 = vpack.c.b16 %v3937, %v3932
    %v4493 = vpack.c.b16 %v3943, %v3938
    %v4494 = vpack.c.b16 %v3944, %v3939
    %v4495 = vpack.c.b16 %v3945, %v3940
    %v4496 = vpack.c.b16 %v3946, %v3941
    %v4497 = vpack.c.b16 %v3947, %v3942
    %v4498 = vpack.c.b16 %v3953, %v3948
    %v4499 = vpack.c.b16 %v3954, %v3949
    %v4500 = vpack.c.b16 %v3955, %v3950
    %v4501 = vpack.c.b16 %v3956, %v3951
    %v4502 = vpack.c.b16 %v3957, %v3952
    %v4503 = vpack.c.b16 %v3963, %v3958
    %v4504 = vpack.c.b16 %v3964, %v3959
    %v4505 = vpack.c.b16 %v3965, %v3960
    %v4506 = vpack.c.b16 %v3966, %v3961
    %v4507 = vpack.c.b16 %v3967, %v3962
    %v4508 = vpack.c.b16 %v3973, %v3968
    %v4509 = vpack.c.b16 %v3974, %v3969
    %v4510 = vpack.c.b16 %v3975, %v3970
    %v4511 = vpack.c.b16 %v3976, %v3971
    %v4512 = vpack.c.b16 %v3977, %v3972
    %v4513 = vpack.c.b16 %v3983, %v3978
    %v4514 = vpack.c.b16 %v3984, %v3979
    %v4515 = vpack.c.b16 %v3985, %v3980
    %v4516 = vpack.c.b16 %v3986, %v3981
    %v4517 = vpack.c.b16 %v3987, %v3982
    %v4518 = vpack.c.b16 %v3993, %v3988
    %v4519 = vpack.c.b16 %v3994, %v3989
    %v4520 = vpack.c.b16 %v3995, %v3990
    %v4521 = vpack.c.b16 %v3996, %v3991
    %v4522 = vpack.c.b16 %v3997, %v3992
    %v4523 = vpack.c.b16 %v4003, %v3998
    %v4524 = vpack.c.b16 %v4004, %v3999
    %v4525 = vpack.c.b16 %v4005, %v4000
    %v4526 = vpack.c.b16 %v4006, %v4001
    %v4527 = vpack.c.b16 %v4007, %v4002
    %v4528 = vpack.c.b16 %v4013, %v4008
    %v4529 = vpack.c.b16 %v4014, %v4009
    %v4530 = vpack.c.b16 %v4015, %v4010
    %v4531 = vpack.c.b16 %v4016, %v4011
    %v4532 = vpack.c.b16 %v4017, %v4012
    %v4533 = vpack.c.b16 %v4023, %v4018
    %v4534 = vpack.c.b16 %v4024, %v4019
    %v4535 = vpack.c.b16 %v4025, %v4020
    %v4536 = vpack.c.b16 %v4026, %v4021
    %v4537 = vpack.c.b16 %v4027, %v4022
    %v4538 = vpack.c.b16 %v4033, %v4028
    %v4539 = vpack.c.b16 %v4034, %v4029
    %v4540 = vpack.c.b16 %v4035, %v4030
    %v4541 = vpack.c.b16 %v4036, %v4031
    %v4542 = vpack.c.b16 %v4037, %v4032
    %v4543 = vpack.c.b16 %v4043, %v4038
    %v4544 = vpack.c.b16 %v4044, %v4039
    %v4545 = vpack.c.b16 %v4045, %v4040
    %v4546 = vpack.c.b16 %v4046, %v4041
    %v4547 = vpack.c.b16 %v4047, %v4042
    %v4548 = vpack.c.b16 %v4053, %v4048
    %v4549 = vpack.c.b16 %v4054, %v4049
    %v4550 = vpack.c.b16 %v4055, %v4050
    %v4551 = vpack.c.b16 %v4056, %v4051
    %v4552 = vpack.c.b16 %v4057, %v4052
    %v4553 = vpack.c.b16 %v4063, %v4058
    %v4554 = vpack.c.b16 %v4064, %v4059
    %v4555 = vpack.c.b16 %v4065, %v4060
    %v4556 = vpack.c.b16 %v4066, %v4061
    %v4557 = vpack.c.b16 %v4067, %v4062
    %v4558 = vpack.c.b16 %v4073, %v4068
    %v4559 = vpack.c.b16 %v4074, %v4069
    %v4560 = vpack.c.b16 %v4075, %v4070
    %v4561 = vpack.c.b16 %v4076, %v4071
    %v4562 = vpack.c.b16 %v4077, %v4072
    %v4563 = vpack.c.b16 %v4083, %v4078
    %v4564 = vpack.c.b16 %v4084, %v4079
    %v4565 = vpack.c.b16 %v4085, %v4080
    %v4566 = vpack.c.b16 %v4086, %v4081
    %v4567 = vpack.c.b16 %v4087, %v4082
    %v4568 = vpack.c.b16 %v4093, %v4088
    %v4569 = vpack.c.b16 %v4094, %v4089
    %v4570 = vpack.c.b16 %v4095, %v4090
    %v4571 = vpack.c.b16 %v4096, %v4091
    %v4572 = vpack.c.b16 %v4097, %v4092
    %v4573 = vpack.c.b16 %v4103, %v4098
    %v4574 = vpack.c.b16 %v4104, %v4099
    %v4575 = vpack.c.b16 %v4105, %v4100
    %v4576 = vpack.c.b16 %v4106, %v4101
    %v4577 = vpack.c.b16 %v4107, %v4102
    %v4578 = vpack.c.b16 %v4113, %v4108
    %v4579 = vpack.c.b16 %v4114, %v4109
    %v4580 = vpack.c.b16 %v4115, %v4110
    %v4581 = vpack.c.b16 %v4116, %v4111
    %v4582 = vpack.c.b16 %v4117, %v4112
    %v4583 = vpack.c.b16 %v4123, %v4118
    %v4584 = vpack.c.b16 %v4124, %v4119
    %v4585 = vpack.c.b16 %v4125, %v4120
    %v4586 = vpack.c.b16 %v4126, %v4121
    %v4587 = vpack.c.b16 %v4127, %v4122
    %v4588 = vpack.c.b16 %v4133, %v4128
    %v4589 = vpack.c.b16 %v4134, %v4129
    %v4590 = vpack.c.b16 %v4135, %v4130
    %v4591 = vpack.c.b16 %v4136, %v4131
    %v4592 = vpack.c.b16 %v4137, %v4132
    %v4593 = vpack.c.b16 %v4143, %v4138
    %v4594 = vpack.c.b16 %v4144, %v4139
    %v4595 = vpack.c.b16 %v4145, %v4140
    %v4596 = vpack.c.b16 %v4146, %v4141
    %v4597 = vpack.c.b16 %v4147, %v4142
    %v4598 = vpack.c.b16 %v4153, %v4148
    %v4599 = vpack.c.b16 %v4154, %v4149
    %v4600 = vpack.c.b16 %v4155, %v4150
    %v4601 = vpack.c.b16 %v4156, %v4151
    %v4602 = vpack.c.b16 %v4157, %v4152
    %v4603 = vpack.c.b16 %v4163, %v4158
    %v4604 = vpack.c.b16 %v4164, %v4159
    %v4605 = vpack.c.b16 %v4165, %v4160
    %v4606 = vpack.c.b16 %v4166, %v4161
    %v4607 = vpack.c.b16 %v4167, %v4162
    %v4608 = vpack.c.b16 %v4173, %v4168
    %v4609 = vpack.c.b16 %v4174, %v4169
    %v4610 = vpack.c.b16 %v4175, %v4170
    %v4611 = vpack.c.b16 %v4176, %v4171
    %v4612 = vpack.c.b16 %v4177, %v4172
    %v4613 = vpack.c.b16 %v4183, %v4178
    %v4614 = vpack.c.b16 %v4184, %v4179
    %v4615 = vpack.c.b16 %v4185, %v4180
    %v4616 = vpack.c.b16 %v4186, %v4181
    %v4617 = vpack.c.b16 %v4187, %v4182
    %v4618 = vpack.c.b16 %v4193, %v4188
    %v4619 = vpack.c.b16 %v4194, %v4189
    %v4620 = vpack.c.b16 %v4195, %v4190
    %v4621 = vpack.c.b16 %v4196, %v4191
    %v4622 = vpack.c.b16 %v4197, %v4192
    %v4623 = vpack.c.b16 %v4203, %v4198
    %v4624 = vpack.c.b16 %v4204, %v4199
    %v4625 = vpack.c.b16 %v4205, %v4200
    %v4626 = vpack.c.b16 %v4206, %v4201
    %v4627 = vpack.c.b16 %v4207, %v4202
    %v4628 = vpack.c.b16 %v4213, %v4208
    %v4629 = vpack.c.b16 %v4214, %v4209
    %v4630 = vpack.c.b16 %v4215, %v4210
    %v4631 = vpack.c.b16 %v4216, %v4211
    %v4632 = vpack.c.b16 %v4217, %v4212
    %v4633 = vpack.c.b16 %v4223, %v4218
    %v4634 = vpack.c.b16 %v4224, %v4219
    %v4635 = vpack.c.b16 %v4225, %v4220
    %v4636 = vpack.c.b16 %v4226, %v4221
    %v4637 = vpack.c.b16 %v4227, %v4222
    %v4638 = vpack.c.b16 %v4233, %v4228
    %v4639 = vpack.c.b16 %v4234, %v4229
    %v4640 = vpack.c.b16 %v4235, %v4230
    %v4641 = vpack.c.b16 %v4236, %v4231
    %v4642 = vpack.c.b16 %v4237, %v4232
    %v4643 = vpack.c.b16 %v4243, %v4238
    %v4644 = vpack.c.b16 %v4244, %v4239
    %v4645 = vpack.c.b16 %v4245, %v4240
    %v4646 = vpack.c.b16 %v4246, %v4241
    %v4647 = vpack.c.b16 %v4247, %v4242
    %v4648 = vpack.c.b16 %v4253, %v4248
    %v4649 = vpack.c.b16 %v4254, %v4249
    %v4650 = vpack.c.b16 %v4255, %v4250
    %v4651 = vpack.c.b16 %v4256, %v4251
    %v4652 = vpack.c.b16 %v4257, %v4252
    %v4653 = vpack.c.b16 %v4263, %v4258
    %v4654 = vpack.c.b16 %v4264, %v4259
    %v4655 = vpack.c.b16 %v4265, %v4260
    %v4656 = vpack.c.b16 %v4266, %v4261
    %v4657 = vpack.c.b16 %v4267, %v4262
    %v4658 = vpack.c.b16 %v4273, %v4268
    %v4659 = vpack.c.b16 %v4274, %v4269
    %v4660 = vpack.c.b16 %v4275, %v4270
    %v4661 = vpack.c.b16 %v4276, %v4271
    %v4662 = vpack.c.b16 %v4277, %v4272
    %v4663 = vpack.c.b16 %v4283, %v4278
    %v4664 = vpack.c.b16 %v4284, %v4279
    %v4665 = vpack.c.b16 %v4285, %v4280
    %v4666 = vpack.c.b16 %v4286, %v4281
    %v4667 = vpack.c.b16 %v4287, %v4282
    %v4668 = vpack.c.b16 %v4293, %v4288
    %v4669 = vpack.c.b16 %v4294, %v4289
    %v4670 = vpack.c.b16 %v4295, %v4290
    %v4671 = vpack.c.b16 %v4296, %v4291
    %v4672 = vpack.c.b16 %v4297, %v4292
    %v4673 = vpack.c.b16 %v4303, %v4298
    %v4674 = vpack.c.b16 %v4304, %v4299
    %v4675 = vpack.c.b16 %v4305, %v4300
    %v4676 = vpack.c.b16 %v4306, %v4301
    %v4677 = vpack.c.b16 %v4307, %v4302
    %v4678 = vpack.c.b16 %v4313, %v4308
    %v4679 = vpack.c.b16 %v4314, %v4309
    %v4680 = vpack.c.b16 %v4315, %v4310
    %v4681 = vpack.c.b16 %v4316, %v4311
    %v4682 = vpack.c.b16 %v4317, %v4312
    %v4683 = vpack.c.b16 %v4323, %v4318
    %v4684 = vpack.c.b16 %v4324, %v4319
    %v4685 = vpack.c.b16 %v4325, %v4320
    %v4686 = vpack.c.b16 %v4326, %v4321
    %v4687 = vpack.c.b16 %v4327, %v4322
    %v4688 = vpack.c.b16 %v4333, %v4328
    %v4689 = vpack.c.b16 %v4334, %v4329
    %v4690 = vpack.c.b16 %v4335, %v4330
    %v4691 = vpack.c.b16 %v4336, %v4331
    %v4692 = vpack.c.b16 %v4337, %v4332
    %v4693 = vpack.c.b16 %v4343, %v4338
    %v4694 = vpack.c.b16 %v4344, %v4339
    %v4695 = vpack.c.b16 %v4345, %v4340
    %v4696 = vpack.c.b16 %v4346, %v4341
    %v4697 = vpack.c.b16 %v4347, %v4342
    %v4698 = vpack.c.b16 %v4353, %v4348
    %v4699 = vpack.c.b16 %v4354, %v4349
    %v4700 = vpack.c.b16 %v4355, %v4350
    %v4701 = vpack.c.b16 %v4356, %v4351
    %v4702 = vpack.c.b16 %v4357, %v4352
    %v4703 = vpack.c.b16 %v4363, %v4358
    %v4704 = vpack.c.b16 %v4364, %v4359
    %v4705 = vpack.c.b16 %v4365, %v4360
    %v4706 = vpack.c.b16 %v4366, %v4361
    %v4707 = vpack.c.b16 %v4367, %v4362
    %v4708 = vpack.c.b16 %v4373, %v4368
    %v4709 = vpack.c.b16 %v4374, %v4369
    %v4710 = vpack.c.b16 %v4375, %v4370
    %v4711 = vpack.c.b16 %v4376, %v4371
    %v4712 = vpack.c.b16 %v4377, %v4372
    %v4713 = vpack.c.b16 %v4383, %v4378
    %v4714 = vpack.c.b16 %v4384, %v4379
    %v4715 = vpack.c.b16 %v4385, %v4380
    %v4716 = vpack.c.b16 %v4386, %v4381
    %v4717 = vpack.c.b16 %v4387, %v4382
    %v4718 = vpack.c.b16 %v4393, %v4388
    %v4719 = vpack.c.b16 %v4394, %v4389
    %v4720 = vpack.c.b16 %v4395, %v4390
    %v4721 = vpack.c.b16 %v4396, %v4391
    %v4722 = vpack.c.b16 %v4397, %v4392
    %v4723 = vpack.c.b16 %v4403, %v4398
    %v4724 = vpack.c.b16 %v4404, %v4399
    %v4725 = vpack.c.b16 %v4405, %v4400
    %v4726 = vpack.c.b16 %v4406, %v4401
    %v4727 = vpack.c.b16 %v4407, %v4402
    %5048 = vmatprep.subr.bf16.mxu0 %v4444
    %5049 = vmatpush1.bf16.msra.mxu0 %v4443
    %5050 = vmatprep.subr.bf16.mxu0 %v4439
    %5051 = vmatpush1.bf16.msra.mxu0 %v4438
    %5052 = vmatprep.subr.bf16.mxu0 %v4434
    %5053 = vmatpush1.bf16.msra.mxu0 %v4433
    %5054 = vmatprep.subr.bf16.mxu0 %v4429
    %5055 = vmatpush1.bf16.msra.mxu0 %v4428
    %5056 = vmatprep.subr.bf16.mxu0 %v4424
    %5057 = vmatpush1.bf16.msra.mxu0 %v4423
    %5058 = vmatprep.subr.bf16.mxu0 %v4419
    %5059 = vmatpush1.bf16.msra.mxu0 %v4418
    %5060 = vmatprep.subr.bf16.mxu0 %v4414
    %5061 = vmatpush1.bf16.msra.mxu0 %v4413
    %5062 = vmatprep.subr.bf16.mxu0 %v4409
    %5063 = vmatpush1.bf16.msra.mxu0 %v4408
    %5064 = vmatprep.subr.bf16.mxu0 %v4484
    %5065 = vmatpush2.bf16.msra.mxu0 %v4483
    %5066 = vmatprep.subr.bf16.mxu0 %v4479
    %5067 = vmatpush2.bf16.msra.mxu0 %v4478
    %5068 = vmatprep.subr.bf16.mxu0 %v4474
    %5069 = vmatpush2.bf16.msra.mxu0 %v4473
    %5070 = vmatprep.subr.bf16.mxu0 %v4469
    %5071 = vmatpush2.bf16.msra.mxu0 %v4468
    %5072 = vmatprep.subr.bf16.mxu0 %v4464
    %5073 = vmatpush2.bf16.msra.mxu0 %v4463
    %5074 = vmatprep.subr.bf16.mxu0 %v4459
    %5075 = vmatpush2.bf16.msra.mxu0 %v4458
    %5076 = vmatprep.subr.bf16.mxu0 %v4454
    %5077 = vmatpush2.bf16.msra.mxu0 %v4453
    %5078 = vmatprep.subr.bf16.mxu0 %v4449
    %5079 = vmatpush2.bf16.msra.mxu0 %v4448
    %5080 = vmatprep.mubr.bf16.mxu0 %v2371
    %5081 = vmatmul.mubr.bf16.gmra.mxu0 %v2370
    %v5082 = vpop.f32.mrf.mxu0
    %v5083 = vadd.f32 0.0, %v5082
    %v5084 = vpop.f32.mrf.mxu0
    %v5085 = vadd.f32 0.0, %v5084
    %v5086 = vpop.f32.mrf.mxu0
    %v5087 = vadd.f32 0.0, %v5086
    %v5088 = vpop.f32.mrf.mxu0
    %v5089 = vadd.f32 0.0, %v5088
    %5090 = vmatprep.mubr.bf16.mxu0 %v2385
    %5091 = vmatmul.mubr.bf16.gmra.mxu0 %v2384
    %v5092 = vpop.f32.mrf.mxu0
    %v5093 = vadd.f32 0.0, %v5092
    %v5094 = vpop.f32.mrf.mxu0
    %v5095 = vadd.f32 0.0, %v5094
    %v5096 = vpop.f32.mrf.mxu0
    %v5097 = vadd.f32 0.0, %v5096
    %v5098 = vpop.f32.mrf.mxu0
    %v5099 = vadd.f32 0.0, %v5098
    %5100 = vmatprep.mubr.bf16.mxu0 %v2399
    %5101 = vmatmul.mubr.bf16.gmra.mxu0 %v2398
    %v5102 = vpop.f32.mrf.mxu0
    %v5103 = vadd.f32 0.0, %v5102
    %v5104 = vpop.f32.mrf.mxu0
    %v5105 = vadd.f32 0.0, %v5104
    %v5106 = vpop.f32.mrf.mxu0
    %v5107 = vadd.f32 0.0, %v5106
    %v5108 = vpop.f32.mrf.mxu0
    %v5109 = vadd.f32 0.0, %v5108
    %5110 = vmatprep.mubr.bf16.mxu0 %v2413
    %5111 = vmatmul.mubr.bf16.gmra.mxu0 %v2412
    %v5112 = vpop.f32.mrf.mxu0
    %v5113 = vadd.f32 0.0, %v5112
    %v5114 = vpop.f32.mrf.mxu0
    %v5115 = vadd.f32 0.0, %v5114
    %v5116 = vpop.f32.mrf.mxu0
    %v5117 = vadd.f32 0.0, %v5116
    %v5118 = vpop.f32.mrf.mxu0
    %v5119 = vadd.f32 0.0, %v5118
    %5120 = vmatprep.mubr.bf16.mxu0 %v2427
    %5121 = vmatmul.mubr.bf16.gmra.mxu0 %v2426
    %v5122 = vpop.f32.mrf.mxu0
    %v5123 = vadd.f32 0.0, %v5122
    %v5124 = vpop.f32.mrf.mxu0
    %v5125 = vadd.f32 0.0, %v5124
    %v5126 = vpop.f32.mrf.mxu0
    %v5127 = vadd.f32 0.0, %v5126
    %v5128 = vpop.f32.mrf.mxu0
    %v5129 = vadd.f32 0.0, %v5128
    %5130 = vmatprep.mubr.bf16.mxu0 %v2441
    %5131 = vmatmul.mubr.bf16.gmra.mxu0 %v2440
    %v5132 = vpop.f32.mrf.mxu0
    %v5133 = vadd.f32 0.0, %v5132
    %v5134 = vpop.f32.mrf.mxu0
    %v5135 = vadd.f32 0.0, %v5134
    %v5136 = vpop.f32.mrf.mxu0
    %v5137 = vadd.f32 0.0, %v5136
    %v5138 = vpop.f32.mrf.mxu0
    %v5139 = vadd.f32 0.0, %v5138
    %5140 = vmatprep.mubr.bf16.mxu0 %v2455
    %5141 = vmatmul.mubr.bf16.gmra.mxu0 %v2454
    %v5142 = vpop.f32.mrf.mxu0
    %v5143 = vadd.f32 0.0, %v5142
    %v5144 = vpop.f32.mrf.mxu0
    %v5145 = vadd.f32 0.0, %v5144
    %v5146 = vpop.f32.mrf.mxu0
    %v5147 = vadd.f32 0.0, %v5146
    %v5148 = vpop.f32.mrf.mxu0
    %v5149 = vadd.f32 0.0, %v5148
    %5150 = vmatprep.mubr.bf16.mxu0 %v2469
    %5151 = vmatmul.mubr.bf16.gmra.mxu0 %v2468
    %v5152 = vpop.f32.mrf.mxu0
    %v5153 = vadd.f32 0.0, %v5152
    %v5154 = vpop.f32.mrf.mxu0
    %v5155 = vadd.f32 0.0, %v5154
    %v5156 = vpop.f32.mrf.mxu0
    %v5157 = vadd.f32 0.0, %v5156
    %v5158 = vpop.f32.mrf.mxu0
    %v5159 = vadd.f32 0.0, %v5158
    %5160 = vmatprep.mubr.bf16.mxu0 %v2483
    %5161 = vmatmul.mubr.bf16.gmra.mxu0 %v2482
    %v5162 = vpop.f32.mrf.mxu0
    %v5163 = vadd.f32 0.0, %v5162
    %v5164 = vpop.f32.mrf.mxu0
    %v5165 = vadd.f32 0.0, %v5164
    %v5166 = vpop.f32.mrf.mxu0
    %v5167 = vadd.f32 0.0, %v5166
    %v5168 = vpop.f32.mrf.mxu0
    %v5169 = vadd.f32 0.0, %v5168
    %5170 = vmatprep.mubr.bf16.mxu0 %v2497
    %5171 = vmatmul.mubr.bf16.gmra.mxu0 %v2496
    %v5172 = vpop.f32.mrf.mxu0
    %v5173 = vadd.f32 0.0, %v5172
    %v5174 = vpop.f32.mrf.mxu0
    %v5175 = vadd.f32 0.0, %v5174
    %v5176 = vpop.f32.mrf.mxu0
    %v5177 = vadd.f32 0.0, %v5176
    %v5178 = vpop.f32.mrf.mxu0
    %v5179 = vadd.f32 0.0, %v5178
    %5180 = vmatprep.mubr.bf16.mxu0 %v2511
    %5181 = vmatmul.mubr.bf16.gmra.mxu0 %v2510
    %v5182 = vpop.f32.mrf.mxu0
    %v5183 = vadd.f32 0.0, %v5182
    %v5184 = vpop.f32.mrf.mxu0
    %v5185 = vadd.f32 0.0, %v5184
    %v5186 = vpop.f32.mrf.mxu0
    %v5187 = vadd.f32 0.0, %v5186
    %v5188 = vpop.f32.mrf.mxu0
    %v5189 = vadd.f32 0.0, %v5188
    %5190 = vmatprep.mubr.bf16.mxu0 %v2525
    %5191 = vmatmul.mubr.bf16.gmra.mxu0 %v2524
    %v5192 = vpop.f32.mrf.mxu0
    %v5193 = vadd.f32 0.0, %v5192
    %v5194 = vpop.f32.mrf.mxu0
    %v5195 = vadd.f32 0.0, %v5194
    %v5196 = vpop.f32.mrf.mxu0
    %v5197 = vadd.f32 0.0, %v5196
    %v5198 = vpop.f32.mrf.mxu0
    %v5199 = vadd.f32 0.0, %v5198
    %5200 = vmatprep.mubr.bf16.mxu0 %v2539
    %5201 = vmatmul.mubr.bf16.gmra.mxu0 %v2538
    %v5202 = vpop.f32.mrf.mxu0
    %v5203 = vadd.f32 0.0, %v5202
    %v5204 = vpop.f32.mrf.mxu0
    %v5205 = vadd.f32 0.0, %v5204
    %v5206 = vpop.f32.mrf.mxu0
    %v5207 = vadd.f32 0.0, %v5206
    %v5208 = vpop.f32.mrf.mxu0
    %v5209 = vadd.f32 0.0, %v5208
    %5210 = vmatprep.mubr.bf16.mxu0 %v2553
    %5211 = vmatmul.mubr.bf16.gmra.mxu0 %v2552
    %v5212 = vpop.f32.mrf.mxu0
    %v5213 = vadd.f32 0.0, %v5212
    %v5214 = vpop.f32.mrf.mxu0
    %v5215 = vadd.f32 0.0, %v5214
    %v5216 = vpop.f32.mrf.mxu0
    %v5217 = vadd.f32 0.0, %v5216
    %v5218 = vpop.f32.mrf.mxu0
    %v5219 = vadd.f32 0.0, %v5218
    %5220 = vmatprep.mubr.bf16.mxu0 %v2567
    %5221 = vmatmul.mubr.bf16.gmra.mxu0 %v2566
    %v5222 = vpop.f32.mrf.mxu0
    %v5223 = vadd.f32 0.0, %v5222
    %v5224 = vpop.f32.mrf.mxu0
    %v5225 = vadd.f32 0.0, %v5224
    %v5226 = vpop.f32.mrf.mxu0
    %v5227 = vadd.f32 0.0, %v5226
    %v5228 = vpop.f32.mrf.mxu0
    %v5229 = vadd.f32 0.0, %v5228
    %5230 = vmatprep.mubr.bf16.mxu0 %v2581
    %5231 = vmatmul.mubr.bf16.gmra.mxu0 %v2580
    %v5232 = vpop.f32.mrf.mxu0
    %v5233 = vadd.f32 0.0, %v5232
    %v5234 = vpop.f32.mrf.mxu0
    %v5235 = vadd.f32 0.0, %v5234
    %v5236 = vpop.f32.mrf.mxu0
    %v5237 = vadd.f32 0.0, %v5236
    %v5238 = vpop.f32.mrf.mxu0
    %v5239 = vadd.f32 0.0, %v5238
    %5240 = vdwg.mxu0
    %5241 = vmatprep.subr.bf16.mxu0 %v4524
    %5242 = vmatpush1.bf16.msra.mxu0 %v4523
    %5243 = vmatprep.subr.bf16.mxu0 %v4519
    %5244 = vmatpush1.bf16.msra.mxu0 %v4518
    %5245 = vmatprep.subr.bf16.mxu0 %v4514
    %5246 = vmatpush1.bf16.msra.mxu0 %v4513
    %5247 = vmatprep.subr.bf16.mxu0 %v4509
    %5248 = vmatpush1.bf16.msra.mxu0 %v4508
    %5249 = vmatprep.subr.bf16.mxu0 %v4504
    %5250 = vmatpush1.bf16.msra.mxu0 %v4503
    %5251 = vmatprep.subr.bf16.mxu0 %v4499
    %5252 = vmatpush1.bf16.msra.mxu0 %v4498
    %5253 = vmatprep.subr.bf16.mxu0 %v4494
    %5254 = vmatpush1.bf16.msra.mxu0 %v4493
    %5255 = vmatprep.subr.bf16.mxu0 %v4489
    %5256 = vmatpush1.bf16.msra.mxu0 %v4488
    %5257 = vmatprep.subr.bf16.mxu0 %v4564
    %5258 = vmatpush2.bf16.msra.mxu0 %v4563
    %5259 = vmatprep.subr.bf16.mxu0 %v4559
    %5260 = vmatpush2.bf16.msra.mxu0 %v4558
    %5261 = vmatprep.subr.bf16.mxu0 %v4554
    %5262 = vmatpush2.bf16.msra.mxu0 %v4553
    %5263 = vmatprep.subr.bf16.mxu0 %v4549
    %5264 = vmatpush2.bf16.msra.mxu0 %v4548
    %5265 = vmatprep.subr.bf16.mxu0 %v4544
    %5266 = vmatpush2.bf16.msra.mxu0 %v4543
    %5267 = vmatprep.subr.bf16.mxu0 %v4539
    %5268 = vmatpush2.bf16.msra.mxu0 %v4538
    %5269 = vmatprep.subr.bf16.mxu0 %v4534
    %5270 = vmatpush2.bf16.msra.mxu0 %v4533
    %5271 = vmatprep.subr.bf16.mxu0 %v4529
    %5272 = vmatpush2.bf16.msra.mxu0 %v4528
    %5273 = vmatprep.mubr.bf16.mxu0 %v2373
    %5274 = vmatmul.mubr.bf16.gmra.mxu0 %v2372
    %v5275 = vpop.f32.mrf.mxu0
    %v5276 = vadd.f32 %v5083, %v5275
    %v5277 = vpop.f32.mrf.mxu0
    %v5278 = vadd.f32 %v5085, %v5277
    %v5279 = vpop.f32.mrf.mxu0
    %v5280 = vadd.f32 %v5087, %v5279
    %v5281 = vpop.f32.mrf.mxu0
    %v5282 = vadd.f32 %v5089, %v5281
    %5283 = vmatprep.mubr.bf16.mxu0 %v2387
    %5284 = vmatmul.mubr.bf16.gmra.mxu0 %v2386
    %v5285 = vpop.f32.mrf.mxu0
    %v5286 = vadd.f32 %v5093, %v5285
    %v5287 = vpop.f32.mrf.mxu0
    %v5288 = vadd.f32 %v5095, %v5287
    %v5289 = vpop.f32.mrf.mxu0
    %v5290 = vadd.f32 %v5097, %v5289
    %v5291 = vpop.f32.mrf.mxu0
    %v5292 = vadd.f32 %v5099, %v5291
    %5293 = vmatprep.mubr.bf16.mxu0 %v2401
    %5294 = vmatmul.mubr.bf16.gmra.mxu0 %v2400
    %v5295 = vpop.f32.mrf.mxu0
    %v5296 = vadd.f32 %v5103, %v5295
    %v5297 = vpop.f32.mrf.mxu0
    %v5298 = vadd.f32 %v5105, %v5297
    %v5299 = vpop.f32.mrf.mxu0
    %v5300 = vadd.f32 %v5107, %v5299
    %v5301 = vpop.f32.mrf.mxu0
    %v5302 = vadd.f32 %v5109, %v5301
    %5303 = vmatprep.mubr.bf16.mxu0 %v2415
    %5304 = vmatmul.mubr.bf16.gmra.mxu0 %v2414
    %v5305 = vpop.f32.mrf.mxu0
    %v5306 = vadd.f32 %v5113, %v5305
    %v5307 = vpop.f32.mrf.mxu0
    %v5308 = vadd.f32 %v5115, %v5307
    %v5309 = vpop.f32.mrf.mxu0
    %v5310 = vadd.f32 %v5117, %v5309
    %v5311 = vpop.f32.mrf.mxu0
    %v5312 = vadd.f32 %v5119, %v5311
    %5313 = vmatprep.mubr.bf16.mxu0 %v2429
    %5314 = vmatmul.mubr.bf16.gmra.mxu0 %v2428
    %v5315 = vpop.f32.mrf.mxu0
    %v5316 = vadd.f32 %v5123, %v5315
    %v5317 = vpop.f32.mrf.mxu0
    %v5318 = vadd.f32 %v5125, %v5317
    %v5319 = vpop.f32.mrf.mxu0
    %v5320 = vadd.f32 %v5127, %v5319
    %v5321 = vpop.f32.mrf.mxu0
    %v5322 = vadd.f32 %v5129, %v5321
    %5323 = vmatprep.mubr.bf16.mxu0 %v2443
    %5324 = vmatmul.mubr.bf16.gmra.mxu0 %v2442
    %v5325 = vpop.f32.mrf.mxu0
    %v5326 = vadd.f32 %v5133, %v5325
    %v5327 = vpop.f32.mrf.mxu0
    %v5328 = vadd.f32 %v5135, %v5327
    %v5329 = vpop.f32.mrf.mxu0
    %v5330 = vadd.f32 %v5137, %v5329
    %v5331 = vpop.f32.mrf.mxu0
    %v5332 = vadd.f32 %v5139, %v5331
    %5333 = vmatprep.mubr.bf16.mxu0 %v2457
    %5334 = vmatmul.mubr.bf16.gmra.mxu0 %v2456
    %v5335 = vpop.f32.mrf.mxu0
    %v5336 = vadd.f32 %v5143, %v5335
    %v5337 = vpop.f32.mrf.mxu0
    %v5338 = vadd.f32 %v5145, %v5337
    %v5339 = vpop.f32.mrf.mxu0
    %v5340 = vadd.f32 %v5147, %v5339
    %v5341 = vpop.f32.mrf.mxu0
    %v5342 = vadd.f32 %v5149, %v5341
    %5343 = vmatprep.mubr.bf16.mxu0 %v2471
    %5344 = vmatmul.mubr.bf16.gmra.mxu0 %v2470
    %v5345 = vpop.f32.mrf.mxu0
    %v5346 = vadd.f32 %v5153, %v5345
    %v5347 = vpop.f32.mrf.mxu0
    %v5348 = vadd.f32 %v5155, %v5347
    %v5349 = vpop.f32.mrf.mxu0
    %v5350 = vadd.f32 %v5157, %v5349
    %v5351 = vpop.f32.mrf.mxu0
    %v5352 = vadd.f32 %v5159, %v5351
    %5353 = vmatprep.mubr.bf16.mxu0 %v2485
    %5354 = vmatmul.mubr.bf16.gmra.mxu0 %v2484
    %v5355 = vpop.f32.mrf.mxu0
    %v5356 = vadd.f32 %v5163, %v5355
    %v5357 = vpop.f32.mrf.mxu0
    %v5358 = vadd.f32 %v5165, %v5357
    %v5359 = vpop.f32.mrf.mxu0
    %v5360 = vadd.f32 %v5167, %v5359
    %v5361 = vpop.f32.mrf.mxu0
    %v5362 = vadd.f32 %v5169, %v5361
    %5363 = vmatprep.mubr.bf16.mxu0 %v2499
    %5364 = vmatmul.mubr.bf16.gmra.mxu0 %v2498
    %v5365 = vpop.f32.mrf.mxu0
    %v5366 = vadd.f32 %v5173, %v5365
    %v5367 = vpop.f32.mrf.mxu0
    %v5368 = vadd.f32 %v5175, %v5367
    %v5369 = vpop.f32.mrf.mxu0
    %v5370 = vadd.f32 %v5177, %v5369
    %v5371 = vpop.f32.mrf.mxu0
    %v5372 = vadd.f32 %v5179, %v5371
    %5373 = vmatprep.mubr.bf16.mxu0 %v2513
    %5374 = vmatmul.mubr.bf16.gmra.mxu0 %v2512
    %v5375 = vpop.f32.mrf.mxu0
    %v5376 = vadd.f32 %v5183, %v5375
    %v5377 = vpop.f32.mrf.mxu0
    %v5378 = vadd.f32 %v5185, %v5377
    %v5379 = vpop.f32.mrf.mxu0
    %v5380 = vadd.f32 %v5187, %v5379
    %v5381 = vpop.f32.mrf.mxu0
    %v5382 = vadd.f32 %v5189, %v5381
    %5383 = vmatprep.mubr.bf16.mxu0 %v2527
    %5384 = vmatmul.mubr.bf16.gmra.mxu0 %v2526
    %v5385 = vpop.f32.mrf.mxu0
    %v5386 = vadd.f32 %v5193, %v5385
    %v5387 = vpop.f32.mrf.mxu0
    %v5388 = vadd.f32 %v5195, %v5387
    %v5389 = vpop.f32.mrf.mxu0
    %v5390 = vadd.f32 %v5197, %v5389
    %v5391 = vpop.f32.mrf.mxu0
    %v5392 = vadd.f32 %v5199, %v5391
    %5393 = vmatprep.mubr.bf16.mxu0 %v2541
    %5394 = vmatmul.mubr.bf16.gmra.mxu0 %v2540
    %v5395 = vpop.f32.mrf.mxu0
    %v5396 = vadd.f32 %v5203, %v5395
    %v5397 = vpop.f32.mrf.mxu0
    %v5398 = vadd.f32 %v5205, %v5397
    %v5399 = vpop.f32.mrf.mxu0
    %v5400 = vadd.f32 %v5207, %v5399
    %v5401 = vpop.f32.mrf.mxu0
    %v5402 = vadd.f32 %v5209, %v5401
    %5403 = vmatprep.mubr.bf16.mxu0 %v2555
    %5404 = vmatmul.mubr.bf16.gmra.mxu0 %v2554
    %v5405 = vpop.f32.mrf.mxu0
    %v5406 = vadd.f32 %v5213, %v5405
    %v5407 = vpop.f32.mrf.mxu0
    %v5408 = vadd.f32 %v5215, %v5407
    %v5409 = vpop.f32.mrf.mxu0
    %v5410 = vadd.f32 %v5217, %v5409
    %v5411 = vpop.f32.mrf.mxu0
    %v5412 = vadd.f32 %v5219, %v5411
    %5413 = vmatprep.mubr.bf16.mxu0 %v2569
    %5414 = vmatmul.mubr.bf16.gmra.mxu0 %v2568
    %v5415 = vpop.f32.mrf.mxu0
    %v5416 = vadd.f32 %v5223, %v5415
    %v5417 = vpop.f32.mrf.mxu0
    %v5418 = vadd.f32 %v5225, %v5417
    %v5419 = vpop.f32.mrf.mxu0
    %v5420 = vadd.f32 %v5227, %v5419
    %v5421 = vpop.f32.mrf.mxu0
    %v5422 = vadd.f32 %v5229, %v5421
    %5423 = vmatprep.mubr.bf16.mxu0 %v2583
    %5424 = vmatmul.mubr.bf16.gmra.mxu0 %v2582
    %v5425 = vpop.f32.mrf.mxu0
    %v5426 = vadd.f32 %v5233, %v5425
    %v5427 = vpop.f32.mrf.mxu0
    %v5428 = vadd.f32 %v5235, %v5427
    %v5429 = vpop.f32.mrf.mxu0
    %v5430 = vadd.f32 %v5237, %v5429
    %v5431 = vpop.f32.mrf.mxu0
    %v5432 = vadd.f32 %v5239, %v5431
    %5433 = vdwg.mxu0
    %5434 = vmatprep.subr.bf16.mxu0 %v4604
    %5435 = vmatpush1.bf16.msra.mxu0 %v4603
    %5436 = vmatprep.subr.bf16.mxu0 %v4599
    %5437 = vmatpush1.bf16.msra.mxu0 %v4598
    %5438 = vmatprep.subr.bf16.mxu0 %v4594
    %5439 = vmatpush1.bf16.msra.mxu0 %v4593
    %5440 = vmatprep.subr.bf16.mxu0 %v4589
    %5441 = vmatpush1.bf16.msra.mxu0 %v4588
    %5442 = vmatprep.subr.bf16.mxu0 %v4584
    %5443 = vmatpush1.bf16.msra.mxu0 %v4583
    %5444 = vmatprep.subr.bf16.mxu0 %v4579
    %5445 = vmatpush1.bf16.msra.mxu0 %v4578
    %5446 = vmatprep.subr.bf16.mxu0 %v4574
    %5447 = vmatpush1.bf16.msra.mxu0 %v4573
    %5448 = vmatprep.subr.bf16.mxu0 %v4569
    %5449 = vmatpush1.bf16.msra.mxu0 %v4568
    %5450 = vmatprep.subr.bf16.mxu0 %v4644
    %5451 = vmatpush2.bf16.msra.mxu0 %v4643
    %5452 = vmatprep.subr.bf16.mxu0 %v4639
    %5453 = vmatpush2.bf16.msra.mxu0 %v4638
    %5454 = vmatprep.subr.bf16.mxu0 %v4634
    %5455 = vmatpush2.bf16.msra.mxu0 %v4633
    %5456 = vmatprep.subr.bf16.mxu0 %v4629
    %5457 = vmatpush2.bf16.msra.mxu0 %v4628
    %5458 = vmatprep.subr.bf16.mxu0 %v4624
    %5459 = vmatpush2.bf16.msra.mxu0 %v4623
    %5460 = vmatprep.subr.bf16.mxu0 %v4619
    %5461 = vmatpush2.bf16.msra.mxu0 %v4618
    %5462 = vmatprep.subr.bf16.mxu0 %v4614
    %5463 = vmatpush2.bf16.msra.mxu0 %v4613
    %5464 = vmatprep.subr.bf16.mxu0 %v4609
    %5465 = vmatpush2.bf16.msra.mxu0 %v4608
    %5466 = vmatprep.mubr.bf16.mxu0 %v2375
    %5467 = vmatmul.mubr.bf16.gmra.mxu0 %v2374
    %v5468 = vpop.f32.mrf.mxu0
    %v5469 = vadd.f32 %v5276, %v5468
    %v5470 = vpop.f32.mrf.mxu0
    %v5471 = vadd.f32 %v5278, %v5470
    %v5472 = vpop.f32.mrf.mxu0
    %v5473 = vadd.f32 %v5280, %v5472
    %v5474 = vpop.f32.mrf.mxu0
    %v5475 = vadd.f32 %v5282, %v5474
    %5476 = vmatprep.mubr.bf16.mxu0 %v2389
    %5477 = vmatmul.mubr.bf16.gmra.mxu0 %v2388
    %v5478 = vpop.f32.mrf.mxu0
    %v5479 = vadd.f32 %v5286, %v5478
    %v5480 = vpop.f32.mrf.mxu0
    %v5481 = vadd.f32 %v5288, %v5480
    %v5482 = vpop.f32.mrf.mxu0
    %v5483 = vadd.f32 %v5290, %v5482
    %v5484 = vpop.f32.mrf.mxu0
    %v5485 = vadd.f32 %v5292, %v5484
    %5486 = vmatprep.mubr.bf16.mxu0 %v2403
    %5487 = vmatmul.mubr.bf16.gmra.mxu0 %v2402
    %v5488 = vpop.f32.mrf.mxu0
    %v5489 = vadd.f32 %v5296, %v5488
    %v5490 = vpop.f32.mrf.mxu0
    %v5491 = vadd.f32 %v5298, %v5490
    %v5492 = vpop.f32.mrf.mxu0
    %v5493 = vadd.f32 %v5300, %v5492
    %v5494 = vpop.f32.mrf.mxu0
    %v5495 = vadd.f32 %v5302, %v5494
    %5496 = vmatprep.mubr.bf16.mxu0 %v2417
    %5497 = vmatmul.mubr.bf16.gmra.mxu0 %v2416
    %v5498 = vpop.f32.mrf.mxu0
    %v5499 = vadd.f32 %v5306, %v5498
    %v5500 = vpop.f32.mrf.mxu0
    %v5501 = vadd.f32 %v5308, %v5500
    %v5502 = vpop.f32.mrf.mxu0
    %v5503 = vadd.f32 %v5310, %v5502
    %v5504 = vpop.f32.mrf.mxu0
    %v5505 = vadd.f32 %v5312, %v5504
    %5506 = vmatprep.mubr.bf16.mxu0 %v2431
    %5507 = vmatmul.mubr.bf16.gmra.mxu0 %v2430
    %v5508 = vpop.f32.mrf.mxu0
    %v5509 = vadd.f32 %v5316, %v5508
    %v5510 = vpop.f32.mrf.mxu0
    %v5511 = vadd.f32 %v5318, %v5510
    %v5512 = vpop.f32.mrf.mxu0
    %v5513 = vadd.f32 %v5320, %v5512
    %v5514 = vpop.f32.mrf.mxu0
    %v5515 = vadd.f32 %v5322, %v5514
    %5516 = vmatprep.mubr.bf16.mxu0 %v2445
    %5517 = vmatmul.mubr.bf16.gmra.mxu0 %v2444
    %v5518 = vpop.f32.mrf.mxu0
    %v5519 = vadd.f32 %v5326, %v5518
    %v5520 = vpop.f32.mrf.mxu0
    %v5521 = vadd.f32 %v5328, %v5520
    %v5522 = vpop.f32.mrf.mxu0
    %v5523 = vadd.f32 %v5330, %v5522
    %v5524 = vpop.f32.mrf.mxu0
    %v5525 = vadd.f32 %v5332, %v5524
    %5526 = vmatprep.mubr.bf16.mxu0 %v2459
    %5527 = vmatmul.mubr.bf16.gmra.mxu0 %v2458
    %v5528 = vpop.f32.mrf.mxu0
    %v5529 = vadd.f32 %v5336, %v5528
    %v5530 = vpop.f32.mrf.mxu0
    %v5531 = vadd.f32 %v5338, %v5530
    %v5532 = vpop.f32.mrf.mxu0
    %v5533 = vadd.f32 %v5340, %v5532
    %v5534 = vpop.f32.mrf.mxu0
    %v5535 = vadd.f32 %v5342, %v5534
    %5536 = vmatprep.mubr.bf16.mxu0 %v2473
    %5537 = vmatmul.mubr.bf16.gmra.mxu0 %v2472
    %v5538 = vpop.f32.mrf.mxu0
    %v5539 = vadd.f32 %v5346, %v5538
    %v5540 = vpop.f32.mrf.mxu0
    %v5541 = vadd.f32 %v5348, %v5540
    %v5542 = vpop.f32.mrf.mxu0
    %v5543 = vadd.f32 %v5350, %v5542
    %v5544 = vpop.f32.mrf.mxu0
    %v5545 = vadd.f32 %v5352, %v5544
    %5546 = vmatprep.mubr.bf16.mxu0 %v2487
    %5547 = vmatmul.mubr.bf16.gmra.mxu0 %v2486
    %v5548 = vpop.f32.mrf.mxu0
    %v5549 = vadd.f32 %v5356, %v5548
    %v5550 = vpop.f32.mrf.mxu0
    %v5551 = vadd.f32 %v5358, %v5550
    %v5552 = vpop.f32.mrf.mxu0
    %v5553 = vadd.f32 %v5360, %v5552
    %v5554 = vpop.f32.mrf.mxu0
    %v5555 = vadd.f32 %v5362, %v5554
    %5556 = vmatprep.mubr.bf16.mxu0 %v2501
    %5557 = vmatmul.mubr.bf16.gmra.mxu0 %v2500
    %v5558 = vpop.f32.mrf.mxu0
    %v5559 = vadd.f32 %v5366, %v5558
    %v5560 = vpop.f32.mrf.mxu0
    %v5561 = vadd.f32 %v5368, %v5560
    %v5562 = vpop.f32.mrf.mxu0
    %v5563 = vadd.f32 %v5370, %v5562
    %v5564 = vpop.f32.mrf.mxu0
    %v5565 = vadd.f32 %v5372, %v5564
    %5566 = vmatprep.mubr.bf16.mxu0 %v2515
    %5567 = vmatmul.mubr.bf16.gmra.mxu0 %v2514
    %v5568 = vpop.f32.mrf.mxu0
    %v5569 = vadd.f32 %v5376, %v5568
    %v5570 = vpop.f32.mrf.mxu0
    %v5571 = vadd.f32 %v5378, %v5570
    %v5572 = vpop.f32.mrf.mxu0
    %v5573 = vadd.f32 %v5380, %v5572
    %v5574 = vpop.f32.mrf.mxu0
    %v5575 = vadd.f32 %v5382, %v5574
    %5576 = vmatprep.mubr.bf16.mxu0 %v2529
    %5577 = vmatmul.mubr.bf16.gmra.mxu0 %v2528
    %v5578 = vpop.f32.mrf.mxu0
    %v5579 = vadd.f32 %v5386, %v5578
    %v5580 = vpop.f32.mrf.mxu0
    %v5581 = vadd.f32 %v5388, %v5580
    %v5582 = vpop.f32.mrf.mxu0
    %v5583 = vadd.f32 %v5390, %v5582
    %v5584 = vpop.f32.mrf.mxu0
    %v5585 = vadd.f32 %v5392, %v5584
    %5586 = vmatprep.mubr.bf16.mxu0 %v2543
    %5587 = vmatmul.mubr.bf16.gmra.mxu0 %v2542
    %v5588 = vpop.f32.mrf.mxu0
    %v5589 = vadd.f32 %v5396, %v5588
    %v5590 = vpop.f32.mrf.mxu0
    %v5591 = vadd.f32 %v5398, %v5590
    %v5592 = vpop.f32.mrf.mxu0
    %v5593 = vadd.f32 %v5400, %v5592
    %v5594 = vpop.f32.mrf.mxu0
    %v5595 = vadd.f32 %v5402, %v5594
    %5596 = vmatprep.mubr.bf16.mxu0 %v2557
    %5597 = vmatmul.mubr.bf16.gmra.mxu0 %v2556
    %v5598 = vpop.f32.mrf.mxu0
    %v5599 = vadd.f32 %v5406, %v5598
    %v5600 = vpop.f32.mrf.mxu0
    %v5601 = vadd.f32 %v5408, %v5600
    %v5602 = vpop.f32.mrf.mxu0
    %v5603 = vadd.f32 %v5410, %v5602
    %v5604 = vpop.f32.mrf.mxu0
    %v5605 = vadd.f32 %v5412, %v5604
    %5606 = vmatprep.mubr.bf16.mxu0 %v2571
    %5607 = vmatmul.mubr.bf16.gmra.mxu0 %v2570
    %v5608 = vpop.f32.mrf.mxu0
    %v5609 = vadd.f32 %v5416, %v5608
    %v5610 = vpop.f32.mrf.mxu0
    %v5611 = vadd.f32 %v5418, %v5610
    %v5612 = vpop.f32.mrf.mxu0
    %v5613 = vadd.f32 %v5420, %v5612
    %v5614 = vpop.f32.mrf.mxu0
    %v5615 = vadd.f32 %v5422, %v5614
    %5616 = vmatprep.mubr.bf16.mxu0 %v2585
    %5617 = vmatmul.mubr.bf16.gmra.mxu0 %v2584
    %v5618 = vpop.f32.mrf.mxu0
    %v5619 = vadd.f32 %v5426, %v5618
    %v5620 = vpop.f32.mrf.mxu0
    %v5621 = vadd.f32 %v5428, %v5620
    %v5622 = vpop.f32.mrf.mxu0
    %v5623 = vadd.f32 %v5430, %v5622
    %v5624 = vpop.f32.mrf.mxu0
    %v5625 = vadd.f32 %v5432, %v5624
    %5626 = vdwg.mxu0
    %5627 = vmatprep.subr.bf16.mxu0 %v4684
    %5628 = vmatpush1.bf16.msra.mxu0 %v4683
    %5629 = vmatprep.subr.bf16.mxu0 %v4679
    %5630 = vmatpush1.bf16.msra.mxu0 %v4678
    %5631 = vmatprep.subr.bf16.mxu0 %v4674
    %5632 = vmatpush1.bf16.msra.mxu0 %v4673
    %5633 = vmatprep.subr.bf16.mxu0 %v4669
    %5634 = vmatpush1.bf16.msra.mxu0 %v4668
    %5635 = vmatprep.subr.bf16.mxu0 %v4664
    %5636 = vmatpush1.bf16.msra.mxu0 %v4663
    %5637 = vmatprep.subr.bf16.mxu0 %v4659
    %5638 = vmatpush1.bf16.msra.mxu0 %v4658
    %5639 = vmatprep.subr.bf16.mxu0 %v4654
    %5640 = vmatpush1.bf16.msra.mxu0 %v4653
    %5641 = vmatprep.subr.bf16.mxu0 %v4649
    %5642 = vmatpush1.bf16.msra.mxu0 %v4648
    %5643 = vmatprep.subr.bf16.mxu0 %v4724
    %5644 = vmatpush2.bf16.msra.mxu0 %v4723
    %5645 = vmatprep.subr.bf16.mxu0 %v4719
    %5646 = vmatpush2.bf16.msra.mxu0 %v4718
    %5647 = vmatprep.subr.bf16.mxu0 %v4714
    %5648 = vmatpush2.bf16.msra.mxu0 %v4713
    %5649 = vmatprep.subr.bf16.mxu0 %v4709
    %5650 = vmatpush2.bf16.msra.mxu0 %v4708
    %5651 = vmatprep.subr.bf16.mxu0 %v4704
    %5652 = vmatpush2.bf16.msra.mxu0 %v4703
    %5653 = vmatprep.subr.bf16.mxu0 %v4699
    %5654 = vmatpush2.bf16.msra.mxu0 %v4698
    %5655 = vmatprep.subr.bf16.mxu0 %v4694
    %5656 = vmatpush2.bf16.msra.mxu0 %v4693
    %5657 = vmatprep.subr.bf16.mxu0 %v4689
    %5658 = vmatpush2.bf16.msra.mxu0 %v4688
    %5659 = vmatprep.mubr.bf16.mxu0 %v2984
    %5660 = vmatmul.mubr.bf16.gmra.mxu0 %v2376
    %v5661 = vpop.f32.mrf.mxu0
    %v5662 = vadd.f32 %v5469, %v5661
    %v5663 = vpop.f32.mrf.mxu0
    %v5664 = vadd.f32 %v5471, %v5663
    %v5665 = vpop.f32.mrf.mxu0
    %v5666 = vadd.f32 %v5473, %v5665
    %v5667 = vpop.f32.mrf.mxu0
    %v5668 = vadd.f32 %v5475, %v5667
    %5669 = vmatprep.mubr.bf16.mxu0 %v2985
    %5670 = vmatmul.mubr.bf16.gmra.mxu0 %v2390
    %v5671 = vpop.f32.mrf.mxu0
    %v5672 = vadd.f32 %v5479, %v5671
    %v5673 = vpop.f32.mrf.mxu0
    %v5674 = vadd.f32 %v5481, %v5673
    %v5675 = vpop.f32.mrf.mxu0
    %v5676 = vadd.f32 %v5483, %v5675
    %v5677 = vpop.f32.mrf.mxu0
    %v5678 = vadd.f32 %v5485, %v5677
    %5679 = vmatprep.mubr.bf16.mxu0 %v2986
    %5680 = vmatmul.mubr.bf16.gmra.mxu0 %v2404
    %v5681 = vpop.f32.mrf.mxu0
    %v5682 = vadd.f32 %v5489, %v5681
    %v5683 = vpop.f32.mrf.mxu0
    %v5684 = vadd.f32 %v5491, %v5683
    %v5685 = vpop.f32.mrf.mxu0
    %v5686 = vadd.f32 %v5493, %v5685
    %v5687 = vpop.f32.mrf.mxu0
    %v5688 = vadd.f32 %v5495, %v5687
    %5689 = vmatprep.mubr.bf16.mxu0 %v2987
    %5690 = vmatmul.mubr.bf16.gmra.mxu0 %v2418
    %v5691 = vpop.f32.mrf.mxu0
    %v5692 = vadd.f32 %v5499, %v5691
    %v5693 = vpop.f32.mrf.mxu0
    %v5694 = vadd.f32 %v5501, %v5693
    %v5695 = vpop.f32.mrf.mxu0
    %v5696 = vadd.f32 %v5503, %v5695
    %v5697 = vpop.f32.mrf.mxu0
    %v5698 = vadd.f32 %v5505, %v5697
    %5699 = vmatprep.mubr.bf16.mxu0 %v2988
    %5700 = vmatmul.mubr.bf16.gmra.mxu0 %v2432
    %v5701 = vpop.f32.mrf.mxu0
    %v5702 = vadd.f32 %v5509, %v5701
    %v5703 = vpop.f32.mrf.mxu0
    %v5704 = vadd.f32 %v5511, %v5703
    %v5705 = vpop.f32.mrf.mxu0
    %v5706 = vadd.f32 %v5513, %v5705
    %v5707 = vpop.f32.mrf.mxu0
    %v5708 = vadd.f32 %v5515, %v5707
    %5709 = vmatprep.mubr.bf16.mxu0 %v2989
    %5710 = vmatmul.mubr.bf16.gmra.mxu0 %v2446
    %v5711 = vpop.f32.mrf.mxu0
    %v5712 = vadd.f32 %v5519, %v5711
    %v5713 = vpop.f32.mrf.mxu0
    %v5714 = vadd.f32 %v5521, %v5713
    %v5715 = vpop.f32.mrf.mxu0
    %v5716 = vadd.f32 %v5523, %v5715
    %v5717 = vpop.f32.mrf.mxu0
    %v5718 = vadd.f32 %v5525, %v5717
    %5719 = vmatprep.mubr.bf16.mxu0 %v2990
    %5720 = vmatmul.mubr.bf16.gmra.mxu0 %v2460
    %v5721 = vpop.f32.mrf.mxu0
    %v5722 = vadd.f32 %v5529, %v5721
    %v5723 = vpop.f32.mrf.mxu0
    %v5724 = vadd.f32 %v5531, %v5723
    %v5725 = vpop.f32.mrf.mxu0
    %v5726 = vadd.f32 %v5533, %v5725
    %v5727 = vpop.f32.mrf.mxu0
    %v5728 = vadd.f32 %v5535, %v5727
    %5729 = vmatprep.mubr.bf16.mxu0 %v2991
    %5730 = vmatmul.mubr.bf16.gmra.mxu0 %v2474
    %v5731 = vpop.f32.mrf.mxu0
    %v5732 = vadd.f32 %v5539, %v5731
    %v5733 = vpop.f32.mrf.mxu0
    %v5734 = vadd.f32 %v5541, %v5733
    %v5735 = vpop.f32.mrf.mxu0
    %v5736 = vadd.f32 %v5543, %v5735
    %v5737 = vpop.f32.mrf.mxu0
    %v5738 = vadd.f32 %v5545, %v5737
    %5739 = vmatprep.mubr.bf16.mxu0 %v2992
    %5740 = vmatmul.mubr.bf16.gmra.mxu0 %v2488
    %v5741 = vpop.f32.mrf.mxu0
    %v5742 = vadd.f32 %v5549, %v5741
    %v5743 = vpop.f32.mrf.mxu0
    %v5744 = vadd.f32 %v5551, %v5743
    %v5745 = vpop.f32.mrf.mxu0
    %v5746 = vadd.f32 %v5553, %v5745
    %v5747 = vpop.f32.mrf.mxu0
    %v5748 = vadd.f32 %v5555, %v5747
    %5749 = vmatprep.mubr.bf16.mxu0 %v2993
    %5750 = vmatmul.mubr.bf16.gmra.mxu0 %v2502
    %v5751 = vpop.f32.mrf.mxu0
    %v5752 = vadd.f32 %v5559, %v5751
    %v5753 = vpop.f32.mrf.mxu0
    %v5754 = vadd.f32 %v5561, %v5753
    %v5755 = vpop.f32.mrf.mxu0
    %v5756 = vadd.f32 %v5563, %v5755
    %v5757 = vpop.f32.mrf.mxu0
    %v5758 = vadd.f32 %v5565, %v5757
    %5759 = vmatprep.mubr.bf16.mxu0 %v2994
    %5760 = vmatmul.mubr.bf16.gmra.mxu0 %v2516
    %v5761 = vpop.f32.mrf.mxu0
    %v5762 = vadd.f32 %v5569, %v5761
    %v5763 = vpop.f32.mrf.mxu0
    %v5764 = vadd.f32 %v5571, %v5763
    %v5765 = vpop.f32.mrf.mxu0
    %v5766 = vadd.f32 %v5573, %v5765
    %v5767 = vpop.f32.mrf.mxu0
    %v5768 = vadd.f32 %v5575, %v5767
    %5769 = vmatprep.mubr.bf16.mxu0 %v2995
    %5770 = vmatmul.mubr.bf16.gmra.mxu0 %v2530
    %v5771 = vpop.f32.mrf.mxu0
    %v5772 = vadd.f32 %v5579, %v5771
    %v5773 = vpop.f32.mrf.mxu0
    %v5774 = vadd.f32 %v5581, %v5773
    %v5775 = vpop.f32.mrf.mxu0
    %v5776 = vadd.f32 %v5583, %v5775
    %v5777 = vpop.f32.mrf.mxu0
    %v5778 = vadd.f32 %v5585, %v5777
    %5779 = vmatprep.mubr.bf16.mxu0 %v2996
    %5780 = vmatmul.mubr.bf16.gmra.mxu0 %v2544
    %v5781 = vpop.f32.mrf.mxu0
    %v5782 = vadd.f32 %v5589, %v5781
    %v5783 = vpop.f32.mrf.mxu0
    %v5784 = vadd.f32 %v5591, %v5783
    %v5785 = vpop.f32.mrf.mxu0
    %v5786 = vadd.f32 %v5593, %v5785
    %v5787 = vpop.f32.mrf.mxu0
    %v5788 = vadd.f32 %v5595, %v5787
    %5789 = vmatprep.mubr.bf16.mxu0 %v2997
    %5790 = vmatmul.mubr.bf16.gmra.mxu0 %v2558
    %v5791 = vpop.f32.mrf.mxu0
    %v5792 = vadd.f32 %v5599, %v5791
    %v5793 = vpop.f32.mrf.mxu0
    %v5794 = vadd.f32 %v5601, %v5793
    %v5795 = vpop.f32.mrf.mxu0
    %v5796 = vadd.f32 %v5603, %v5795
    %v5797 = vpop.f32.mrf.mxu0
    %v5798 = vadd.f32 %v5605, %v5797
    %5799 = vmatprep.mubr.bf16.mxu0 %v2998
    %5800 = vmatmul.mubr.bf16.gmra.mxu0 %v2572
    %v5801 = vpop.f32.mrf.mxu0
    %v5802 = vadd.f32 %v5609, %v5801
    %v5803 = vpop.f32.mrf.mxu0
    %v5804 = vadd.f32 %v5611, %v5803
    %v5805 = vpop.f32.mrf.mxu0
    %v5806 = vadd.f32 %v5613, %v5805
    %v5807 = vpop.f32.mrf.mxu0
    %v5808 = vadd.f32 %v5615, %v5807
    %5809 = vmatprep.mubr.bf16.mxu0 %v2999
    %5810 = vmatmul.mubr.bf16.gmra.mxu0 %v2586
    %v5811 = vpop.f32.mrf.mxu0
    %v5812 = vadd.f32 %v5619, %v5811
    %v5813 = vpop.f32.mrf.mxu0
    %v5814 = vadd.f32 %v5621, %v5813
    %v5815 = vpop.f32.mrf.mxu0
    %v5816 = vadd.f32 %v5623, %v5815
    %v5817 = vpop.f32.mrf.mxu0
    %v5818 = vadd.f32 %v5625, %v5817
    %5819 = vdwg.mxu0
    %5820 = vmatprep.subr.bf16.mxu0 %v4446
    %5821 = vmatpush1.bf16.msra.mxu0 %v4445
    %5822 = vmatprep.subr.bf16.mxu0 %v4441
    %5823 = vmatpush1.bf16.msra.mxu0 %v4440
    %5824 = vmatprep.subr.bf16.mxu0 %v4436
    %5825 = vmatpush1.bf16.msra.mxu0 %v4435
    %5826 = vmatprep.subr.bf16.mxu0 %v4431
    %5827 = vmatpush1.bf16.msra.mxu0 %v4430
    %5828 = vmatprep.subr.bf16.mxu0 %v4426
    %5829 = vmatpush1.bf16.msra.mxu0 %v4425
    %5830 = vmatprep.subr.bf16.mxu0 %v4421
    %5831 = vmatpush1.bf16.msra.mxu0 %v4420
    %5832 = vmatprep.subr.bf16.mxu0 %v4416
    %5833 = vmatpush1.bf16.msra.mxu0 %v4415
    %5834 = vmatprep.subr.bf16.mxu0 %v4411
    %5835 = vmatpush1.bf16.msra.mxu0 %v4410
    %5836 = vmatprep.subr.bf16.mxu0 %v4486
    %5837 = vmatpush2.bf16.msra.mxu0 %v4485
    %5838 = vmatprep.subr.bf16.mxu0 %v4481
    %5839 = vmatpush2.bf16.msra.mxu0 %v4480
    %5840 = vmatprep.subr.bf16.mxu0 %v4476
    %5841 = vmatpush2.bf16.msra.mxu0 %v4475
    %5842 = vmatprep.subr.bf16.mxu0 %v4471
    %5843 = vmatpush2.bf16.msra.mxu0 %v4470
    %5844 = vmatprep.subr.bf16.mxu0 %v4466
    %5845 = vmatpush2.bf16.msra.mxu0 %v4465
    %5846 = vmatprep.subr.bf16.mxu0 %v4461
    %5847 = vmatpush2.bf16.msra.mxu0 %v4460
    %5848 = vmatprep.subr.bf16.mxu0 %v4456
    %5849 = vmatpush2.bf16.msra.mxu0 %v4455
    %5850 = vmatprep.subr.bf16.mxu0 %v4451
    %5851 = vmatpush2.bf16.msra.mxu0 %v4450
    %5852 = vmatprep.mubr.bf16.mxu0 %v2371
    %5853 = vmatmul.mubr.bf16.gmra.mxu0 %v2370
    %v5854 = vpop.f32.mrf.mxu0
    %v5855 = vadd.f32 0.0, %v5854
    %v5856 = vpop.f32.mrf.mxu0
    %v5857 = vadd.f32 0.0, %v5856
    %v5858 = vpop.f32.mrf.mxu0
    %v5859 = vadd.f32 0.0, %v5858
    %v5860 = vpop.f32.mrf.mxu0
    %v5861 = vadd.f32 0.0, %v5860
    %5862 = vmatprep.mubr.bf16.mxu0 %v2385
    %5863 = vmatmul.mubr.bf16.gmra.mxu0 %v2384
    %v5864 = vpop.f32.mrf.mxu0
    %v5865 = vadd.f32 0.0, %v5864
    %v5866 = vpop.f32.mrf.mxu0
    %v5867 = vadd.f32 0.0, %v5866
    %v5868 = vpop.f32.mrf.mxu0
    %v5869 = vadd.f32 0.0, %v5868
    %v5870 = vpop.f32.mrf.mxu0
    %v5871 = vadd.f32 0.0, %v5870
    %5872 = vmatprep.mubr.bf16.mxu0 %v2399
    %5873 = vmatmul.mubr.bf16.gmra.mxu0 %v2398
    %v5874 = vpop.f32.mrf.mxu0
    %v5875 = vadd.f32 0.0, %v5874
    %v5876 = vpop.f32.mrf.mxu0
    %v5877 = vadd.f32 0.0, %v5876
    %v5878 = vpop.f32.mrf.mxu0
    %v5879 = vadd.f32 0.0, %v5878
    %v5880 = vpop.f32.mrf.mxu0
    %v5881 = vadd.f32 0.0, %v5880
    %5882 = vmatprep.mubr.bf16.mxu0 %v2413
    %5883 = vmatmul.mubr.bf16.gmra.mxu0 %v2412
    %v5884 = vpop.f32.mrf.mxu0
    %v5885 = vadd.f32 0.0, %v5884
    %v5886 = vpop.f32.mrf.mxu0
    %v5887 = vadd.f32 0.0, %v5886
    %v5888 = vpop.f32.mrf.mxu0
    %v5889 = vadd.f32 0.0, %v5888
    %v5890 = vpop.f32.mrf.mxu0
    %v5891 = vadd.f32 0.0, %v5890
    %5892 = vmatprep.mubr.bf16.mxu0 %v2427
    %5893 = vmatmul.mubr.bf16.gmra.mxu0 %v2426
    %v5894 = vpop.f32.mrf.mxu0
    %v5895 = vadd.f32 0.0, %v5894
    %v5896 = vpop.f32.mrf.mxu0
    %v5897 = vadd.f32 0.0, %v5896
    %v5898 = vpop.f32.mrf.mxu0
    %v5899 = vadd.f32 0.0, %v5898
    %v5900 = vpop.f32.mrf.mxu0
    %v5901 = vadd.f32 0.0, %v5900
    %5902 = vmatprep.mubr.bf16.mxu0 %v2441
    %5903 = vmatmul.mubr.bf16.gmra.mxu0 %v2440
    %v5904 = vpop.f32.mrf.mxu0
    %v5905 = vadd.f32 0.0, %v5904
    %v5906 = vpop.f32.mrf.mxu0
    %v5907 = vadd.f32 0.0, %v5906
    %v5908 = vpop.f32.mrf.mxu0
    %v5909 = vadd.f32 0.0, %v5908
    %v5910 = vpop.f32.mrf.mxu0
    %v5911 = vadd.f32 0.0, %v5910
    %5912 = vmatprep.mubr.bf16.mxu0 %v2455
    %5913 = vmatmul.mubr.bf16.gmra.mxu0 %v2454
    %v5914 = vpop.f32.mrf.mxu0
    %v5915 = vadd.f32 0.0, %v5914
    %v5916 = vpop.f32.mrf.mxu0
    %v5917 = vadd.f32 0.0, %v5916
    %v5918 = vpop.f32.mrf.mxu0
    %v5919 = vadd.f32 0.0, %v5918
    %v5920 = vpop.f32.mrf.mxu0
    %v5921 = vadd.f32 0.0, %v5920
    %5922 = vmatprep.mubr.bf16.mxu0 %v2469
    %5923 = vmatmul.mubr.bf16.gmra.mxu0 %v2468
    %v5924 = vpop.f32.mrf.mxu0
    %v5925 = vadd.f32 0.0, %v5924
    %v5926 = vpop.f32.mrf.mxu0
    %v5927 = vadd.f32 0.0, %v5926
    %v5928 = vpop.f32.mrf.mxu0
    %v5929 = vadd.f32 0.0, %v5928
    %v5930 = vpop.f32.mrf.mxu0
    %v5931 = vadd.f32 0.0, %v5930
    %5932 = vmatprep.mubr.bf16.mxu0 %v2483
    %5933 = vmatmul.mubr.bf16.gmra.mxu0 %v2482
    %v5934 = vpop.f32.mrf.mxu0
    %v5935 = vadd.f32 0.0, %v5934
    %v5936 = vpop.f32.mrf.mxu0
    %v5937 = vadd.f32 0.0, %v5936
    %v5938 = vpop.f32.mrf.mxu0
    %v5939 = vadd.f32 0.0, %v5938
    %v5940 = vpop.f32.mrf.mxu0
    %v5941 = vadd.f32 0.0, %v5940
    %5942 = vmatprep.mubr.bf16.mxu0 %v2497
    %5943 = vmatmul.mubr.bf16.gmra.mxu0 %v2496
    %v5944 = vpop.f32.mrf.mxu0
    %v5945 = vadd.f32 0.0, %v5944
    %v5946 = vpop.f32.mrf.mxu0
    %v5947 = vadd.f32 0.0, %v5946
    %v5948 = vpop.f32.mrf.mxu0
    %v5949 = vadd.f32 0.0, %v5948
    %v5950 = vpop.f32.mrf.mxu0
    %v5951 = vadd.f32 0.0, %v5950
    %5952 = vmatprep.mubr.bf16.mxu0 %v2511
    %5953 = vmatmul.mubr.bf16.gmra.mxu0 %v2510
    %v5954 = vpop.f32.mrf.mxu0
    %v5955 = vadd.f32 0.0, %v5954
    %v5956 = vpop.f32.mrf.mxu0
    %v5957 = vadd.f32 0.0, %v5956
    %v5958 = vpop.f32.mrf.mxu0
    %v5959 = vadd.f32 0.0, %v5958
    %v5960 = vpop.f32.mrf.mxu0
    %v5961 = vadd.f32 0.0, %v5960
    %5962 = vmatprep.mubr.bf16.mxu0 %v2525
    %5963 = vmatmul.mubr.bf16.gmra.mxu0 %v2524
    %v5964 = vpop.f32.mrf.mxu0
    %v5965 = vadd.f32 0.0, %v5964
    %v5966 = vpop.f32.mrf.mxu0
    %v5967 = vadd.f32 0.0, %v5966
    %v5968 = vpop.f32.mrf.mxu0
    %v5969 = vadd.f32 0.0, %v5968
    %v5970 = vpop.f32.mrf.mxu0
    %v5971 = vadd.f32 0.0, %v5970
    %5972 = vmatprep.mubr.bf16.mxu0 %v2539
    %5973 = vmatmul.mubr.bf16.gmra.mxu0 %v2538
    %v5974 = vpop.f32.mrf.mxu0
    %v5975 = vadd.f32 0.0, %v5974
    %v5976 = vpop.f32.mrf.mxu0
    %v5977 = vadd.f32 0.0, %v5976
    %v5978 = vpop.f32.mrf.mxu0
    %v5979 = vadd.f32 0.0, %v5978
    %v5980 = vpop.f32.mrf.mxu0
    %v5981 = vadd.f32 0.0, %v5980
    %5982 = vmatprep.mubr.bf16.mxu0 %v2553
    %5983 = vmatmul.mubr.bf16.gmra.mxu0 %v2552
    %v5984 = vpop.f32.mrf.mxu0
    %v5985 = vadd.f32 0.0, %v5984
    %v5986 = vpop.f32.mrf.mxu0
    %v5987 = vadd.f32 0.0, %v5986
    %v5988 = vpop.f32.mrf.mxu0
    %v5989 = vadd.f32 0.0, %v5988
    %v5990 = vpop.f32.mrf.mxu0
    %v5991 = vadd.f32 0.0, %v5990
    %5992 = vmatprep.mubr.bf16.mxu0 %v2567
    %5993 = vmatmul.mubr.bf16.gmra.mxu0 %v2566
    %v5994 = vpop.f32.mrf.mxu0
    %v5995 = vadd.f32 0.0, %v5994
    %v5996 = vpop.f32.mrf.mxu0
    %v5997 = vadd.f32 0.0, %v5996
    %v5998 = vpop.f32.mrf.mxu0
    %v5999 = vadd.f32 0.0, %v5998
    %v6000 = vpop.f32.mrf.mxu0
    %v6001 = vadd.f32 0.0, %v6000
    %6002 = vmatprep.mubr.bf16.mxu0 %v2581
    %6003 = vmatmul.mubr.bf16.gmra.mxu0 %v2580
    %v6004 = vpop.f32.mrf.mxu0
    %v6005 = vadd.f32 0.0, %v6004
    %v6006 = vpop.f32.mrf.mxu0
    %v6007 = vadd.f32 0.0, %v6006
    %v6008 = vpop.f32.mrf.mxu0
    %v6009 = vadd.f32 0.0, %v6008
    %v6010 = vpop.f32.mrf.mxu0
    %v6011 = vadd.f32 0.0, %v6010
    %6012 = vdwg.mxu0
    %6013 = vmatprep.subr.bf16.mxu0 %v4526
    %6014 = vmatpush1.bf16.msra.mxu0 %v4525
    %6015 = vmatprep.subr.bf16.mxu0 %v4521
    %6016 = vmatpush1.bf16.msra.mxu0 %v4520
    %6017 = vmatprep.subr.bf16.mxu0 %v4516
    %6018 = vmatpush1.bf16.msra.mxu0 %v4515
    %6019 = vmatprep.subr.bf16.mxu0 %v4511
    %6020 = vmatpush1.bf16.msra.mxu0 %v4510
    %6021 = vmatprep.subr.bf16.mxu0 %v4506
    %6022 = vmatpush1.bf16.msra.mxu0 %v4505
    %6023 = vmatprep.subr.bf16.mxu0 %v4501
    %6024 = vmatpush1.bf16.msra.mxu0 %v4500
    %6025 = vmatprep.subr.bf16.mxu0 %v4496
    %6026 = vmatpush1.bf16.msra.mxu0 %v4495
    %6027 = vmatprep.subr.bf16.mxu0 %v4491
    %6028 = vmatpush1.bf16.msra.mxu0 %v4490
    %6029 = vmatprep.subr.bf16.mxu0 %v4566
    %6030 = vmatpush2.bf16.msra.mxu0 %v4565
    %6031 = vmatprep.subr.bf16.mxu0 %v4561
    %6032 = vmatpush2.bf16.msra.mxu0 %v4560
    %6033 = vmatprep.subr.bf16.mxu0 %v4556
    %6034 = vmatpush2.bf16.msra.mxu0 %v4555
    %6035 = vmatprep.subr.bf16.mxu0 %v4551
    %6036 = vmatpush2.bf16.msra.mxu0 %v4550
    %6037 = vmatprep.subr.bf16.mxu0 %v4546
    %6038 = vmatpush2.bf16.msra.mxu0 %v4545
    %6039 = vmatprep.subr.bf16.mxu0 %v4541
    %6040 = vmatpush2.bf16.msra.mxu0 %v4540
    %6041 = vmatprep.subr.bf16.mxu0 %v4536
    %6042 = vmatpush2.bf16.msra.mxu0 %v4535
    %6043 = vmatprep.subr.bf16.mxu0 %v4531
    %6044 = vmatpush2.bf16.msra.mxu0 %v4530
    %6045 = vmatprep.mubr.bf16.mxu0 %v2373
    %6046 = vmatmul.mubr.bf16.gmra.mxu0 %v2372
    %v6047 = vpop.f32.mrf.mxu0
    %v6048 = vadd.f32 %v5855, %v6047
    %v6049 = vpop.f32.mrf.mxu0
    %v6050 = vadd.f32 %v5857, %v6049
    %v6051 = vpop.f32.mrf.mxu0
    %v6052 = vadd.f32 %v5859, %v6051
    %v6053 = vpop.f32.mrf.mxu0
    %v6054 = vadd.f32 %v5861, %v6053
    %6055 = vmatprep.mubr.bf16.mxu0 %v2387
    %6056 = vmatmul.mubr.bf16.gmra.mxu0 %v2386
    %v6057 = vpop.f32.mrf.mxu0
    %v6058 = vadd.f32 %v5865, %v6057
    %v6059 = vpop.f32.mrf.mxu0
    %v6060 = vadd.f32 %v5867, %v6059
    %v6061 = vpop.f32.mrf.mxu0
    %v6062 = vadd.f32 %v5869, %v6061
    %v6063 = vpop.f32.mrf.mxu0
    %v6064 = vadd.f32 %v5871, %v6063
    %6065 = vmatprep.mubr.bf16.mxu0 %v2401
    %6066 = vmatmul.mubr.bf16.gmra.mxu0 %v2400
    %v6067 = vpop.f32.mrf.mxu0
    %v6068 = vadd.f32 %v5875, %v6067
    %v6069 = vpop.f32.mrf.mxu0
    %v6070 = vadd.f32 %v5877, %v6069
    %v6071 = vpop.f32.mrf.mxu0
    %v6072 = vadd.f32 %v5879, %v6071
    %v6073 = vpop.f32.mrf.mxu0
    %v6074 = vadd.f32 %v5881, %v6073
    %6075 = vmatprep.mubr.bf16.mxu0 %v2415
    %6076 = vmatmul.mubr.bf16.gmra.mxu0 %v2414
    %v6077 = vpop.f32.mrf.mxu0
    %v6078 = vadd.f32 %v5885, %v6077
    %v6079 = vpop.f32.mrf.mxu0
    %v6080 = vadd.f32 %v5887, %v6079
    %v6081 = vpop.f32.mrf.mxu0
    %v6082 = vadd.f32 %v5889, %v6081
    %v6083 = vpop.f32.mrf.mxu0
    %v6084 = vadd.f32 %v5891, %v6083
    %6085 = vmatprep.mubr.bf16.mxu0 %v2429
    %6086 = vmatmul.mubr.bf16.gmra.mxu0 %v2428
    %v6087 = vpop.f32.mrf.mxu0
    %v6088 = vadd.f32 %v5895, %v6087
    %v6089 = vpop.f32.mrf.mxu0
    %v6090 = vadd.f32 %v5897, %v6089
    %v6091 = vpop.f32.mrf.mxu0
    %v6092 = vadd.f32 %v5899, %v6091
    %v6093 = vpop.f32.mrf.mxu0
    %v6094 = vadd.f32 %v5901, %v6093
    %6095 = vmatprep.mubr.bf16.mxu0 %v2443
    %6096 = vmatmul.mubr.bf16.gmra.mxu0 %v2442
    %v6097 = vpop.f32.mrf.mxu0
    %v6098 = vadd.f32 %v5905, %v6097
    %v6099 = vpop.f32.mrf.mxu0
    %v6100 = vadd.f32 %v5907, %v6099
    %v6101 = vpop.f32.mrf.mxu0
    %v6102 = vadd.f32 %v5909, %v6101
    %v6103 = vpop.f32.mrf.mxu0
    %v6104 = vadd.f32 %v5911, %v6103
    %6105 = vmatprep.mubr.bf16.mxu0 %v2457
    %6106 = vmatmul.mubr.bf16.gmra.mxu0 %v2456
    %v6107 = vpop.f32.mrf.mxu0
    %v6108 = vadd.f32 %v5915, %v6107
    %v6109 = vpop.f32.mrf.mxu0
    %v6110 = vadd.f32 %v5917, %v6109
    %v6111 = vpop.f32.mrf.mxu0
    %v6112 = vadd.f32 %v5919, %v6111
    %v6113 = vpop.f32.mrf.mxu0
    %v6114 = vadd.f32 %v5921, %v6113
    %6115 = vmatprep.mubr.bf16.mxu0 %v2471
    %6116 = vmatmul.mubr.bf16.gmra.mxu0 %v2470
    %v6117 = vpop.f32.mrf.mxu0
    %v6118 = vadd.f32 %v5925, %v6117
    %v6119 = vpop.f32.mrf.mxu0
    %v6120 = vadd.f32 %v5927, %v6119
    %v6121 = vpop.f32.mrf.mxu0
    %v6122 = vadd.f32 %v5929, %v6121
    %v6123 = vpop.f32.mrf.mxu0
    %v6124 = vadd.f32 %v5931, %v6123
    %6125 = vmatprep.mubr.bf16.mxu0 %v2485
    %6126 = vmatmul.mubr.bf16.gmra.mxu0 %v2484
    %v6127 = vpop.f32.mrf.mxu0
    %v6128 = vadd.f32 %v5935, %v6127
    %v6129 = vpop.f32.mrf.mxu0
    %v6130 = vadd.f32 %v5937, %v6129
    %v6131 = vpop.f32.mrf.mxu0
    %v6132 = vadd.f32 %v5939, %v6131
    %v6133 = vpop.f32.mrf.mxu0
    %v6134 = vadd.f32 %v5941, %v6133
    %6135 = vmatprep.mubr.bf16.mxu0 %v2499
    %6136 = vmatmul.mubr.bf16.gmra.mxu0 %v2498
    %v6137 = vpop.f32.mrf.mxu0
    %v6138 = vadd.f32 %v5945, %v6137
    %v6139 = vpop.f32.mrf.mxu0
    %v6140 = vadd.f32 %v5947, %v6139
    %v6141 = vpop.f32.mrf.mxu0
    %v6142 = vadd.f32 %v5949, %v6141
    %v6143 = vpop.f32.mrf.mxu0
    %v6144 = vadd.f32 %v5951, %v6143
    %6145 = vmatprep.mubr.bf16.mxu0 %v2513
    %6146 = vmatmul.mubr.bf16.gmra.mxu0 %v2512
    %v6147 = vpop.f32.mrf.mxu0
    %v6148 = vadd.f32 %v5955, %v6147
    %v6149 = vpop.f32.mrf.mxu0
    %v6150 = vadd.f32 %v5957, %v6149
    %v6151 = vpop.f32.mrf.mxu0
    %v6152 = vadd.f32 %v5959, %v6151
    %v6153 = vpop.f32.mrf.mxu0
    %v6154 = vadd.f32 %v5961, %v6153
    %6155 = vmatprep.mubr.bf16.mxu0 %v2527
    %6156 = vmatmul.mubr.bf16.gmra.mxu0 %v2526
    %v6157 = vpop.f32.mrf.mxu0
    %v6158 = vadd.f32 %v5965, %v6157
    %v6159 = vpop.f32.mrf.mxu0
    %v6160 = vadd.f32 %v5967, %v6159
    %v6161 = vpop.f32.mrf.mxu0
    %v6162 = vadd.f32 %v5969, %v6161
    %v6163 = vpop.f32.mrf.mxu0
    %v6164 = vadd.f32 %v5971, %v6163
    %6165 = vmatprep.mubr.bf16.mxu0 %v2541
    %6166 = vmatmul.mubr.bf16.gmra.mxu0 %v2540
    %v6167 = vpop.f32.mrf.mxu0
    %v6168 = vadd.f32 %v5975, %v6167
    %v6169 = vpop.f32.mrf.mxu0
    %v6170 = vadd.f32 %v5977, %v6169
    %v6171 = vpop.f32.mrf.mxu0
    %v6172 = vadd.f32 %v5979, %v6171
    %v6173 = vpop.f32.mrf.mxu0
    %v6174 = vadd.f32 %v5981, %v6173
    %6175 = vmatprep.mubr.bf16.mxu0 %v2555
    %6176 = vmatmul.mubr.bf16.gmra.mxu0 %v2554
    %v6177 = vpop.f32.mrf.mxu0
    %v6178 = vadd.f32 %v5985, %v6177
    %v6179 = vpop.f32.mrf.mxu0
    %v6180 = vadd.f32 %v5987, %v6179
    %v6181 = vpop.f32.mrf.mxu0
    %v6182 = vadd.f32 %v5989, %v6181
    %v6183 = vpop.f32.mrf.mxu0
    %v6184 = vadd.f32 %v5991, %v6183
    %6185 = vmatprep.mubr.bf16.mxu0 %v2569
    %6186 = vmatmul.mubr.bf16.gmra.mxu0 %v2568
    %v6187 = vpop.f32.mrf.mxu0
    %v6188 = vadd.f32 %v5995, %v6187
    %v6189 = vpop.f32.mrf.mxu0
    %v6190 = vadd.f32 %v5997, %v6189
    %v6191 = vpop.f32.mrf.mxu0
    %v6192 = vadd.f32 %v5999, %v6191
    %v6193 = vpop.f32.mrf.mxu0
    %v6194 = vadd.f32 %v6001, %v6193
    %6195 = vmatprep.mubr.bf16.mxu0 %v2583
    %6196 = vmatmul.mubr.bf16.gmra.mxu0 %v2582
    %v6197 = vpop.f32.mrf.mxu0
    %v6198 = vadd.f32 %v6005, %v6197
    %v6199 = vpop.f32.mrf.mxu0
    %v6200 = vadd.f32 %v6007, %v6199
    %v6201 = vpop.f32.mrf.mxu0
    %v6202 = vadd.f32 %v6009, %v6201
    %v6203 = vpop.f32.mrf.mxu0
    %v6204 = vadd.f32 %v6011, %v6203
    %6205 = vdwg.mxu0
    %6206 = vmatprep.subr.bf16.mxu0 %v4606
    %6207 = vmatpush1.bf16.msra.mxu0 %v4605
    %6208 = vmatprep.subr.bf16.mxu0 %v4601
    %6209 = vmatpush1.bf16.msra.mxu0 %v4600
    %6210 = vmatprep.subr.bf16.mxu0 %v4596
    %6211 = vmatpush1.bf16.msra.mxu0 %v4595
    %6212 = vmatprep.subr.bf16.mxu0 %v4591
    %6213 = vmatpush1.bf16.msra.mxu0 %v4590
    %6214 = vmatprep.subr.bf16.mxu0 %v4586
    %6215 = vmatpush1.bf16.msra.mxu0 %v4585
    %6216 = vmatprep.subr.bf16.mxu0 %v4581
    %6217 = vmatpush1.bf16.msra.mxu0 %v4580
    %6218 = vmatprep.subr.bf16.mxu0 %v4576
    %6219 = vmatpush1.bf16.msra.mxu0 %v4575
    %6220 = vmatprep.subr.bf16.mxu0 %v4571
    %6221 = vmatpush1.bf16.msra.mxu0 %v4570
    %6222 = vmatprep.subr.bf16.mxu0 %v4646
    %6223 = vmatpush2.bf16.msra.mxu0 %v4645
    %6224 = vmatprep.subr.bf16.mxu0 %v4641
    %6225 = vmatpush2.bf16.msra.mxu0 %v4640
    %6226 = vmatprep.subr.bf16.mxu0 %v4636
    %6227 = vmatpush2.bf16.msra.mxu0 %v4635
    %6228 = vmatprep.subr.bf16.mxu0 %v4631
    %6229 = vmatpush2.bf16.msra.mxu0 %v4630
    %6230 = vmatprep.subr.bf16.mxu0 %v4626
    %6231 = vmatpush2.bf16.msra.mxu0 %v4625
    %6232 = vmatprep.subr.bf16.mxu0 %v4621
    %6233 = vmatpush2.bf16.msra.mxu0 %v4620
    %6234 = vmatprep.subr.bf16.mxu0 %v4616
    %6235 = vmatpush2.bf16.msra.mxu0 %v4615
    %6236 = vmatprep.subr.bf16.mxu0 %v4611
    %6237 = vmatpush2.bf16.msra.mxu0 %v4610
    %6238 = vmatprep.mubr.bf16.mxu0 %v2375
    %6239 = vmatmul.mubr.bf16.gmra.mxu0 %v2374
    %v6240 = vpop.f32.mrf.mxu0
    %v6241 = vadd.f32 %v6048, %v6240
    %v6242 = vpop.f32.mrf.mxu0
    %v6243 = vadd.f32 %v6050, %v6242
    %v6244 = vpop.f32.mrf.mxu0
    %v6245 = vadd.f32 %v6052, %v6244
    %v6246 = vpop.f32.mrf.mxu0
    %v6247 = vadd.f32 %v6054, %v6246
    %6248 = vmatprep.mubr.bf16.mxu0 %v2389
    %6249 = vmatmul.mubr.bf16.gmra.mxu0 %v2388
    %v6250 = vpop.f32.mrf.mxu0
    %v6251 = vadd.f32 %v6058, %v6250
    %v6252 = vpop.f32.mrf.mxu0
    %v6253 = vadd.f32 %v6060, %v6252
    %v6254 = vpop.f32.mrf.mxu0
    %v6255 = vadd.f32 %v6062, %v6254
    %v6256 = vpop.f32.mrf.mxu0
    %v6257 = vadd.f32 %v6064, %v6256
    %6258 = vmatprep.mubr.bf16.mxu0 %v2403
    %6259 = vmatmul.mubr.bf16.gmra.mxu0 %v2402
    %v6260 = vpop.f32.mrf.mxu0
    %v6261 = vadd.f32 %v6068, %v6260
    %v6262 = vpop.f32.mrf.mxu0
    %v6263 = vadd.f32 %v6070, %v6262
    %v6264 = vpop.f32.mrf.mxu0
    %v6265 = vadd.f32 %v6072, %v6264
    %v6266 = vpop.f32.mrf.mxu0
    %v6267 = vadd.f32 %v6074, %v6266
    %6268 = vmatprep.mubr.bf16.mxu0 %v2417
    %6269 = vmatmul.mubr.bf16.gmra.mxu0 %v2416
    %v6270 = vpop.f32.mrf.mxu0
    %v6271 = vadd.f32 %v6078, %v6270
    %v6272 = vpop.f32.mrf.mxu0
    %v6273 = vadd.f32 %v6080, %v6272
    %v6274 = vpop.f32.mrf.mxu0
    %v6275 = vadd.f32 %v6082, %v6274
    %v6276 = vpop.f32.mrf.mxu0
    %v6277 = vadd.f32 %v6084, %v6276
    %6278 = vmatprep.mubr.bf16.mxu0 %v2431
    %6279 = vmatmul.mubr.bf16.gmra.mxu0 %v2430
    %v6280 = vpop.f32.mrf.mxu0
    %v6281 = vadd.f32 %v6088, %v6280
    %v6282 = vpop.f32.mrf.mxu0
    %v6283 = vadd.f32 %v6090, %v6282
    %v6284 = vpop.f32.mrf.mxu0
    %v6285 = vadd.f32 %v6092, %v6284
    %v6286 = vpop.f32.mrf.mxu0
    %v6287 = vadd.f32 %v6094, %v6286
    %6288 = vmatprep.mubr.bf16.mxu0 %v2445
    %6289 = vmatmul.mubr.bf16.gmra.mxu0 %v2444
    %v6290 = vpop.f32.mrf.mxu0
    %v6291 = vadd.f32 %v6098, %v6290
    %v6292 = vpop.f32.mrf.mxu0
    %v6293 = vadd.f32 %v6100, %v6292
    %v6294 = vpop.f32.mrf.mxu0
    %v6295 = vadd.f32 %v6102, %v6294
    %v6296 = vpop.f32.mrf.mxu0
    %v6297 = vadd.f32 %v6104, %v6296
    %6298 = vmatprep.mubr.bf16.mxu0 %v2459
    %6299 = vmatmul.mubr.bf16.gmra.mxu0 %v2458
    %v6300 = vpop.f32.mrf.mxu0
    %v6301 = vadd.f32 %v6108, %v6300
    %v6302 = vpop.f32.mrf.mxu0
    %v6303 = vadd.f32 %v6110, %v6302
    %v6304 = vpop.f32.mrf.mxu0
    %v6305 = vadd.f32 %v6112, %v6304
    %v6306 = vpop.f32.mrf.mxu0
    %v6307 = vadd.f32 %v6114, %v6306
    %6308 = vmatprep.mubr.bf16.mxu0 %v2473
    %6309 = vmatmul.mubr.bf16.gmra.mxu0 %v2472
    %v6310 = vpop.f32.mrf.mxu0
    %v6311 = vadd.f32 %v6118, %v6310
    %v6312 = vpop.f32.mrf.mxu0
    %v6313 = vadd.f32 %v6120, %v6312
    %v6314 = vpop.f32.mrf.mxu0
    %v6315 = vadd.f32 %v6122, %v6314
    %v6316 = vpop.f32.mrf.mxu0
    %v6317 = vadd.f32 %v6124, %v6316
    %6318 = vmatprep.mubr.bf16.mxu0 %v2487
    %6319 = vmatmul.mubr.bf16.gmra.mxu0 %v2486
    %v6320 = vpop.f32.mrf.mxu0
    %v6321 = vadd.f32 %v6128, %v6320
    %v6322 = vpop.f32.mrf.mxu0
    %v6323 = vadd.f32 %v6130, %v6322
    %v6324 = vpop.f32.mrf.mxu0
    %v6325 = vadd.f32 %v6132, %v6324
    %v6326 = vpop.f32.mrf.mxu0
    %v6327 = vadd.f32 %v6134, %v6326
    %6328 = vmatprep.mubr.bf16.mxu0 %v2501
    %6329 = vmatmul.mubr.bf16.gmra.mxu0 %v2500
    %v6330 = vpop.f32.mrf.mxu0
    %v6331 = vadd.f32 %v6138, %v6330
    %v6332 = vpop.f32.mrf.mxu0
    %v6333 = vadd.f32 %v6140, %v6332
    %v6334 = vpop.f32.mrf.mxu0
    %v6335 = vadd.f32 %v6142, %v6334
    %v6336 = vpop.f32.mrf.mxu0
    %v6337 = vadd.f32 %v6144, %v6336
    %6338 = vmatprep.mubr.bf16.mxu0 %v2515
    %6339 = vmatmul.mubr.bf16.gmra.mxu0 %v2514
    %v6340 = vpop.f32.mrf.mxu0
    %v6341 = vadd.f32 %v6148, %v6340
    %v6342 = vpop.f32.mrf.mxu0
    %v6343 = vadd.f32 %v6150, %v6342
    %v6344 = vpop.f32.mrf.mxu0
    %v6345 = vadd.f32 %v6152, %v6344
    %v6346 = vpop.f32.mrf.mxu0
    %v6347 = vadd.f32 %v6154, %v6346
    %6348 = vmatprep.mubr.bf16.mxu0 %v2529
    %6349 = vmatmul.mubr.bf16.gmra.mxu0 %v2528
    %v6350 = vpop.f32.mrf.mxu0
    %v6351 = vadd.f32 %v6158, %v6350
    %v6352 = vpop.f32.mrf.mxu0
    %v6353 = vadd.f32 %v6160, %v6352
    %v6354 = vpop.f32.mrf.mxu0
    %v6355 = vadd.f32 %v6162, %v6354
    %v6356 = vpop.f32.mrf.mxu0
    %v6357 = vadd.f32 %v6164, %v6356
    %6358 = vmatprep.mubr.bf16.mxu0 %v2543
    %6359 = vmatmul.mubr.bf16.gmra.mxu0 %v2542
    %v6360 = vpop.f32.mrf.mxu0
    %v6361 = vadd.f32 %v6168, %v6360
    %v6362 = vpop.f32.mrf.mxu0
    %v6363 = vadd.f32 %v6170, %v6362
    %v6364 = vpop.f32.mrf.mxu0
    %v6365 = vadd.f32 %v6172, %v6364
    %v6366 = vpop.f32.mrf.mxu0
    %v6367 = vadd.f32 %v6174, %v6366
    %6368 = vmatprep.mubr.bf16.mxu0 %v2557
    %6369 = vmatmul.mubr.bf16.gmra.mxu0 %v2556
    %v6370 = vpop.f32.mrf.mxu0
    %v6371 = vadd.f32 %v6178, %v6370
    %v6372 = vpop.f32.mrf.mxu0
    %v6373 = vadd.f32 %v6180, %v6372
    %v6374 = vpop.f32.mrf.mxu0
    %v6375 = vadd.f32 %v6182, %v6374
    %v6376 = vpop.f32.mrf.mxu0
    %v6377 = vadd.f32 %v6184, %v6376
    %6378 = vmatprep.mubr.bf16.mxu0 %v2571
    %6379 = vmatmul.mubr.bf16.gmra.mxu0 %v2570
    %v6380 = vpop.f32.mrf.mxu0
    %v6381 = vadd.f32 %v6188, %v6380
    %v6382 = vpop.f32.mrf.mxu0
    %v6383 = vadd.f32 %v6190, %v6382
    %v6384 = vpop.f32.mrf.mxu0
    %v6385 = vadd.f32 %v6192, %v6384
    %v6386 = vpop.f32.mrf.mxu0
    %v6387 = vadd.f32 %v6194, %v6386
    %6388 = vmatprep.mubr.bf16.mxu0 %v2585
    %6389 = vmatmul.mubr.bf16.gmra.mxu0 %v2584
    %v6390 = vpop.f32.mrf.mxu0
    %v6391 = vadd.f32 %v6198, %v6390
    %v6392 = vpop.f32.mrf.mxu0
    %v6393 = vadd.f32 %v6200, %v6392
    %v6394 = vpop.f32.mrf.mxu0
    %v6395 = vadd.f32 %v6202, %v6394
    %v6396 = vpop.f32.mrf.mxu0
    %v6397 = vadd.f32 %v6204, %v6396
    %6398 = vdwg.mxu0
    %6399 = vmatprep.subr.bf16.mxu0 %v4686
    %6400 = vmatpush1.bf16.msra.mxu0 %v4685
    %6401 = vmatprep.subr.bf16.mxu0 %v4681
    %6402 = vmatpush1.bf16.msra.mxu0 %v4680
    %6403 = vmatprep.subr.bf16.mxu0 %v4676
    %6404 = vmatpush1.bf16.msra.mxu0 %v4675
    %6405 = vmatprep.subr.bf16.mxu0 %v4671
    %6406 = vmatpush1.bf16.msra.mxu0 %v4670
    %6407 = vmatprep.subr.bf16.mxu0 %v4666
    %6408 = vmatpush1.bf16.msra.mxu0 %v4665
    %6409 = vmatprep.subr.bf16.mxu0 %v4661
    %6410 = vmatpush1.bf16.msra.mxu0 %v4660
    %6411 = vmatprep.subr.bf16.mxu0 %v4656
    %6412 = vmatpush1.bf16.msra.mxu0 %v4655
    %6413 = vmatprep.subr.bf16.mxu0 %v4651
    %6414 = vmatpush1.bf16.msra.mxu0 %v4650
    %6415 = vmatprep.subr.bf16.mxu0 %v4726
    %6416 = vmatpush2.bf16.msra.mxu0 %v4725
    %6417 = vmatprep.subr.bf16.mxu0 %v4721
    %6418 = vmatpush2.bf16.msra.mxu0 %v4720
    %6419 = vmatprep.subr.bf16.mxu0 %v4716
    %6420 = vmatpush2.bf16.msra.mxu0 %v4715
    %6421 = vmatprep.subr.bf16.mxu0 %v4711
    %6422 = vmatpush2.bf16.msra.mxu0 %v4710
    %6423 = vmatprep.subr.bf16.mxu0 %v4706
    %6424 = vmatpush2.bf16.msra.mxu0 %v4705
    %6425 = vmatprep.subr.bf16.mxu0 %v4701
    %6426 = vmatpush2.bf16.msra.mxu0 %v4700
    %6427 = vmatprep.subr.bf16.mxu0 %v4696
    %6428 = vmatpush2.bf16.msra.mxu0 %v4695
    %6429 = vmatprep.subr.bf16.mxu0 %v4691
    %6430 = vmatpush2.bf16.msra.mxu0 %v4690
    %6431 = vmatprep.mubr.bf16.mxu0 %v2984
    %6432 = vmatmul.mubr.bf16.gmra.mxu0 %v2376
    %v6433 = vpop.f32.mrf.mxu0
    %v6434 = vadd.f32 %v6241, %v6433
    %v6435 = vpop.f32.mrf.mxu0
    %v6436 = vadd.f32 %v6243, %v6435
    %v6437 = vpop.f32.mrf.mxu0
    %v6438 = vadd.f32 %v6245, %v6437
    %v6439 = vpop.f32.mrf.mxu0
    %v6440 = vadd.f32 %v6247, %v6439
    %6441 = vmatprep.mubr.bf16.mxu0 %v2985
    %6442 = vmatmul.mubr.bf16.gmra.mxu0 %v2390
    %v6443 = vpop.f32.mrf.mxu0
    %v6444 = vadd.f32 %v6251, %v6443
    %v6445 = vpop.f32.mrf.mxu0
    %v6446 = vadd.f32 %v6253, %v6445
    %v6447 = vpop.f32.mrf.mxu0
    %v6448 = vadd.f32 %v6255, %v6447
    %v6449 = vpop.f32.mrf.mxu0
    %v6450 = vadd.f32 %v6257, %v6449
    %6451 = vmatprep.mubr.bf16.mxu0 %v2986
    %6452 = vmatmul.mubr.bf16.gmra.mxu0 %v2404
    %v6453 = vpop.f32.mrf.mxu0
    %v6454 = vadd.f32 %v6261, %v6453
    %v6455 = vpop.f32.mrf.mxu0
    %v6456 = vadd.f32 %v6263, %v6455
    %v6457 = vpop.f32.mrf.mxu0
    %v6458 = vadd.f32 %v6265, %v6457
    %v6459 = vpop.f32.mrf.mxu0
    %v6460 = vadd.f32 %v6267, %v6459
    %6461 = vmatprep.mubr.bf16.mxu0 %v2987
    %6462 = vmatmul.mubr.bf16.gmra.mxu0 %v2418
    %v6463 = vpop.f32.mrf.mxu0
    %v6464 = vadd.f32 %v6271, %v6463
    %v6465 = vpop.f32.mrf.mxu0
    %v6466 = vadd.f32 %v6273, %v6465
    %v6467 = vpop.f32.mrf.mxu0
    %v6468 = vadd.f32 %v6275, %v6467
    %v6469 = vpop.f32.mrf.mxu0
    %v6470 = vadd.f32 %v6277, %v6469
    %6471 = vmatprep.mubr.bf16.mxu0 %v2988
    %6472 = vmatmul.mubr.bf16.gmra.mxu0 %v2432
    %v6473 = vpop.f32.mrf.mxu0
    %v6474 = vadd.f32 %v6281, %v6473
    %v6475 = vpop.f32.mrf.mxu0
    %v6476 = vadd.f32 %v6283, %v6475
    %v6477 = vpop.f32.mrf.mxu0
    %v6478 = vadd.f32 %v6285, %v6477
    %v6479 = vpop.f32.mrf.mxu0
    %v6480 = vadd.f32 %v6287, %v6479
    %6481 = vmatprep.mubr.bf16.mxu0 %v2989
    %6482 = vmatmul.mubr.bf16.gmra.mxu0 %v2446
    %v6483 = vpop.f32.mrf.mxu0
    %v6484 = vadd.f32 %v6291, %v6483
    %v6485 = vpop.f32.mrf.mxu0
    %v6486 = vadd.f32 %v6293, %v6485
    %v6487 = vpop.f32.mrf.mxu0
    %v6488 = vadd.f32 %v6295, %v6487
    %v6489 = vpop.f32.mrf.mxu0
    %v6490 = vadd.f32 %v6297, %v6489
    %6491 = vmatprep.mubr.bf16.mxu0 %v2990
    %6492 = vmatmul.mubr.bf16.gmra.mxu0 %v2460
    %v6493 = vpop.f32.mrf.mxu0
    %v6494 = vadd.f32 %v6301, %v6493
    %v6495 = vpop.f32.mrf.mxu0
    %v6496 = vadd.f32 %v6303, %v6495
    %v6497 = vpop.f32.mrf.mxu0
    %v6498 = vadd.f32 %v6305, %v6497
    %v6499 = vpop.f32.mrf.mxu0
    %v6500 = vadd.f32 %v6307, %v6499
    %6501 = vmatprep.mubr.bf16.mxu0 %v2991
    %6502 = vmatmul.mubr.bf16.gmra.mxu0 %v2474
    %v6503 = vpop.f32.mrf.mxu0
    %v6504 = vadd.f32 %v6311, %v6503
    %v6505 = vpop.f32.mrf.mxu0
    %v6506 = vadd.f32 %v6313, %v6505
    %v6507 = vpop.f32.mrf.mxu0
    %v6508 = vadd.f32 %v6315, %v6507
    %v6509 = vpop.f32.mrf.mxu0
    %v6510 = vadd.f32 %v6317, %v6509
    %6511 = vmatprep.mubr.bf16.mxu0 %v2992
    %6512 = vmatmul.mubr.bf16.gmra.mxu0 %v2488
    %v6513 = vpop.f32.mrf.mxu0
    %v6514 = vadd.f32 %v6321, %v6513
    %v6515 = vpop.f32.mrf.mxu0
    %v6516 = vadd.f32 %v6323, %v6515
    %v6517 = vpop.f32.mrf.mxu0
    %v6518 = vadd.f32 %v6325, %v6517
    %v6519 = vpop.f32.mrf.mxu0
    %v6520 = vadd.f32 %v6327, %v6519
    %6521 = vmatprep.mubr.bf16.mxu0 %v2993
    %6522 = vmatmul.mubr.bf16.gmra.mxu0 %v2502
    %v6523 = vpop.f32.mrf.mxu0
    %v6524 = vadd.f32 %v6331, %v6523
    %v6525 = vpop.f32.mrf.mxu0
    %v6526 = vadd.f32 %v6333, %v6525
    %v6527 = vpop.f32.mrf.mxu0
    %v6528 = vadd.f32 %v6335, %v6527
    %v6529 = vpop.f32.mrf.mxu0
    %v6530 = vadd.f32 %v6337, %v6529
    %6531 = vmatprep.mubr.bf16.mxu0 %v2994
    %6532 = vmatmul.mubr.bf16.gmra.mxu0 %v2516
    %v6533 = vpop.f32.mrf.mxu0
    %v6534 = vadd.f32 %v6341, %v6533
    %v6535 = vpop.f32.mrf.mxu0
    %v6536 = vadd.f32 %v6343, %v6535
    %v6537 = vpop.f32.mrf.mxu0
    %v6538 = vadd.f32 %v6345, %v6537
    %v6539 = vpop.f32.mrf.mxu0
    %v6540 = vadd.f32 %v6347, %v6539
    %6541 = vmatprep.mubr.bf16.mxu0 %v2995
    %6542 = vmatmul.mubr.bf16.gmra.mxu0 %v2530
    %v6543 = vpop.f32.mrf.mxu0
    %v6544 = vadd.f32 %v6351, %v6543
    %v6545 = vpop.f32.mrf.mxu0
    %v6546 = vadd.f32 %v6353, %v6545
    %v6547 = vpop.f32.mrf.mxu0
    %v6548 = vadd.f32 %v6355, %v6547
    %v6549 = vpop.f32.mrf.mxu0
    %v6550 = vadd.f32 %v6357, %v6549
    %6551 = vmatprep.mubr.bf16.mxu0 %v2996
    %6552 = vmatmul.mubr.bf16.gmra.mxu0 %v2544
    %v6553 = vpop.f32.mrf.mxu0
    %v6554 = vadd.f32 %v6361, %v6553
    %v6555 = vpop.f32.mrf.mxu0
    %v6556 = vadd.f32 %v6363, %v6555
    %v6557 = vpop.f32.mrf.mxu0
    %v6558 = vadd.f32 %v6365, %v6557
    %v6559 = vpop.f32.mrf.mxu0
    %v6560 = vadd.f32 %v6367, %v6559
    %6561 = vmatprep.mubr.bf16.mxu0 %v2997
    %6562 = vmatmul.mubr.bf16.gmra.mxu0 %v2558
    %v6563 = vpop.f32.mrf.mxu0
    %v6564 = vadd.f32 %v6371, %v6563
    %v6565 = vpop.f32.mrf.mxu0
    %v6566 = vadd.f32 %v6373, %v6565
    %v6567 = vpop.f32.mrf.mxu0
    %v6568 = vadd.f32 %v6375, %v6567
    %v6569 = vpop.f32.mrf.mxu0
    %v6570 = vadd.f32 %v6377, %v6569
    %6571 = vmatprep.mubr.bf16.mxu0 %v2998
    %6572 = vmatmul.mubr.bf16.gmra.mxu0 %v2572
    %v6573 = vpop.f32.mrf.mxu0
    %v6574 = vadd.f32 %v6381, %v6573
    %v6575 = vpop.f32.mrf.mxu0
    %v6576 = vadd.f32 %v6383, %v6575
    %v6577 = vpop.f32.mrf.mxu0
    %v6578 = vadd.f32 %v6385, %v6577
    %v6579 = vpop.f32.mrf.mxu0
    %v6580 = vadd.f32 %v6387, %v6579
    %6581 = vmatprep.mubr.bf16.mxu0 %v2999
    %6582 = vmatmul.mubr.bf16.gmra.mxu0 %v2586
    %v6583 = vpop.f32.mrf.mxu0
    %v6584 = vadd.f32 %v6391, %v6583
    %v6585 = vpop.f32.mrf.mxu0
    %v6586 = vadd.f32 %v6393, %v6585
    %v6587 = vpop.f32.mrf.mxu0
    %v6588 = vadd.f32 %v6395, %v6587
    %v6589 = vpop.f32.mrf.mxu0
    %v6590 = vadd.f32 %v6397, %v6589
    %6591 = vdwg.mxu0
    %6592 = vmatprep.subr.bf16.mxu0 0
    %6593 = vmatpush1.bf16.msra.mxu0 %v4447
    %6594 = vmatprep.subr.bf16.mxu0 0
    %6595 = vmatpush1.bf16.msra.mxu0 %v4442
    %6596 = vmatprep.subr.bf16.mxu0 0
    %6597 = vmatpush1.bf16.msra.mxu0 %v4437
    %6598 = vmatprep.subr.bf16.mxu0 0
    %6599 = vmatpush1.bf16.msra.mxu0 %v4432
    %6600 = vmatprep.subr.bf16.mxu0 0
    %6601 = vmatpush1.bf16.msra.mxu0 %v4427
    %6602 = vmatprep.subr.bf16.mxu0 0
    %6603 = vmatpush1.bf16.msra.mxu0 %v4422
    %6604 = vmatprep.subr.bf16.mxu0 0
    %6605 = vmatpush1.bf16.msra.mxu0 %v4417
    %6606 = vmatprep.subr.bf16.mxu0 0
    %6607 = vmatpush1.bf16.msra.mxu0 %v4412
    %6608 = vmatprep.subr.bf16.mxu0 0
    %6609 = vmatpush2.bf16.msra.mxu0 %v4487
    %6610 = vmatprep.subr.bf16.mxu0 0
    %6611 = vmatpush2.bf16.msra.mxu0 %v4482
    %6612 = vmatprep.subr.bf16.mxu0 0
    %6613 = vmatpush2.bf16.msra.mxu0 %v4477
    %6614 = vmatprep.subr.bf16.mxu0 0
    %6615 = vmatpush2.bf16.msra.mxu0 %v4472
    %6616 = vmatprep.subr.bf16.mxu0 0
    %6617 = vmatpush2.bf16.msra.mxu0 %v4467
    %6618 = vmatprep.subr.bf16.mxu0 0
    %6619 = vmatpush2.bf16.msra.mxu0 %v4462
    %6620 = vmatprep.subr.bf16.mxu0 0
    %6621 = vmatpush2.bf16.msra.mxu0 %v4457
    %6622 = vmatprep.subr.bf16.mxu0 0
    %6623 = vmatpush2.bf16.msra.mxu0 %v4452
    %6624 = vmatprep.mubr.bf16.mxu0 %v2371
    %6625 = vmatmul.mubr.bf16.gmra.mxu0 %v2370
    %v6626 = vpop.f32.mrf.mxu0
    %v6627 = vadd.f32 0.0, %v6626
    %v6628 = vpop.f32.mrf.mxu0
    %v6629 = vpop.f32.mrf.mxu0
    %v6630 = vadd.f32 0.0, %v6629
    %v6631 = vpop.f32.mrf.mxu0
    %6632 = vmatprep.mubr.bf16.mxu0 %v2385
    %6633 = vmatmul.mubr.bf16.gmra.mxu0 %v2384
    %v6634 = vpop.f32.mrf.mxu0
    %v6635 = vadd.f32 0.0, %v6634
    %v6636 = vpop.f32.mrf.mxu0
    %v6637 = vpop.f32.mrf.mxu0
    %v6638 = vadd.f32 0.0, %v6637
    %v6639 = vpop.f32.mrf.mxu0
    %6640 = vmatprep.mubr.bf16.mxu0 %v2399
    %6641 = vmatmul.mubr.bf16.gmra.mxu0 %v2398
    %v6642 = vpop.f32.mrf.mxu0
    %v6643 = vadd.f32 0.0, %v6642
    %v6644 = vpop.f32.mrf.mxu0
    %v6645 = vpop.f32.mrf.mxu0
    %v6646 = vadd.f32 0.0, %v6645
    %v6647 = vpop.f32.mrf.mxu0
    %6648 = vmatprep.mubr.bf16.mxu0 %v2413
    %6649 = vmatmul.mubr.bf16.gmra.mxu0 %v2412
    %v6650 = vpop.f32.mrf.mxu0
    %v6651 = vadd.f32 0.0, %v6650
    %v6652 = vpop.f32.mrf.mxu0
    %v6653 = vpop.f32.mrf.mxu0
    %v6654 = vadd.f32 0.0, %v6653
    %v6655 = vpop.f32.mrf.mxu0
    %6656 = vmatprep.mubr.bf16.mxu0 %v2427
    %6657 = vmatmul.mubr.bf16.gmra.mxu0 %v2426
    %v6658 = vpop.f32.mrf.mxu0
    %v6659 = vadd.f32 0.0, %v6658
    %v6660 = vpop.f32.mrf.mxu0
    %v6661 = vpop.f32.mrf.mxu0
    %v6662 = vadd.f32 0.0, %v6661
    %v6663 = vpop.f32.mrf.mxu0
    %6664 = vmatprep.mubr.bf16.mxu0 %v2441
    %6665 = vmatmul.mubr.bf16.gmra.mxu0 %v2440
    %v6666 = vpop.f32.mrf.mxu0
    %v6667 = vadd.f32 0.0, %v6666
    %v6668 = vpop.f32.mrf.mxu0
    %v6669 = vpop.f32.mrf.mxu0
    %v6670 = vadd.f32 0.0, %v6669
    %v6671 = vpop.f32.mrf.mxu0
    %6672 = vmatprep.mubr.bf16.mxu0 %v2455
    %6673 = vmatmul.mubr.bf16.gmra.mxu0 %v2454
    %v6674 = vpop.f32.mrf.mxu0
    %v6675 = vadd.f32 0.0, %v6674
    %v6676 = vpop.f32.mrf.mxu0
    %v6677 = vpop.f32.mrf.mxu0
    %v6678 = vadd.f32 0.0, %v6677
    %v6679 = vpop.f32.mrf.mxu0
    %6680 = vmatprep.mubr.bf16.mxu0 %v2469
    %6681 = vmatmul.mubr.bf16.gmra.mxu0 %v2468
    %v6682 = vpop.f32.mrf.mxu0
    %v6683 = vadd.f32 0.0, %v6682
    %v6684 = vpop.f32.mrf.mxu0
    %v6685 = vpop.f32.mrf.mxu0
    %v6686 = vadd.f32 0.0, %v6685
    %v6687 = vpop.f32.mrf.mxu0
    %6688 = vmatprep.mubr.bf16.mxu0 %v2483
    %6689 = vmatmul.mubr.bf16.gmra.mxu0 %v2482
    %v6690 = vpop.f32.mrf.mxu0
    %v6691 = vadd.f32 0.0, %v6690
    %v6692 = vpop.f32.mrf.mxu0
    %v6693 = vpop.f32.mrf.mxu0
    %v6694 = vadd.f32 0.0, %v6693
    %v6695 = vpop.f32.mrf.mxu0
    %6696 = vmatprep.mubr.bf16.mxu0 %v2497
    %6697 = vmatmul.mubr.bf16.gmra.mxu0 %v2496
    %v6698 = vpop.f32.mrf.mxu0
    %v6699 = vadd.f32 0.0, %v6698
    %v6700 = vpop.f32.mrf.mxu0
    %v6701 = vpop.f32.mrf.mxu0
    %v6702 = vadd.f32 0.0, %v6701
    %v6703 = vpop.f32.mrf.mxu0
    %6704 = vmatprep.mubr.bf16.mxu0 %v2511
    %6705 = vmatmul.mubr.bf16.gmra.mxu0 %v2510
    %v6706 = vpop.f32.mrf.mxu0
    %v6707 = vadd.f32 0.0, %v6706
    %v6708 = vpop.f32.mrf.mxu0
    %v6709 = vpop.f32.mrf.mxu0
    %v6710 = vadd.f32 0.0, %v6709
    %v6711 = vpop.f32.mrf.mxu0
    %6712 = vmatprep.mubr.bf16.mxu0 %v2525
    %6713 = vmatmul.mubr.bf16.gmra.mxu0 %v2524
    %v6714 = vpop.f32.mrf.mxu0
    %v6715 = vadd.f32 0.0, %v6714
    %v6716 = vpop.f32.mrf.mxu0
    %v6717 = vpop.f32.mrf.mxu0
    %v6718 = vadd.f32 0.0, %v6717
    %v6719 = vpop.f32.mrf.mxu0
    %6720 = vmatprep.mubr.bf16.mxu0 %v2539
    %6721 = vmatmul.mubr.bf16.gmra.mxu0 %v2538
    %v6722 = vpop.f32.mrf.mxu0
    %v6723 = vadd.f32 0.0, %v6722
    %v6724 = vpop.f32.mrf.mxu0
    %v6725 = vpop.f32.mrf.mxu0
    %v6726 = vadd.f32 0.0, %v6725
    %v6727 = vpop.f32.mrf.mxu0
    %6728 = vmatprep.mubr.bf16.mxu0 %v2553
    %6729 = vmatmul.mubr.bf16.gmra.mxu0 %v2552
    %v6730 = vpop.f32.mrf.mxu0
    %v6731 = vadd.f32 0.0, %v6730
    %v6732 = vpop.f32.mrf.mxu0
    %v6733 = vpop.f32.mrf.mxu0
    %v6734 = vadd.f32 0.0, %v6733
    %v6735 = vpop.f32.mrf.mxu0
    %6736 = vmatprep.mubr.bf16.mxu0 %v2567
    %6737 = vmatmul.mubr.bf16.gmra.mxu0 %v2566
    %v6738 = vpop.f32.mrf.mxu0
    %v6739 = vadd.f32 0.0, %v6738
    %v6740 = vpop.f32.mrf.mxu0
    %v6741 = vpop.f32.mrf.mxu0
    %v6742 = vadd.f32 0.0, %v6741
    %v6743 = vpop.f32.mrf.mxu0
    %6744 = vmatprep.mubr.bf16.mxu0 %v2581
    %6745 = vmatmul.mubr.bf16.gmra.mxu0 %v2580
    %v6746 = vpop.f32.mrf.mxu0
    %v6747 = vadd.f32 0.0, %v6746
    %v6748 = vpop.f32.mrf.mxu0
    %v6749 = vpop.f32.mrf.mxu0
    %v6750 = vadd.f32 0.0, %v6749
    %v6751 = vpop.f32.mrf.mxu0
    %6752 = vdwg.mxu0
    %6753 = vmatprep.subr.bf16.mxu0 0
    %6754 = vmatpush1.bf16.msra.mxu0 %v4527
    %6755 = vmatprep.subr.bf16.mxu0 0
    %6756 = vmatpush1.bf16.msra.mxu0 %v4522
    %6757 = vmatprep.subr.bf16.mxu0 0
    %6758 = vmatpush1.bf16.msra.mxu0 %v4517
    %6759 = vmatprep.subr.bf16.mxu0 0
    %6760 = vmatpush1.bf16.msra.mxu0 %v4512
    %6761 = vmatprep.subr.bf16.mxu0 0
    %6762 = vmatpush1.bf16.msra.mxu0 %v4507
    %6763 = vmatprep.subr.bf16.mxu0 0
    %6764 = vmatpush1.bf16.msra.mxu0 %v4502
    %6765 = vmatprep.subr.bf16.mxu0 0
    %6766 = vmatpush1.bf16.msra.mxu0 %v4497
    %6767 = vmatprep.subr.bf16.mxu0 0
    %6768 = vmatpush1.bf16.msra.mxu0 %v4492
    %6769 = vmatprep.subr.bf16.mxu0 0
    %6770 = vmatpush2.bf16.msra.mxu0 %v4567
    %6771 = vmatprep.subr.bf16.mxu0 0
    %6772 = vmatpush2.bf16.msra.mxu0 %v4562
    %6773 = vmatprep.subr.bf16.mxu0 0
    %6774 = vmatpush2.bf16.msra.mxu0 %v4557
    %6775 = vmatprep.subr.bf16.mxu0 0
    %6776 = vmatpush2.bf16.msra.mxu0 %v4552
    %6777 = vmatprep.subr.bf16.mxu0 0
    %6778 = vmatpush2.bf16.msra.mxu0 %v4547
    %6779 = vmatprep.subr.bf16.mxu0 0
    %6780 = vmatpush2.bf16.msra.mxu0 %v4542
    %6781 = vmatprep.subr.bf16.mxu0 0
    %6782 = vmatpush2.bf16.msra.mxu0 %v4537
    %6783 = vmatprep.subr.bf16.mxu0 0
    %6784 = vmatpush2.bf16.msra.mxu0 %v4532
    %6785 = vmatprep.mubr.bf16.mxu0 %v2373
    %6786 = vmatmul.mubr.bf16.gmra.mxu0 %v2372
    %v6787 = vpop.f32.mrf.mxu0
    %v6788 = vadd.f32 %v6627, %v6787
    %v6789 = vpop.f32.mrf.mxu0
    %v6790 = vpop.f32.mrf.mxu0
    %v6791 = vadd.f32 %v6630, %v6790
    %v6792 = vpop.f32.mrf.mxu0
    %6793 = vmatprep.mubr.bf16.mxu0 %v2387
    %6794 = vmatmul.mubr.bf16.gmra.mxu0 %v2386
    %v6795 = vpop.f32.mrf.mxu0
    %v6796 = vadd.f32 %v6635, %v6795
    %v6797 = vpop.f32.mrf.mxu0
    %v6798 = vpop.f32.mrf.mxu0
    %v6799 = vadd.f32 %v6638, %v6798
    %v6800 = vpop.f32.mrf.mxu0
    %6801 = vmatprep.mubr.bf16.mxu0 %v2401
    %6802 = vmatmul.mubr.bf16.gmra.mxu0 %v2400
    %v6803 = vpop.f32.mrf.mxu0
    %v6804 = vadd.f32 %v6643, %v6803
    %v6805 = vpop.f32.mrf.mxu0
    %v6806 = vpop.f32.mrf.mxu0
    %v6807 = vadd.f32 %v6646, %v6806
    %v6808 = vpop.f32.mrf.mxu0
    %6809 = vmatprep.mubr.bf16.mxu0 %v2415
    %6810 = vmatmul.mubr.bf16.gmra.mxu0 %v2414
    %v6811 = vpop.f32.mrf.mxu0
    %v6812 = vadd.f32 %v6651, %v6811
    %v6813 = vpop.f32.mrf.mxu0
    %v6814 = vpop.f32.mrf.mxu0
    %v6815 = vadd.f32 %v6654, %v6814
    %v6816 = vpop.f32.mrf.mxu0
    %6817 = vmatprep.mubr.bf16.mxu0 %v2429
    %6818 = vmatmul.mubr.bf16.gmra.mxu0 %v2428
    %v6819 = vpop.f32.mrf.mxu0
    %v6820 = vadd.f32 %v6659, %v6819
    %v6821 = vpop.f32.mrf.mxu0
    %v6822 = vpop.f32.mrf.mxu0
    %v6823 = vadd.f32 %v6662, %v6822
    %v6824 = vpop.f32.mrf.mxu0
    %6825 = vmatprep.mubr.bf16.mxu0 %v2443
    %6826 = vmatmul.mubr.bf16.gmra.mxu0 %v2442
    %v6827 = vpop.f32.mrf.mxu0
    %v6828 = vadd.f32 %v6667, %v6827
    %v6829 = vpop.f32.mrf.mxu0
    %v6830 = vpop.f32.mrf.mxu0
    %v6831 = vadd.f32 %v6670, %v6830
    %v6832 = vpop.f32.mrf.mxu0
    %6833 = vmatprep.mubr.bf16.mxu0 %v2457
    %6834 = vmatmul.mubr.bf16.gmra.mxu0 %v2456
    %v6835 = vpop.f32.mrf.mxu0
    %v6836 = vadd.f32 %v6675, %v6835
    %v6837 = vpop.f32.mrf.mxu0
    %v6838 = vpop.f32.mrf.mxu0
    %v6839 = vadd.f32 %v6678, %v6838
    %v6840 = vpop.f32.mrf.mxu0
    %6841 = vmatprep.mubr.bf16.mxu0 %v2471
    %6842 = vmatmul.mubr.bf16.gmra.mxu0 %v2470
    %v6843 = vpop.f32.mrf.mxu0
    %v6844 = vadd.f32 %v6683, %v6843
    %v6845 = vpop.f32.mrf.mxu0
    %v6846 = vpop.f32.mrf.mxu0
    %v6847 = vadd.f32 %v6686, %v6846
    %v6848 = vpop.f32.mrf.mxu0
    %6849 = vmatprep.mubr.bf16.mxu0 %v2485
    %6850 = vmatmul.mubr.bf16.gmra.mxu0 %v2484
    %v6851 = vpop.f32.mrf.mxu0
    %v6852 = vadd.f32 %v6691, %v6851
    %v6853 = vpop.f32.mrf.mxu0
    %v6854 = vpop.f32.mrf.mxu0
    %v6855 = vadd.f32 %v6694, %v6854
    %v6856 = vpop.f32.mrf.mxu0
    %6857 = vmatprep.mubr.bf16.mxu0 %v2499
    %6858 = vmatmul.mubr.bf16.gmra.mxu0 %v2498
    %v6859 = vpop.f32.mrf.mxu0
    %v6860 = vadd.f32 %v6699, %v6859
    %v6861 = vpop.f32.mrf.mxu0
    %v6862 = vpop.f32.mrf.mxu0
    %v6863 = vadd.f32 %v6702, %v6862
    %v6864 = vpop.f32.mrf.mxu0
    %6865 = vmatprep.mubr.bf16.mxu0 %v2513
    %6866 = vmatmul.mubr.bf16.gmra.mxu0 %v2512
    %v6867 = vpop.f32.mrf.mxu0
    %v6868 = vadd.f32 %v6707, %v6867
    %v6869 = vpop.f32.mrf.mxu0
    %v6870 = vpop.f32.mrf.mxu0
    %v6871 = vadd.f32 %v6710, %v6870
    %v6872 = vpop.f32.mrf.mxu0
    %6873 = vmatprep.mubr.bf16.mxu0 %v2527
    %6874 = vmatmul.mubr.bf16.gmra.mxu0 %v2526
    %v6875 = vpop.f32.mrf.mxu0
    %v6876 = vadd.f32 %v6715, %v6875
    %v6877 = vpop.f32.mrf.mxu0
    %v6878 = vpop.f32.mrf.mxu0
    %v6879 = vadd.f32 %v6718, %v6878
    %v6880 = vpop.f32.mrf.mxu0
    %6881 = vmatprep.mubr.bf16.mxu0 %v2541
    %6882 = vmatmul.mubr.bf16.gmra.mxu0 %v2540
    %v6883 = vpop.f32.mrf.mxu0
    %v6884 = vadd.f32 %v6723, %v6883
    %v6885 = vpop.f32.mrf.mxu0
    %v6886 = vpop.f32.mrf.mxu0
    %v6887 = vadd.f32 %v6726, %v6886
    %v6888 = vpop.f32.mrf.mxu0
    %6889 = vmatprep.mubr.bf16.mxu0 %v2555
    %6890 = vmatmul.mubr.bf16.gmra.mxu0 %v2554
    %v6891 = vpop.f32.mrf.mxu0
    %v6892 = vadd.f32 %v6731, %v6891
    %v6893 = vpop.f32.mrf.mxu0
    %v6894 = vpop.f32.mrf.mxu0
    %v6895 = vadd.f32 %v6734, %v6894
    %v6896 = vpop.f32.mrf.mxu0
    %6897 = vmatprep.mubr.bf16.mxu0 %v2569
    %6898 = vmatmul.mubr.bf16.gmra.mxu0 %v2568
    %v6899 = vpop.f32.mrf.mxu0
    %v6900 = vadd.f32 %v6739, %v6899
    %v6901 = vpop.f32.mrf.mxu0
    %v6902 = vpop.f32.mrf.mxu0
    %v6903 = vadd.f32 %v6742, %v6902
    %v6904 = vpop.f32.mrf.mxu0
    %6905 = vmatprep.mubr.bf16.mxu0 %v2583
    %6906 = vmatmul.mubr.bf16.gmra.mxu0 %v2582
    %v6907 = vpop.f32.mrf.mxu0
    %v6908 = vadd.f32 %v6747, %v6907
    %v6909 = vpop.f32.mrf.mxu0
    %v6910 = vpop.f32.mrf.mxu0
    %v6911 = vadd.f32 %v6750, %v6910
    %v6912 = vpop.f32.mrf.mxu0
    %6913 = vdwg.mxu0
    %6914 = vmatprep.subr.bf16.mxu0 0
    %6915 = vmatpush1.bf16.msra.mxu0 %v4607
    %6916 = vmatprep.subr.bf16.mxu0 0
    %6917 = vmatpush1.bf16.msra.mxu0 %v4602
    %6918 = vmatprep.subr.bf16.mxu0 0
    %6919 = vmatpush1.bf16.msra.mxu0 %v4597
    %6920 = vmatprep.subr.bf16.mxu0 0
    %6921 = vmatpush1.bf16.msra.mxu0 %v4592
    %6922 = vmatprep.subr.bf16.mxu0 0
    %6923 = vmatpush1.bf16.msra.mxu0 %v4587
    %6924 = vmatprep.subr.bf16.mxu0 0
    %6925 = vmatpush1.bf16.msra.mxu0 %v4582
    %6926 = vmatprep.subr.bf16.mxu0 0
    %6927 = vmatpush1.bf16.msra.mxu0 %v4577
    %6928 = vmatprep.subr.bf16.mxu0 0
    %6929 = vmatpush1.bf16.msra.mxu0 %v4572
    %6930 = vmatprep.subr.bf16.mxu0 0
    %6931 = vmatpush2.bf16.msra.mxu0 %v4647
    %6932 = vmatprep.subr.bf16.mxu0 0
    %6933 = vmatpush2.bf16.msra.mxu0 %v4642
    %6934 = vmatprep.subr.bf16.mxu0 0
    %6935 = vmatpush2.bf16.msra.mxu0 %v4637
    %6936 = vmatprep.subr.bf16.mxu0 0
    %6937 = vmatpush2.bf16.msra.mxu0 %v4632
    %6938 = vmatprep.subr.bf16.mxu0 0
    %6939 = vmatpush2.bf16.msra.mxu0 %v4627
    %6940 = vmatprep.subr.bf16.mxu0 0
    %6941 = vmatpush2.bf16.msra.mxu0 %v4622
    %6942 = vmatprep.subr.bf16.mxu0 0
    %6943 = vmatpush2.bf16.msra.mxu0 %v4617
    %6944 = vmatprep.subr.bf16.mxu0 0
    %6945 = vmatpush2.bf16.msra.mxu0 %v4612
    %6946 = vmatprep.mubr.bf16.mxu0 %v2375
    %6947 = vmatmul.mubr.bf16.gmra.mxu0 %v2374
    %v6948 = vpop.f32.mrf.mxu0
    %v6949 = vadd.f32 %v6788, %v6948
    %v6950 = vpop.f32.mrf.mxu0
    %v6951 = vpop.f32.mrf.mxu0
    %v6952 = vadd.f32 %v6791, %v6951
    %v6953 = vpop.f32.mrf.mxu0
    %6954 = vmatprep.mubr.bf16.mxu0 %v2389
    %6955 = vmatmul.mubr.bf16.gmra.mxu0 %v2388
    %v6956 = vpop.f32.mrf.mxu0
    %v6957 = vadd.f32 %v6796, %v6956
    %v6958 = vpop.f32.mrf.mxu0
    %v6959 = vpop.f32.mrf.mxu0
    %v6960 = vadd.f32 %v6799, %v6959
    %v6961 = vpop.f32.mrf.mxu0
    %6962 = vmatprep.mubr.bf16.mxu0 %v2403
    %6963 = vmatmul.mubr.bf16.gmra.mxu0 %v2402
    %v6964 = vpop.f32.mrf.mxu0
    %v6965 = vadd.f32 %v6804, %v6964
    %v6966 = vpop.f32.mrf.mxu0
    %v6967 = vpop.f32.mrf.mxu0
    %v6968 = vadd.f32 %v6807, %v6967
    %v6969 = vpop.f32.mrf.mxu0
    %6970 = vmatprep.mubr.bf16.mxu0 %v2417
    %6971 = vmatmul.mubr.bf16.gmra.mxu0 %v2416
    %v6972 = vpop.f32.mrf.mxu0
    %v6973 = vadd.f32 %v6812, %v6972
    %v6974 = vpop.f32.mrf.mxu0
    %v6975 = vpop.f32.mrf.mxu0
    %v6976 = vadd.f32 %v6815, %v6975
    %v6977 = vpop.f32.mrf.mxu0
    %6978 = vmatprep.mubr.bf16.mxu0 %v2431
    %6979 = vmatmul.mubr.bf16.gmra.mxu0 %v2430
    %v6980 = vpop.f32.mrf.mxu0
    %v6981 = vadd.f32 %v6820, %v6980
    %v6982 = vpop.f32.mrf.mxu0
    %v6983 = vpop.f32.mrf.mxu0
    %v6984 = vadd.f32 %v6823, %v6983
    %v6985 = vpop.f32.mrf.mxu0
    %6986 = vmatprep.mubr.bf16.mxu0 %v2445
    %6987 = vmatmul.mubr.bf16.gmra.mxu0 %v2444
    %v6988 = vpop.f32.mrf.mxu0
    %v6989 = vadd.f32 %v6828, %v6988
    %v6990 = vpop.f32.mrf.mxu0
    %v6991 = vpop.f32.mrf.mxu0
    %v6992 = vadd.f32 %v6831, %v6991
    %v6993 = vpop.f32.mrf.mxu0
    %6994 = vmatprep.mubr.bf16.mxu0 %v2459
    %6995 = vmatmul.mubr.bf16.gmra.mxu0 %v2458
    %v6996 = vpop.f32.mrf.mxu0
    %v6997 = vadd.f32 %v6836, %v6996
    %v6998 = vpop.f32.mrf.mxu0
    %v6999 = vpop.f32.mrf.mxu0
    %v7000 = vadd.f32 %v6839, %v6999
    %v7001 = vpop.f32.mrf.mxu0
    %7002 = vmatprep.mubr.bf16.mxu0 %v2473
    %7003 = vmatmul.mubr.bf16.gmra.mxu0 %v2472
    %v7004 = vpop.f32.mrf.mxu0
    %v7005 = vadd.f32 %v6844, %v7004
    %v7006 = vpop.f32.mrf.mxu0
    %v7007 = vpop.f32.mrf.mxu0
    %v7008 = vadd.f32 %v6847, %v7007
    %v7009 = vpop.f32.mrf.mxu0
    %7010 = vmatprep.mubr.bf16.mxu0 %v2487
    %7011 = vmatmul.mubr.bf16.gmra.mxu0 %v2486
    %v7012 = vpop.f32.mrf.mxu0
    %v7013 = vadd.f32 %v6852, %v7012
    %v7014 = vpop.f32.mrf.mxu0
    %v7015 = vpop.f32.mrf.mxu0
    %v7016 = vadd.f32 %v6855, %v7015
    %v7017 = vpop.f32.mrf.mxu0
    %7018 = vmatprep.mubr.bf16.mxu0 %v2501
    %7019 = vmatmul.mubr.bf16.gmra.mxu0 %v2500
    %v7020 = vpop.f32.mrf.mxu0
    %v7021 = vadd.f32 %v6860, %v7020
    %v7022 = vpop.f32.mrf.mxu0
    %v7023 = vpop.f32.mrf.mxu0
    %v7024 = vadd.f32 %v6863, %v7023
    %v7025 = vpop.f32.mrf.mxu0
    %7026 = vmatprep.mubr.bf16.mxu0 %v2515
    %7027 = vmatmul.mubr.bf16.gmra.mxu0 %v2514
    %v7028 = vpop.f32.mrf.mxu0
    %v7029 = vadd.f32 %v6868, %v7028
    %v7030 = vpop.f32.mrf.mxu0
    %v7031 = vpop.f32.mrf.mxu0
    %v7032 = vadd.f32 %v6871, %v7031
    %v7033 = vpop.f32.mrf.mxu0
    %7034 = vmatprep.mubr.bf16.mxu0 %v2529
    %7035 = vmatmul.mubr.bf16.gmra.mxu0 %v2528
    %v7036 = vpop.f32.mrf.mxu0
    %v7037 = vadd.f32 %v6876, %v7036
    %v7038 = vpop.f32.mrf.mxu0
    %v7039 = vpop.f32.mrf.mxu0
    %v7040 = vadd.f32 %v6879, %v7039
    %v7041 = vpop.f32.mrf.mxu0
    %7042 = vmatprep.mubr.bf16.mxu0 %v2543
    %7043 = vmatmul.mubr.bf16.gmra.mxu0 %v2542
    %v7044 = vpop.f32.mrf.mxu0
    %v7045 = vadd.f32 %v6884, %v7044
    %v7046 = vpop.f32.mrf.mxu0
    %v7047 = vpop.f32.mrf.mxu0
    %v7048 = vadd.f32 %v6887, %v7047
    %v7049 = vpop.f32.mrf.mxu0
    %7050 = vmatprep.mubr.bf16.mxu0 %v2557
    %7051 = vmatmul.mubr.bf16.gmra.mxu0 %v2556
    %v7052 = vpop.f32.mrf.mxu0
    %v7053 = vadd.f32 %v6892, %v7052
    %v7054 = vpop.f32.mrf.mxu0
    %v7055 = vpop.f32.mrf.mxu0
    %v7056 = vadd.f32 %v6895, %v7055
    %v7057 = vpop.f32.mrf.mxu0
    %7058 = vmatprep.mubr.bf16.mxu0 %v2571
    %7059 = vmatmul.mubr.bf16.gmra.mxu0 %v2570
    %v7060 = vpop.f32.mrf.mxu0
    %v7061 = vadd.f32 %v6900, %v7060
    %v7062 = vpop.f32.mrf.mxu0
    %v7063 = vpop.f32.mrf.mxu0
    %v7064 = vadd.f32 %v6903, %v7063
    %v7065 = vpop.f32.mrf.mxu0
    %7066 = vmatprep.mubr.bf16.mxu0 %v2585
    %7067 = vmatmul.mubr.bf16.gmra.mxu0 %v2584
    %v7068 = vpop.f32.mrf.mxu0
    %v7069 = vadd.f32 %v6908, %v7068
    %v7070 = vpop.f32.mrf.mxu0
    %v7071 = vpop.f32.mrf.mxu0
    %v7072 = vadd.f32 %v6911, %v7071
    %v7073 = vpop.f32.mrf.mxu0
    %7074 = vdwg.mxu0
    %7075 = vmatprep.subr.bf16.mxu0 0
    %7076 = vmatpush1.bf16.msra.mxu0 %v4687
    %7077 = vmatprep.subr.bf16.mxu0 0
    %7078 = vmatpush1.bf16.msra.mxu0 %v4682
    %7079 = vmatprep.subr.bf16.mxu0 0
    %7080 = vmatpush1.bf16.msra.mxu0 %v4677
    %7081 = vmatprep.subr.bf16.mxu0 0
    %7082 = vmatpush1.bf16.msra.mxu0 %v4672
    %7083 = vmatprep.subr.bf16.mxu0 0
    %7084 = vmatpush1.bf16.msra.mxu0 %v4667
    %7085 = vmatprep.subr.bf16.mxu0 0
    %7086 = vmatpush1.bf16.msra.mxu0 %v4662
    %7087 = vmatprep.subr.bf16.mxu0 0
    %7088 = vmatpush1.bf16.msra.mxu0 %v4657
    %7089 = vmatprep.subr.bf16.mxu0 0
    %7090 = vmatpush1.bf16.msra.mxu0 %v4652
    %7091 = vmatprep.subr.bf16.mxu0 0
    %7092 = vmatpush2.bf16.msra.mxu0 %v4727
    %7093 = vmatprep.subr.bf16.mxu0 0
    %7094 = vmatpush2.bf16.msra.mxu0 %v4722
    %7095 = vmatprep.subr.bf16.mxu0 0
    %7096 = vmatpush2.bf16.msra.mxu0 %v4717
    %7097 = vmatprep.subr.bf16.mxu0 0
    %7098 = vmatpush2.bf16.msra.mxu0 %v4712
    %7099 = vmatprep.subr.bf16.mxu0 0
    %7100 = vmatpush2.bf16.msra.mxu0 %v4707
    %7101 = vmatprep.subr.bf16.mxu0 0
    %7102 = vmatpush2.bf16.msra.mxu0 %v4702
    %7103 = vmatprep.subr.bf16.mxu0 0
    %7104 = vmatpush2.bf16.msra.mxu0 %v4697
    %7105 = vmatprep.subr.bf16.mxu0 0
    %7106 = vmatpush2.bf16.msra.mxu0 %v4692
    %7107 = vmatprep.mubr.bf16.mxu0 %v2984
    %7108 = vmatmul.mubr.bf16.gmra.mxu0 %v2376
    %v7109 = vpop.f32.mrf.mxu0
    %v7110 = vadd.f32 %v6949, %v7109
    %v7111 = vpop.f32.mrf.mxu0
    %v7112 = vpop.f32.mrf.mxu0
    %v7113 = vadd.f32 %v6952, %v7112
    %v7114 = vpop.f32.mrf.mxu0
    %7115 = vmatprep.mubr.bf16.mxu0 %v2985
    %7116 = vmatmul.mubr.bf16.gmra.mxu0 %v2390
    %v7117 = vpop.f32.mrf.mxu0
    %v7118 = vadd.f32 %v6957, %v7117
    %v7119 = vpop.f32.mrf.mxu0
    %v7120 = vpop.f32.mrf.mxu0
    %v7121 = vadd.f32 %v6960, %v7120
    %v7122 = vpop.f32.mrf.mxu0
    %7123 = vmatprep.mubr.bf16.mxu0 %v2986
    %7124 = vmatmul.mubr.bf16.gmra.mxu0 %v2404
    %v7125 = vpop.f32.mrf.mxu0
    %v7126 = vadd.f32 %v6965, %v7125
    %v7127 = vpop.f32.mrf.mxu0
    %v7128 = vpop.f32.mrf.mxu0
    %v7129 = vadd.f32 %v6968, %v7128
    %v7130 = vpop.f32.mrf.mxu0
    %7131 = vmatprep.mubr.bf16.mxu0 %v2987
    %7132 = vmatmul.mubr.bf16.gmra.mxu0 %v2418
    %v7133 = vpop.f32.mrf.mxu0
    %v7134 = vadd.f32 %v6973, %v7133
    %v7135 = vpop.f32.mrf.mxu0
    %v7136 = vpop.f32.mrf.mxu0
    %v7137 = vadd.f32 %v6976, %v7136
    %v7138 = vpop.f32.mrf.mxu0
    %7139 = vmatprep.mubr.bf16.mxu0 %v2988
    %7140 = vmatmul.mubr.bf16.gmra.mxu0 %v2432
    %v7141 = vpop.f32.mrf.mxu0
    %v7142 = vadd.f32 %v6981, %v7141
    %v7143 = vpop.f32.mrf.mxu0
    %v7144 = vpop.f32.mrf.mxu0
    %v7145 = vadd.f32 %v6984, %v7144
    %v7146 = vpop.f32.mrf.mxu0
    %7147 = vmatprep.mubr.bf16.mxu0 %v2989
    %7148 = vmatmul.mubr.bf16.gmra.mxu0 %v2446
    %v7149 = vpop.f32.mrf.mxu0
    %v7150 = vadd.f32 %v6989, %v7149
    %v7151 = vpop.f32.mrf.mxu0
    %v7152 = vpop.f32.mrf.mxu0
    %v7153 = vadd.f32 %v6992, %v7152
    %v7154 = vpop.f32.mrf.mxu0
    %7155 = vmatprep.mubr.bf16.mxu0 %v2990
    %7156 = vmatmul.mubr.bf16.gmra.mxu0 %v2460
    %v7157 = vpop.f32.mrf.mxu0
    %v7158 = vadd.f32 %v6997, %v7157
    %v7159 = vpop.f32.mrf.mxu0
    %v7160 = vpop.f32.mrf.mxu0
    %v7161 = vadd.f32 %v7000, %v7160
    %v7162 = vpop.f32.mrf.mxu0
    %7163 = vmatprep.mubr.bf16.mxu0 %v2991
    %7164 = vmatmul.mubr.bf16.gmra.mxu0 %v2474
    %v7165 = vpop.f32.mrf.mxu0
    %v7166 = vadd.f32 %v7005, %v7165
    %v7167 = vpop.f32.mrf.mxu0
    %v7168 = vpop.f32.mrf.mxu0
    %v7169 = vadd.f32 %v7008, %v7168
    %v7170 = vpop.f32.mrf.mxu0
    %7171 = vmatprep.mubr.bf16.mxu0 %v2992
    %7172 = vmatmul.mubr.bf16.gmra.mxu0 %v2488
    %v7173 = vpop.f32.mrf.mxu0
    %v7174 = vadd.f32 %v7013, %v7173
    %v7175 = vpop.f32.mrf.mxu0
    %v7176 = vpop.f32.mrf.mxu0
    %v7177 = vadd.f32 %v7016, %v7176
    %v7178 = vpop.f32.mrf.mxu0
    %7179 = vmatprep.mubr.bf16.mxu0 %v2993
    %7180 = vmatmul.mubr.bf16.gmra.mxu0 %v2502
    %v7181 = vpop.f32.mrf.mxu0
    %v7182 = vadd.f32 %v7021, %v7181
    %v7183 = vpop.f32.mrf.mxu0
    %v7184 = vpop.f32.mrf.mxu0
    %v7185 = vadd.f32 %v7024, %v7184
    %v7186 = vpop.f32.mrf.mxu0
    %7187 = vmatprep.mubr.bf16.mxu0 %v2994
    %7188 = vmatmul.mubr.bf16.gmra.mxu0 %v2516
    %v7189 = vpop.f32.mrf.mxu0
    %v7190 = vadd.f32 %v7029, %v7189
    %v7191 = vpop.f32.mrf.mxu0
    %v7192 = vpop.f32.mrf.mxu0
    %v7193 = vadd.f32 %v7032, %v7192
    %v7194 = vpop.f32.mrf.mxu0
    %7195 = vmatprep.mubr.bf16.mxu0 %v2995
    %7196 = vmatmul.mubr.bf16.gmra.mxu0 %v2530
    %v7197 = vpop.f32.mrf.mxu0
    %v7198 = vadd.f32 %v7037, %v7197
    %v7199 = vpop.f32.mrf.mxu0
    %v7200 = vpop.f32.mrf.mxu0
    %v7201 = vadd.f32 %v7040, %v7200
    %v7202 = vpop.f32.mrf.mxu0
    %7203 = vmatprep.mubr.bf16.mxu0 %v2996
    %7204 = vmatmul.mubr.bf16.gmra.mxu0 %v2544
    %v7205 = vpop.f32.mrf.mxu0
    %v7206 = vadd.f32 %v7045, %v7205
    %v7207 = vpop.f32.mrf.mxu0
    %v7208 = vpop.f32.mrf.mxu0
    %v7209 = vadd.f32 %v7048, %v7208
    %v7210 = vpop.f32.mrf.mxu0
    %7211 = vmatprep.mubr.bf16.mxu0 %v2997
    %7212 = vmatmul.mubr.bf16.gmra.mxu0 %v2558
    %v7213 = vpop.f32.mrf.mxu0
    %v7214 = vadd.f32 %v7053, %v7213
    %v7215 = vpop.f32.mrf.mxu0
    %v7216 = vpop.f32.mrf.mxu0
    %v7217 = vadd.f32 %v7056, %v7216
    %v7218 = vpop.f32.mrf.mxu0
    %7219 = vmatprep.mubr.bf16.mxu0 %v2998
    %7220 = vmatmul.mubr.bf16.gmra.mxu0 %v2572
    %v7221 = vpop.f32.mrf.mxu0
    %v7222 = vadd.f32 %v7061, %v7221
    %v7223 = vpop.f32.mrf.mxu0
    %v7224 = vpop.f32.mrf.mxu0
    %v7225 = vadd.f32 %v7064, %v7224
    %v7226 = vpop.f32.mrf.mxu0
    %7227 = vmatprep.mubr.bf16.mxu0 %v2999
    %7228 = vmatmul.mubr.bf16.gmra.mxu0 %v2586
    %v7229 = vpop.f32.mrf.mxu0
    %v7230 = vadd.f32 %v7069, %v7229
    %v7231 = vpop.f32.mrf.mxu0
    %v7232 = vpop.f32.mrf.mxu0
    %v7233 = vadd.f32 %v7072, %v7232
    %v7234 = vpop.f32.mrf.mxu0
    %7235 = vdwg.mxu0
    %v7236 = vmax.f32 %v5662, 0.0
    %v7237 = vmax.f32 %v5664, 0.0
    %v7238 = vmax.f32 %v6434, 0.0
    %v7239 = vmax.f32 %v6436, 0.0
    %v7240 = vmax.f32 %v7110, 0.0
    %v7241 = vmax.f32 %v5666, 0.0
    %v7242 = vmax.f32 %v5668, 0.0
    %v7243 = vmax.f32 %v6438, 0.0
    %v7244 = vmax.f32 %v6440, 0.0
    %v7245 = vmax.f32 %v7113, 0.0
    %v7246 = vmax.f32 %v5672, 0.0
    %v7247 = vmax.f32 %v5674, 0.0
    %v7248 = vmax.f32 %v6444, 0.0
    %v7249 = vmax.f32 %v6446, 0.0
    %v7250 = vmax.f32 %v7118, 0.0
    %v7251 = vmax.f32 %v5676, 0.0
    %v7252 = vmax.f32 %v5678, 0.0
    %v7253 = vmax.f32 %v6448, 0.0
    %v7254 = vmax.f32 %v6450, 0.0
    %v7255 = vmax.f32 %v7121, 0.0
    %v7256 = vmax.f32 %v5682, 0.0
    %v7257 = vmax.f32 %v5684, 0.0
    %v7258 = vmax.f32 %v6454, 0.0
    %v7259 = vmax.f32 %v6456, 0.0
    %v7260 = vmax.f32 %v7126, 0.0
    %v7261 = vmax.f32 %v5686, 0.0
    %v7262 = vmax.f32 %v5688, 0.0
    %v7263 = vmax.f32 %v6458, 0.0
    %v7264 = vmax.f32 %v6460, 0.0
    %v7265 = vmax.f32 %v7129, 0.0
    %v7266 = vmax.f32 %v5692, 0.0
    %v7267 = vmax.f32 %v5694, 0.0
    %v7268 = vmax.f32 %v6464, 0.0
    %v7269 = vmax.f32 %v6466, 0.0
    %v7270 = vmax.f32 %v7134, 0.0
    %v7271 = vmax.f32 %v5696, 0.0
    %v7272 = vmax.f32 %v5698, 0.0
    %v7273 = vmax.f32 %v6468, 0.0
    %v7274 = vmax.f32 %v6470, 0.0
    %v7275 = vmax.f32 %v7137, 0.0
    %v7276 = vmax.f32 %v5702, 0.0
    %v7277 = vmax.f32 %v5704, 0.0
    %v7278 = vmax.f32 %v6474, 0.0
    %v7279 = vmax.f32 %v6476, 0.0
    %v7280 = vmax.f32 %v7142, 0.0
    %v7281 = vmax.f32 %v5706, 0.0
    %v7282 = vmax.f32 %v5708, 0.0
    %v7283 = vmax.f32 %v6478, 0.0
    %v7284 = vmax.f32 %v6480, 0.0
    %v7285 = vmax.f32 %v7145, 0.0
    %v7286 = vmax.f32 %v5712, 0.0
    %v7287 = vmax.f32 %v5714, 0.0
    %v7288 = vmax.f32 %v6484, 0.0
    %v7289 = vmax.f32 %v6486, 0.0
    %v7290 = vmax.f32 %v7150, 0.0
    %v7291 = vmax.f32 %v5716, 0.0
    %v7292 = vmax.f32 %v5718, 0.0
    %v7293 = vmax.f32 %v6488, 0.0
    %v7294 = vmax.f32 %v6490, 0.0
    %v7295 = vmax.f32 %v7153, 0.0
    %v7296 = vmax.f32 %v5722, 0.0
    %v7297 = vmax.f32 %v5724, 0.0
    %v7298 = vmax.f32 %v6494, 0.0
    %v7299 = vmax.f32 %v6496, 0.0
    %v7300 = vmax.f32 %v7158, 0.0
    %v7301 = vmax.f32 %v5726, 0.0
    %v7302 = vmax.f32 %v5728, 0.0
    %v7303 = vmax.f32 %v6498, 0.0
    %v7304 = vmax.f32 %v6500, 0.0
    %v7305 = vmax.f32 %v7161, 0.0
    %v7306 = vmax.f32 %v5732, 0.0
    %v7307 = vmax.f32 %v5734, 0.0
    %v7308 = vmax.f32 %v6504, 0.0
    %v7309 = vmax.f32 %v6506, 0.0
    %v7310 = vmax.f32 %v7166, 0.0
    %v7311 = vmax.f32 %v5736, 0.0
    %v7312 = vmax.f32 %v5738, 0.0
    %v7313 = vmax.f32 %v6508, 0.0
    %v7314 = vmax.f32 %v6510, 0.0
    %v7315 = vmax.f32 %v7169, 0.0
    %v7316 = vmax.f32 %v5742, 0.0
    %v7317 = vmax.f32 %v5744, 0.0
    %v7318 = vmax.f32 %v6514, 0.0
    %v7319 = vmax.f32 %v6516, 0.0
    %v7320 = vmax.f32 %v7174, 0.0
    %v7321 = vmax.f32 %v5746, 0.0
    %v7322 = vmax.f32 %v5748, 0.0
    %v7323 = vmax.f32 %v6518, 0.0
    %v7324 = vmax.f32 %v6520, 0.0
    %v7325 = vmax.f32 %v7177, 0.0
    %v7326 = vmax.f32 %v5752, 0.0
    %v7327 = vmax.f32 %v5754, 0.0
    %v7328 = vmax.f32 %v6524, 0.0
    %v7329 = vmax.f32 %v6526, 0.0
    %v7330 = vmax.f32 %v7182, 0.0
    %v7331 = vmax.f32 %v5756, 0.0
    %v7332 = vmax.f32 %v5758, 0.0
    %v7333 = vmax.f32 %v6528, 0.0
    %v7334 = vmax.f32 %v6530, 0.0
    %v7335 = vmax.f32 %v7185, 0.0
    %v7336 = vmax.f32 %v5762, 0.0
    %v7337 = vmax.f32 %v5764, 0.0
    %v7338 = vmax.f32 %v6534, 0.0
    %v7339 = vmax.f32 %v6536, 0.0
    %v7340 = vmax.f32 %v7190, 0.0
    %v7341 = vmax.f32 %v5766, 0.0
    %v7342 = vmax.f32 %v5768, 0.0
    %v7343 = vmax.f32 %v6538, 0.0
    %v7344 = vmax.f32 %v6540, 0.0
    %v7345 = vmax.f32 %v7193, 0.0
    %v7346 = vmax.f32 %v5772, 0.0
    %v7347 = vmax.f32 %v5774, 0.0
    %v7348 = vmax.f32 %v6544, 0.0
    %v7349 = vmax.f32 %v6546, 0.0
    %v7350 = vmax.f32 %v7198, 0.0
    %v7351 = vmax.f32 %v5776, 0.0
    %v7352 = vmax.f32 %v5778, 0.0
    %v7353 = vmax.f32 %v6548, 0.0
    %v7354 = vmax.f32 %v6550, 0.0
    %v7355 = vmax.f32 %v7201, 0.0
    %v7356 = vmax.f32 %v5782, 0.0
    %v7357 = vmax.f32 %v5784, 0.0
    %v7358 = vmax.f32 %v6554, 0.0
    %v7359 = vmax.f32 %v6556, 0.0
    %v7360 = vmax.f32 %v7206, 0.0
    %v7361 = vmax.f32 %v5786, 0.0
    %v7362 = vmax.f32 %v5788, 0.0
    %v7363 = vmax.f32 %v6558, 0.0
    %v7364 = vmax.f32 %v6560, 0.0
    %v7365 = vmax.f32 %v7209, 0.0
    %v7366 = vmax.f32 %v5792, 0.0
    %v7367 = vmax.f32 %v5794, 0.0
    %v7368 = vmax.f32 %v6564, 0.0
    %v7369 = vmax.f32 %v6566, 0.0
    %v7370 = vmax.f32 %v7214, 0.0
    %v7371 = vmax.f32 %v5796, 0.0
    %v7372 = vmax.f32 %v5798, 0.0
    %v7373 = vmax.f32 %v6568, 0.0
    %v7374 = vmax.f32 %v6570, 0.0
    %v7375 = vmax.f32 %v7217, 0.0
    %v7376 = vmax.f32 %v5802, 0.0
    %v7377 = vmax.f32 %v5804, 0.0
    %v7378 = vmax.f32 %v6574, 0.0
    %v7379 = vmax.f32 %v6576, 0.0
    %v7380 = vmax.f32 %v7222, 0.0
    %v7381 = vmax.f32 %v5806, 0.0
    %v7382 = vmax.f32 %v5808, 0.0
    %v7383 = vmax.f32 %v6578, 0.0
    %v7384 = vmax.f32 %v6580, 0.0
    %v7385 = vmax.f32 %v7225, 0.0
    %v7386 = vmax.f32 %v5812, 0.0
    %v7387 = vmax.f32 %v5814, 0.0
    %v7388 = vmax.f32 %v6584, 0.0
    %v7389 = vmax.f32 %v6586, 0.0
    %v7390 = vmax.f32 %v7230, 0.0
    %v7391 = vmax.f32 %v5816, 0.0
    %v7392 = vmax.f32 %v5818, 0.0
    %v7393 = vmax.f32 %v6588, 0.0
    %v7394 = vmax.f32 %v6590, 0.0
    %v7395 = vmax.f32 %v7233, 0.0
    %v7396 = vld [vmem:[#allocation7] sm:$0xff]
    %v7397 = vld [vmem:[#allocation7 + $0x8] sm:$0xff]
    %v7398 = vld [vmem:[#allocation7 + $0x10] sm:$0xf]
    %v7399 = vld [vmem:[#allocation7 + $0x14] sm:$0xff]
    %v7400 = vld [vmem:[#allocation7 + $0x1c] sm:$0xff]
    %v7401 = vld [vmem:[#allocation7 + $0x24] sm:$0xf]
    %v7402 = vld [vmem:[#allocation7 + $0x28] sm:$0xff]
    %v7403 = vld [vmem:[#allocation7 + $0x30] sm:$0xff]
    %v7404 = vld [vmem:[#allocation7 + $0x38] sm:$0xf]
    %v7405 = vld [vmem:[#allocation7 + $0x3c] sm:$0xff]
    %v7406 = vld [vmem:[#allocation7 + $0x44] sm:$0xff]
    %v7407 = vld [vmem:[#allocation7 + $0x4c] sm:$0xf]
    %v7408 = vld [vmem:[#allocation7 + $0x50] sm:$0xff]
    %v7409 = vld [vmem:[#allocation7 + $0x58] sm:$0xff]
    %v7410 = vld [vmem:[#allocation7 + $0x60] sm:$0xf]
    %v7411 = vld [vmem:[#allocation7 + $0x64] sm:$0xff]
    %v7412 = vld [vmem:[#allocation7 + $0x6c] sm:$0xff]
    %v7413 = vld [vmem:[#allocation7 + $0x74] sm:$0xf]
    %v7414 = vld [vmem:[#allocation7 + $0x78] sm:$0xff]
    %v7415 = vld [vmem:[#allocation7 + $0x80] sm:$0xff]
    %v7416 = vld [vmem:[#allocation7 + $0x88] sm:$0xf]
    %v7417 = vld [vmem:[#allocation7 + $0x8c] sm:$0xff]
    %v7418 = vld [vmem:[#allocation7 + $0x94] sm:$0xff]
    %v7419 = vld [vmem:[#allocation7 + $0x9c] sm:$0xf]
    %v7420 = vld [vmem:[#allocation7 + $0xa0] sm:$0xff]
    %v7421 = vld [vmem:[#allocation7 + $0xa8] sm:$0xff]
    %v7422 = vld [vmem:[#allocation7 + $0xb0] sm:$0xf]
    %v7423 = vld [vmem:[#allocation7 + $0xb4] sm:$0xff]
    %v7424 = vld [vmem:[#allocation7 + $0xbc] sm:$0xff]
    %v7425 = vld [vmem:[#allocation7 + $0xc4] sm:$0xf]
    %v7426 = vld [vmem:[#allocation7 + $0xc8] sm:$0xff]
    %v7427 = vld [vmem:[#allocation7 + $0xd0] sm:$0xff]
    %v7428 = vld [vmem:[#allocation7 + $0xd8] sm:$0xf]
    %v7429 = vld [vmem:[#allocation7 + $0xdc] sm:$0xff]
    %v7430 = vld [vmem:[#allocation7 + $0xe4] sm:$0xff]
    %v7431 = vld [vmem:[#allocation7 + $0xec] sm:$0xf]
    %v7432 = vld [vmem:[#allocation7 + $0xf0] sm:$0xff]
    %v7433 = vld [vmem:[#allocation7 + $0xf8] sm:$0xff]
    %v7434 = vld [vmem:[#allocation7 + $0x100] sm:$0xf]
    %v7435 = vld [vmem:[#allocation7 + $0x104] sm:$0xff]
    %v7436 = vld [vmem:[#allocation7 + $0x10c] sm:$0xff]
    %v7437 = vld [vmem:[#allocation7 + $0x114] sm:$0xf]
    %v7438 = vld [vmem:[#allocation7 + $0x118] sm:$0xff]
    %v7439 = vld [vmem:[#allocation7 + $0x120] sm:$0xff]
    %v7440 = vld [vmem:[#allocation7 + $0x128] sm:$0xf]
    %v7441 = vld [vmem:[#allocation7 + $0x12c] sm:$0xff]
    %v7442 = vld [vmem:[#allocation7 + $0x134] sm:$0xff]
    %v7443 = vld [vmem:[#allocation7 + $0x13c] sm:$0xf]
    %v7444 = vld [vmem:[#allocation7 + $0x140] sm:$0xff]
    %v7445 = vld [vmem:[#allocation7 + $0x148] sm:$0xff]
    %v7446 = vld [vmem:[#allocation7 + $0x150] sm:$0xf]
    %v7447 = vld [vmem:[#allocation7 + $0x154] sm:$0xff]
    %v7448 = vld [vmem:[#allocation7 + $0x15c] sm:$0xff]
    %v7449 = vld [vmem:[#allocation7 + $0x164] sm:$0xf]
    %v7450 = vld [vmem:[#allocation7 + $0x168] sm:$0xff]
    %v7451 = vld [vmem:[#allocation7 + $0x170] sm:$0xff]
    %v7452 = vld [vmem:[#allocation7 + $0x178] sm:$0xf]
    %v7453 = vld [vmem:[#allocation7 + $0x17c] sm:$0xff]
    %v7454 = vld [vmem:[#allocation7 + $0x184] sm:$0xff]
    %v7455 = vld [vmem:[#allocation7 + $0x18c] sm:$0xf]
    %v7456 = vld [vmem:[#allocation7 + $0x190] sm:$0xff]
    %v7457 = vld [vmem:[#allocation7 + $0x198] sm:$0xff]
    %v7458 = vld [vmem:[#allocation7 + $0x1a0] sm:$0xf]
    %v7459 = vld [vmem:[#allocation7 + $0x1a4] sm:$0xff]
    %v7460 = vld [vmem:[#allocation7 + $0x1ac] sm:$0xff]
    %v7461 = vld [vmem:[#allocation7 + $0x1b4] sm:$0xf]
    %v7462 = vld [vmem:[#allocation7 + $0x1b8] sm:$0xff]
    %v7463 = vld [vmem:[#allocation7 + $0x1c0] sm:$0xff]
    %v7464 = vld [vmem:[#allocation7 + $0x1c8] sm:$0xf]
    %v7465 = vld [vmem:[#allocation7 + $0x1cc] sm:$0xff]
    %v7466 = vld [vmem:[#allocation7 + $0x1d4] sm:$0xff]
    %v7467 = vld [vmem:[#allocation7 + $0x1dc] sm:$0xf]
    %v7468 = vld [vmem:[#allocation7 + $0x1e0] sm:$0xff]
    %v7469 = vld [vmem:[#allocation7 + $0x1e8] sm:$0xff]
    %v7470 = vld [vmem:[#allocation7 + $0x1f0] sm:$0xf]
    %v7471 = vld [vmem:[#allocation7 + $0x1f4] sm:$0xff]
    %v7472 = vld [vmem:[#allocation7 + $0x1fc] sm:$0xff]
    %v7473 = vld [vmem:[#allocation7 + $0x204] sm:$0xf]
    %v7474 = vld [vmem:[#allocation7 + $0x208] sm:$0xff]
    %v7475 = vld [vmem:[#allocation7 + $0x210] sm:$0xff]
    %v7476 = vld [vmem:[#allocation7 + $0x218] sm:$0xf]
    %v7477 = vld [vmem:[#allocation7 + $0x21c] sm:$0xff]
    %v7478 = vld [vmem:[#allocation7 + $0x224] sm:$0xff]
    %v7479 = vld [vmem:[#allocation7 + $0x22c] sm:$0xf]
    %v7480 = vld [vmem:[#allocation7 + $0x230] sm:$0xff]
    %v7481 = vld [vmem:[#allocation7 + $0x238] sm:$0xff]
    %v7482 = vld [vmem:[#allocation7 + $0x240] sm:$0xf]
    %v7483 = vld [vmem:[#allocation7 + $0x244] sm:$0xff]
    %v7484 = vld [vmem:[#allocation7 + $0x24c] sm:$0xff]
    %v7485 = vld [vmem:[#allocation7 + $0x254] sm:$0xf]
    %v7486 = vld [vmem:[#allocation7 + $0x258] sm:$0xff]
    %v7487 = vld [vmem:[#allocation7 + $0x260] sm:$0xff]
    %v7488 = vld [vmem:[#allocation7 + $0x268] sm:$0xf]
    %v7489 = vld [vmem:[#allocation7 + $0x26c] sm:$0xff]
    %v7490 = vld [vmem:[#allocation7 + $0x274] sm:$0xff]
    %v7491 = vld [vmem:[#allocation7 + $0x27c] sm:$0xf]
    %v7492 = vld [vmem:[#allocation7 + $0x280] sm:$0xff]
    %v7493 = vld [vmem:[#allocation7 + $0x288] sm:$0xff]
    %v7494 = vld [vmem:[#allocation7 + $0x290] sm:$0xf]
    %v7495 = vld [vmem:[#allocation7 + $0x294] sm:$0xff]
    %v7496 = vld [vmem:[#allocation7 + $0x29c] sm:$0xff]
    %v7497 = vld [vmem:[#allocation7 + $0x2a4] sm:$0xf]
    %v7498 = vld [vmem:[#allocation7 + $0x2a8] sm:$0xff]
    %v7499 = vld [vmem:[#allocation7 + $0x2b0] sm:$0xff]
    %v7500 = vld [vmem:[#allocation7 + $0x2b8] sm:$0xf]
    %v7501 = vld [vmem:[#allocation7 + $0x2bc] sm:$0xff]
    %v7502 = vld [vmem:[#allocation7 + $0x2c4] sm:$0xff]
    %v7503 = vld [vmem:[#allocation7 + $0x2cc] sm:$0xf]
    %v7504 = vld [vmem:[#allocation7 + $0x2d0] sm:$0xff]
    %v7505 = vld [vmem:[#allocation7 + $0x2d8] sm:$0xff]
    %v7506 = vld [vmem:[#allocation7 + $0x2e0] sm:$0xf]
    %v7507 = vld [vmem:[#allocation7 + $0x2e4] sm:$0xff]
    %v7508 = vld [vmem:[#allocation7 + $0x2ec] sm:$0xff]
    %v7509 = vld [vmem:[#allocation7 + $0x2f4] sm:$0xf]
    %v7510 = vld [vmem:[#allocation7 + $0x2f8] sm:$0xff]
    %v7511 = vld [vmem:[#allocation7 + $0x300] sm:$0xff]
    %v7512 = vld [vmem:[#allocation7 + $0x308] sm:$0xf]
    %v7513 = vld [vmem:[#allocation7 + $0x30c] sm:$0xff]
    %v7514 = vld [vmem:[#allocation7 + $0x314] sm:$0xff]
    %v7515 = vld [vmem:[#allocation7 + $0x31c] sm:$0xf]
    %v7516 = vld [vmem:[#allocation7 + $0x320] sm:$0xff]
    %v7517 = vld [vmem:[#allocation7 + $0x328] sm:$0xff]
    %v7518 = vld [vmem:[#allocation7 + $0x330] sm:$0xf]
    %v7519 = vld [vmem:[#allocation7 + $0x334] sm:$0xff]
    %v7520 = vld [vmem:[#allocation7 + $0x33c] sm:$0xff]
    %v7521 = vld [vmem:[#allocation7 + $0x344] sm:$0xf]
    %v7522 = vld [vmem:[#allocation7 + $0x348] sm:$0xff]
    %v7523 = vld [vmem:[#allocation7 + $0x350] sm:$0xff]
    %v7524 = vld [vmem:[#allocation7 + $0x358] sm:$0xf]
    %v7525 = vld [vmem:[#allocation7 + $0x35c] sm:$0xff]
    %v7526 = vld [vmem:[#allocation7 + $0x364] sm:$0xff]
    %v7527 = vld [vmem:[#allocation7 + $0x36c] sm:$0xf]
    %v7528 = vld [vmem:[#allocation7 + $0x370] sm:$0xff]
    %v7529 = vld [vmem:[#allocation7 + $0x378] sm:$0xff]
    %v7530 = vld [vmem:[#allocation7 + $0x380] sm:$0xf]
    %v7531 = vld [vmem:[#allocation7 + $0x384] sm:$0xff]
    %v7532 = vld [vmem:[#allocation7 + $0x38c] sm:$0xff]
    %v7533 = vld [vmem:[#allocation7 + $0x394] sm:$0xf]
    %v7534 = vld [vmem:[#allocation7 + $0x398] sm:$0xff]
    %v7535 = vld [vmem:[#allocation7 + $0x3a0] sm:$0xff]
    %v7536 = vld [vmem:[#allocation7 + $0x3a8] sm:$0xf]
    %v7537 = vld [vmem:[#allocation7 + $0x3ac] sm:$0xff]
    %v7538 = vld [vmem:[#allocation7 + $0x3b4] sm:$0xff]
    %v7539 = vld [vmem:[#allocation7 + $0x3bc] sm:$0xf]
    %v7540 = vld [vmem:[#allocation7 + $0x3c0] sm:$0xff]
    %v7541 = vld [vmem:[#allocation7 + $0x3c8] sm:$0xff]
    %v7542 = vld [vmem:[#allocation7 + $0x3d0] sm:$0xf]
    %v7543 = vld [vmem:[#allocation7 + $0x3d4] sm:$0xff]
    %v7544 = vld [vmem:[#allocation7 + $0x3dc] sm:$0xff]
    %v7545 = vld [vmem:[#allocation7 + $0x3e4] sm:$0xf]
    %v7546 = vld [vmem:[#allocation7 + $0x3e8] sm:$0xff]
    %v7547 = vld [vmem:[#allocation7 + $0x3f0] sm:$0xff]
    %v7548 = vld [vmem:[#allocation7 + $0x3f8] sm:$0xf]
    %v7549 = vld [vmem:[#allocation7 + $0x3fc] sm:$0xff]
    %v7550 = vld [vmem:[#allocation7 + $0x404] sm:$0xff]
    %v7551 = vld [vmem:[#allocation7 + $0x40c] sm:$0xf]
    %v7552 = vld [vmem:[#allocation7 + $0x410] sm:$0xff]
    %v7553 = vld [vmem:[#allocation7 + $0x418] sm:$0xff]
    %v7554 = vld [vmem:[#allocation7 + $0x420] sm:$0xf]
    %v7555 = vld [vmem:[#allocation7 + $0x424] sm:$0xff]
    %v7556 = vld [vmem:[#allocation7 + $0x42c] sm:$0xff]
    %v7557 = vld [vmem:[#allocation7 + $0x434] sm:$0xf]
    %v7558 = vld [vmem:[#allocation7 + $0x438] sm:$0xff]
    %v7559 = vld [vmem:[#allocation7 + $0x440] sm:$0xff]
    %v7560 = vld [vmem:[#allocation7 + $0x448] sm:$0xf]
    %v7561 = vld [vmem:[#allocation7 + $0x44c] sm:$0xff]
    %v7562 = vld [vmem:[#allocation7 + $0x454] sm:$0xff]
    %v7563 = vld [vmem:[#allocation7 + $0x45c] sm:$0xf]
    %v7564 = vld [vmem:[#allocation7 + $0x460] sm:$0xff]
    %v7565 = vld [vmem:[#allocation7 + $0x468] sm:$0xff]
    %v7566 = vld [vmem:[#allocation7 + $0x470] sm:$0xf]
    %v7567 = vld [vmem:[#allocation7 + $0x474] sm:$0xff]
    %v7568 = vld [vmem:[#allocation7 + $0x47c] sm:$0xff]
    %v7569 = vld [vmem:[#allocation7 + $0x484] sm:$0xf]
    %v7570 = vld [vmem:[#allocation7 + $0x488] sm:$0xff]
    %v7571 = vld [vmem:[#allocation7 + $0x490] sm:$0xff]
    %v7572 = vld [vmem:[#allocation7 + $0x498] sm:$0xf]
    %v7573 = vld [vmem:[#allocation7 + $0x49c] sm:$0xff]
    %v7574 = vld [vmem:[#allocation7 + $0x4a4] sm:$0xff]
    %v7575 = vld [vmem:[#allocation7 + $0x4ac] sm:$0xf]
    %v7576 = vld [vmem:[#allocation7 + $0x4b0] sm:$0xff]
    %v7577 = vld [vmem:[#allocation7 + $0x4b8] sm:$0xff]
    %v7578 = vld [vmem:[#allocation7 + $0x4c0] sm:$0xf]
    %v7579 = vld [vmem:[#allocation7 + $0x4c4] sm:$0xff]
    %v7580 = vld [vmem:[#allocation7 + $0x4cc] sm:$0xff]
    %v7581 = vld [vmem:[#allocation7 + $0x4d4] sm:$0xf]
    %v7582 = vld [vmem:[#allocation7 + $0x4d8] sm:$0xff]
    %v7583 = vld [vmem:[#allocation7 + $0x4e0] sm:$0xff]
    %v7584 = vld [vmem:[#allocation7 + $0x4e8] sm:$0xf]
    %v7585 = vld [vmem:[#allocation7 + $0x4ec] sm:$0xff]
    %v7586 = vld [vmem:[#allocation7 + $0x4f4] sm:$0xff]
    %v7587 = vld [vmem:[#allocation7 + $0x4fc] sm:$0xf]
    %v7588 = vld [vmem:[#allocation7 + $0x500] sm:$0xff]
    %v7589 = vld [vmem:[#allocation7 + $0x508] sm:$0xff]
    %v7590 = vld [vmem:[#allocation7 + $0x510] sm:$0xf]
    %v7591 = vld [vmem:[#allocation7 + $0x514] sm:$0xff]
    %v7592 = vld [vmem:[#allocation7 + $0x51c] sm:$0xff]
    %v7593 = vld [vmem:[#allocation7 + $0x524] sm:$0xf]
    %v7594 = vld [vmem:[#allocation7 + $0x528] sm:$0xff]
    %v7595 = vld [vmem:[#allocation7 + $0x530] sm:$0xff]
    %v7596 = vld [vmem:[#allocation7 + $0x538] sm:$0xf]
    %v7597 = vld [vmem:[#allocation7 + $0x53c] sm:$0xff]
    %v7598 = vld [vmem:[#allocation7 + $0x544] sm:$0xff]
    %v7599 = vld [vmem:[#allocation7 + $0x54c] sm:$0xf]
    %v7600 = vld [vmem:[#allocation7 + $0x550] sm:$0xff]
    %v7601 = vld [vmem:[#allocation7 + $0x558] sm:$0xff]
    %v7602 = vld [vmem:[#allocation7 + $0x560] sm:$0xf]
    %v7603 = vld [vmem:[#allocation7 + $0x564] sm:$0xff]
    %v7604 = vld [vmem:[#allocation7 + $0x56c] sm:$0xff]
    %v7605 = vld [vmem:[#allocation7 + $0x574] sm:$0xf]
    %v7606 = vld [vmem:[#allocation7 + $0x578] sm:$0xff]
    %v7607 = vld [vmem:[#allocation7 + $0x580] sm:$0xff]
    %v7608 = vld [vmem:[#allocation7 + $0x588] sm:$0xf]
    %v7609 = vld [vmem:[#allocation7 + $0x58c] sm:$0xff]
    %v7610 = vld [vmem:[#allocation7 + $0x594] sm:$0xff]
    %v7611 = vld [vmem:[#allocation7 + $0x59c] sm:$0xf]
    %v7612 = vld [vmem:[#allocation7 + $0x5a0] sm:$0xff]
    %v7613 = vld [vmem:[#allocation7 + $0x5a8] sm:$0xff]
    %v7614 = vld [vmem:[#allocation7 + $0x5b0] sm:$0xf]
    %v7615 = vld [vmem:[#allocation7 + $0x5b4] sm:$0xff]
    %v7616 = vld [vmem:[#allocation7 + $0x5bc] sm:$0xff]
    %v7617 = vld [vmem:[#allocation7 + $0x5c4] sm:$0xf]
    %v7618 = vld [vmem:[#allocation7 + $0x5c8] sm:$0xff]
    %v7619 = vld [vmem:[#allocation7 + $0x5d0] sm:$0xff]
    %v7620 = vld [vmem:[#allocation7 + $0x5d8] sm:$0xf]
    %v7621 = vld [vmem:[#allocation7 + $0x5dc] sm:$0xff]
    %v7622 = vld [vmem:[#allocation7 + $0x5e4] sm:$0xff]
    %v7623 = vld [vmem:[#allocation7 + $0x5ec] sm:$0xf]
    %v7624 = vld [vmem:[#allocation7 + $0x5f0] sm:$0xff]
    %v7625 = vld [vmem:[#allocation7 + $0x5f8] sm:$0xff]
    %v7626 = vld [vmem:[#allocation7 + $0x600] sm:$0xf]
    %v7627 = vld [vmem:[#allocation7 + $0x604] sm:$0xff]
    %v7628 = vld [vmem:[#allocation7 + $0x60c] sm:$0xff]
    %v7629 = vld [vmem:[#allocation7 + $0x614] sm:$0xf]
    %v7630 = vld [vmem:[#allocation7 + $0x618] sm:$0xff]
    %v7631 = vld [vmem:[#allocation7 + $0x620] sm:$0xff]
    %v7632 = vld [vmem:[#allocation7 + $0x628] sm:$0xf]
    %v7633 = vld [vmem:[#allocation7 + $0x62c] sm:$0xff]
    %v7634 = vld [vmem:[#allocation7 + $0x634] sm:$0xff]
    %v7635 = vld [vmem:[#allocation7 + $0x63c] sm:$0xf]
    %v7636 = vld [vmem:[#allocation7 + $0x640] sm:$0xff]
    %v7637 = vld [vmem:[#allocation7 + $0x648] sm:$0xff]
    %v7638 = vld [vmem:[#allocation7 + $0x650] sm:$0xf]
    %v7639 = vld [vmem:[#allocation7 + $0x654] sm:$0xff]
    %v7640 = vld [vmem:[#allocation7 + $0x65c] sm:$0xff]
    %v7641 = vld [vmem:[#allocation7 + $0x664] sm:$0xf]
    %v7642 = vld [vmem:[#allocation7 + $0x668] sm:$0xff]
    %v7643 = vld [vmem:[#allocation7 + $0x670] sm:$0xff]
    %v7644 = vld [vmem:[#allocation7 + $0x678] sm:$0xf]
    %v7645 = vld [vmem:[#allocation7 + $0x67c] sm:$0xff]
    %v7646 = vld [vmem:[#allocation7 + $0x684] sm:$0xff]
    %v7647 = vld [vmem:[#allocation7 + $0x68c] sm:$0xf]
    %v7648 = vld [vmem:[#allocation7 + $0x690] sm:$0xff]
    %v7649 = vld [vmem:[#allocation7 + $0x698] sm:$0xff]
    %v7650 = vld [vmem:[#allocation7 + $0x6a0] sm:$0xf]
    %v7651 = vld [vmem:[#allocation7 + $0x6a4] sm:$0xff]
    %v7652 = vld [vmem:[#allocation7 + $0x6ac] sm:$0xff]
    %v7653 = vld [vmem:[#allocation7 + $0x6b4] sm:$0xf]
    %v7654 = vld [vmem:[#allocation7 + $0x6b8] sm:$0xff]
    %v7655 = vld [vmem:[#allocation7 + $0x6c0] sm:$0xff]
    %v7656 = vld [vmem:[#allocation7 + $0x6c8] sm:$0xf]
    %v7657 = vld [vmem:[#allocation7 + $0x6cc] sm:$0xff]
    %v7658 = vld [vmem:[#allocation7 + $0x6d4] sm:$0xff]
    %v7659 = vld [vmem:[#allocation7 + $0x6dc] sm:$0xf]
    %v7660 = vld [vmem:[#allocation7 + $0x6e0] sm:$0xff]
    %v7661 = vld [vmem:[#allocation7 + $0x6e8] sm:$0xff]
    %v7662 = vld [vmem:[#allocation7 + $0x6f0] sm:$0xf]
    %v7663 = vld [vmem:[#allocation7 + $0x6f4] sm:$0xff]
    %v7664 = vld [vmem:[#allocation7 + $0x6fc] sm:$0xff]
    %v7665 = vld [vmem:[#allocation7 + $0x704] sm:$0xf]
    %v7666 = vld [vmem:[#allocation7 + $0x708] sm:$0xff]
    %v7667 = vld [vmem:[#allocation7 + $0x710] sm:$0xff]
    %v7668 = vld [vmem:[#allocation7 + $0x718] sm:$0xf]
    %v7669 = vld [vmem:[#allocation7 + $0x71c] sm:$0xff]
    %v7670 = vld [vmem:[#allocation7 + $0x724] sm:$0xff]
    %v7671 = vld [vmem:[#allocation7 + $0x72c] sm:$0xf]
    %v7672 = vld [vmem:[#allocation7 + $0x730] sm:$0xff]
    %v7673 = vld [vmem:[#allocation7 + $0x738] sm:$0xff]
    %v7674 = vld [vmem:[#allocation7 + $0x740] sm:$0xf]
    %v7675 = vld [vmem:[#allocation7 + $0x744] sm:$0xff]
    %v7676 = vld [vmem:[#allocation7 + $0x74c] sm:$0xff]
    %v7677 = vld [vmem:[#allocation7 + $0x754] sm:$0xf]
    %v7678 = vld [vmem:[#allocation7 + $0x758] sm:$0xff]
    %v7679 = vld [vmem:[#allocation7 + $0x760] sm:$0xff]
    %v7680 = vld [vmem:[#allocation7 + $0x768] sm:$0xf]
    %v7681 = vld [vmem:[#allocation7 + $0x76c] sm:$0xff]
    %v7682 = vld [vmem:[#allocation7 + $0x774] sm:$0xff]
    %v7683 = vld [vmem:[#allocation7 + $0x77c] sm:$0xf]
    %v7684 = vld [vmem:[#allocation7 + $0x780] sm:$0xff]
    %v7685 = vld [vmem:[#allocation7 + $0x788] sm:$0xff]
    %v7686 = vld [vmem:[#allocation7 + $0x790] sm:$0xf]
    %v7687 = vld [vmem:[#allocation7 + $0x794] sm:$0xff]
    %v7688 = vld [vmem:[#allocation7 + $0x79c] sm:$0xff]
    %v7689 = vld [vmem:[#allocation7 + $0x7a4] sm:$0xf]
    %v7690 = vld [vmem:[#allocation7 + $0x7a8] sm:$0xff]
    %v7691 = vld [vmem:[#allocation7 + $0x7b0] sm:$0xff]
    %v7692 = vld [vmem:[#allocation7 + $0x7b8] sm:$0xf]
    %v7693 = vld [vmem:[#allocation7 + $0x7bc] sm:$0xff]
    %v7694 = vld [vmem:[#allocation7 + $0x7c4] sm:$0xff]
    %v7695 = vld [vmem:[#allocation7 + $0x7cc] sm:$0xf]
    %v7696 = vld [vmem:[#allocation7 + $0x7d0] sm:$0xff]
    %v7697 = vld [vmem:[#allocation7 + $0x7d8] sm:$0xff]
    %v7698 = vld [vmem:[#allocation7 + $0x7e0] sm:$0xf]
    %v7699 = vld [vmem:[#allocation7 + $0x7e4] sm:$0xff]
    %v7700 = vld [vmem:[#allocation7 + $0x7ec] sm:$0xff]
    %v7701 = vld [vmem:[#allocation7 + $0x7f4] sm:$0xf]
    %v7702 = vld [vmem:[#allocation7 + $0x7f8] sm:$0xff]
    %v7703 = vld [vmem:[#allocation7 + $0x800] sm:$0xff]
    %v7704 = vld [vmem:[#allocation7 + $0x808] sm:$0xf]
    %v7705 = vld [vmem:[#allocation7 + $0x80c] sm:$0xff]
    %v7706 = vld [vmem:[#allocation7 + $0x814] sm:$0xff]
    %v7707 = vld [vmem:[#allocation7 + $0x81c] sm:$0xf]
    %v7708 = vld [vmem:[#allocation7 + $0x820] sm:$0xff]
    %v7709 = vld [vmem:[#allocation7 + $0x828] sm:$0xff]
    %v7710 = vld [vmem:[#allocation7 + $0x830] sm:$0xf]
    %v7711 = vld [vmem:[#allocation7 + $0x834] sm:$0xff]
    %v7712 = vld [vmem:[#allocation7 + $0x83c] sm:$0xff]
    %v7713 = vld [vmem:[#allocation7 + $0x844] sm:$0xf]
    %v7714 = vld [vmem:[#allocation7 + $0x848] sm:$0xff]
    %v7715 = vld [vmem:[#allocation7 + $0x850] sm:$0xff]
    %v7716 = vld [vmem:[#allocation7 + $0x858] sm:$0xf]
    %v7717 = vld [vmem:[#allocation7 + $0x85c] sm:$0xff]
    %v7718 = vld [vmem:[#allocation7 + $0x864] sm:$0xff]
    %v7719 = vld [vmem:[#allocation7 + $0x86c] sm:$0xf]
    %v7720 = vld [vmem:[#allocation7 + $0x870] sm:$0xff]
    %v7721 = vld [vmem:[#allocation7 + $0x878] sm:$0xff]
    %v7722 = vld [vmem:[#allocation7 + $0x880] sm:$0xf]
    %v7723 = vld [vmem:[#allocation7 + $0x884] sm:$0xff]
    %v7724 = vld [vmem:[#allocation7 + $0x88c] sm:$0xff]
    %v7725 = vld [vmem:[#allocation7 + $0x894] sm:$0xf]
    %v7726 = vld [vmem:[#allocation7 + $0x898] sm:$0xff]
    %v7727 = vld [vmem:[#allocation7 + $0x8a0] sm:$0xff]
    %v7728 = vld [vmem:[#allocation7 + $0x8a8] sm:$0xf]
    %v7729 = vld [vmem:[#allocation7 + $0x8ac] sm:$0xff]
    %v7730 = vld [vmem:[#allocation7 + $0x8b4] sm:$0xff]
    %v7731 = vld [vmem:[#allocation7 + $0x8bc] sm:$0xf]
    %v7732 = vld [vmem:[#allocation7 + $0x8c0] sm:$0xff]
    %v7733 = vld [vmem:[#allocation7 + $0x8c8] sm:$0xff]
    %v7734 = vld [vmem:[#allocation7 + $0x8d0] sm:$0xf]
    %v7735 = vld [vmem:[#allocation7 + $0x8d4] sm:$0xff]
    %v7736 = vld [vmem:[#allocation7 + $0x8dc] sm:$0xff]
    %v7737 = vld [vmem:[#allocation7 + $0x8e4] sm:$0xf]
    %v7738 = vld [vmem:[#allocation7 + $0x8e8] sm:$0xff]
    %v7739 = vld [vmem:[#allocation7 + $0x8f0] sm:$0xff]
    %v7740 = vld [vmem:[#allocation7 + $0x8f8] sm:$0xf]
    %v7741 = vld [vmem:[#allocation7 + $0x8fc] sm:$0xff]
    %v7742 = vld [vmem:[#allocation7 + $0x904] sm:$0xff]
    %v7743 = vld [vmem:[#allocation7 + $0x90c] sm:$0xf]
    %v7744 = vld [vmem:[#allocation7 + $0x910] sm:$0xff]
    %v7745 = vld [vmem:[#allocation7 + $0x918] sm:$0xff]
    %v7746 = vld [vmem:[#allocation7 + $0x920] sm:$0xf]
    %v7747 = vld [vmem:[#allocation7 + $0x924] sm:$0xff]
    %v7748 = vld [vmem:[#allocation7 + $0x92c] sm:$0xff]
    %v7749 = vld [vmem:[#allocation7 + $0x934] sm:$0xf]
    %v7750 = vld [vmem:[#allocation7 + $0x938] sm:$0xff]
    %v7751 = vld [vmem:[#allocation7 + $0x940] sm:$0xff]
    %v7752 = vld [vmem:[#allocation7 + $0x948] sm:$0xf]
    %v7753 = vld [vmem:[#allocation7 + $0x94c] sm:$0xff]
    %v7754 = vld [vmem:[#allocation7 + $0x954] sm:$0xff]
    %v7755 = vld [vmem:[#allocation7 + $0x95c] sm:$0xf]
    %v7756 = vld [vmem:[#allocation7 + $0x960] sm:$0xff]
    %v7757 = vld [vmem:[#allocation7 + $0x968] sm:$0xff]
    %v7758 = vld [vmem:[#allocation7 + $0x970] sm:$0xf]
    %v7759 = vld [vmem:[#allocation7 + $0x974] sm:$0xff]
    %v7760 = vld [vmem:[#allocation7 + $0x97c] sm:$0xff]
    %v7761 = vld [vmem:[#allocation7 + $0x984] sm:$0xf]
    %v7762 = vld [vmem:[#allocation7 + $0x988] sm:$0xff]
    %v7763 = vld [vmem:[#allocation7 + $0x990] sm:$0xff]
    %v7764 = vld [vmem:[#allocation7 + $0x998] sm:$0xf]
    %v7765 = vld [vmem:[#allocation7 + $0x99c] sm:$0xff]
    %v7766 = vld [vmem:[#allocation7 + $0x9a4] sm:$0xff]
    %v7767 = vld [vmem:[#allocation7 + $0x9ac] sm:$0xf]
    %v7768 = vld [vmem:[#allocation7 + $0x9b0] sm:$0xff]
    %v7769 = vld [vmem:[#allocation7 + $0x9b8] sm:$0xff]
    %v7770 = vld [vmem:[#allocation7 + $0x9c0] sm:$0xf]
    %v7771 = vld [vmem:[#allocation7 + $0x9c4] sm:$0xff]
    %v7772 = vld [vmem:[#allocation7 + $0x9cc] sm:$0xff]
    %v7773 = vld [vmem:[#allocation7 + $0x9d4] sm:$0xf]
    %v7774 = vld [vmem:[#allocation7 + $0x9d8] sm:$0xff]
    %v7775 = vld [vmem:[#allocation7 + $0x9e0] sm:$0xff]
    %v7776 = vld [vmem:[#allocation7 + $0x9e8] sm:$0xf]
    %v7777 = vld [vmem:[#allocation7 + $0x9ec] sm:$0xff]
    %v7778 = vld [vmem:[#allocation7 + $0x9f4] sm:$0xff]
    %v7779 = vld [vmem:[#allocation7 + $0x9fc] sm:$0xf]
    %v8164 = vunpack.c.l.b16 %v7396
    %v8165 = vunpack.c.h.b16 %v7396
    %v8166 = vunpack.c.l.b16 %v7397
    %v8167 = vunpack.c.h.b16 %v7397
    %v8168 = vunpack.c.l.b16 %v7398
    %v8169 = vunpack.c.l.b16 %v7399
    %v8170 = vunpack.c.h.b16 %v7399
    %v8171 = vunpack.c.l.b16 %v7400
    %v8172 = vunpack.c.h.b16 %v7400
    %v8173 = vunpack.c.l.b16 %v7401
    %v8174 = vunpack.c.l.b16 %v7402
    %v8175 = vunpack.c.h.b16 %v7402
    %v8176 = vunpack.c.l.b16 %v7403
    %v8177 = vunpack.c.h.b16 %v7403
    %v8178 = vunpack.c.l.b16 %v7404
    %v8179 = vunpack.c.l.b16 %v7405
    %v8180 = vunpack.c.h.b16 %v7405
    %v8181 = vunpack.c.l.b16 %v7406
    %v8182 = vunpack.c.h.b16 %v7406
    %v8183 = vunpack.c.l.b16 %v7407
    %v8184 = vunpack.c.l.b16 %v7408
    %v8185 = vunpack.c.h.b16 %v7408
    %v8186 = vunpack.c.l.b16 %v7409
    %v8187 = vunpack.c.h.b16 %v7409
    %v8188 = vunpack.c.l.b16 %v7410
    %v8189 = vunpack.c.l.b16 %v7411
    %v8190 = vunpack.c.h.b16 %v7411
    %v8191 = vunpack.c.l.b16 %v7412
    %v8192 = vunpack.c.h.b16 %v7412
    %v8193 = vunpack.c.l.b16 %v7413
    %v8194 = vunpack.c.l.b16 %v7414
    %v8195 = vunpack.c.h.b16 %v7414
    %v8196 = vunpack.c.l.b16 %v7415
    %v8197 = vunpack.c.h.b16 %v7415
    %v8198 = vunpack.c.l.b16 %v7416
    %v8199 = vunpack.c.l.b16 %v7417
    %v8200 = vunpack.c.h.b16 %v7417
    %v8201 = vunpack.c.l.b16 %v7418
    %v8202 = vunpack.c.h.b16 %v7418
    %v8203 = vunpack.c.l.b16 %v7419
    %v8204 = vunpack.c.l.b16 %v7420
    %v8205 = vunpack.c.h.b16 %v7420
    %v8206 = vunpack.c.l.b16 %v7421
    %v8207 = vunpack.c.h.b16 %v7421
    %v8208 = vunpack.c.l.b16 %v7422
    %v8209 = vunpack.c.l.b16 %v7423
    %v8210 = vunpack.c.h.b16 %v7423
    %v8211 = vunpack.c.l.b16 %v7424
    %v8212 = vunpack.c.h.b16 %v7424
    %v8213 = vunpack.c.l.b16 %v7425
    %v8214 = vunpack.c.l.b16 %v7426
    %v8215 = vunpack.c.h.b16 %v7426
    %v8216 = vunpack.c.l.b16 %v7427
    %v8217 = vunpack.c.h.b16 %v7427
    %v8218 = vunpack.c.l.b16 %v7428
    %v8219 = vunpack.c.l.b16 %v7429
    %v8220 = vunpack.c.h.b16 %v7429
    %v8221 = vunpack.c.l.b16 %v7430
    %v8222 = vunpack.c.h.b16 %v7430
    %v8223 = vunpack.c.l.b16 %v7431
    %v8224 = vunpack.c.l.b16 %v7432
    %v8225 = vunpack.c.h.b16 %v7432
    %v8226 = vunpack.c.l.b16 %v7433
    %v8227 = vunpack.c.h.b16 %v7433
    %v8228 = vunpack.c.l.b16 %v7434
    %v8229 = vunpack.c.l.b16 %v7435
    %v8230 = vunpack.c.h.b16 %v7435
    %v8231 = vunpack.c.l.b16 %v7436
    %v8232 = vunpack.c.h.b16 %v7436
    %v8233 = vunpack.c.l.b16 %v7437
    %v8234 = vunpack.c.l.b16 %v7438
    %v8235 = vunpack.c.h.b16 %v7438
    %v8236 = vunpack.c.l.b16 %v7439
    %v8237 = vunpack.c.h.b16 %v7439
    %v8238 = vunpack.c.l.b16 %v7440
    %v8239 = vunpack.c.l.b16 %v7441
    %v8240 = vunpack.c.h.b16 %v7441
    %v8241 = vunpack.c.l.b16 %v7442
    %v8242 = vunpack.c.h.b16 %v7442
    %v8243 = vunpack.c.l.b16 %v7443
    %v8244 = vunpack.c.l.b16 %v7444
    %v8245 = vunpack.c.h.b16 %v7444
    %v8246 = vunpack.c.l.b16 %v7445
    %v8247 = vunpack.c.h.b16 %v7445
    %v8248 = vunpack.c.l.b16 %v7446
    %v8249 = vunpack.c.l.b16 %v7447
    %v8250 = vunpack.c.h.b16 %v7447
    %v8251 = vunpack.c.l.b16 %v7448
    %v8252 = vunpack.c.h.b16 %v7448
    %v8253 = vunpack.c.l.b16 %v7449
    %v8254 = vunpack.c.l.b16 %v7450
    %v8255 = vunpack.c.h.b16 %v7450
    %v8256 = vunpack.c.l.b16 %v7451
    %v8257 = vunpack.c.h.b16 %v7451
    %v8258 = vunpack.c.l.b16 %v7452
    %v8259 = vunpack.c.l.b16 %v7453
    %v8260 = vunpack.c.h.b16 %v7453
    %v8261 = vunpack.c.l.b16 %v7454
    %v8262 = vunpack.c.h.b16 %v7454
    %v8263 = vunpack.c.l.b16 %v7455
    %v8264 = vunpack.c.l.b16 %v7456
    %v8265 = vunpack.c.h.b16 %v7456
    %v8266 = vunpack.c.l.b16 %v7457
    %v8267 = vunpack.c.h.b16 %v7457
    %v8268 = vunpack.c.l.b16 %v7458
    %v8269 = vunpack.c.l.b16 %v7459
    %v8270 = vunpack.c.h.b16 %v7459
    %v8271 = vunpack.c.l.b16 %v7460
    %v8272 = vunpack.c.h.b16 %v7460
    %v8273 = vunpack.c.l.b16 %v7461
    %v8274 = vunpack.c.l.b16 %v7462
    %v8275 = vunpack.c.h.b16 %v7462
    %v8276 = vunpack.c.l.b16 %v7463
    %v8277 = vunpack.c.h.b16 %v7463
    %v8278 = vunpack.c.l.b16 %v7464
    %v8279 = vunpack.c.l.b16 %v7465
    %v8280 = vunpack.c.h.b16 %v7465
    %v8281 = vunpack.c.l.b16 %v7466
    %v8282 = vunpack.c.h.b16 %v7466
    %v8283 = vunpack.c.l.b16 %v7467
    %v8284 = vunpack.c.l.b16 %v7468
    %v8285 = vunpack.c.h.b16 %v7468
    %v8286 = vunpack.c.l.b16 %v7469
    %v8287 = vunpack.c.h.b16 %v7469
    %v8288 = vunpack.c.l.b16 %v7470
    %v8289 = vunpack.c.l.b16 %v7471
    %v8290 = vunpack.c.h.b16 %v7471
    %v8291 = vunpack.c.l.b16 %v7472
    %v8292 = vunpack.c.h.b16 %v7472
    %v8293 = vunpack.c.l.b16 %v7473
    %v8294 = vunpack.c.l.b16 %v7474
    %v8295 = vunpack.c.h.b16 %v7474
    %v8296 = vunpack.c.l.b16 %v7475
    %v8297 = vunpack.c.h.b16 %v7475
    %v8298 = vunpack.c.l.b16 %v7476
    %v8299 = vunpack.c.l.b16 %v7477
    %v8300 = vunpack.c.h.b16 %v7477
    %v8301 = vunpack.c.l.b16 %v7478
    %v8302 = vunpack.c.h.b16 %v7478
    %v8303 = vunpack.c.l.b16 %v7479
    %v8304 = vunpack.c.l.b16 %v7480
    %v8305 = vunpack.c.h.b16 %v7480
    %v8306 = vunpack.c.l.b16 %v7481
    %v8307 = vunpack.c.h.b16 %v7481
    %v8308 = vunpack.c.l.b16 %v7482
    %v8309 = vunpack.c.l.b16 %v7483
    %v8310 = vunpack.c.h.b16 %v7483
    %v8311 = vunpack.c.l.b16 %v7484
    %v8312 = vunpack.c.h.b16 %v7484
    %v8313 = vunpack.c.l.b16 %v7485
    %v8314 = vunpack.c.l.b16 %v7486
    %v8315 = vunpack.c.h.b16 %v7486
    %v8316 = vunpack.c.l.b16 %v7487
    %v8317 = vunpack.c.h.b16 %v7487
    %v8318 = vunpack.c.l.b16 %v7488
    %v8319 = vunpack.c.l.b16 %v7489
    %v8320 = vunpack.c.h.b16 %v7489
    %v8321 = vunpack.c.l.b16 %v7490
    %v8322 = vunpack.c.h.b16 %v7490
    %v8323 = vunpack.c.l.b16 %v7491
    %v8324 = vunpack.c.l.b16 %v7492
    %v8325 = vunpack.c.h.b16 %v7492
    %v8326 = vunpack.c.l.b16 %v7493
    %v8327 = vunpack.c.h.b16 %v7493
    %v8328 = vunpack.c.l.b16 %v7494
    %v8329 = vunpack.c.l.b16 %v7495
    %v8330 = vunpack.c.h.b16 %v7495
    %v8331 = vunpack.c.l.b16 %v7496
    %v8332 = vunpack.c.h.b16 %v7496
    %v8333 = vunpack.c.l.b16 %v7497
    %v8334 = vunpack.c.l.b16 %v7498
    %v8335 = vunpack.c.h.b16 %v7498
    %v8336 = vunpack.c.l.b16 %v7499
    %v8337 = vunpack.c.h.b16 %v7499
    %v8338 = vunpack.c.l.b16 %v7500
    %v8339 = vunpack.c.l.b16 %v7501
    %v8340 = vunpack.c.h.b16 %v7501
    %v8341 = vunpack.c.l.b16 %v7502
    %v8342 = vunpack.c.h.b16 %v7502
    %v8343 = vunpack.c.l.b16 %v7503
    %v8344 = vunpack.c.l.b16 %v7504
    %v8345 = vunpack.c.h.b16 %v7504
    %v8346 = vunpack.c.l.b16 %v7505
    %v8347 = vunpack.c.h.b16 %v7505
    %v8348 = vunpack.c.l.b16 %v7506
    %v8349 = vunpack.c.l.b16 %v7507
    %v8350 = vunpack.c.h.b16 %v7507
    %v8351 = vunpack.c.l.b16 %v7508
    %v8352 = vunpack.c.h.b16 %v7508
    %v8353 = vunpack.c.l.b16 %v7509
    %v8354 = vunpack.c.l.b16 %v7510
    %v8355 = vunpack.c.h.b16 %v7510
    %v8356 = vunpack.c.l.b16 %v7511
    %v8357 = vunpack.c.h.b16 %v7511
    %v8358 = vunpack.c.l.b16 %v7512
    %v8359 = vunpack.c.l.b16 %v7513
    %v8360 = vunpack.c.h.b16 %v7513
    %v8361 = vunpack.c.l.b16 %v7514
    %v8362 = vunpack.c.h.b16 %v7514
    %v8363 = vunpack.c.l.b16 %v7515
    %v8364 = vunpack.c.l.b16 %v7516
    %v8365 = vunpack.c.h.b16 %v7516
    %v8366 = vunpack.c.l.b16 %v7517
    %v8367 = vunpack.c.h.b16 %v7517
    %v8368 = vunpack.c.l.b16 %v7518
    %v8369 = vunpack.c.l.b16 %v7519
    %v8370 = vunpack.c.h.b16 %v7519
    %v8371 = vunpack.c.l.b16 %v7520
    %v8372 = vunpack.c.h.b16 %v7520
    %v8373 = vunpack.c.l.b16 %v7521
    %v8374 = vunpack.c.l.b16 %v7522
    %v8375 = vunpack.c.h.b16 %v7522
    %v8376 = vunpack.c.l.b16 %v7523
    %v8377 = vunpack.c.h.b16 %v7523
    %v8378 = vunpack.c.l.b16 %v7524
    %v8379 = vunpack.c.l.b16 %v7525
    %v8380 = vunpack.c.h.b16 %v7525
    %v8381 = vunpack.c.l.b16 %v7526
    %v8382 = vunpack.c.h.b16 %v7526
    %v8383 = vunpack.c.l.b16 %v7527
    %v8384 = vunpack.c.l.b16 %v7528
    %v8385 = vunpack.c.h.b16 %v7528
    %v8386 = vunpack.c.l.b16 %v7529
    %v8387 = vunpack.c.h.b16 %v7529
    %v8388 = vunpack.c.l.b16 %v7530
    %v8389 = vunpack.c.l.b16 %v7531
    %v8390 = vunpack.c.h.b16 %v7531
    %v8391 = vunpack.c.l.b16 %v7532
    %v8392 = vunpack.c.h.b16 %v7532
    %v8393 = vunpack.c.l.b16 %v7533
    %v8394 = vunpack.c.l.b16 %v7534
    %v8395 = vunpack.c.h.b16 %v7534
    %v8396 = vunpack.c.l.b16 %v7535
    %v8397 = vunpack.c.h.b16 %v7535
    %v8398 = vunpack.c.l.b16 %v7536
    %v8399 = vunpack.c.l.b16 %v7537
    %v8400 = vunpack.c.h.b16 %v7537
    %v8401 = vunpack.c.l.b16 %v7538
    %v8402 = vunpack.c.h.b16 %v7538
    %v8403 = vunpack.c.l.b16 %v7539
    %v8404 = vunpack.c.l.b16 %v7540
    %v8405 = vunpack.c.h.b16 %v7540
    %v8406 = vunpack.c.l.b16 %v7541
    %v8407 = vunpack.c.h.b16 %v7541
    %v8408 = vunpack.c.l.b16 %v7542
    %v8409 = vunpack.c.l.b16 %v7543
    %v8410 = vunpack.c.h.b16 %v7543
    %v8411 = vunpack.c.l.b16 %v7544
    %v8412 = vunpack.c.h.b16 %v7544
    %v8413 = vunpack.c.l.b16 %v7545
    %v8414 = vunpack.c.l.b16 %v7546
    %v8415 = vunpack.c.h.b16 %v7546
    %v8416 = vunpack.c.l.b16 %v7547
    %v8417 = vunpack.c.h.b16 %v7547
    %v8418 = vunpack.c.l.b16 %v7548
    %v8419 = vunpack.c.l.b16 %v7549
    %v8420 = vunpack.c.h.b16 %v7549
    %v8421 = vunpack.c.l.b16 %v7550
    %v8422 = vunpack.c.h.b16 %v7550
    %v8423 = vunpack.c.l.b16 %v7551
    %v8424 = vunpack.c.l.b16 %v7552
    %v8425 = vunpack.c.h.b16 %v7552
    %v8426 = vunpack.c.l.b16 %v7553
    %v8427 = vunpack.c.h.b16 %v7553
    %v8428 = vunpack.c.l.b16 %v7554
    %v8429 = vunpack.c.l.b16 %v7555
    %v8430 = vunpack.c.h.b16 %v7555
    %v8431 = vunpack.c.l.b16 %v7556
    %v8432 = vunpack.c.h.b16 %v7556
    %v8433 = vunpack.c.l.b16 %v7557
    %v8434 = vunpack.c.l.b16 %v7558
    %v8435 = vunpack.c.h.b16 %v7558
    %v8436 = vunpack.c.l.b16 %v7559
    %v8437 = vunpack.c.h.b16 %v7559
    %v8438 = vunpack.c.l.b16 %v7560
    %v8439 = vunpack.c.l.b16 %v7561
    %v8440 = vunpack.c.h.b16 %v7561
    %v8441 = vunpack.c.l.b16 %v7562
    %v8442 = vunpack.c.h.b16 %v7562
    %v8443 = vunpack.c.l.b16 %v7563
    %v8444 = vunpack.c.l.b16 %v7564
    %v8445 = vunpack.c.h.b16 %v7564
    %v8446 = vunpack.c.l.b16 %v7565
    %v8447 = vunpack.c.h.b16 %v7565
    %v8448 = vunpack.c.l.b16 %v7566
    %v8449 = vunpack.c.l.b16 %v7567
    %v8450 = vunpack.c.h.b16 %v7567
    %v8451 = vunpack.c.l.b16 %v7568
    %v8452 = vunpack.c.h.b16 %v7568
    %v8453 = vunpack.c.l.b16 %v7569
    %v8454 = vunpack.c.l.b16 %v7570
    %v8455 = vunpack.c.h.b16 %v7570
    %v8456 = vunpack.c.l.b16 %v7571
    %v8457 = vunpack.c.h.b16 %v7571
    %v8458 = vunpack.c.l.b16 %v7572
    %v8459 = vunpack.c.l.b16 %v7573
    %v8460 = vunpack.c.h.b16 %v7573
    %v8461 = vunpack.c.l.b16 %v7574
    %v8462 = vunpack.c.h.b16 %v7574
    %v8463 = vunpack.c.l.b16 %v7575
    %v8464 = vunpack.c.l.b16 %v7576
    %v8465 = vunpack.c.h.b16 %v7576
    %v8466 = vunpack.c.l.b16 %v7577
    %v8467 = vunpack.c.h.b16 %v7577
    %v8468 = vunpack.c.l.b16 %v7578
    %v8469 = vunpack.c.l.b16 %v7579
    %v8470 = vunpack.c.h.b16 %v7579
    %v8471 = vunpack.c.l.b16 %v7580
    %v8472 = vunpack.c.h.b16 %v7580
    %v8473 = vunpack.c.l.b16 %v7581
    %v8474 = vunpack.c.l.b16 %v7582
    %v8475 = vunpack.c.h.b16 %v7582
    %v8476 = vunpack.c.l.b16 %v7583
    %v8477 = vunpack.c.h.b16 %v7583
    %v8478 = vunpack.c.l.b16 %v7584
    %v8479 = vunpack.c.l.b16 %v7585
    %v8480 = vunpack.c.h.b16 %v7585
    %v8481 = vunpack.c.l.b16 %v7586
    %v8482 = vunpack.c.h.b16 %v7586
    %v8483 = vunpack.c.l.b16 %v7587
    %v8484 = vunpack.c.l.b16 %v7588
    %v8485 = vunpack.c.h.b16 %v7588
    %v8486 = vunpack.c.l.b16 %v7589
    %v8487 = vunpack.c.h.b16 %v7589
    %v8488 = vunpack.c.l.b16 %v7590
    %v8489 = vunpack.c.l.b16 %v7591
    %v8490 = vunpack.c.h.b16 %v7591
    %v8491 = vunpack.c.l.b16 %v7592
    %v8492 = vunpack.c.h.b16 %v7592
    %v8493 = vunpack.c.l.b16 %v7593
    %v8494 = vunpack.c.l.b16 %v7594
    %v8495 = vunpack.c.h.b16 %v7594
    %v8496 = vunpack.c.l.b16 %v7595
    %v8497 = vunpack.c.h.b16 %v7595
    %v8498 = vunpack.c.l.b16 %v7596
    %v8499 = vunpack.c.l.b16 %v7597
    %v8500 = vunpack.c.h.b16 %v7597
    %v8501 = vunpack.c.l.b16 %v7598
    %v8502 = vunpack.c.h.b16 %v7598
    %v8503 = vunpack.c.l.b16 %v7599
    %v8504 = vunpack.c.l.b16 %v7600
    %v8505 = vunpack.c.h.b16 %v7600
    %v8506 = vunpack.c.l.b16 %v7601
    %v8507 = vunpack.c.h.b16 %v7601
    %v8508 = vunpack.c.l.b16 %v7602
    %v8509 = vunpack.c.l.b16 %v7603
    %v8510 = vunpack.c.h.b16 %v7603
    %v8511 = vunpack.c.l.b16 %v7604
    %v8512 = vunpack.c.h.b16 %v7604
    %v8513 = vunpack.c.l.b16 %v7605
    %v8514 = vunpack.c.l.b16 %v7606
    %v8515 = vunpack.c.h.b16 %v7606
    %v8516 = vunpack.c.l.b16 %v7607
    %v8517 = vunpack.c.h.b16 %v7607
    %v8518 = vunpack.c.l.b16 %v7608
    %v8519 = vunpack.c.l.b16 %v7609
    %v8520 = vunpack.c.h.b16 %v7609
    %v8521 = vunpack.c.l.b16 %v7610
    %v8522 = vunpack.c.h.b16 %v7610
    %v8523 = vunpack.c.l.b16 %v7611
    %v8524 = vunpack.c.l.b16 %v7612
    %v8525 = vunpack.c.h.b16 %v7612
    %v8526 = vunpack.c.l.b16 %v7613
    %v8527 = vunpack.c.h.b16 %v7613
    %v8528 = vunpack.c.l.b16 %v7614
    %v8529 = vunpack.c.l.b16 %v7615
    %v8530 = vunpack.c.h.b16 %v7615
    %v8531 = vunpack.c.l.b16 %v7616
    %v8532 = vunpack.c.h.b16 %v7616
    %v8533 = vunpack.c.l.b16 %v7617
    %v8534 = vunpack.c.l.b16 %v7618
    %v8535 = vunpack.c.h.b16 %v7618
    %v8536 = vunpack.c.l.b16 %v7619
    %v8537 = vunpack.c.h.b16 %v7619
    %v8538 = vunpack.c.l.b16 %v7620
    %v8539 = vunpack.c.l.b16 %v7621
    %v8540 = vunpack.c.h.b16 %v7621
    %v8541 = vunpack.c.l.b16 %v7622
    %v8542 = vunpack.c.h.b16 %v7622
    %v8543 = vunpack.c.l.b16 %v7623
    %v8544 = vunpack.c.l.b16 %v7624
    %v8545 = vunpack.c.h.b16 %v7624
    %v8546 = vunpack.c.l.b16 %v7625
    %v8547 = vunpack.c.h.b16 %v7625
    %v8548 = vunpack.c.l.b16 %v7626
    %v8549 = vunpack.c.l.b16 %v7627
    %v8550 = vunpack.c.h.b16 %v7627
    %v8551 = vunpack.c.l.b16 %v7628
    %v8552 = vunpack.c.h.b16 %v7628
    %v8553 = vunpack.c.l.b16 %v7629
    %v8554 = vunpack.c.l.b16 %v7630
    %v8555 = vunpack.c.h.b16 %v7630
    %v8556 = vunpack.c.l.b16 %v7631
    %v8557 = vunpack.c.h.b16 %v7631
    %v8558 = vunpack.c.l.b16 %v7632
    %v8559 = vunpack.c.l.b16 %v7633
    %v8560 = vunpack.c.h.b16 %v7633
    %v8561 = vunpack.c.l.b16 %v7634
    %v8562 = vunpack.c.h.b16 %v7634
    %v8563 = vunpack.c.l.b16 %v7635
    %v8564 = vunpack.c.l.b16 %v7636
    %v8565 = vunpack.c.h.b16 %v7636
    %v8566 = vunpack.c.l.b16 %v7637
    %v8567 = vunpack.c.h.b16 %v7637
    %v8568 = vunpack.c.l.b16 %v7638
    %v8569 = vunpack.c.l.b16 %v7639
    %v8570 = vunpack.c.h.b16 %v7639
    %v8571 = vunpack.c.l.b16 %v7640
    %v8572 = vunpack.c.h.b16 %v7640
    %v8573 = vunpack.c.l.b16 %v7641
    %v8574 = vunpack.c.l.b16 %v7642
    %v8575 = vunpack.c.h.b16 %v7642
    %v8576 = vunpack.c.l.b16 %v7643
    %v8577 = vunpack.c.h.b16 %v7643
    %v8578 = vunpack.c.l.b16 %v7644
    %v8579 = vunpack.c.l.b16 %v7645
    %v8580 = vunpack.c.h.b16 %v7645
    %v8581 = vunpack.c.l.b16 %v7646
    %v8582 = vunpack.c.h.b16 %v7646
    %v8583 = vunpack.c.l.b16 %v7647
    %v8584 = vunpack.c.l.b16 %v7648
    %v8585 = vunpack.c.h.b16 %v7648
    %v8586 = vunpack.c.l.b16 %v7649
    %v8587 = vunpack.c.h.b16 %v7649
    %v8588 = vunpack.c.l.b16 %v7650
    %v8589 = vunpack.c.l.b16 %v7651
    %v8590 = vunpack.c.h.b16 %v7651
    %v8591 = vunpack.c.l.b16 %v7652
    %v8592 = vunpack.c.h.b16 %v7652
    %v8593 = vunpack.c.l.b16 %v7653
    %v8594 = vunpack.c.l.b16 %v7654
    %v8595 = vunpack.c.h.b16 %v7654
    %v8596 = vunpack.c.l.b16 %v7655
    %v8597 = vunpack.c.h.b16 %v7655
    %v8598 = vunpack.c.l.b16 %v7656
    %v8599 = vunpack.c.l.b16 %v7657
    %v8600 = vunpack.c.h.b16 %v7657
    %v8601 = vunpack.c.l.b16 %v7658
    %v8602 = vunpack.c.h.b16 %v7658
    %v8603 = vunpack.c.l.b16 %v7659
    %v8604 = vunpack.c.l.b16 %v7660
    %v8605 = vunpack.c.h.b16 %v7660
    %v8606 = vunpack.c.l.b16 %v7661
    %v8607 = vunpack.c.h.b16 %v7661
    %v8608 = vunpack.c.l.b16 %v7662
    %v8609 = vunpack.c.l.b16 %v7663
    %v8610 = vunpack.c.h.b16 %v7663
    %v8611 = vunpack.c.l.b16 %v7664
    %v8612 = vunpack.c.h.b16 %v7664
    %v8613 = vunpack.c.l.b16 %v7665
    %v8614 = vunpack.c.l.b16 %v7666
    %v8615 = vunpack.c.h.b16 %v7666
    %v8616 = vunpack.c.l.b16 %v7667
    %v8617 = vunpack.c.h.b16 %v7667
    %v8618 = vunpack.c.l.b16 %v7668
    %v8619 = vunpack.c.l.b16 %v7669
    %v8620 = vunpack.c.h.b16 %v7669
    %v8621 = vunpack.c.l.b16 %v7670
    %v8622 = vunpack.c.h.b16 %v7670
    %v8623 = vunpack.c.l.b16 %v7671
    %v8624 = vunpack.c.l.b16 %v7672
    %v8625 = vunpack.c.h.b16 %v7672
    %v8626 = vunpack.c.l.b16 %v7673
    %v8627 = vunpack.c.h.b16 %v7673
    %v8628 = vunpack.c.l.b16 %v7674
    %v8629 = vunpack.c.l.b16 %v7675
    %v8630 = vunpack.c.h.b16 %v7675
    %v8631 = vunpack.c.l.b16 %v7676
    %v8632 = vunpack.c.h.b16 %v7676
    %v8633 = vunpack.c.l.b16 %v7677
    %v8634 = vunpack.c.l.b16 %v7678
    %v8635 = vunpack.c.h.b16 %v7678
    %v8636 = vunpack.c.l.b16 %v7679
    %v8637 = vunpack.c.h.b16 %v7679
    %v8638 = vunpack.c.l.b16 %v7680
    %v8639 = vunpack.c.l.b16 %v7681
    %v8640 = vunpack.c.h.b16 %v7681
    %v8641 = vunpack.c.l.b16 %v7682
    %v8642 = vunpack.c.h.b16 %v7682
    %v8643 = vunpack.c.l.b16 %v7683
    %v8644 = vunpack.c.l.b16 %v7684
    %v8645 = vunpack.c.h.b16 %v7684
    %v8646 = vunpack.c.l.b16 %v7685
    %v8647 = vunpack.c.h.b16 %v7685
    %v8648 = vunpack.c.l.b16 %v7686
    %v8649 = vunpack.c.l.b16 %v7687
    %v8650 = vunpack.c.h.b16 %v7687
    %v8651 = vunpack.c.l.b16 %v7688
    %v8652 = vunpack.c.h.b16 %v7688
    %v8653 = vunpack.c.l.b16 %v7689
    %v8654 = vunpack.c.l.b16 %v7690
    %v8655 = vunpack.c.h.b16 %v7690
    %v8656 = vunpack.c.l.b16 %v7691
    %v8657 = vunpack.c.h.b16 %v7691
    %v8658 = vunpack.c.l.b16 %v7692
    %v8659 = vunpack.c.l.b16 %v7693
    %v8660 = vunpack.c.h.b16 %v7693
    %v8661 = vunpack.c.l.b16 %v7694
    %v8662 = vunpack.c.h.b16 %v7694
    %v8663 = vunpack.c.l.b16 %v7695
    %v8664 = vunpack.c.l.b16 %v7696
    %v8665 = vunpack.c.h.b16 %v7696
    %v8666 = vunpack.c.l.b16 %v7697
    %v8667 = vunpack.c.h.b16 %v7697
    %v8668 = vunpack.c.l.b16 %v7698
    %v8669 = vunpack.c.l.b16 %v7699
    %v8670 = vunpack.c.h.b16 %v7699
    %v8671 = vunpack.c.l.b16 %v7700
    %v8672 = vunpack.c.h.b16 %v7700
    %v8673 = vunpack.c.l.b16 %v7701
    %v8674 = vunpack.c.l.b16 %v7702
    %v8675 = vunpack.c.h.b16 %v7702
    %v8676 = vunpack.c.l.b16 %v7703
    %v8677 = vunpack.c.h.b16 %v7703
    %v8678 = vunpack.c.l.b16 %v7704
    %v8679 = vunpack.c.l.b16 %v7705
    %v8680 = vunpack.c.h.b16 %v7705
    %v8681 = vunpack.c.l.b16 %v7706
    %v8682 = vunpack.c.h.b16 %v7706
    %v8683 = vunpack.c.l.b16 %v7707
    %v8684 = vunpack.c.l.b16 %v7708
    %v8685 = vunpack.c.h.b16 %v7708
    %v8686 = vunpack.c.l.b16 %v7709
    %v8687 = vunpack.c.h.b16 %v7709
    %v8688 = vunpack.c.l.b16 %v7710
    %v8689 = vunpack.c.l.b16 %v7711
    %v8690 = vunpack.c.h.b16 %v7711
    %v8691 = vunpack.c.l.b16 %v7712
    %v8692 = vunpack.c.h.b16 %v7712
    %v8693 = vunpack.c.l.b16 %v7713
    %v8694 = vunpack.c.l.b16 %v7714
    %v8695 = vunpack.c.h.b16 %v7714
    %v8696 = vunpack.c.l.b16 %v7715
    %v8697 = vunpack.c.h.b16 %v7715
    %v8698 = vunpack.c.l.b16 %v7716
    %v8699 = vunpack.c.l.b16 %v7717
    %v8700 = vunpack.c.h.b16 %v7717
    %v8701 = vunpack.c.l.b16 %v7718
    %v8702 = vunpack.c.h.b16 %v7718
    %v8703 = vunpack.c.l.b16 %v7719
    %v8704 = vunpack.c.l.b16 %v7720
    %v8705 = vunpack.c.h.b16 %v7720
    %v8706 = vunpack.c.l.b16 %v7721
    %v8707 = vunpack.c.h.b16 %v7721
    %v8708 = vunpack.c.l.b16 %v7722
    %v8709 = vunpack.c.l.b16 %v7723
    %v8710 = vunpack.c.h.b16 %v7723
    %v8711 = vunpack.c.l.b16 %v7724
    %v8712 = vunpack.c.h.b16 %v7724
    %v8713 = vunpack.c.l.b16 %v7725
    %v8714 = vunpack.c.l.b16 %v7726
    %v8715 = vunpack.c.h.b16 %v7726
    %v8716 = vunpack.c.l.b16 %v7727
    %v8717 = vunpack.c.h.b16 %v7727
    %v8718 = vunpack.c.l.b16 %v7728
    %v8719 = vunpack.c.l.b16 %v7729
    %v8720 = vunpack.c.h.b16 %v7729
    %v8721 = vunpack.c.l.b16 %v7730
    %v8722 = vunpack.c.h.b16 %v7730
    %v8723 = vunpack.c.l.b16 %v7731
    %v8724 = vunpack.c.l.b16 %v7732
    %v8725 = vunpack.c.h.b16 %v7732
    %v8726 = vunpack.c.l.b16 %v7733
    %v8727 = vunpack.c.h.b16 %v7733
    %v8728 = vunpack.c.l.b16 %v7734
    %v8729 = vunpack.c.l.b16 %v7735
    %v8730 = vunpack.c.h.b16 %v7735
    %v8731 = vunpack.c.l.b16 %v7736
    %v8732 = vunpack.c.h.b16 %v7736
    %v8733 = vunpack.c.l.b16 %v7737
    %v8734 = vunpack.c.l.b16 %v7738
    %v8735 = vunpack.c.h.b16 %v7738
    %v8736 = vunpack.c.l.b16 %v7739
    %v8737 = vunpack.c.h.b16 %v7739
    %v8738 = vunpack.c.l.b16 %v7740
    %v8739 = vunpack.c.l.b16 %v7741
    %v8740 = vunpack.c.h.b16 %v7741
    %v8741 = vunpack.c.l.b16 %v7742
    %v8742 = vunpack.c.h.b16 %v7742
    %v8743 = vunpack.c.l.b16 %v7743
    %v8744 = vunpack.c.l.b16 %v7744
    %v8745 = vunpack.c.h.b16 %v7744
    %v8746 = vunpack.c.l.b16 %v7745
    %v8747 = vunpack.c.h.b16 %v7745
    %v8748 = vunpack.c.l.b16 %v7746
    %v8749 = vunpack.c.l.b16 %v7747
    %v8750 = vunpack.c.h.b16 %v7747
    %v8751 = vunpack.c.l.b16 %v7748
    %v8752 = vunpack.c.h.b16 %v7748
    %v8753 = vunpack.c.l.b16 %v7749
    %v8754 = vunpack.c.l.b16 %v7750
    %v8755 = vunpack.c.h.b16 %v7750
    %v8756 = vunpack.c.l.b16 %v7751
    %v8757 = vunpack.c.h.b16 %v7751
    %v8758 = vunpack.c.l.b16 %v7752
    %v8759 = vunpack.c.l.b16 %v7753
    %v8760 = vunpack.c.h.b16 %v7753
    %v8761 = vunpack.c.l.b16 %v7754
    %v8762 = vunpack.c.h.b16 %v7754
    %v8763 = vunpack.c.l.b16 %v7755
    %v8764 = vunpack.c.l.b16 %v7756
    %v8765 = vunpack.c.h.b16 %v7756
    %v8766 = vunpack.c.l.b16 %v7757
    %v8767 = vunpack.c.h.b16 %v7757
    %v8768 = vunpack.c.l.b16 %v7758
    %v8769 = vunpack.c.l.b16 %v7759
    %v8770 = vunpack.c.h.b16 %v7759
    %v8771 = vunpack.c.l.b16 %v7760
    %v8772 = vunpack.c.h.b16 %v7760
    %v8773 = vunpack.c.l.b16 %v7761
    %v8774 = vunpack.c.l.b16 %v7762
    %v8775 = vunpack.c.h.b16 %v7762
    %v8776 = vunpack.c.l.b16 %v7763
    %v8777 = vunpack.c.h.b16 %v7763
    %v8778 = vunpack.c.l.b16 %v7764
    %v8779 = vunpack.c.l.b16 %v7765
    %v8780 = vunpack.c.h.b16 %v7765
    %v8781 = vunpack.c.l.b16 %v7766
    %v8782 = vunpack.c.h.b16 %v7766
    %v8783 = vunpack.c.l.b16 %v7767
    %v8784 = vunpack.c.l.b16 %v7768
    %v8785 = vunpack.c.h.b16 %v7768
    %v8786 = vunpack.c.l.b16 %v7769
    %v8787 = vunpack.c.h.b16 %v7769
    %v8788 = vunpack.c.l.b16 %v7770
    %v8789 = vunpack.c.l.b16 %v7771
    %v8790 = vunpack.c.h.b16 %v7771
    %v8791 = vunpack.c.l.b16 %v7772
    %v8792 = vunpack.c.h.b16 %v7772
    %v8793 = vunpack.c.l.b16 %v7773
    %v8794 = vunpack.c.l.b16 %v7774
    %v8795 = vunpack.c.h.b16 %v7774
    %v8796 = vunpack.c.l.b16 %v7775
    %v8797 = vunpack.c.h.b16 %v7775
    %v8798 = vunpack.c.l.b16 %v7776
    %v8799 = vunpack.c.l.b16 %v7777
    %v8800 = vunpack.c.h.b16 %v7777
    %v8801 = vunpack.c.l.b16 %v7778
    %v8802 = vunpack.c.h.b16 %v7778
    %v8803 = vunpack.c.l.b16 %v7779
    %v8804 = vpack.c.b16 %v8169, %v8164
    %v8805 = vpack.c.b16 %v8170, %v8165
    %v8806 = vpack.c.b16 %v8171, %v8166
    %v8807 = vpack.c.b16 %v8172, %v8167
    %v8808 = vpack.c.b16 %v8173, %v8168
    %v8809 = vpack.c.b16 %v8179, %v8174
    %v8810 = vpack.c.b16 %v8180, %v8175
    %v8811 = vpack.c.b16 %v8181, %v8176
    %v8812 = vpack.c.b16 %v8182, %v8177
    %v8813 = vpack.c.b16 %v8183, %v8178
    %v8814 = vpack.c.b16 %v8189, %v8184
    %v8815 = vpack.c.b16 %v8190, %v8185
    %v8816 = vpack.c.b16 %v8191, %v8186
    %v8817 = vpack.c.b16 %v8192, %v8187
    %v8818 = vpack.c.b16 %v8193, %v8188
    %v8819 = vpack.c.b16 %v8199, %v8194
    %v8820 = vpack.c.b16 %v8200, %v8195
    %v8821 = vpack.c.b16 %v8201, %v8196
    %v8822 = vpack.c.b16 %v8202, %v8197
    %v8823 = vpack.c.b16 %v8203, %v8198
    %v8824 = vpack.c.b16 %v8209, %v8204
    %v8825 = vpack.c.b16 %v8210, %v8205
    %v8826 = vpack.c.b16 %v8211, %v8206
    %v8827 = vpack.c.b16 %v8212, %v8207
    %v8828 = vpack.c.b16 %v8213, %v8208
    %v8829 = vpack.c.b16 %v8219, %v8214
    %v8830 = vpack.c.b16 %v8220, %v8215
    %v8831 = vpack.c.b16 %v8221, %v8216
    %v8832 = vpack.c.b16 %v8222, %v8217
    %v8833 = vpack.c.b16 %v8223, %v8218
    %v8834 = vpack.c.b16 %v8229, %v8224
    %v8835 = vpack.c.b16 %v8230, %v8225
    %v8836 = vpack.c.b16 %v8231, %v8226
    %v8837 = vpack.c.b16 %v8232, %v8227
    %v8838 = vpack.c.b16 %v8233, %v8228
    %v8839 = vpack.c.b16 %v8239, %v8234
    %v8840 = vpack.c.b16 %v8240, %v8235
    %v8841 = vpack.c.b16 %v8241, %v8236
    %v8842 = vpack.c.b16 %v8242, %v8237
    %v8843 = vpack.c.b16 %v8243, %v8238
    %v8844 = vpack.c.b16 %v8249, %v8244
    %v8845 = vpack.c.b16 %v8250, %v8245
    %v8846 = vpack.c.b16 %v8251, %v8246
    %v8847 = vpack.c.b16 %v8252, %v8247
    %v8848 = vpack.c.b16 %v8253, %v8248
    %v8849 = vpack.c.b16 %v8259, %v8254
    %v8850 = vpack.c.b16 %v8260, %v8255
    %v8851 = vpack.c.b16 %v8261, %v8256
    %v8852 = vpack.c.b16 %v8262, %v8257
    %v8853 = vpack.c.b16 %v8263, %v8258
    %v8854 = vpack.c.b16 %v8269, %v8264
    %v8855 = vpack.c.b16 %v8270, %v8265
    %v8856 = vpack.c.b16 %v8271, %v8266
    %v8857 = vpack.c.b16 %v8272, %v8267
    %v8858 = vpack.c.b16 %v8273, %v8268
    %v8859 = vpack.c.b16 %v8279, %v8274
    %v8860 = vpack.c.b16 %v8280, %v8275
    %v8861 = vpack.c.b16 %v8281, %v8276
    %v8862 = vpack.c.b16 %v8282, %v8277
    %v8863 = vpack.c.b16 %v8283, %v8278
    %v8864 = vpack.c.b16 %v8289, %v8284
    %v8865 = vpack.c.b16 %v8290, %v8285
    %v8866 = vpack.c.b16 %v8291, %v8286
    %v8867 = vpack.c.b16 %v8292, %v8287
    %v8868 = vpack.c.b16 %v8293, %v8288
    %v8869 = vpack.c.b16 %v8299, %v8294
    %v8870 = vpack.c.b16 %v8300, %v8295
    %v8871 = vpack.c.b16 %v8301, %v8296
    %v8872 = vpack.c.b16 %v8302, %v8297
    %v8873 = vpack.c.b16 %v8303, %v8298
    %v8874 = vpack.c.b16 %v8309, %v8304
    %v8875 = vpack.c.b16 %v8310, %v8305
    %v8876 = vpack.c.b16 %v8311, %v8306
    %v8877 = vpack.c.b16 %v8312, %v8307
    %v8878 = vpack.c.b16 %v8313, %v8308
    %v8879 = vpack.c.b16 %v8319, %v8314
    %v8880 = vpack.c.b16 %v8320, %v8315
    %v8881 = vpack.c.b16 %v8321, %v8316
    %v8882 = vpack.c.b16 %v8322, %v8317
    %v8883 = vpack.c.b16 %v8323, %v8318
    %v8884 = vpack.c.b16 %v8329, %v8324
    %v8885 = vpack.c.b16 %v8330, %v8325
    %v8886 = vpack.c.b16 %v8331, %v8326
    %v8887 = vpack.c.b16 %v8332, %v8327
    %v8888 = vpack.c.b16 %v8333, %v8328
    %v8889 = vpack.c.b16 %v8339, %v8334
    %v8890 = vpack.c.b16 %v8340, %v8335
    %v8891 = vpack.c.b16 %v8341, %v8336
    %v8892 = vpack.c.b16 %v8342, %v8337
    %v8893 = vpack.c.b16 %v8343, %v8338
    %v8894 = vpack.c.b16 %v8349, %v8344
    %v8895 = vpack.c.b16 %v8350, %v8345
    %v8896 = vpack.c.b16 %v8351, %v8346
    %v8897 = vpack.c.b16 %v8352, %v8347
    %v8898 = vpack.c.b16 %v8353, %v8348
    %v8899 = vpack.c.b16 %v8359, %v8354
    %v8900 = vpack.c.b16 %v8360, %v8355
    %v8901 = vpack.c.b16 %v8361, %v8356
    %v8902 = vpack.c.b16 %v8362, %v8357
    %v8903 = vpack.c.b16 %v8363, %v8358
    %v8904 = vpack.c.b16 %v8369, %v8364
    %v8905 = vpack.c.b16 %v8370, %v8365
    %v8906 = vpack.c.b16 %v8371, %v8366
    %v8907 = vpack.c.b16 %v8372, %v8367
    %v8908 = vpack.c.b16 %v8373, %v8368
    %v8909 = vpack.c.b16 %v8379, %v8374
    %v8910 = vpack.c.b16 %v8380, %v8375
    %v8911 = vpack.c.b16 %v8381, %v8376
    %v8912 = vpack.c.b16 %v8382, %v8377
    %v8913 = vpack.c.b16 %v8383, %v8378
    %v8914 = vpack.c.b16 %v8389, %v8384
    %v8915 = vpack.c.b16 %v8390, %v8385
    %v8916 = vpack.c.b16 %v8391, %v8386
    %v8917 = vpack.c.b16 %v8392, %v8387
    %v8918 = vpack.c.b16 %v8393, %v8388
    %v8919 = vpack.c.b16 %v8399, %v8394
    %v8920 = vpack.c.b16 %v8400, %v8395
    %v8921 = vpack.c.b16 %v8401, %v8396
    %v8922 = vpack.c.b16 %v8402, %v8397
    %v8923 = vpack.c.b16 %v8403, %v8398
    %v8924 = vpack.c.b16 %v8409, %v8404
    %v8925 = vpack.c.b16 %v8410, %v8405
    %v8926 = vpack.c.b16 %v8411, %v8406
    %v8927 = vpack.c.b16 %v8412, %v8407
    %v8928 = vpack.c.b16 %v8413, %v8408
    %v8929 = vpack.c.b16 %v8419, %v8414
    %v8930 = vpack.c.b16 %v8420, %v8415
    %v8931 = vpack.c.b16 %v8421, %v8416
    %v8932 = vpack.c.b16 %v8422, %v8417
    %v8933 = vpack.c.b16 %v8423, %v8418
    %v8934 = vpack.c.b16 %v8429, %v8424
    %v8935 = vpack.c.b16 %v8430, %v8425
    %v8936 = vpack.c.b16 %v8431, %v8426
    %v8937 = vpack.c.b16 %v8432, %v8427
    %v8938 = vpack.c.b16 %v8433, %v8428
    %v8939 = vpack.c.b16 %v8439, %v8434
    %v8940 = vpack.c.b16 %v8440, %v8435
    %v8941 = vpack.c.b16 %v8441, %v8436
    %v8942 = vpack.c.b16 %v8442, %v8437
    %v8943 = vpack.c.b16 %v8443, %v8438
    %v8944 = vpack.c.b16 %v8449, %v8444
    %v8945 = vpack.c.b16 %v8450, %v8445
    %v8946 = vpack.c.b16 %v8451, %v8446
    %v8947 = vpack.c.b16 %v8452, %v8447
    %v8948 = vpack.c.b16 %v8453, %v8448
    %v8949 = vpack.c.b16 %v8459, %v8454
    %v8950 = vpack.c.b16 %v8460, %v8455
    %v8951 = vpack.c.b16 %v8461, %v8456
    %v8952 = vpack.c.b16 %v8462, %v8457
    %v8953 = vpack.c.b16 %v8463, %v8458
    %v8954 = vpack.c.b16 %v8469, %v8464
    %v8955 = vpack.c.b16 %v8470, %v8465
    %v8956 = vpack.c.b16 %v8471, %v8466
    %v8957 = vpack.c.b16 %v8472, %v8467
    %v8958 = vpack.c.b16 %v8473, %v8468
    %v8959 = vpack.c.b16 %v8479, %v8474
    %v8960 = vpack.c.b16 %v8480, %v8475
    %v8961 = vpack.c.b16 %v8481, %v8476
    %v8962 = vpack.c.b16 %v8482, %v8477
    %v8963 = vpack.c.b16 %v8483, %v8478
    %v8964 = vpack.c.b16 %v8489, %v8484
    %v8965 = vpack.c.b16 %v8490, %v8485
    %v8966 = vpack.c.b16 %v8491, %v8486
    %v8967 = vpack.c.b16 %v8492, %v8487
    %v8968 = vpack.c.b16 %v8493, %v8488
    %v8969 = vpack.c.b16 %v8499, %v8494
    %v8970 = vpack.c.b16 %v8500, %v8495
    %v8971 = vpack.c.b16 %v8501, %v8496
    %v8972 = vpack.c.b16 %v8502, %v8497
    %v8973 = vpack.c.b16 %v8503, %v8498
    %v8974 = vpack.c.b16 %v8509, %v8504
    %v8975 = vpack.c.b16 %v8510, %v8505
    %v8976 = vpack.c.b16 %v8511, %v8506
    %v8977 = vpack.c.b16 %v8512, %v8507
    %v8978 = vpack.c.b16 %v8513, %v8508
    %v8979 = vpack.c.b16 %v8519, %v8514
    %v8980 = vpack.c.b16 %v8520, %v8515
    %v8981 = vpack.c.b16 %v8521, %v8516
    %v8982 = vpack.c.b16 %v8522, %v8517
    %v8983 = vpack.c.b16 %v8523, %v8518
    %v8984 = vpack.c.b16 %v8529, %v8524
    %v8985 = vpack.c.b16 %v8530, %v8525
    %v8986 = vpack.c.b16 %v8531, %v8526
    %v8987 = vpack.c.b16 %v8532, %v8527
    %v8988 = vpack.c.b16 %v8533, %v8528
    %v8989 = vpack.c.b16 %v8539, %v8534
    %v8990 = vpack.c.b16 %v8540, %v8535
    %v8991 = vpack.c.b16 %v8541, %v8536
    %v8992 = vpack.c.b16 %v8542, %v8537
    %v8993 = vpack.c.b16 %v8543, %v8538
    %v8994 = vpack.c.b16 %v8549, %v8544
    %v8995 = vpack.c.b16 %v8550, %v8545
    %v8996 = vpack.c.b16 %v8551, %v8546
    %v8997 = vpack.c.b16 %v8552, %v8547
    %v8998 = vpack.c.b16 %v8553, %v8548
    %v8999 = vpack.c.b16 %v8559, %v8554
    %v9000 = vpack.c.b16 %v8560, %v8555
    %v9001 = vpack.c.b16 %v8561, %v8556
    %v9002 = vpack.c.b16 %v8562, %v8557
    %v9003 = vpack.c.b16 %v8563, %v8558
    %v9004 = vpack.c.b16 %v8569, %v8564
    %v9005 = vpack.c.b16 %v8570, %v8565
    %v9006 = vpack.c.b16 %v8571, %v8566
    %v9007 = vpack.c.b16 %v8572, %v8567
    %v9008 = vpack.c.b16 %v8573, %v8568
    %v9009 = vpack.c.b16 %v8579, %v8574
    %v9010 = vpack.c.b16 %v8580, %v8575
    %v9011 = vpack.c.b16 %v8581, %v8576
    %v9012 = vpack.c.b16 %v8582, %v8577
    %v9013 = vpack.c.b16 %v8583, %v8578
    %v9014 = vpack.c.b16 %v8589, %v8584
    %v9015 = vpack.c.b16 %v8590, %v8585
    %v9016 = vpack.c.b16 %v8591, %v8586
    %v9017 = vpack.c.b16 %v8592, %v8587
    %v9018 = vpack.c.b16 %v8593, %v8588
    %v9019 = vpack.c.b16 %v8599, %v8594
    %v9020 = vpack.c.b16 %v8600, %v8595
    %v9021 = vpack.c.b16 %v8601, %v8596
    %v9022 = vpack.c.b16 %v8602, %v8597
    %v9023 = vpack.c.b16 %v8603, %v8598
    %v9024 = vpack.c.b16 %v8609, %v8604
    %v9025 = vpack.c.b16 %v8610, %v8605
    %v9026 = vpack.c.b16 %v8611, %v8606
    %v9027 = vpack.c.b16 %v8612, %v8607
    %v9028 = vpack.c.b16 %v8613, %v8608
    %v9029 = vpack.c.b16 %v8619, %v8614
    %v9030 = vpack.c.b16 %v8620, %v8615
    %v9031 = vpack.c.b16 %v8621, %v8616
    %v9032 = vpack.c.b16 %v8622, %v8617
    %v9033 = vpack.c.b16 %v8623, %v8618
    %v9034 = vpack.c.b16 %v8629, %v8624
    %v9035 = vpack.c.b16 %v8630, %v8625
    %v9036 = vpack.c.b16 %v8631, %v8626
    %v9037 = vpack.c.b16 %v8632, %v8627
    %v9038 = vpack.c.b16 %v8633, %v8628
    %v9039 = vpack.c.b16 %v8639, %v8634
    %v9040 = vpack.c.b16 %v8640, %v8635
    %v9041 = vpack.c.b16 %v8641, %v8636
    %v9042 = vpack.c.b16 %v8642, %v8637
    %v9043 = vpack.c.b16 %v8643, %v8638
    %v9044 = vpack.c.b16 %v8649, %v8644
    %v9045 = vpack.c.b16 %v8650, %v8645
    %v9046 = vpack.c.b16 %v8651, %v8646
    %v9047 = vpack.c.b16 %v8652, %v8647
    %v9048 = vpack.c.b16 %v8653, %v8648
    %v9049 = vpack.c.b16 %v8659, %v8654
    %v9050 = vpack.c.b16 %v8660, %v8655
    %v9051 = vpack.c.b16 %v8661, %v8656
    %v9052 = vpack.c.b16 %v8662, %v8657
    %v9053 = vpack.c.b16 %v8663, %v8658
    %v9054 = vpack.c.b16 %v8669, %v8664
    %v9055 = vpack.c.b16 %v8670, %v8665
    %v9056 = vpack.c.b16 %v8671, %v8666
    %v9057 = vpack.c.b16 %v8672, %v8667
    %v9058 = vpack.c.b16 %v8673, %v8668
    %v9059 = vpack.c.b16 %v8679, %v8674
    %v9060 = vpack.c.b16 %v8680, %v8675
    %v9061 = vpack.c.b16 %v8681, %v8676
    %v9062 = vpack.c.b16 %v8682, %v8677
    %v9063 = vpack.c.b16 %v8683, %v8678
    %v9064 = vpack.c.b16 %v8689, %v8684
    %v9065 = vpack.c.b16 %v8690, %v8685
    %v9066 = vpack.c.b16 %v8691, %v8686
    %v9067 = vpack.c.b16 %v8692, %v8687
    %v9068 = vpack.c.b16 %v8693, %v8688
    %v9069 = vpack.c.b16 %v8699, %v8694
    %v9070 = vpack.c.b16 %v8700, %v8695
    %v9071 = vpack.c.b16 %v8701, %v8696
    %v9072 = vpack.c.b16 %v8702, %v8697
    %v9073 = vpack.c.b16 %v8703, %v8698
    %v9074 = vpack.c.b16 %v8709, %v8704
    %v9075 = vpack.c.b16 %v8710, %v8705
    %v9076 = vpack.c.b16 %v8711, %v8706
    %v9077 = vpack.c.b16 %v8712, %v8707
    %v9078 = vpack.c.b16 %v8713, %v8708
    %v9079 = vpack.c.b16 %v8719, %v8714
    %v9080 = vpack.c.b16 %v8720, %v8715
    %v9081 = vpack.c.b16 %v8721, %v8716
    %v9082 = vpack.c.b16 %v8722, %v8717
    %v9083 = vpack.c.b16 %v8723, %v8718
    %v9084 = vpack.c.b16 %v8729, %v8724
    %v9085 = vpack.c.b16 %v8730, %v8725
    %v9086 = vpack.c.b16 %v8731, %v8726
    %v9087 = vpack.c.b16 %v8732, %v8727
    %v9088 = vpack.c.b16 %v8733, %v8728
    %v9089 = vpack.c.b16 %v8739, %v8734
    %v9090 = vpack.c.b16 %v8740, %v8735
    %v9091 = vpack.c.b16 %v8741, %v8736
    %v9092 = vpack.c.b16 %v8742, %v8737
    %v9093 = vpack.c.b16 %v8743, %v8738
    %v9094 = vpack.c.b16 %v8749, %v8744
    %v9095 = vpack.c.b16 %v8750, %v8745
    %v9096 = vpack.c.b16 %v8751, %v8746
    %v9097 = vpack.c.b16 %v8752, %v8747
    %v9098 = vpack.c.b16 %v8753, %v8748
    %v9099 = vpack.c.b16 %v8759, %v8754
    %v9100 = vpack.c.b16 %v8760, %v8755
    %v9101 = vpack.c.b16 %v8761, %v8756
    %v9102 = vpack.c.b16 %v8762, %v8757
    %v9103 = vpack.c.b16 %v8763, %v8758
    %v9104 = vpack.c.b16 %v8769, %v8764
    %v9105 = vpack.c.b16 %v8770, %v8765
    %v9106 = vpack.c.b16 %v8771, %v8766
    %v9107 = vpack.c.b16 %v8772, %v8767
    %v9108 = vpack.c.b16 %v8773, %v8768
    %v9109 = vpack.c.b16 %v8779, %v8774
    %v9110 = vpack.c.b16 %v8780, %v8775
    %v9111 = vpack.c.b16 %v8781, %v8776
    %v9112 = vpack.c.b16 %v8782, %v8777
    %v9113 = vpack.c.b16 %v8783, %v8778
    %v9114 = vpack.c.b16 %v8789, %v8784
    %v9115 = vpack.c.b16 %v8790, %v8785
    %v9116 = vpack.c.b16 %v8791, %v8786
    %v9117 = vpack.c.b16 %v8792, %v8787
    %v9118 = vpack.c.b16 %v8793, %v8788
    %v9119 = vpack.c.b16 %v8799, %v8794
    %v9120 = vpack.c.b16 %v8800, %v8795
    %v9121 = vpack.c.b16 %v8801, %v8796
    %v9122 = vpack.c.b16 %v8802, %v8797
    %v9123 = vpack.c.b16 %v8803, %v8798
    %9444 = vmatprep.subr.bf16.mxu0 %v8840
    %9445 = vmatpush1.bf16.msra.mxu0 %v8839
    %9446 = vmatprep.subr.bf16.mxu0 %v8835
    %9447 = vmatpush1.bf16.msra.mxu0 %v8834
    %9448 = vmatprep.subr.bf16.mxu0 %v8830
    %9449 = vmatpush1.bf16.msra.mxu0 %v8829
    %9450 = vmatprep.subr.bf16.mxu0 %v8825
    %9451 = vmatpush1.bf16.msra.mxu0 %v8824
    %9452 = vmatprep.subr.bf16.mxu0 %v8820
    %9453 = vmatpush1.bf16.msra.mxu0 %v8819
    %9454 = vmatprep.subr.bf16.mxu0 %v8815
    %9455 = vmatpush1.bf16.msra.mxu0 %v8814
    %9456 = vmatprep.subr.bf16.mxu0 %v8810
    %9457 = vmatpush1.bf16.msra.mxu0 %v8809
    %9458 = vmatprep.subr.bf16.mxu0 %v8805
    %9459 = vmatpush1.bf16.msra.mxu0 %v8804
    %9460 = vmatprep.subr.bf16.mxu0 %v8880
    %9461 = vmatpush2.bf16.msra.mxu0 %v8879
    %9462 = vmatprep.subr.bf16.mxu0 %v8875
    %9463 = vmatpush2.bf16.msra.mxu0 %v8874
    %9464 = vmatprep.subr.bf16.mxu0 %v8870
    %9465 = vmatpush2.bf16.msra.mxu0 %v8869
    %9466 = vmatprep.subr.bf16.mxu0 %v8865
    %9467 = vmatpush2.bf16.msra.mxu0 %v8864
    %9468 = vmatprep.subr.bf16.mxu0 %v8860
    %9469 = vmatpush2.bf16.msra.mxu0 %v8859
    %9470 = vmatprep.subr.bf16.mxu0 %v8855
    %9471 = vmatpush2.bf16.msra.mxu0 %v8854
    %9472 = vmatprep.subr.bf16.mxu0 %v8850
    %9473 = vmatpush2.bf16.msra.mxu0 %v8849
    %9474 = vmatprep.subr.bf16.mxu0 %v8845
    %9475 = vmatpush2.bf16.msra.mxu0 %v8844
    %9476 = vmatprep.mubr.bf16.mxu0 %v2378
    %9477 = vmatmul.mubr.bf16.gmra.mxu0 %v2377
    %v9478 = vpop.f32.mrf.mxu0
    %v9479 = vadd.f32 0.0, %v9478
    %v9480 = vpop.f32.mrf.mxu0
    %v9481 = vadd.f32 0.0, %v9480
    %v9482 = vpop.f32.mrf.mxu0
    %v9483 = vadd.f32 0.0, %v9482
    %v9484 = vpop.f32.mrf.mxu0
    %v9485 = vadd.f32 0.0, %v9484
    %9486 = vmatprep.mubr.bf16.mxu0 %v2392
    %9487 = vmatmul.mubr.bf16.gmra.mxu0 %v2391
    %v9488 = vpop.f32.mrf.mxu0
    %v9489 = vadd.f32 0.0, %v9488
    %v9490 = vpop.f32.mrf.mxu0
    %v9491 = vadd.f32 0.0, %v9490
    %v9492 = vpop.f32.mrf.mxu0
    %v9493 = vadd.f32 0.0, %v9492
    %v9494 = vpop.f32.mrf.mxu0
    %v9495 = vadd.f32 0.0, %v9494
    %9496 = vmatprep.mubr.bf16.mxu0 %v2406
    %9497 = vmatmul.mubr.bf16.gmra.mxu0 %v2405
    %v9498 = vpop.f32.mrf.mxu0
    %v9499 = vadd.f32 0.0, %v9498
    %v9500 = vpop.f32.mrf.mxu0
    %v9501 = vadd.f32 0.0, %v9500
    %v9502 = vpop.f32.mrf.mxu0
    %v9503 = vadd.f32 0.0, %v9502
    %v9504 = vpop.f32.mrf.mxu0
    %v9505 = vadd.f32 0.0, %v9504
    %9506 = vmatprep.mubr.bf16.mxu0 %v2420
    %9507 = vmatmul.mubr.bf16.gmra.mxu0 %v2419
    %v9508 = vpop.f32.mrf.mxu0
    %v9509 = vadd.f32 0.0, %v9508
    %v9510 = vpop.f32.mrf.mxu0
    %v9511 = vadd.f32 0.0, %v9510
    %v9512 = vpop.f32.mrf.mxu0
    %v9513 = vadd.f32 0.0, %v9512
    %v9514 = vpop.f32.mrf.mxu0
    %v9515 = vadd.f32 0.0, %v9514
    %9516 = vmatprep.mubr.bf16.mxu0 %v2434
    %9517 = vmatmul.mubr.bf16.gmra.mxu0 %v2433
    %v9518 = vpop.f32.mrf.mxu0
    %v9519 = vadd.f32 0.0, %v9518
    %v9520 = vpop.f32.mrf.mxu0
    %v9521 = vadd.f32 0.0, %v9520
    %v9522 = vpop.f32.mrf.mxu0
    %v9523 = vadd.f32 0.0, %v9522
    %v9524 = vpop.f32.mrf.mxu0
    %v9525 = vadd.f32 0.0, %v9524
    %9526 = vmatprep.mubr.bf16.mxu0 %v2448
    %9527 = vmatmul.mubr.bf16.gmra.mxu0 %v2447
    %v9528 = vpop.f32.mrf.mxu0
    %v9529 = vadd.f32 0.0, %v9528
    %v9530 = vpop.f32.mrf.mxu0
    %v9531 = vadd.f32 0.0, %v9530
    %v9532 = vpop.f32.mrf.mxu0
    %v9533 = vadd.f32 0.0, %v9532
    %v9534 = vpop.f32.mrf.mxu0
    %v9535 = vadd.f32 0.0, %v9534
    %9536 = vmatprep.mubr.bf16.mxu0 %v2462
    %9537 = vmatmul.mubr.bf16.gmra.mxu0 %v2461
    %v9538 = vpop.f32.mrf.mxu0
    %v9539 = vadd.f32 0.0, %v9538
    %v9540 = vpop.f32.mrf.mxu0
    %v9541 = vadd.f32 0.0, %v9540
    %v9542 = vpop.f32.mrf.mxu0
    %v9543 = vadd.f32 0.0, %v9542
    %v9544 = vpop.f32.mrf.mxu0
    %v9545 = vadd.f32 0.0, %v9544
    %9546 = vmatprep.mubr.bf16.mxu0 %v2476
    %9547 = vmatmul.mubr.bf16.gmra.mxu0 %v2475
    %v9548 = vpop.f32.mrf.mxu0
    %v9549 = vadd.f32 0.0, %v9548
    %v9550 = vpop.f32.mrf.mxu0
    %v9551 = vadd.f32 0.0, %v9550
    %v9552 = vpop.f32.mrf.mxu0
    %v9553 = vadd.f32 0.0, %v9552
    %v9554 = vpop.f32.mrf.mxu0
    %v9555 = vadd.f32 0.0, %v9554
    %9556 = vmatprep.mubr.bf16.mxu0 %v2490
    %9557 = vmatmul.mubr.bf16.gmra.mxu0 %v2489
    %v9558 = vpop.f32.mrf.mxu0
    %v9559 = vadd.f32 0.0, %v9558
    %v9560 = vpop.f32.mrf.mxu0
    %v9561 = vadd.f32 0.0, %v9560
    %v9562 = vpop.f32.mrf.mxu0
    %v9563 = vadd.f32 0.0, %v9562
    %v9564 = vpop.f32.mrf.mxu0
    %v9565 = vadd.f32 0.0, %v9564
    %9566 = vmatprep.mubr.bf16.mxu0 %v2504
    %9567 = vmatmul.mubr.bf16.gmra.mxu0 %v2503
    %v9568 = vpop.f32.mrf.mxu0
    %v9569 = vadd.f32 0.0, %v9568
    %v9570 = vpop.f32.mrf.mxu0
    %v9571 = vadd.f32 0.0, %v9570
    %v9572 = vpop.f32.mrf.mxu0
    %v9573 = vadd.f32 0.0, %v9572
    %v9574 = vpop.f32.mrf.mxu0
    %v9575 = vadd.f32 0.0, %v9574
    %9576 = vmatprep.mubr.bf16.mxu0 %v2518
    %9577 = vmatmul.mubr.bf16.gmra.mxu0 %v2517
    %v9578 = vpop.f32.mrf.mxu0
    %v9579 = vadd.f32 0.0, %v9578
    %v9580 = vpop.f32.mrf.mxu0
    %v9581 = vadd.f32 0.0, %v9580
    %v9582 = vpop.f32.mrf.mxu0
    %v9583 = vadd.f32 0.0, %v9582
    %v9584 = vpop.f32.mrf.mxu0
    %v9585 = vadd.f32 0.0, %v9584
    %9586 = vmatprep.mubr.bf16.mxu0 %v2532
    %9587 = vmatmul.mubr.bf16.gmra.mxu0 %v2531
    %v9588 = vpop.f32.mrf.mxu0
    %v9589 = vadd.f32 0.0, %v9588
    %v9590 = vpop.f32.mrf.mxu0
    %v9591 = vadd.f32 0.0, %v9590
    %v9592 = vpop.f32.mrf.mxu0
    %v9593 = vadd.f32 0.0, %v9592
    %v9594 = vpop.f32.mrf.mxu0
    %v9595 = vadd.f32 0.0, %v9594
    %9596 = vmatprep.mubr.bf16.mxu0 %v2546
    %9597 = vmatmul.mubr.bf16.gmra.mxu0 %v2545
    %v9598 = vpop.f32.mrf.mxu0
    %v9599 = vadd.f32 0.0, %v9598
    %v9600 = vpop.f32.mrf.mxu0
    %v9601 = vadd.f32 0.0, %v9600
    %v9602 = vpop.f32.mrf.mxu0
    %v9603 = vadd.f32 0.0, %v9602
    %v9604 = vpop.f32.mrf.mxu0
    %v9605 = vadd.f32 0.0, %v9604
    %9606 = vmatprep.mubr.bf16.mxu0 %v2560
    %9607 = vmatmul.mubr.bf16.gmra.mxu0 %v2559
    %v9608 = vpop.f32.mrf.mxu0
    %v9609 = vadd.f32 0.0, %v9608
    %v9610 = vpop.f32.mrf.mxu0
    %v9611 = vadd.f32 0.0, %v9610
    %v9612 = vpop.f32.mrf.mxu0
    %v9613 = vadd.f32 0.0, %v9612
    %v9614 = vpop.f32.mrf.mxu0
    %v9615 = vadd.f32 0.0, %v9614
    %9616 = vmatprep.mubr.bf16.mxu0 %v2574
    %9617 = vmatmul.mubr.bf16.gmra.mxu0 %v2573
    %v9618 = vpop.f32.mrf.mxu0
    %v9619 = vadd.f32 0.0, %v9618
    %v9620 = vpop.f32.mrf.mxu0
    %v9621 = vadd.f32 0.0, %v9620
    %v9622 = vpop.f32.mrf.mxu0
    %v9623 = vadd.f32 0.0, %v9622
    %v9624 = vpop.f32.mrf.mxu0
    %v9625 = vadd.f32 0.0, %v9624
    %9626 = vmatprep.mubr.bf16.mxu0 %v2588
    %9627 = vmatmul.mubr.bf16.gmra.mxu0 %v2587
    %v9628 = vpop.f32.mrf.mxu0
    %v9629 = vadd.f32 0.0, %v9628
    %v9630 = vpop.f32.mrf.mxu0
    %v9631 = vadd.f32 0.0, %v9630
    %v9632 = vpop.f32.mrf.mxu0
    %v9633 = vadd.f32 0.0, %v9632
    %v9634 = vpop.f32.mrf.mxu0
    %v9635 = vadd.f32 0.0, %v9634
    %9636 = vdwg.mxu0
    %9637 = vmatprep.subr.bf16.mxu0 %v8920
    %9638 = vmatpush1.bf16.msra.mxu0 %v8919
    %9639 = vmatprep.subr.bf16.mxu0 %v8915
    %9640 = vmatpush1.bf16.msra.mxu0 %v8914
    %9641 = vmatprep.subr.bf16.mxu0 %v8910
    %9642 = vmatpush1.bf16.msra.mxu0 %v8909
    %9643 = vmatprep.subr.bf16.mxu0 %v8905
    %9644 = vmatpush1.bf16.msra.mxu0 %v8904
    %9645 = vmatprep.subr.bf16.mxu0 %v8900
    %9646 = vmatpush1.bf16.msra.mxu0 %v8899
    %9647 = vmatprep.subr.bf16.mxu0 %v8895
    %9648 = vmatpush1.bf16.msra.mxu0 %v8894
    %9649 = vmatprep.subr.bf16.mxu0 %v8890
    %9650 = vmatpush1.bf16.msra.mxu0 %v8889
    %9651 = vmatprep.subr.bf16.mxu0 %v8885
    %9652 = vmatpush1.bf16.msra.mxu0 %v8884
    %9653 = vmatprep.subr.bf16.mxu0 %v8960
    %9654 = vmatpush2.bf16.msra.mxu0 %v8959
    %9655 = vmatprep.subr.bf16.mxu0 %v8955
    %9656 = vmatpush2.bf16.msra.mxu0 %v8954
    %9657 = vmatprep.subr.bf16.mxu0 %v8950
    %9658 = vmatpush2.bf16.msra.mxu0 %v8949
    %9659 = vmatprep.subr.bf16.mxu0 %v8945
    %9660 = vmatpush2.bf16.msra.mxu0 %v8944
    %9661 = vmatprep.subr.bf16.mxu0 %v8940
    %9662 = vmatpush2.bf16.msra.mxu0 %v8939
    %9663 = vmatprep.subr.bf16.mxu0 %v8935
    %9664 = vmatpush2.bf16.msra.mxu0 %v8934
    %9665 = vmatprep.subr.bf16.mxu0 %v8930
    %9666 = vmatpush2.bf16.msra.mxu0 %v8929
    %9667 = vmatprep.subr.bf16.mxu0 %v8925
    %9668 = vmatpush2.bf16.msra.mxu0 %v8924
    %9669 = vmatprep.mubr.bf16.mxu0 %v2380
    %9670 = vmatmul.mubr.bf16.gmra.mxu0 %v2379
    %v9671 = vpop.f32.mrf.mxu0
    %v9672 = vadd.f32 %v9479, %v9671
    %v9673 = vpop.f32.mrf.mxu0
    %v9674 = vadd.f32 %v9481, %v9673
    %v9675 = vpop.f32.mrf.mxu0
    %v9676 = vadd.f32 %v9483, %v9675
    %v9677 = vpop.f32.mrf.mxu0
    %v9678 = vadd.f32 %v9485, %v9677
    %9679 = vmatprep.mubr.bf16.mxu0 %v2394
    %9680 = vmatmul.mubr.bf16.gmra.mxu0 %v2393
    %v9681 = vpop.f32.mrf.mxu0
    %v9682 = vadd.f32 %v9489, %v9681
    %v9683 = vpop.f32.mrf.mxu0
    %v9684 = vadd.f32 %v9491, %v9683
    %v9685 = vpop.f32.mrf.mxu0
    %v9686 = vadd.f32 %v9493, %v9685
    %v9687 = vpop.f32.mrf.mxu0
    %v9688 = vadd.f32 %v9495, %v9687
    %9689 = vmatprep.mubr.bf16.mxu0 %v2408
    %9690 = vmatmul.mubr.bf16.gmra.mxu0 %v2407
    %v9691 = vpop.f32.mrf.mxu0
    %v9692 = vadd.f32 %v9499, %v9691
    %v9693 = vpop.f32.mrf.mxu0
    %v9694 = vadd.f32 %v9501, %v9693
    %v9695 = vpop.f32.mrf.mxu0
    %v9696 = vadd.f32 %v9503, %v9695
    %v9697 = vpop.f32.mrf.mxu0
    %v9698 = vadd.f32 %v9505, %v9697
    %9699 = vmatprep.mubr.bf16.mxu0 %v2422
    %9700 = vmatmul.mubr.bf16.gmra.mxu0 %v2421
    %v9701 = vpop.f32.mrf.mxu0
    %v9702 = vadd.f32 %v9509, %v9701
    %v9703 = vpop.f32.mrf.mxu0
    %v9704 = vadd.f32 %v9511, %v9703
    %v9705 = vpop.f32.mrf.mxu0
    %v9706 = vadd.f32 %v9513, %v9705
    %v9707 = vpop.f32.mrf.mxu0
    %v9708 = vadd.f32 %v9515, %v9707
    %9709 = vmatprep.mubr.bf16.mxu0 %v2436
    %9710 = vmatmul.mubr.bf16.gmra.mxu0 %v2435
    %v9711 = vpop.f32.mrf.mxu0
    %v9712 = vadd.f32 %v9519, %v9711
    %v9713 = vpop.f32.mrf.mxu0
    %v9714 = vadd.f32 %v9521, %v9713
    %v9715 = vpop.f32.mrf.mxu0
    %v9716 = vadd.f32 %v9523, %v9715
    %v9717 = vpop.f32.mrf.mxu0
    %v9718 = vadd.f32 %v9525, %v9717
    %9719 = vmatprep.mubr.bf16.mxu0 %v2450
    %9720 = vmatmul.mubr.bf16.gmra.mxu0 %v2449
    %v9721 = vpop.f32.mrf.mxu0
    %v9722 = vadd.f32 %v9529, %v9721
    %v9723 = vpop.f32.mrf.mxu0
    %v9724 = vadd.f32 %v9531, %v9723
    %v9725 = vpop.f32.mrf.mxu0
    %v9726 = vadd.f32 %v9533, %v9725
    %v9727 = vpop.f32.mrf.mxu0
    %v9728 = vadd.f32 %v9535, %v9727
    %9729 = vmatprep.mubr.bf16.mxu0 %v2464
    %9730 = vmatmul.mubr.bf16.gmra.mxu0 %v2463
    %v9731 = vpop.f32.mrf.mxu0
    %v9732 = vadd.f32 %v9539, %v9731
    %v9733 = vpop.f32.mrf.mxu0
    %v9734 = vadd.f32 %v9541, %v9733
    %v9735 = vpop.f32.mrf.mxu0
    %v9736 = vadd.f32 %v9543, %v9735
    %v9737 = vpop.f32.mrf.mxu0
    %v9738 = vadd.f32 %v9545, %v9737
    %9739 = vmatprep.mubr.bf16.mxu0 %v2478
    %9740 = vmatmul.mubr.bf16.gmra.mxu0 %v2477
    %v9741 = vpop.f32.mrf.mxu0
    %v9742 = vadd.f32 %v9549, %v9741
    %v9743 = vpop.f32.mrf.mxu0
    %v9744 = vadd.f32 %v9551, %v9743
    %v9745 = vpop.f32.mrf.mxu0
    %v9746 = vadd.f32 %v9553, %v9745
    %v9747 = vpop.f32.mrf.mxu0
    %v9748 = vadd.f32 %v9555, %v9747
    %9749 = vmatprep.mubr.bf16.mxu0 %v2492
    %9750 = vmatmul.mubr.bf16.gmra.mxu0 %v2491
    %v9751 = vpop.f32.mrf.mxu0
    %v9752 = vadd.f32 %v9559, %v9751
    %v9753 = vpop.f32.mrf.mxu0
    %v9754 = vadd.f32 %v9561, %v9753
    %v9755 = vpop.f32.mrf.mxu0
    %v9756 = vadd.f32 %v9563, %v9755
    %v9757 = vpop.f32.mrf.mxu0
    %v9758 = vadd.f32 %v9565, %v9757
    %9759 = vmatprep.mubr.bf16.mxu0 %v2506
    %9760 = vmatmul.mubr.bf16.gmra.mxu0 %v2505
    %v9761 = vpop.f32.mrf.mxu0
    %v9762 = vadd.f32 %v9569, %v9761
    %v9763 = vpop.f32.mrf.mxu0
    %v9764 = vadd.f32 %v9571, %v9763
    %v9765 = vpop.f32.mrf.mxu0
    %v9766 = vadd.f32 %v9573, %v9765
    %v9767 = vpop.f32.mrf.mxu0
    %v9768 = vadd.f32 %v9575, %v9767
    %9769 = vmatprep.mubr.bf16.mxu0 %v2520
    %9770 = vmatmul.mubr.bf16.gmra.mxu0 %v2519
    %v9771 = vpop.f32.mrf.mxu0
    %v9772 = vadd.f32 %v9579, %v9771
    %v9773 = vpop.f32.mrf.mxu0
    %v9774 = vadd.f32 %v9581, %v9773
    %v9775 = vpop.f32.mrf.mxu0
    %v9776 = vadd.f32 %v9583, %v9775
    %v9777 = vpop.f32.mrf.mxu0
    %v9778 = vadd.f32 %v9585, %v9777
    %9779 = vmatprep.mubr.bf16.mxu0 %v2534
    %9780 = vmatmul.mubr.bf16.gmra.mxu0 %v2533
    %v9781 = vpop.f32.mrf.mxu0
    %v9782 = vadd.f32 %v9589, %v9781
    %v9783 = vpop.f32.mrf.mxu0
    %v9784 = vadd.f32 %v9591, %v9783
    %v9785 = vpop.f32.mrf.mxu0
    %v9786 = vadd.f32 %v9593, %v9785
    %v9787 = vpop.f32.mrf.mxu0
    %v9788 = vadd.f32 %v9595, %v9787
    %9789 = vmatprep.mubr.bf16.mxu0 %v2548
    %9790 = vmatmul.mubr.bf16.gmra.mxu0 %v2547
    %v9791 = vpop.f32.mrf.mxu0
    %v9792 = vadd.f32 %v9599, %v9791
    %v9793 = vpop.f32.mrf.mxu0
    %v9794 = vadd.f32 %v9601, %v9793
    %v9795 = vpop.f32.mrf.mxu0
    %v9796 = vadd.f32 %v9603, %v9795
    %v9797 = vpop.f32.mrf.mxu0
    %v9798 = vadd.f32 %v9605, %v9797
    %9799 = vmatprep.mubr.bf16.mxu0 %v2562
    %9800 = vmatmul.mubr.bf16.gmra.mxu0 %v2561
    %v9801 = vpop.f32.mrf.mxu0
    %v9802 = vadd.f32 %v9609, %v9801
    %v9803 = vpop.f32.mrf.mxu0
    %v9804 = vadd.f32 %v9611, %v9803
    %v9805 = vpop.f32.mrf.mxu0
    %v9806 = vadd.f32 %v9613, %v9805
    %v9807 = vpop.f32.mrf.mxu0
    %v9808 = vadd.f32 %v9615, %v9807
    %9809 = vmatprep.mubr.bf16.mxu0 %v2576
    %9810 = vmatmul.mubr.bf16.gmra.mxu0 %v2575
    %v9811 = vpop.f32.mrf.mxu0
    %v9812 = vadd.f32 %v9619, %v9811
    %v9813 = vpop.f32.mrf.mxu0
    %v9814 = vadd.f32 %v9621, %v9813
    %v9815 = vpop.f32.mrf.mxu0
    %v9816 = vadd.f32 %v9623, %v9815
    %v9817 = vpop.f32.mrf.mxu0
    %v9818 = vadd.f32 %v9625, %v9817
    %9819 = vmatprep.mubr.bf16.mxu0 %v2590
    %9820 = vmatmul.mubr.bf16.gmra.mxu0 %v2589
    %v9821 = vpop.f32.mrf.mxu0
    %v9822 = vadd.f32 %v9629, %v9821
    %v9823 = vpop.f32.mrf.mxu0
    %v9824 = vadd.f32 %v9631, %v9823
    %v9825 = vpop.f32.mrf.mxu0
    %v9826 = vadd.f32 %v9633, %v9825
    %v9827 = vpop.f32.mrf.mxu0
    %v9828 = vadd.f32 %v9635, %v9827
    %9829 = vdwg.mxu0
    %9830 = vmatprep.subr.bf16.mxu0 %v9000
    %9831 = vmatpush1.bf16.msra.mxu0 %v8999
    %9832 = vmatprep.subr.bf16.mxu0 %v8995
    %9833 = vmatpush1.bf16.msra.mxu0 %v8994
    %9834 = vmatprep.subr.bf16.mxu0 %v8990
    %9835 = vmatpush1.bf16.msra.mxu0 %v8989
    %9836 = vmatprep.subr.bf16.mxu0 %v8985
    %9837 = vmatpush1.bf16.msra.mxu0 %v8984
    %9838 = vmatprep.subr.bf16.mxu0 %v8980
    %9839 = vmatpush1.bf16.msra.mxu0 %v8979
    %9840 = vmatprep.subr.bf16.mxu0 %v8975
    %9841 = vmatpush1.bf16.msra.mxu0 %v8974
    %9842 = vmatprep.subr.bf16.mxu0 %v8970
    %9843 = vmatpush1.bf16.msra.mxu0 %v8969
    %9844 = vmatprep.subr.bf16.mxu0 %v8965
    %9845 = vmatpush1.bf16.msra.mxu0 %v8964
    %9846 = vmatprep.subr.bf16.mxu0 %v9040
    %9847 = vmatpush2.bf16.msra.mxu0 %v9039
    %9848 = vmatprep.subr.bf16.mxu0 %v9035
    %9849 = vmatpush2.bf16.msra.mxu0 %v9034
    %9850 = vmatprep.subr.bf16.mxu0 %v9030
    %9851 = vmatpush2.bf16.msra.mxu0 %v9029
    %9852 = vmatprep.subr.bf16.mxu0 %v9025
    %9853 = vmatpush2.bf16.msra.mxu0 %v9024
    %9854 = vmatprep.subr.bf16.mxu0 %v9020
    %9855 = vmatpush2.bf16.msra.mxu0 %v9019
    %9856 = vmatprep.subr.bf16.mxu0 %v9015
    %9857 = vmatpush2.bf16.msra.mxu0 %v9014
    %9858 = vmatprep.subr.bf16.mxu0 %v9010
    %9859 = vmatpush2.bf16.msra.mxu0 %v9009
    %9860 = vmatprep.subr.bf16.mxu0 %v9005
    %9861 = vmatpush2.bf16.msra.mxu0 %v9004
    %9862 = vmatprep.mubr.bf16.mxu0 %v2382
    %9863 = vmatmul.mubr.bf16.gmra.mxu0 %v2381
    %v9864 = vpop.f32.mrf.mxu0
    %v9865 = vadd.f32 %v9672, %v9864
    %v9866 = vpop.f32.mrf.mxu0
    %v9867 = vadd.f32 %v9674, %v9866
    %v9868 = vpop.f32.mrf.mxu0
    %v9869 = vadd.f32 %v9676, %v9868
    %v9870 = vpop.f32.mrf.mxu0
    %v9871 = vadd.f32 %v9678, %v9870
    %9872 = vmatprep.mubr.bf16.mxu0 %v2396
    %9873 = vmatmul.mubr.bf16.gmra.mxu0 %v2395
    %v9874 = vpop.f32.mrf.mxu0
    %v9875 = vadd.f32 %v9682, %v9874
    %v9876 = vpop.f32.mrf.mxu0
    %v9877 = vadd.f32 %v9684, %v9876
    %v9878 = vpop.f32.mrf.mxu0
    %v9879 = vadd.f32 %v9686, %v9878
    %v9880 = vpop.f32.mrf.mxu0
    %v9881 = vadd.f32 %v9688, %v9880
    %9882 = vmatprep.mubr.bf16.mxu0 %v2410
    %9883 = vmatmul.mubr.bf16.gmra.mxu0 %v2409
    %v9884 = vpop.f32.mrf.mxu0
    %v9885 = vadd.f32 %v9692, %v9884
    %v9886 = vpop.f32.mrf.mxu0
    %v9887 = vadd.f32 %v9694, %v9886
    %v9888 = vpop.f32.mrf.mxu0
    %v9889 = vadd.f32 %v9696, %v9888
    %v9890 = vpop.f32.mrf.mxu0
    %v9891 = vadd.f32 %v9698, %v9890
    %9892 = vmatprep.mubr.bf16.mxu0 %v2424
    %9893 = vmatmul.mubr.bf16.gmra.mxu0 %v2423
    %v9894 = vpop.f32.mrf.mxu0
    %v9895 = vadd.f32 %v9702, %v9894
    %v9896 = vpop.f32.mrf.mxu0
    %v9897 = vadd.f32 %v9704, %v9896
    %v9898 = vpop.f32.mrf.mxu0
    %v9899 = vadd.f32 %v9706, %v9898
    %v9900 = vpop.f32.mrf.mxu0
    %v9901 = vadd.f32 %v9708, %v9900
    %9902 = vmatprep.mubr.bf16.mxu0 %v2438
    %9903 = vmatmul.mubr.bf16.gmra.mxu0 %v2437
    %v9904 = vpop.f32.mrf.mxu0
    %v9905 = vadd.f32 %v9712, %v9904
    %v9906 = vpop.f32.mrf.mxu0
    %v9907 = vadd.f32 %v9714, %v9906
    %v9908 = vpop.f32.mrf.mxu0
    %v9909 = vadd.f32 %v9716, %v9908
    %v9910 = vpop.f32.mrf.mxu0
    %v9911 = vadd.f32 %v9718, %v9910
    %9912 = vmatprep.mubr.bf16.mxu0 %v2452
    %9913 = vmatmul.mubr.bf16.gmra.mxu0 %v2451
    %v9914 = vpop.f32.mrf.mxu0
    %v9915 = vadd.f32 %v9722, %v9914
    %v9916 = vpop.f32.mrf.mxu0
    %v9917 = vadd.f32 %v9724, %v9916
    %v9918 = vpop.f32.mrf.mxu0
    %v9919 = vadd.f32 %v9726, %v9918
    %v9920 = vpop.f32.mrf.mxu0
    %v9921 = vadd.f32 %v9728, %v9920
    %9922 = vmatprep.mubr.bf16.mxu0 %v2466
    %9923 = vmatmul.mubr.bf16.gmra.mxu0 %v2465
    %v9924 = vpop.f32.mrf.mxu0
    %v9925 = vadd.f32 %v9732, %v9924
    %v9926 = vpop.f32.mrf.mxu0
    %v9927 = vadd.f32 %v9734, %v9926
    %v9928 = vpop.f32.mrf.mxu0
    %v9929 = vadd.f32 %v9736, %v9928
    %v9930 = vpop.f32.mrf.mxu0
    %v9931 = vadd.f32 %v9738, %v9930
    %9932 = vmatprep.mubr.bf16.mxu0 %v2480
    %9933 = vmatmul.mubr.bf16.gmra.mxu0 %v2479
    %v9934 = vpop.f32.mrf.mxu0
    %v9935 = vadd.f32 %v9742, %v9934
    %v9936 = vpop.f32.mrf.mxu0
    %v9937 = vadd.f32 %v9744, %v9936
    %v9938 = vpop.f32.mrf.mxu0
    %v9939 = vadd.f32 %v9746, %v9938
    %v9940 = vpop.f32.mrf.mxu0
    %v9941 = vadd.f32 %v9748, %v9940
    %9942 = vmatprep.mubr.bf16.mxu0 %v2494
    %9943 = vmatmul.mubr.bf16.gmra.mxu0 %v2493
    %v9944 = vpop.f32.mrf.mxu0
    %v9945 = vadd.f32 %v9752, %v9944
    %v9946 = vpop.f32.mrf.mxu0
    %v9947 = vadd.f32 %v9754, %v9946
    %v9948 = vpop.f32.mrf.mxu0
    %v9949 = vadd.f32 %v9756, %v9948
    %v9950 = vpop.f32.mrf.mxu0
    %v9951 = vadd.f32 %v9758, %v9950
    %9952 = vmatprep.mubr.bf16.mxu0 %v2508
    %9953 = vmatmul.mubr.bf16.gmra.mxu0 %v2507
    %v9954 = vpop.f32.mrf.mxu0
    %v9955 = vadd.f32 %v9762, %v9954
    %v9956 = vpop.f32.mrf.mxu0
    %v9957 = vadd.f32 %v9764, %v9956
    %v9958 = vpop.f32.mrf.mxu0
    %v9959 = vadd.f32 %v9766, %v9958
    %v9960 = vpop.f32.mrf.mxu0
    %v9961 = vadd.f32 %v9768, %v9960
    %9962 = vmatprep.mubr.bf16.mxu0 %v2522
    %9963 = vmatmul.mubr.bf16.gmra.mxu0 %v2521
    %v9964 = vpop.f32.mrf.mxu0
    %v9965 = vadd.f32 %v9772, %v9964
    %v9966 = vpop.f32.mrf.mxu0
    %v9967 = vadd.f32 %v9774, %v9966
    %v9968 = vpop.f32.mrf.mxu0
    %v9969 = vadd.f32 %v9776, %v9968
    %v9970 = vpop.f32.mrf.mxu0
    %v9971 = vadd.f32 %v9778, %v9970
    %9972 = vmatprep.mubr.bf16.mxu0 %v2536
    %9973 = vmatmul.mubr.bf16.gmra.mxu0 %v2535
    %v9974 = vpop.f32.mrf.mxu0
    %v9975 = vadd.f32 %v9782, %v9974
    %v9976 = vpop.f32.mrf.mxu0
    %v9977 = vadd.f32 %v9784, %v9976
    %v9978 = vpop.f32.mrf.mxu0
    %v9979 = vadd.f32 %v9786, %v9978
    %v9980 = vpop.f32.mrf.mxu0
    %v9981 = vadd.f32 %v9788, %v9980
    %9982 = vmatprep.mubr.bf16.mxu0 %v2550
    %9983 = vmatmul.mubr.bf16.gmra.mxu0 %v2549
    %v9984 = vpop.f32.mrf.mxu0
    %v9985 = vadd.f32 %v9792, %v9984
    %v9986 = vpop.f32.mrf.mxu0
    %v9987 = vadd.f32 %v9794, %v9986
    %v9988 = vpop.f32.mrf.mxu0
    %v9989 = vadd.f32 %v9796, %v9988
    %v9990 = vpop.f32.mrf.mxu0
    %v9991 = vadd.f32 %v9798, %v9990
    %9992 = vmatprep.mubr.bf16.mxu0 %v2564
    %9993 = vmatmul.mubr.bf16.gmra.mxu0 %v2563
    %v9994 = vpop.f32.mrf.mxu0
    %v9995 = vadd.f32 %v9802, %v9994
    %v9996 = vpop.f32.mrf.mxu0
    %v9997 = vadd.f32 %v9804, %v9996
    %v9998 = vpop.f32.mrf.mxu0
    %v9999 = vadd.f32 %v9806, %v9998
    %v10000 = vpop.f32.mrf.mxu0
    %v10001 = vadd.f32 %v9808, %v10000
    %10002 = vmatprep.mubr.bf16.mxu0 %v2578
    %10003 = vmatmul.mubr.bf16.gmra.mxu0 %v2577
    %v10004 = vpop.f32.mrf.mxu0
    %v10005 = vadd.f32 %v9812, %v10004
    %v10006 = vpop.f32.mrf.mxu0
    %v10007 = vadd.f32 %v9814, %v10006
    %v10008 = vpop.f32.mrf.mxu0
    %v10009 = vadd.f32 %v9816, %v10008
    %v10010 = vpop.f32.mrf.mxu0
    %v10011 = vadd.f32 %v9818, %v10010
    %10012 = vmatprep.mubr.bf16.mxu0 %v2592
    %10013 = vmatmul.mubr.bf16.gmra.mxu0 %v2591
    %v10014 = vpop.f32.mrf.mxu0
    %v10015 = vadd.f32 %v9822, %v10014
    %v10016 = vpop.f32.mrf.mxu0
    %v10017 = vadd.f32 %v9824, %v10016
    %v10018 = vpop.f32.mrf.mxu0
    %v10019 = vadd.f32 %v9826, %v10018
    %v10020 = vpop.f32.mrf.mxu0
    %v10021 = vadd.f32 %v9828, %v10020
    %10022 = vdwg.mxu0
    %10023 = vmatprep.subr.bf16.mxu0 %v9080
    %10024 = vmatpush1.bf16.msra.mxu0 %v9079
    %10025 = vmatprep.subr.bf16.mxu0 %v9075
    %10026 = vmatpush1.bf16.msra.mxu0 %v9074
    %10027 = vmatprep.subr.bf16.mxu0 %v9070
    %10028 = vmatpush1.bf16.msra.mxu0 %v9069
    %10029 = vmatprep.subr.bf16.mxu0 %v9065
    %10030 = vmatpush1.bf16.msra.mxu0 %v9064
    %10031 = vmatprep.subr.bf16.mxu0 %v9060
    %10032 = vmatpush1.bf16.msra.mxu0 %v9059
    %10033 = vmatprep.subr.bf16.mxu0 %v9055
    %10034 = vmatpush1.bf16.msra.mxu0 %v9054
    %10035 = vmatprep.subr.bf16.mxu0 %v9050
    %10036 = vmatpush1.bf16.msra.mxu0 %v9049
    %10037 = vmatprep.subr.bf16.mxu0 %v9045
    %10038 = vmatpush1.bf16.msra.mxu0 %v9044
    %10039 = vmatprep.subr.bf16.mxu0 %v9120
    %10040 = vmatpush2.bf16.msra.mxu0 %v9119
    %10041 = vmatprep.subr.bf16.mxu0 %v9115
    %10042 = vmatpush2.bf16.msra.mxu0 %v9114
    %10043 = vmatprep.subr.bf16.mxu0 %v9110
    %10044 = vmatpush2.bf16.msra.mxu0 %v9109
    %10045 = vmatprep.subr.bf16.mxu0 %v9105
    %10046 = vmatpush2.bf16.msra.mxu0 %v9104
    %10047 = vmatprep.subr.bf16.mxu0 %v9100
    %10048 = vmatpush2.bf16.msra.mxu0 %v9099
    %10049 = vmatprep.subr.bf16.mxu0 %v9095
    %10050 = vmatpush2.bf16.msra.mxu0 %v9094
    %10051 = vmatprep.subr.bf16.mxu0 %v9090
    %10052 = vmatpush2.bf16.msra.mxu0 %v9089
    %10053 = vmatprep.subr.bf16.mxu0 %v9085
    %10054 = vmatpush2.bf16.msra.mxu0 %v9084
    %10055 = vmatprep.mubr.bf16.mxu0 %v2984
    %10056 = vmatmul.mubr.bf16.gmra.mxu0 %v2383
    %v10057 = vpop.f32.mrf.mxu0
    %v10058 = vadd.f32 %v9865, %v10057
    %v10059 = vpop.f32.mrf.mxu0
    %v10060 = vadd.f32 %v9867, %v10059
    %v10061 = vpop.f32.mrf.mxu0
    %v10062 = vadd.f32 %v9869, %v10061
    %v10063 = vpop.f32.mrf.mxu0
    %v10064 = vadd.f32 %v9871, %v10063
    %10065 = vmatprep.mubr.bf16.mxu0 %v2985
    %10066 = vmatmul.mubr.bf16.gmra.mxu0 %v2397
    %v10067 = vpop.f32.mrf.mxu0
    %v10068 = vadd.f32 %v9875, %v10067
    %v10069 = vpop.f32.mrf.mxu0
    %v10070 = vadd.f32 %v9877, %v10069
    %v10071 = vpop.f32.mrf.mxu0
    %v10072 = vadd.f32 %v9879, %v10071
    %v10073 = vpop.f32.mrf.mxu0
    %v10074 = vadd.f32 %v9881, %v10073
    %10075 = vmatprep.mubr.bf16.mxu0 %v2986
    %10076 = vmatmul.mubr.bf16.gmra.mxu0 %v2411
    %v10077 = vpop.f32.mrf.mxu0
    %v10078 = vadd.f32 %v9885, %v10077
    %v10079 = vpop.f32.mrf.mxu0
    %v10080 = vadd.f32 %v9887, %v10079
    %v10081 = vpop.f32.mrf.mxu0
    %v10082 = vadd.f32 %v9889, %v10081
    %v10083 = vpop.f32.mrf.mxu0
    %v10084 = vadd.f32 %v9891, %v10083
    %10085 = vmatprep.mubr.bf16.mxu0 %v2987
    %10086 = vmatmul.mubr.bf16.gmra.mxu0 %v2425
    %v10087 = vpop.f32.mrf.mxu0
    %v10088 = vadd.f32 %v9895, %v10087
    %v10089 = vpop.f32.mrf.mxu0
    %v10090 = vadd.f32 %v9897, %v10089
    %v10091 = vpop.f32.mrf.mxu0
    %v10092 = vadd.f32 %v9899, %v10091
    %v10093 = vpop.f32.mrf.mxu0
    %v10094 = vadd.f32 %v9901, %v10093
    %10095 = vmatprep.mubr.bf16.mxu0 %v2988
    %10096 = vmatmul.mubr.bf16.gmra.mxu0 %v2439
    %v10097 = vpop.f32.mrf.mxu0
    %v10098 = vadd.f32 %v9905, %v10097
    %v10099 = vpop.f32.mrf.mxu0
    %v10100 = vadd.f32 %v9907, %v10099
    %v10101 = vpop.f32.mrf.mxu0
    %v10102 = vadd.f32 %v9909, %v10101
    %v10103 = vpop.f32.mrf.mxu0
    %v10104 = vadd.f32 %v9911, %v10103
    %10105 = vmatprep.mubr.bf16.mxu0 %v2989
    %10106 = vmatmul.mubr.bf16.gmra.mxu0 %v2453
    %v10107 = vpop.f32.mrf.mxu0
    %v10108 = vadd.f32 %v9915, %v10107
    %v10109 = vpop.f32.mrf.mxu0
    %v10110 = vadd.f32 %v9917, %v10109
    %v10111 = vpop.f32.mrf.mxu0
    %v10112 = vadd.f32 %v9919, %v10111
    %v10113 = vpop.f32.mrf.mxu0
    %v10114 = vadd.f32 %v9921, %v10113
    %10115 = vmatprep.mubr.bf16.mxu0 %v2990
    %10116 = vmatmul.mubr.bf16.gmra.mxu0 %v2467
    %v10117 = vpop.f32.mrf.mxu0
    %v10118 = vadd.f32 %v9925, %v10117
    %v10119 = vpop.f32.mrf.mxu0
    %v10120 = vadd.f32 %v9927, %v10119
    %v10121 = vpop.f32.mrf.mxu0
    %v10122 = vadd.f32 %v9929, %v10121
    %v10123 = vpop.f32.mrf.mxu0
    %v10124 = vadd.f32 %v9931, %v10123
    %10125 = vmatprep.mubr.bf16.mxu0 %v2991
    %10126 = vmatmul.mubr.bf16.gmra.mxu0 %v2481
    %v10127 = vpop.f32.mrf.mxu0
    %v10128 = vadd.f32 %v9935, %v10127
    %v10129 = vpop.f32.mrf.mxu0
    %v10130 = vadd.f32 %v9937, %v10129
    %v10131 = vpop.f32.mrf.mxu0
    %v10132 = vadd.f32 %v9939, %v10131
    %v10133 = vpop.f32.mrf.mxu0
    %v10134 = vadd.f32 %v9941, %v10133
    %10135 = vmatprep.mubr.bf16.mxu0 %v2992
    %10136 = vmatmul.mubr.bf16.gmra.mxu0 %v2495
    %v10137 = vpop.f32.mrf.mxu0
    %v10138 = vadd.f32 %v9945, %v10137
    %v10139 = vpop.f32.mrf.mxu0
    %v10140 = vadd.f32 %v9947, %v10139
    %v10141 = vpop.f32.mrf.mxu0
    %v10142 = vadd.f32 %v9949, %v10141
    %v10143 = vpop.f32.mrf.mxu0
    %v10144 = vadd.f32 %v9951, %v10143
    %10145 = vmatprep.mubr.bf16.mxu0 %v2993
    %10146 = vmatmul.mubr.bf16.gmra.mxu0 %v2509
    %v10147 = vpop.f32.mrf.mxu0
    %v10148 = vadd.f32 %v9955, %v10147
    %v10149 = vpop.f32.mrf.mxu0
    %v10150 = vadd.f32 %v9957, %v10149
    %v10151 = vpop.f32.mrf.mxu0
    %v10152 = vadd.f32 %v9959, %v10151
    %v10153 = vpop.f32.mrf.mxu0
    %v10154 = vadd.f32 %v9961, %v10153
    %10155 = vmatprep.mubr.bf16.mxu0 %v2994
    %10156 = vmatmul.mubr.bf16.gmra.mxu0 %v2523
    %v10157 = vpop.f32.mrf.mxu0
    %v10158 = vadd.f32 %v9965, %v10157
    %v10159 = vpop.f32.mrf.mxu0
    %v10160 = vadd.f32 %v9967, %v10159
    %v10161 = vpop.f32.mrf.mxu0
    %v10162 = vadd.f32 %v9969, %v10161
    %v10163 = vpop.f32.mrf.mxu0
    %v10164 = vadd.f32 %v9971, %v10163
    %10165 = vmatprep.mubr.bf16.mxu0 %v2995
    %10166 = vmatmul.mubr.bf16.gmra.mxu0 %v2537
    %v10167 = vpop.f32.mrf.mxu0
    %v10168 = vadd.f32 %v9975, %v10167
    %v10169 = vpop.f32.mrf.mxu0
    %v10170 = vadd.f32 %v9977, %v10169
    %v10171 = vpop.f32.mrf.mxu0
    %v10172 = vadd.f32 %v9979, %v10171
    %v10173 = vpop.f32.mrf.mxu0
    %v10174 = vadd.f32 %v9981, %v10173
    %10175 = vmatprep.mubr.bf16.mxu0 %v2996
    %10176 = vmatmul.mubr.bf16.gmra.mxu0 %v2551
    %v10177 = vpop.f32.mrf.mxu0
    %v10178 = vadd.f32 %v9985, %v10177
    %v10179 = vpop.f32.mrf.mxu0
    %v10180 = vadd.f32 %v9987, %v10179
    %v10181 = vpop.f32.mrf.mxu0
    %v10182 = vadd.f32 %v9989, %v10181
    %v10183 = vpop.f32.mrf.mxu0
    %v10184 = vadd.f32 %v9991, %v10183
    %10185 = vmatprep.mubr.bf16.mxu0 %v2997
    %10186 = vmatmul.mubr.bf16.gmra.mxu0 %v2565
    %v10187 = vpop.f32.mrf.mxu0
    %v10188 = vadd.f32 %v9995, %v10187
    %v10189 = vpop.f32.mrf.mxu0
    %v10190 = vadd.f32 %v9997, %v10189
    %v10191 = vpop.f32.mrf.mxu0
    %v10192 = vadd.f32 %v9999, %v10191
    %v10193 = vpop.f32.mrf.mxu0
    %v10194 = vadd.f32 %v10001, %v10193
    %10195 = vmatprep.mubr.bf16.mxu0 %v2998
    %10196 = vmatmul.mubr.bf16.gmra.mxu0 %v2579
    %v10197 = vpop.f32.mrf.mxu0
    %v10198 = vadd.f32 %v10005, %v10197
    %v10199 = vpop.f32.mrf.mxu0
    %v10200 = vadd.f32 %v10007, %v10199
    %v10201 = vpop.f32.mrf.mxu0
    %v10202 = vadd.f32 %v10009, %v10201
    %v10203 = vpop.f32.mrf.mxu0
    %v10204 = vadd.f32 %v10011, %v10203
    %10205 = vmatprep.mubr.bf16.mxu0 %v2999
    %10206 = vmatmul.mubr.bf16.gmra.mxu0 %v2593
    %v10207 = vpop.f32.mrf.mxu0
    %v10208 = vadd.f32 %v10015, %v10207
    %v10209 = vpop.f32.mrf.mxu0
    %v10210 = vadd.f32 %v10017, %v10209
    %v10211 = vpop.f32.mrf.mxu0
    %v10212 = vadd.f32 %v10019, %v10211
    %v10213 = vpop.f32.mrf.mxu0
    %v10214 = vadd.f32 %v10021, %v10213
    %10215 = vdwg.mxu0
    %10216 = vmatprep.subr.bf16.mxu0 %v8842
    %10217 = vmatpush1.bf16.msra.mxu0 %v8841
    %10218 = vmatprep.subr.bf16.mxu0 %v8837
    %10219 = vmatpush1.bf16.msra.mxu0 %v8836
    %10220 = vmatprep.subr.bf16.mxu0 %v8832
    %10221 = vmatpush1.bf16.msra.mxu0 %v8831
    %10222 = vmatprep.subr.bf16.mxu0 %v8827
    %10223 = vmatpush1.bf16.msra.mxu0 %v8826
    %10224 = vmatprep.subr.bf16.mxu0 %v8822
    %10225 = vmatpush1.bf16.msra.mxu0 %v8821
    %10226 = vmatprep.subr.bf16.mxu0 %v8817
    %10227 = vmatpush1.bf16.msra.mxu0 %v8816
    %10228 = vmatprep.subr.bf16.mxu0 %v8812
    %10229 = vmatpush1.bf16.msra.mxu0 %v8811
    %10230 = vmatprep.subr.bf16.mxu0 %v8807
    %10231 = vmatpush1.bf16.msra.mxu0 %v8806
    %10232 = vmatprep.subr.bf16.mxu0 %v8882
    %10233 = vmatpush2.bf16.msra.mxu0 %v8881
    %10234 = vmatprep.subr.bf16.mxu0 %v8877
    %10235 = vmatpush2.bf16.msra.mxu0 %v8876
    %10236 = vmatprep.subr.bf16.mxu0 %v8872
    %10237 = vmatpush2.bf16.msra.mxu0 %v8871
    %10238 = vmatprep.subr.bf16.mxu0 %v8867
    %10239 = vmatpush2.bf16.msra.mxu0 %v8866
    %10240 = vmatprep.subr.bf16.mxu0 %v8862
    %10241 = vmatpush2.bf16.msra.mxu0 %v8861
    %10242 = vmatprep.subr.bf16.mxu0 %v8857
    %10243 = vmatpush2.bf16.msra.mxu0 %v8856
    %10244 = vmatprep.subr.bf16.mxu0 %v8852
    %10245 = vmatpush2.bf16.msra.mxu0 %v8851
    %10246 = vmatprep.subr.bf16.mxu0 %v8847
    %10247 = vmatpush2.bf16.msra.mxu0 %v8846
    %10248 = vmatprep.mubr.bf16.mxu0 %v2378
    %10249 = vmatmul.mubr.bf16.gmra.mxu0 %v2377
    %v10250 = vpop.f32.mrf.mxu0
    %v10251 = vadd.f32 0.0, %v10250
    %v10252 = vpop.f32.mrf.mxu0
    %v10253 = vadd.f32 0.0, %v10252
    %v10254 = vpop.f32.mrf.mxu0
    %v10255 = vadd.f32 0.0, %v10254
    %v10256 = vpop.f32.mrf.mxu0
    %v10257 = vadd.f32 0.0, %v10256
    %10258 = vmatprep.mubr.bf16.mxu0 %v2392
    %10259 = vmatmul.mubr.bf16.gmra.mxu0 %v2391
    %v10260 = vpop.f32.mrf.mxu0
    %v10261 = vadd.f32 0.0, %v10260
    %v10262 = vpop.f32.mrf.mxu0
    %v10263 = vadd.f32 0.0, %v10262
    %v10264 = vpop.f32.mrf.mxu0
    %v10265 = vadd.f32 0.0, %v10264
    %v10266 = vpop.f32.mrf.mxu0
    %v10267 = vadd.f32 0.0, %v10266
    %10268 = vmatprep.mubr.bf16.mxu0 %v2406
    %10269 = vmatmul.mubr.bf16.gmra.mxu0 %v2405
    %v10270 = vpop.f32.mrf.mxu0
    %v10271 = vadd.f32 0.0, %v10270
    %v10272 = vpop.f32.mrf.mxu0
    %v10273 = vadd.f32 0.0, %v10272
    %v10274 = vpop.f32.mrf.mxu0
    %v10275 = vadd.f32 0.0, %v10274
    %v10276 = vpop.f32.mrf.mxu0
    %v10277 = vadd.f32 0.0, %v10276
    %10278 = vmatprep.mubr.bf16.mxu0 %v2420
    %10279 = vmatmul.mubr.bf16.gmra.mxu0 %v2419
    %v10280 = vpop.f32.mrf.mxu0
    %v10281 = vadd.f32 0.0, %v10280
    %v10282 = vpop.f32.mrf.mxu0
    %v10283 = vadd.f32 0.0, %v10282
    %v10284 = vpop.f32.mrf.mxu0
    %v10285 = vadd.f32 0.0, %v10284
    %v10286 = vpop.f32.mrf.mxu0
    %v10287 = vadd.f32 0.0, %v10286
    %10288 = vmatprep.mubr.bf16.mxu0 %v2434
    %10289 = vmatmul.mubr.bf16.gmra.mxu0 %v2433
    %v10290 = vpop.f32.mrf.mxu0
    %v10291 = vadd.f32 0.0, %v10290
    %v10292 = vpop.f32.mrf.mxu0
    %v10293 = vadd.f32 0.0, %v10292
    %v10294 = vpop.f32.mrf.mxu0
    %v10295 = vadd.f32 0.0, %v10294
    %v10296 = vpop.f32.mrf.mxu0
    %v10297 = vadd.f32 0.0, %v10296
    %10298 = vmatprep.mubr.bf16.mxu0 %v2448
    %10299 = vmatmul.mubr.bf16.gmra.mxu0 %v2447
    %v10300 = vpop.f32.mrf.mxu0
    %v10301 = vadd.f32 0.0, %v10300
    %v10302 = vpop.f32.mrf.mxu0
    %v10303 = vadd.f32 0.0, %v10302
    %v10304 = vpop.f32.mrf.mxu0
    %v10305 = vadd.f32 0.0, %v10304
    %v10306 = vpop.f32.mrf.mxu0
    %v10307 = vadd.f32 0.0, %v10306
    %10308 = vmatprep.mubr.bf16.mxu0 %v2462
    %10309 = vmatmul.mubr.bf16.gmra.mxu0 %v2461
    %v10310 = vpop.f32.mrf.mxu0
    %v10311 = vadd.f32 0.0, %v10310
    %v10312 = vpop.f32.mrf.mxu0
    %v10313 = vadd.f32 0.0, %v10312
    %v10314 = vpop.f32.mrf.mxu0
    %v10315 = vadd.f32 0.0, %v10314
    %v10316 = vpop.f32.mrf.mxu0
    %v10317 = vadd.f32 0.0, %v10316
    %10318 = vmatprep.mubr.bf16.mxu0 %v2476
    %10319 = vmatmul.mubr.bf16.gmra.mxu0 %v2475
    %v10320 = vpop.f32.mrf.mxu0
    %v10321 = vadd.f32 0.0, %v10320
    %v10322 = vpop.f32.mrf.mxu0
    %v10323 = vadd.f32 0.0, %v10322
    %v10324 = vpop.f32.mrf.mxu0
    %v10325 = vadd.f32 0.0, %v10324
    %v10326 = vpop.f32.mrf.mxu0
    %v10327 = vadd.f32 0.0, %v10326
    %10328 = vmatprep.mubr.bf16.mxu0 %v2490
    %10329 = vmatmul.mubr.bf16.gmra.mxu0 %v2489
    %v10330 = vpop.f32.mrf.mxu0
    %v10331 = vadd.f32 0.0, %v10330
    %v10332 = vpop.f32.mrf.mxu0
    %v10333 = vadd.f32 0.0, %v10332
    %v10334 = vpop.f32.mrf.mxu0
    %v10335 = vadd.f32 0.0, %v10334
    %v10336 = vpop.f32.mrf.mxu0
    %v10337 = vadd.f32 0.0, %v10336
    %10338 = vmatprep.mubr.bf16.mxu0 %v2504
    %10339 = vmatmul.mubr.bf16.gmra.mxu0 %v2503
    %v10340 = vpop.f32.mrf.mxu0
    %v10341 = vadd.f32 0.0, %v10340
    %v10342 = vpop.f32.mrf.mxu0
    %v10343 = vadd.f32 0.0, %v10342
    %v10344 = vpop.f32.mrf.mxu0
    %v10345 = vadd.f32 0.0, %v10344
    %v10346 = vpop.f32.mrf.mxu0
    %v10347 = vadd.f32 0.0, %v10346
    %10348 = vmatprep.mubr.bf16.mxu0 %v2518
    %10349 = vmatmul.mubr.bf16.gmra.mxu0 %v2517
    %v10350 = vpop.f32.mrf.mxu0
    %v10351 = vadd.f32 0.0, %v10350
    %v10352 = vpop.f32.mrf.mxu0
    %v10353 = vadd.f32 0.0, %v10352
    %v10354 = vpop.f32.mrf.mxu0
    %v10355 = vadd.f32 0.0, %v10354
    %v10356 = vpop.f32.mrf.mxu0
    %v10357 = vadd.f32 0.0, %v10356
    %10358 = vmatprep.mubr.bf16.mxu0 %v2532
    %10359 = vmatmul.mubr.bf16.gmra.mxu0 %v2531
    %v10360 = vpop.f32.mrf.mxu0
    %v10361 = vadd.f32 0.0, %v10360
    %v10362 = vpop.f32.mrf.mxu0
    %v10363 = vadd.f32 0.0, %v10362
    %v10364 = vpop.f32.mrf.mxu0
    %v10365 = vadd.f32 0.0, %v10364
    %v10366 = vpop.f32.mrf.mxu0
    %v10367 = vadd.f32 0.0, %v10366
    %10368 = vmatprep.mubr.bf16.mxu0 %v2546
    %10369 = vmatmul.mubr.bf16.gmra.mxu0 %v2545
    %v10370 = vpop.f32.mrf.mxu0
    %v10371 = vadd.f32 0.0, %v10370
    %v10372 = vpop.f32.mrf.mxu0
    %v10373 = vadd.f32 0.0, %v10372
    %v10374 = vpop.f32.mrf.mxu0
    %v10375 = vadd.f32 0.0, %v10374
    %v10376 = vpop.f32.mrf.mxu0
    %v10377 = vadd.f32 0.0, %v10376
    %10378 = vmatprep.mubr.bf16.mxu0 %v2560
    %10379 = vmatmul.mubr.bf16.gmra.mxu0 %v2559
    %v10380 = vpop.f32.mrf.mxu0
    %v10381 = vadd.f32 0.0, %v10380
    %v10382 = vpop.f32.mrf.mxu0
    %v10383 = vadd.f32 0.0, %v10382
    %v10384 = vpop.f32.mrf.mxu0
    %v10385 = vadd.f32 0.0, %v10384
    %v10386 = vpop.f32.mrf.mxu0
    %v10387 = vadd.f32 0.0, %v10386
    %10388 = vmatprep.mubr.bf16.mxu0 %v2574
    %10389 = vmatmul.mubr.bf16.gmra.mxu0 %v2573
    %v10390 = vpop.f32.mrf.mxu0
    %v10391 = vadd.f32 0.0, %v10390
    %v10392 = vpop.f32.mrf.mxu0
    %v10393 = vadd.f32 0.0, %v10392
    %v10394 = vpop.f32.mrf.mxu0
    %v10395 = vadd.f32 0.0, %v10394
    %v10396 = vpop.f32.mrf.mxu0
    %v10397 = vadd.f32 0.0, %v10396
    %10398 = vmatprep.mubr.bf16.mxu0 %v2588
    %10399 = vmatmul.mubr.bf16.gmra.mxu0 %v2587
    %v10400 = vpop.f32.mrf.mxu0
    %v10401 = vadd.f32 0.0, %v10400
    %v10402 = vpop.f32.mrf.mxu0
    %v10403 = vadd.f32 0.0, %v10402
    %v10404 = vpop.f32.mrf.mxu0
    %v10405 = vadd.f32 0.0, %v10404
    %v10406 = vpop.f32.mrf.mxu0
    %v10407 = vadd.f32 0.0, %v10406
    %10408 = vdwg.mxu0
    %10409 = vmatprep.subr.bf16.mxu0 %v8922
    %10410 = vmatpush1.bf16.msra.mxu0 %v8921
    %10411 = vmatprep.subr.bf16.mxu0 %v8917
    %10412 = vmatpush1.bf16.msra.mxu0 %v8916
    %10413 = vmatprep.subr.bf16.mxu0 %v8912
    %10414 = vmatpush1.bf16.msra.mxu0 %v8911
    %10415 = vmatprep.subr.bf16.mxu0 %v8907
    %10416 = vmatpush1.bf16.msra.mxu0 %v8906
    %10417 = vmatprep.subr.bf16.mxu0 %v8902
    %10418 = vmatpush1.bf16.msra.mxu0 %v8901
    %10419 = vmatprep.subr.bf16.mxu0 %v8897
    %10420 = vmatpush1.bf16.msra.mxu0 %v8896
    %10421 = vmatprep.subr.bf16.mxu0 %v8892
    %10422 = vmatpush1.bf16.msra.mxu0 %v8891
    %10423 = vmatprep.subr.bf16.mxu0 %v8887
    %10424 = vmatpush1.bf16.msra.mxu0 %v8886
    %10425 = vmatprep.subr.bf16.mxu0 %v8962
    %10426 = vmatpush2.bf16.msra.mxu0 %v8961
    %10427 = vmatprep.subr.bf16.mxu0 %v8957
    %10428 = vmatpush2.bf16.msra.mxu0 %v8956
    %10429 = vmatprep.subr.bf16.mxu0 %v8952
    %10430 = vmatpush2.bf16.msra.mxu0 %v8951
    %10431 = vmatprep.subr.bf16.mxu0 %v8947
    %10432 = vmatpush2.bf16.msra.mxu0 %v8946
    %10433 = vmatprep.subr.bf16.mxu0 %v8942
    %10434 = vmatpush2.bf16.msra.mxu0 %v8941
    %10435 = vmatprep.subr.bf16.mxu0 %v8937
    %10436 = vmatpush2.bf16.msra.mxu0 %v8936
    %10437 = vmatprep.subr.bf16.mxu0 %v8932
    %10438 = vmatpush2.bf16.msra.mxu0 %v8931
    %10439 = vmatprep.subr.bf16.mxu0 %v8927
    %10440 = vmatpush2.bf16.msra.mxu0 %v8926
    %10441 = vmatprep.mubr.bf16.mxu0 %v2380
    %10442 = vmatmul.mubr.bf16.gmra.mxu0 %v2379
    %v10443 = vpop.f32.mrf.mxu0
    %v10444 = vadd.f32 %v10251, %v10443
    %v10445 = vpop.f32.mrf.mxu0
    %v10446 = vadd.f32 %v10253, %v10445
    %v10447 = vpop.f32.mrf.mxu0
    %v10448 = vadd.f32 %v10255, %v10447
    %v10449 = vpop.f32.mrf.mxu0
    %v10450 = vadd.f32 %v10257, %v10449
    %10451 = vmatprep.mubr.bf16.mxu0 %v2394
    %10452 = vmatmul.mubr.bf16.gmra.mxu0 %v2393
    %v10453 = vpop.f32.mrf.mxu0
    %v10454 = vadd.f32 %v10261, %v10453
    %v10455 = vpop.f32.mrf.mxu0
    %v10456 = vadd.f32 %v10263, %v10455
    %v10457 = vpop.f32.mrf.mxu0
    %v10458 = vadd.f32 %v10265, %v10457
    %v10459 = vpop.f32.mrf.mxu0
    %v10460 = vadd.f32 %v10267, %v10459
    %10461 = vmatprep.mubr.bf16.mxu0 %v2408
    %10462 = vmatmul.mubr.bf16.gmra.mxu0 %v2407
    %v10463 = vpop.f32.mrf.mxu0
    %v10464 = vadd.f32 %v10271, %v10463
    %v10465 = vpop.f32.mrf.mxu0
    %v10466 = vadd.f32 %v10273, %v10465
    %v10467 = vpop.f32.mrf.mxu0
    %v10468 = vadd.f32 %v10275, %v10467
    %v10469 = vpop.f32.mrf.mxu0
    %v10470 = vadd.f32 %v10277, %v10469
    %10471 = vmatprep.mubr.bf16.mxu0 %v2422
    %10472 = vmatmul.mubr.bf16.gmra.mxu0 %v2421
    %v10473 = vpop.f32.mrf.mxu0
    %v10474 = vadd.f32 %v10281, %v10473
    %v10475 = vpop.f32.mrf.mxu0
    %v10476 = vadd.f32 %v10283, %v10475
    %v10477 = vpop.f32.mrf.mxu0
    %v10478 = vadd.f32 %v10285, %v10477
    %v10479 = vpop.f32.mrf.mxu0
    %v10480 = vadd.f32 %v10287, %v10479
    %10481 = vmatprep.mubr.bf16.mxu0 %v2436
    %10482 = vmatmul.mubr.bf16.gmra.mxu0 %v2435
    %v10483 = vpop.f32.mrf.mxu0
    %v10484 = vadd.f32 %v10291, %v10483
    %v10485 = vpop.f32.mrf.mxu0
    %v10486 = vadd.f32 %v10293, %v10485
    %v10487 = vpop.f32.mrf.mxu0
    %v10488 = vadd.f32 %v10295, %v10487
    %v10489 = vpop.f32.mrf.mxu0
    %v10490 = vadd.f32 %v10297, %v10489
    %10491 = vmatprep.mubr.bf16.mxu0 %v2450
    %10492 = vmatmul.mubr.bf16.gmra.mxu0 %v2449
    %v10493 = vpop.f32.mrf.mxu0
    %v10494 = vadd.f32 %v10301, %v10493
    %v10495 = vpop.f32.mrf.mxu0
    %v10496 = vadd.f32 %v10303, %v10495
    %v10497 = vpop.f32.mrf.mxu0
    %v10498 = vadd.f32 %v10305, %v10497
    %v10499 = vpop.f32.mrf.mxu0
    %v10500 = vadd.f32 %v10307, %v10499
    %10501 = vmatprep.mubr.bf16.mxu0 %v2464
    %10502 = vmatmul.mubr.bf16.gmra.mxu0 %v2463
    %v10503 = vpop.f32.mrf.mxu0
    %v10504 = vadd.f32 %v10311, %v10503
    %v10505 = vpop.f32.mrf.mxu0
    %v10506 = vadd.f32 %v10313, %v10505
    %v10507 = vpop.f32.mrf.mxu0
    %v10508 = vadd.f32 %v10315, %v10507
    %v10509 = vpop.f32.mrf.mxu0
    %v10510 = vadd.f32 %v10317, %v10509
    %10511 = vmatprep.mubr.bf16.mxu0 %v2478
    %10512 = vmatmul.mubr.bf16.gmra.mxu0 %v2477
    %v10513 = vpop.f32.mrf.mxu0
    %v10514 = vadd.f32 %v10321, %v10513
    %v10515 = vpop.f32.mrf.mxu0
    %v10516 = vadd.f32 %v10323, %v10515
    %v10517 = vpop.f32.mrf.mxu0
    %v10518 = vadd.f32 %v10325, %v10517
    %v10519 = vpop.f32.mrf.mxu0
    %v10520 = vadd.f32 %v10327, %v10519
    %10521 = vmatprep.mubr.bf16.mxu0 %v2492
    %10522 = vmatmul.mubr.bf16.gmra.mxu0 %v2491
    %v10523 = vpop.f32.mrf.mxu0
    %v10524 = vadd.f32 %v10331, %v10523
    %v10525 = vpop.f32.mrf.mxu0
    %v10526 = vadd.f32 %v10333, %v10525
    %v10527 = vpop.f32.mrf.mxu0
    %v10528 = vadd.f32 %v10335, %v10527
    %v10529 = vpop.f32.mrf.mxu0
    %v10530 = vadd.f32 %v10337, %v10529
    %10531 = vmatprep.mubr.bf16.mxu0 %v2506
    %10532 = vmatmul.mubr.bf16.gmra.mxu0 %v2505
    %v10533 = vpop.f32.mrf.mxu0
    %v10534 = vadd.f32 %v10341, %v10533
    %v10535 = vpop.f32.mrf.mxu0
    %v10536 = vadd.f32 %v10343, %v10535
    %v10537 = vpop.f32.mrf.mxu0
    %v10538 = vadd.f32 %v10345, %v10537
    %v10539 = vpop.f32.mrf.mxu0
    %v10540 = vadd.f32 %v10347, %v10539
    %10541 = vmatprep.mubr.bf16.mxu0 %v2520
    %10542 = vmatmul.mubr.bf16.gmra.mxu0 %v2519
    %v10543 = vpop.f32.mrf.mxu0
    %v10544 = vadd.f32 %v10351, %v10543
    %v10545 = vpop.f32.mrf.mxu0
    %v10546 = vadd.f32 %v10353, %v10545
    %v10547 = vpop.f32.mrf.mxu0
    %v10548 = vadd.f32 %v10355, %v10547
    %v10549 = vpop.f32.mrf.mxu0
    %v10550 = vadd.f32 %v10357, %v10549
    %10551 = vmatprep.mubr.bf16.mxu0 %v2534
    %10552 = vmatmul.mubr.bf16.gmra.mxu0 %v2533
    %v10553 = vpop.f32.mrf.mxu0
    %v10554 = vadd.f32 %v10361, %v10553
    %v10555 = vpop.f32.mrf.mxu0
    %v10556 = vadd.f32 %v10363, %v10555
    %v10557 = vpop.f32.mrf.mxu0
    %v10558 = vadd.f32 %v10365, %v10557
    %v10559 = vpop.f32.mrf.mxu0
    %v10560 = vadd.f32 %v10367, %v10559
    %10561 = vmatprep.mubr.bf16.mxu0 %v2548
    %10562 = vmatmul.mubr.bf16.gmra.mxu0 %v2547
    %v10563 = vpop.f32.mrf.mxu0
    %v10564 = vadd.f32 %v10371, %v10563
    %v10565 = vpop.f32.mrf.mxu0
    %v10566 = vadd.f32 %v10373, %v10565
    %v10567 = vpop.f32.mrf.mxu0
    %v10568 = vadd.f32 %v10375, %v10567
    %v10569 = vpop.f32.mrf.mxu0
    %v10570 = vadd.f32 %v10377, %v10569
    %10571 = vmatprep.mubr.bf16.mxu0 %v2562
    %10572 = vmatmul.mubr.bf16.gmra.mxu0 %v2561
    %v10573 = vpop.f32.mrf.mxu0
    %v10574 = vadd.f32 %v10381, %v10573
    %v10575 = vpop.f32.mrf.mxu0
    %v10576 = vadd.f32 %v10383, %v10575
    %v10577 = vpop.f32.mrf.mxu0
    %v10578 = vadd.f32 %v10385, %v10577
    %v10579 = vpop.f32.mrf.mxu0
    %v10580 = vadd.f32 %v10387, %v10579
    %10581 = vmatprep.mubr.bf16.mxu0 %v2576
    %10582 = vmatmul.mubr.bf16.gmra.mxu0 %v2575
    %v10583 = vpop.f32.mrf.mxu0
    %v10584 = vadd.f32 %v10391, %v10583
    %v10585 = vpop.f32.mrf.mxu0
    %v10586 = vadd.f32 %v10393, %v10585
    %v10587 = vpop.f32.mrf.mxu0
    %v10588 = vadd.f32 %v10395, %v10587
    %v10589 = vpop.f32.mrf.mxu0
    %v10590 = vadd.f32 %v10397, %v10589
    %10591 = vmatprep.mubr.bf16.mxu0 %v2590
    %10592 = vmatmul.mubr.bf16.gmra.mxu0 %v2589
    %v10593 = vpop.f32.mrf.mxu0
    %v10594 = vadd.f32 %v10401, %v10593
    %v10595 = vpop.f32.mrf.mxu0
    %v10596 = vadd.f32 %v10403, %v10595
    %v10597 = vpop.f32.mrf.mxu0
    %v10598 = vadd.f32 %v10405, %v10597
    %v10599 = vpop.f32.mrf.mxu0
    %v10600 = vadd.f32 %v10407, %v10599
    %10601 = vdwg.mxu0
    %10602 = vmatprep.subr.bf16.mxu0 %v9002
    %10603 = vmatpush1.bf16.msra.mxu0 %v9001
    %10604 = vmatprep.subr.bf16.mxu0 %v8997
    %10605 = vmatpush1.bf16.msra.mxu0 %v8996
    %10606 = vmatprep.subr.bf16.mxu0 %v8992
    %10607 = vmatpush1.bf16.msra.mxu0 %v8991
    %10608 = vmatprep.subr.bf16.mxu0 %v8987
    %10609 = vmatpush1.bf16.msra.mxu0 %v8986
    %10610 = vmatprep.subr.bf16.mxu0 %v8982
    %10611 = vmatpush1.bf16.msra.mxu0 %v8981
    %10612 = vmatprep.subr.bf16.mxu0 %v8977
    %10613 = vmatpush1.bf16.msra.mxu0 %v8976
    %10614 = vmatprep.subr.bf16.mxu0 %v8972
    %10615 = vmatpush1.bf16.msra.mxu0 %v8971
    %10616 = vmatprep.subr.bf16.mxu0 %v8967
    %10617 = vmatpush1.bf16.msra.mxu0 %v8966
    %10618 = vmatprep.subr.bf16.mxu0 %v9042
    %10619 = vmatpush2.bf16.msra.mxu0 %v9041
    %10620 = vmatprep.subr.bf16.mxu0 %v9037
    %10621 = vmatpush2.bf16.msra.mxu0 %v9036
    %10622 = vmatprep.subr.bf16.mxu0 %v9032
    %10623 = vmatpush2.bf16.msra.mxu0 %v9031
    %10624 = vmatprep.subr.bf16.mxu0 %v9027
    %10625 = vmatpush2.bf16.msra.mxu0 %v9026
    %10626 = vmatprep.subr.bf16.mxu0 %v9022
    %10627 = vmatpush2.bf16.msra.mxu0 %v9021
    %10628 = vmatprep.subr.bf16.mxu0 %v9017
    %10629 = vmatpush2.bf16.msra.mxu0 %v9016
    %10630 = vmatprep.subr.bf16.mxu0 %v9012
    %10631 = vmatpush2.bf16.msra.mxu0 %v9011
    %10632 = vmatprep.subr.bf16.mxu0 %v9007
    %10633 = vmatpush2.bf16.msra.mxu0 %v9006
    %10634 = vmatprep.mubr.bf16.mxu0 %v2382
    %10635 = vmatmul.mubr.bf16.gmra.mxu0 %v2381
    %v10636 = vpop.f32.mrf.mxu0
    %v10637 = vadd.f32 %v10444, %v10636
    %v10638 = vpop.f32.mrf.mxu0
    %v10639 = vadd.f32 %v10446, %v10638
    %v10640 = vpop.f32.mrf.mxu0
    %v10641 = vadd.f32 %v10448, %v10640
    %v10642 = vpop.f32.mrf.mxu0
    %v10643 = vadd.f32 %v10450, %v10642
    %10644 = vmatprep.mubr.bf16.mxu0 %v2396
    %10645 = vmatmul.mubr.bf16.gmra.mxu0 %v2395
    %v10646 = vpop.f32.mrf.mxu0
    %v10647 = vadd.f32 %v10454, %v10646
    %v10648 = vpop.f32.mrf.mxu0
    %v10649 = vadd.f32 %v10456, %v10648
    %v10650 = vpop.f32.mrf.mxu0
    %v10651 = vadd.f32 %v10458, %v10650
    %v10652 = vpop.f32.mrf.mxu0
    %v10653 = vadd.f32 %v10460, %v10652
    %10654 = vmatprep.mubr.bf16.mxu0 %v2410
    %10655 = vmatmul.mubr.bf16.gmra.mxu0 %v2409
    %v10656 = vpop.f32.mrf.mxu0
    %v10657 = vadd.f32 %v10464, %v10656
    %v10658 = vpop.f32.mrf.mxu0
    %v10659 = vadd.f32 %v10466, %v10658
    %v10660 = vpop.f32.mrf.mxu0
    %v10661 = vadd.f32 %v10468, %v10660
    %v10662 = vpop.f32.mrf.mxu0
    %v10663 = vadd.f32 %v10470, %v10662
    %10664 = vmatprep.mubr.bf16.mxu0 %v2424
    %10665 = vmatmul.mubr.bf16.gmra.mxu0 %v2423
    %v10666 = vpop.f32.mrf.mxu0
    %v10667 = vadd.f32 %v10474, %v10666
    %v10668 = vpop.f32.mrf.mxu0
    %v10669 = vadd.f32 %v10476, %v10668
    %v10670 = vpop.f32.mrf.mxu0
    %v10671 = vadd.f32 %v10478, %v10670
    %v10672 = vpop.f32.mrf.mxu0
    %v10673 = vadd.f32 %v10480, %v10672
    %10674 = vmatprep.mubr.bf16.mxu0 %v2438
    %10675 = vmatmul.mubr.bf16.gmra.mxu0 %v2437
    %v10676 = vpop.f32.mrf.mxu0
    %v10677 = vadd.f32 %v10484, %v10676
    %v10678 = vpop.f32.mrf.mxu0
    %v10679 = vadd.f32 %v10486, %v10678
    %v10680 = vpop.f32.mrf.mxu0
    %v10681 = vadd.f32 %v10488, %v10680
    %v10682 = vpop.f32.mrf.mxu0
    %v10683 = vadd.f32 %v10490, %v10682
    %10684 = vmatprep.mubr.bf16.mxu0 %v2452
    %10685 = vmatmul.mubr.bf16.gmra.mxu0 %v2451
    %v10686 = vpop.f32.mrf.mxu0
    %v10687 = vadd.f32 %v10494, %v10686
    %v10688 = vpop.f32.mrf.mxu0
    %v10689 = vadd.f32 %v10496, %v10688
    %v10690 = vpop.f32.mrf.mxu0
    %v10691 = vadd.f32 %v10498, %v10690
    %v10692 = vpop.f32.mrf.mxu0
    %v10693 = vadd.f32 %v10500, %v10692
    %10694 = vmatprep.mubr.bf16.mxu0 %v2466
    %10695 = vmatmul.mubr.bf16.gmra.mxu0 %v2465
    %v10696 = vpop.f32.mrf.mxu0
    %v10697 = vadd.f32 %v10504, %v10696
    %v10698 = vpop.f32.mrf.mxu0
    %v10699 = vadd.f32 %v10506, %v10698
    %v10700 = vpop.f32.mrf.mxu0
    %v10701 = vadd.f32 %v10508, %v10700
    %v10702 = vpop.f32.mrf.mxu0
    %v10703 = vadd.f32 %v10510, %v10702
    %10704 = vmatprep.mubr.bf16.mxu0 %v2480
    %10705 = vmatmul.mubr.bf16.gmra.mxu0 %v2479
    %v10706 = vpop.f32.mrf.mxu0
    %v10707 = vadd.f32 %v10514, %v10706
    %v10708 = vpop.f32.mrf.mxu0
    %v10709 = vadd.f32 %v10516, %v10708
    %v10710 = vpop.f32.mrf.mxu0
    %v10711 = vadd.f32 %v10518, %v10710
    %v10712 = vpop.f32.mrf.mxu0
    %v10713 = vadd.f32 %v10520, %v10712
    %10714 = vmatprep.mubr.bf16.mxu0 %v2494
    %10715 = vmatmul.mubr.bf16.gmra.mxu0 %v2493
    %v10716 = vpop.f32.mrf.mxu0
    %v10717 = vadd.f32 %v10524, %v10716
    %v10718 = vpop.f32.mrf.mxu0
    %v10719 = vadd.f32 %v10526, %v10718
    %v10720 = vpop.f32.mrf.mxu0
    %v10721 = vadd.f32 %v10528, %v10720
    %v10722 = vpop.f32.mrf.mxu0
    %v10723 = vadd.f32 %v10530, %v10722
    %10724 = vmatprep.mubr.bf16.mxu0 %v2508
    %10725 = vmatmul.mubr.bf16.gmra.mxu0 %v2507
    %v10726 = vpop.f32.mrf.mxu0
    %v10727 = vadd.f32 %v10534, %v10726
    %v10728 = vpop.f32.mrf.mxu0
    %v10729 = vadd.f32 %v10536, %v10728
    %v10730 = vpop.f32.mrf.mxu0
    %v10731 = vadd.f32 %v10538, %v10730
    %v10732 = vpop.f32.mrf.mxu0
    %v10733 = vadd.f32 %v10540, %v10732
    %10734 = vmatprep.mubr.bf16.mxu0 %v2522
    %10735 = vmatmul.mubr.bf16.gmra.mxu0 %v2521
    %v10736 = vpop.f32.mrf.mxu0
    %v10737 = vadd.f32 %v10544, %v10736
    %v10738 = vpop.f32.mrf.mxu0
    %v10739 = vadd.f32 %v10546, %v10738
    %v10740 = vpop.f32.mrf.mxu0
    %v10741 = vadd.f32 %v10548, %v10740
    %v10742 = vpop.f32.mrf.mxu0
    %v10743 = vadd.f32 %v10550, %v10742
    %10744 = vmatprep.mubr.bf16.mxu0 %v2536
    %10745 = vmatmul.mubr.bf16.gmra.mxu0 %v2535
    %v10746 = vpop.f32.mrf.mxu0
    %v10747 = vadd.f32 %v10554, %v10746
    %v10748 = vpop.f32.mrf.mxu0
    %v10749 = vadd.f32 %v10556, %v10748
    %v10750 = vpop.f32.mrf.mxu0
    %v10751 = vadd.f32 %v10558, %v10750
    %v10752 = vpop.f32.mrf.mxu0
    %v10753 = vadd.f32 %v10560, %v10752
    %10754 = vmatprep.mubr.bf16.mxu0 %v2550
    %10755 = vmatmul.mubr.bf16.gmra.mxu0 %v2549
    %v10756 = vpop.f32.mrf.mxu0
    %v10757 = vadd.f32 %v10564, %v10756
    %v10758 = vpop.f32.mrf.mxu0
    %v10759 = vadd.f32 %v10566, %v10758
    %v10760 = vpop.f32.mrf.mxu0
    %v10761 = vadd.f32 %v10568, %v10760
    %v10762 = vpop.f32.mrf.mxu0
    %v10763 = vadd.f32 %v10570, %v10762
    %10764 = vmatprep.mubr.bf16.mxu0 %v2564
    %10765 = vmatmul.mubr.bf16.gmra.mxu0 %v2563
    %v10766 = vpop.f32.mrf.mxu0
    %v10767 = vadd.f32 %v10574, %v10766
    %v10768 = vpop.f32.mrf.mxu0
    %v10769 = vadd.f32 %v10576, %v10768
    %v10770 = vpop.f32.mrf.mxu0
    %v10771 = vadd.f32 %v10578, %v10770
    %v10772 = vpop.f32.mrf.mxu0
    %v10773 = vadd.f32 %v10580, %v10772
    %10774 = vmatprep.mubr.bf16.mxu0 %v2578
    %10775 = vmatmul.mubr.bf16.gmra.mxu0 %v2577
    %v10776 = vpop.f32.mrf.mxu0
    %v10777 = vadd.f32 %v10584, %v10776
    %v10778 = vpop.f32.mrf.mxu0
    %v10779 = vadd.f32 %v10586, %v10778
    %v10780 = vpop.f32.mrf.mxu0
    %v10781 = vadd.f32 %v10588, %v10780
    %v10782 = vpop.f32.mrf.mxu0
    %v10783 = vadd.f32 %v10590, %v10782
    %10784 = vmatprep.mubr.bf16.mxu0 %v2592
    %10785 = vmatmul.mubr.bf16.gmra.mxu0 %v2591
    %v10786 = vpop.f32.mrf.mxu0
    %v10787 = vadd.f32 %v10594, %v10786
    %v10788 = vpop.f32.mrf.mxu0
    %v10789 = vadd.f32 %v10596, %v10788
    %v10790 = vpop.f32.mrf.mxu0
    %v10791 = vadd.f32 %v10598, %v10790
    %v10792 = vpop.f32.mrf.mxu0
    %v10793 = vadd.f32 %v10600, %v10792
    %10794 = vdwg.mxu0
    %10795 = vmatprep.subr.bf16.mxu0 %v9082
    %10796 = vmatpush1.bf16.msra.mxu0 %v9081
    %10797 = vmatprep.subr.bf16.mxu0 %v9077
    %10798 = vmatpush1.bf16.msra.mxu0 %v9076
    %10799 = vmatprep.subr.bf16.mxu0 %v9072
    %10800 = vmatpush1.bf16.msra.mxu0 %v9071
    %10801 = vmatprep.subr.bf16.mxu0 %v9067
    %10802 = vmatpush1.bf16.msra.mxu0 %v9066
    %10803 = vmatprep.subr.bf16.mxu0 %v9062
    %10804 = vmatpush1.bf16.msra.mxu0 %v9061
    %10805 = vmatprep.subr.bf16.mxu0 %v9057
    %10806 = vmatpush1.bf16.msra.mxu0 %v9056
    %10807 = vmatprep.subr.bf16.mxu0 %v9052
    %10808 = vmatpush1.bf16.msra.mxu0 %v9051
    %10809 = vmatprep.subr.bf16.mxu0 %v9047
    %10810 = vmatpush1.bf16.msra.mxu0 %v9046
    %10811 = vmatprep.subr.bf16.mxu0 %v9122
    %10812 = vmatpush2.bf16.msra.mxu0 %v9121
    %10813 = vmatprep.subr.bf16.mxu0 %v9117
    %10814 = vmatpush2.bf16.msra.mxu0 %v9116
    %10815 = vmatprep.subr.bf16.mxu0 %v9112
    %10816 = vmatpush2.bf16.msra.mxu0 %v9111
    %10817 = vmatprep.subr.bf16.mxu0 %v9107
    %10818 = vmatpush2.bf16.msra.mxu0 %v9106
    %10819 = vmatprep.subr.bf16.mxu0 %v9102
    %10820 = vmatpush2.bf16.msra.mxu0 %v9101
    %10821 = vmatprep.subr.bf16.mxu0 %v9097
    %10822 = vmatpush2.bf16.msra.mxu0 %v9096
    %10823 = vmatprep.subr.bf16.mxu0 %v9092
    %10824 = vmatpush2.bf16.msra.mxu0 %v9091
    %10825 = vmatprep.subr.bf16.mxu0 %v9087
    %10826 = vmatpush2.bf16.msra.mxu0 %v9086
    %10827 = vmatprep.mubr.bf16.mxu0 %v2984
    %10828 = vmatmul.mubr.bf16.gmra.mxu0 %v2383
    %v10829 = vpop.f32.mrf.mxu0
    %v10830 = vadd.f32 %v10637, %v10829
    %v10831 = vpop.f32.mrf.mxu0
    %v10832 = vadd.f32 %v10639, %v10831
    %v10833 = vpop.f32.mrf.mxu0
    %v10834 = vadd.f32 %v10641, %v10833
    %v10835 = vpop.f32.mrf.mxu0
    %v10836 = vadd.f32 %v10643, %v10835
    %10837 = vmatprep.mubr.bf16.mxu0 %v2985
    %10838 = vmatmul.mubr.bf16.gmra.mxu0 %v2397
    %v10839 = vpop.f32.mrf.mxu0
    %v10840 = vadd.f32 %v10647, %v10839
    %v10841 = vpop.f32.mrf.mxu0
    %v10842 = vadd.f32 %v10649, %v10841
    %v10843 = vpop.f32.mrf.mxu0
    %v10844 = vadd.f32 %v10651, %v10843
    %v10845 = vpop.f32.mrf.mxu0
    %v10846 = vadd.f32 %v10653, %v10845
    %10847 = vmatprep.mubr.bf16.mxu0 %v2986
    %10848 = vmatmul.mubr.bf16.gmra.mxu0 %v2411
    %v10849 = vpop.f32.mrf.mxu0
    %v10850 = vadd.f32 %v10657, %v10849
    %v10851 = vpop.f32.mrf.mxu0
    %v10852 = vadd.f32 %v10659, %v10851
    %v10853 = vpop.f32.mrf.mxu0
    %v10854 = vadd.f32 %v10661, %v10853
    %v10855 = vpop.f32.mrf.mxu0
    %v10856 = vadd.f32 %v10663, %v10855
    %10857 = vmatprep.mubr.bf16.mxu0 %v2987
    %10858 = vmatmul.mubr.bf16.gmra.mxu0 %v2425
    %v10859 = vpop.f32.mrf.mxu0
    %v10860 = vadd.f32 %v10667, %v10859
    %v10861 = vpop.f32.mrf.mxu0
    %v10862 = vadd.f32 %v10669, %v10861
    %v10863 = vpop.f32.mrf.mxu0
    %v10864 = vadd.f32 %v10671, %v10863
    %v10865 = vpop.f32.mrf.mxu0
    %v10866 = vadd.f32 %v10673, %v10865
    %10867 = vmatprep.mubr.bf16.mxu0 %v2988
    %10868 = vmatmul.mubr.bf16.gmra.mxu0 %v2439
    %v10869 = vpop.f32.mrf.mxu0
    %v10870 = vadd.f32 %v10677, %v10869
    %v10871 = vpop.f32.mrf.mxu0
    %v10872 = vadd.f32 %v10679, %v10871
    %v10873 = vpop.f32.mrf.mxu0
    %v10874 = vadd.f32 %v10681, %v10873
    %v10875 = vpop.f32.mrf.mxu0
    %v10876 = vadd.f32 %v10683, %v10875
    %10877 = vmatprep.mubr.bf16.mxu0 %v2989
    %10878 = vmatmul.mubr.bf16.gmra.mxu0 %v2453
    %v10879 = vpop.f32.mrf.mxu0
    %v10880 = vadd.f32 %v10687, %v10879
    %v10881 = vpop.f32.mrf.mxu0
    %v10882 = vadd.f32 %v10689, %v10881
    %v10883 = vpop.f32.mrf.mxu0
    %v10884 = vadd.f32 %v10691, %v10883
    %v10885 = vpop.f32.mrf.mxu0
    %v10886 = vadd.f32 %v10693, %v10885
    %10887 = vmatprep.mubr.bf16.mxu0 %v2990
    %10888 = vmatmul.mubr.bf16.gmra.mxu0 %v2467
    %v10889 = vpop.f32.mrf.mxu0
    %v10890 = vadd.f32 %v10697, %v10889
    %v10891 = vpop.f32.mrf.mxu0
    %v10892 = vadd.f32 %v10699, %v10891
    %v10893 = vpop.f32.mrf.mxu0
    %v10894 = vadd.f32 %v10701, %v10893
    %v10895 = vpop.f32.mrf.mxu0
    %v10896 = vadd.f32 %v10703, %v10895
    %10897 = vmatprep.mubr.bf16.mxu0 %v2991
    %10898 = vmatmul.mubr.bf16.gmra.mxu0 %v2481
    %v10899 = vpop.f32.mrf.mxu0
    %v10900 = vadd.f32 %v10707, %v10899
    %v10901 = vpop.f32.mrf.mxu0
    %v10902 = vadd.f32 %v10709, %v10901
    %v10903 = vpop.f32.mrf.mxu0
    %v10904 = vadd.f32 %v10711, %v10903
    %v10905 = vpop.f32.mrf.mxu0
    %v10906 = vadd.f32 %v10713, %v10905
    %10907 = vmatprep.mubr.bf16.mxu0 %v2992
    %10908 = vmatmul.mubr.bf16.gmra.mxu0 %v2495
    %v10909 = vpop.f32.mrf.mxu0
    %v10910 = vadd.f32 %v10717, %v10909
    %v10911 = vpop.f32.mrf.mxu0
    %v10912 = vadd.f32 %v10719, %v10911
    %v10913 = vpop.f32.mrf.mxu0
    %v10914 = vadd.f32 %v10721, %v10913
    %v10915 = vpop.f32.mrf.mxu0
    %v10916 = vadd.f32 %v10723, %v10915
    %10917 = vmatprep.mubr.bf16.mxu0 %v2993
    %10918 = vmatmul.mubr.bf16.gmra.mxu0 %v2509
    %v10919 = vpop.f32.mrf.mxu0
    %v10920 = vadd.f32 %v10727, %v10919
    %v10921 = vpop.f32.mrf.mxu0
    %v10922 = vadd.f32 %v10729, %v10921
    %v10923 = vpop.f32.mrf.mxu0
    %v10924 = vadd.f32 %v10731, %v10923
    %v10925 = vpop.f32.mrf.mxu0
    %v10926 = vadd.f32 %v10733, %v10925
    %10927 = vmatprep.mubr.bf16.mxu0 %v2994
    %10928 = vmatmul.mubr.bf16.gmra.mxu0 %v2523
    %v10929 = vpop.f32.mrf.mxu0
    %v10930 = vadd.f32 %v10737, %v10929
    %v10931 = vpop.f32.mrf.mxu0
    %v10932 = vadd.f32 %v10739, %v10931
    %v10933 = vpop.f32.mrf.mxu0
    %v10934 = vadd.f32 %v10741, %v10933
    %v10935 = vpop.f32.mrf.mxu0
    %v10936 = vadd.f32 %v10743, %v10935
    %10937 = vmatprep.mubr.bf16.mxu0 %v2995
    %10938 = vmatmul.mubr.bf16.gmra.mxu0 %v2537
    %v10939 = vpop.f32.mrf.mxu0
    %v10940 = vadd.f32 %v10747, %v10939
    %v10941 = vpop.f32.mrf.mxu0
    %v10942 = vadd.f32 %v10749, %v10941
    %v10943 = vpop.f32.mrf.mxu0
    %v10944 = vadd.f32 %v10751, %v10943
    %v10945 = vpop.f32.mrf.mxu0
    %v10946 = vadd.f32 %v10753, %v10945
    %10947 = vmatprep.mubr.bf16.mxu0 %v2996
    %10948 = vmatmul.mubr.bf16.gmra.mxu0 %v2551
    %v10949 = vpop.f32.mrf.mxu0
    %v10950 = vadd.f32 %v10757, %v10949
    %v10951 = vpop.f32.mrf.mxu0
    %v10952 = vadd.f32 %v10759, %v10951
    %v10953 = vpop.f32.mrf.mxu0
    %v10954 = vadd.f32 %v10761, %v10953
    %v10955 = vpop.f32.mrf.mxu0
    %v10956 = vadd.f32 %v10763, %v10955
    %10957 = vmatprep.mubr.bf16.mxu0 %v2997
    %10958 = vmatmul.mubr.bf16.gmra.mxu0 %v2565
    %v10959 = vpop.f32.mrf.mxu0
    %v10960 = vadd.f32 %v10767, %v10959
    %v10961 = vpop.f32.mrf.mxu0
    %v10962 = vadd.f32 %v10769, %v10961
    %v10963 = vpop.f32.mrf.mxu0
    %v10964 = vadd.f32 %v10771, %v10963
    %v10965 = vpop.f32.mrf.mxu0
    %v10966 = vadd.f32 %v10773, %v10965
    %10967 = vmatprep.mubr.bf16.mxu0 %v2998
    %10968 = vmatmul.mubr.bf16.gmra.mxu0 %v2579
    %v10969 = vpop.f32.mrf.mxu0
    %v10970 = vadd.f32 %v10777, %v10969
    %v10971 = vpop.f32.mrf.mxu0
    %v10972 = vadd.f32 %v10779, %v10971
    %v10973 = vpop.f32.mrf.mxu0
    %v10974 = vadd.f32 %v10781, %v10973
    %v10975 = vpop.f32.mrf.mxu0
    %v10976 = vadd.f32 %v10783, %v10975
    %10977 = vmatprep.mubr.bf16.mxu0 %v2999
    %10978 = vmatmul.mubr.bf16.gmra.mxu0 %v2593
    %v10979 = vpop.f32.mrf.mxu0
    %v10980 = vadd.f32 %v10787, %v10979
    %v10981 = vpop.f32.mrf.mxu0
    %v10982 = vadd.f32 %v10789, %v10981
    %v10983 = vpop.f32.mrf.mxu0
    %v10984 = vadd.f32 %v10791, %v10983
    %v10985 = vpop.f32.mrf.mxu0
    %v10986 = vadd.f32 %v10793, %v10985
    %10987 = vdwg.mxu0
    %10988 = vmatprep.subr.bf16.mxu0 0
    %10989 = vmatpush1.bf16.msra.mxu0 %v8843
    %10990 = vmatprep.subr.bf16.mxu0 0
    %10991 = vmatpush1.bf16.msra.mxu0 %v8838
    %10992 = vmatprep.subr.bf16.mxu0 0
    %10993 = vmatpush1.bf16.msra.mxu0 %v8833
    %10994 = vmatprep.subr.bf16.mxu0 0
    %10995 = vmatpush1.bf16.msra.mxu0 %v8828
    %10996 = vmatprep.subr.bf16.mxu0 0
    %10997 = vmatpush1.bf16.msra.mxu0 %v8823
    %10998 = vmatprep.subr.bf16.mxu0 0
    %10999 = vmatpush1.bf16.msra.mxu0 %v8818
    %11000 = vmatprep.subr.bf16.mxu0 0
    %11001 = vmatpush1.bf16.msra.mxu0 %v8813
    %11002 = vmatprep.subr.bf16.mxu0 0
    %11003 = vmatpush1.bf16.msra.mxu0 %v8808
    %11004 = vmatprep.subr.bf16.mxu0 0
    %11005 = vmatpush2.bf16.msra.mxu0 %v8883
    %11006 = vmatprep.subr.bf16.mxu0 0
    %11007 = vmatpush2.bf16.msra.mxu0 %v8878
    %11008 = vmatprep.subr.bf16.mxu0 0
    %11009 = vmatpush2.bf16.msra.mxu0 %v8873
    %11010 = vmatprep.subr.bf16.mxu0 0
    %11011 = vmatpush2.bf16.msra.mxu0 %v8868
    %11012 = vmatprep.subr.bf16.mxu0 0
    %11013 = vmatpush2.bf16.msra.mxu0 %v8863
    %11014 = vmatprep.subr.bf16.mxu0 0
    %11015 = vmatpush2.bf16.msra.mxu0 %v8858
    %11016 = vmatprep.subr.bf16.mxu0 0
    %11017 = vmatpush2.bf16.msra.mxu0 %v8853
    %11018 = vmatprep.subr.bf16.mxu0 0
    %11019 = vmatpush2.bf16.msra.mxu0 %v8848
    %11020 = vmatprep.mubr.bf16.mxu0 %v2378
    %11021 = vmatmul.mubr.bf16.gmra.mxu0 %v2377
    %v11022 = vpop.f32.mrf.mxu0
    %v11023 = vadd.f32 0.0, %v11022
    %v11024 = vpop.f32.mrf.mxu0
    %v11025 = vpop.f32.mrf.mxu0
    %v11026 = vadd.f32 0.0, %v11025
    %v11027 = vpop.f32.mrf.mxu0
    %11028 = vmatprep.mubr.bf16.mxu0 %v2392
    %11029 = vmatmul.mubr.bf16.gmra.mxu0 %v2391
    %v11030 = vpop.f32.mrf.mxu0
    %v11031 = vadd.f32 0.0, %v11030
    %v11032 = vpop.f32.mrf.mxu0
    %v11033 = vpop.f32.mrf.mxu0
    %v11034 = vadd.f32 0.0, %v11033
    %v11035 = vpop.f32.mrf.mxu0
    %11036 = vmatprep.mubr.bf16.mxu0 %v2406
    %11037 = vmatmul.mubr.bf16.gmra.mxu0 %v2405
    %v11038 = vpop.f32.mrf.mxu0
    %v11039 = vadd.f32 0.0, %v11038
    %v11040 = vpop.f32.mrf.mxu0
    %v11041 = vpop.f32.mrf.mxu0
    %v11042 = vadd.f32 0.0, %v11041
    %v11043 = vpop.f32.mrf.mxu0
    %11044 = vmatprep.mubr.bf16.mxu0 %v2420
    %11045 = vmatmul.mubr.bf16.gmra.mxu0 %v2419
    %v11046 = vpop.f32.mrf.mxu0
    %v11047 = vadd.f32 0.0, %v11046
    %v11048 = vpop.f32.mrf.mxu0
    %v11049 = vpop.f32.mrf.mxu0
    %v11050 = vadd.f32 0.0, %v11049
    %v11051 = vpop.f32.mrf.mxu0
    %11052 = vmatprep.mubr.bf16.mxu0 %v2434
    %11053 = vmatmul.mubr.bf16.gmra.mxu0 %v2433
    %v11054 = vpop.f32.mrf.mxu0
    %v11055 = vadd.f32 0.0, %v11054
    %v11056 = vpop.f32.mrf.mxu0
    %v11057 = vpop.f32.mrf.mxu0
    %v11058 = vadd.f32 0.0, %v11057
    %v11059 = vpop.f32.mrf.mxu0
    %11060 = vmatprep.mubr.bf16.mxu0 %v2448
    %11061 = vmatmul.mubr.bf16.gmra.mxu0 %v2447
    %v11062 = vpop.f32.mrf.mxu0
    %v11063 = vadd.f32 0.0, %v11062
    %v11064 = vpop.f32.mrf.mxu0
    %v11065 = vpop.f32.mrf.mxu0
    %v11066 = vadd.f32 0.0, %v11065
    %v11067 = vpop.f32.mrf.mxu0
    %11068 = vmatprep.mubr.bf16.mxu0 %v2462
    %11069 = vmatmul.mubr.bf16.gmra.mxu0 %v2461
    %v11070 = vpop.f32.mrf.mxu0
    %v11071 = vadd.f32 0.0, %v11070
    %v11072 = vpop.f32.mrf.mxu0
    %v11073 = vpop.f32.mrf.mxu0
    %v11074 = vadd.f32 0.0, %v11073
    %v11075 = vpop.f32.mrf.mxu0
    %11076 = vmatprep.mubr.bf16.mxu0 %v2476
    %11077 = vmatmul.mubr.bf16.gmra.mxu0 %v2475
    %v11078 = vpop.f32.mrf.mxu0
    %v11079 = vadd.f32 0.0, %v11078
    %v11080 = vpop.f32.mrf.mxu0
    %v11081 = vpop.f32.mrf.mxu0
    %v11082 = vadd.f32 0.0, %v11081
    %v11083 = vpop.f32.mrf.mxu0
    %11084 = vmatprep.mubr.bf16.mxu0 %v2490
    %11085 = vmatmul.mubr.bf16.gmra.mxu0 %v2489
    %v11086 = vpop.f32.mrf.mxu0
    %v11087 = vadd.f32 0.0, %v11086
    %v11088 = vpop.f32.mrf.mxu0
    %v11089 = vpop.f32.mrf.mxu0
    %v11090 = vadd.f32 0.0, %v11089
    %v11091 = vpop.f32.mrf.mxu0
    %11092 = vmatprep.mubr.bf16.mxu0 %v2504
    %11093 = vmatmul.mubr.bf16.gmra.mxu0 %v2503
    %v11094 = vpop.f32.mrf.mxu0
    %v11095 = vadd.f32 0.0, %v11094
    %v11096 = vpop.f32.mrf.mxu0
    %v11097 = vpop.f32.mrf.mxu0
    %v11098 = vadd.f32 0.0, %v11097
    %v11099 = vpop.f32.mrf.mxu0
    %11100 = vmatprep.mubr.bf16.mxu0 %v2518
    %11101 = vmatmul.mubr.bf16.gmra.mxu0 %v2517
    %v11102 = vpop.f32.mrf.mxu0
    %v11103 = vadd.f32 0.0, %v11102
    %v11104 = vpop.f32.mrf.mxu0
    %v11105 = vpop.f32.mrf.mxu0
    %v11106 = vadd.f32 0.0, %v11105
    %v11107 = vpop.f32.mrf.mxu0
    %11108 = vmatprep.mubr.bf16.mxu0 %v2532
    %11109 = vmatmul.mubr.bf16.gmra.mxu0 %v2531
    %v11110 = vpop.f32.mrf.mxu0
    %v11111 = vadd.f32 0.0, %v11110
    %v11112 = vpop.f32.mrf.mxu0
    %v11113 = vpop.f32.mrf.mxu0
    %v11114 = vadd.f32 0.0, %v11113
    %v11115 = vpop.f32.mrf.mxu0
    %11116 = vmatprep.mubr.bf16.mxu0 %v2546
    %11117 = vmatmul.mubr.bf16.gmra.mxu0 %v2545
    %v11118 = vpop.f32.mrf.mxu0
    %v11119 = vadd.f32 0.0, %v11118
    %v11120 = vpop.f32.mrf.mxu0
    %v11121 = vpop.f32.mrf.mxu0
    %v11122 = vadd.f32 0.0, %v11121
    %v11123 = vpop.f32.mrf.mxu0
    %11124 = vmatprep.mubr.bf16.mxu0 %v2560
    %11125 = vmatmul.mubr.bf16.gmra.mxu0 %v2559
    %v11126 = vpop.f32.mrf.mxu0
    %v11127 = vadd.f32 0.0, %v11126
    %v11128 = vpop.f32.mrf.mxu0
    %v11129 = vpop.f32.mrf.mxu0
    %v11130 = vadd.f32 0.0, %v11129
    %v11131 = vpop.f32.mrf.mxu0
    %11132 = vmatprep.mubr.bf16.mxu0 %v2574
    %11133 = vmatmul.mubr.bf16.gmra.mxu0 %v2573
    %v11134 = vpop.f32.mrf.mxu0
    %v11135 = vadd.f32 0.0, %v11134
    %v11136 = vpop.f32.mrf.mxu0
    %v11137 = vpop.f32.mrf.mxu0
    %v11138 = vadd.f32 0.0, %v11137
    %v11139 = vpop.f32.mrf.mxu0
    %11140 = vmatprep.mubr.bf16.mxu0 %v2588
    %11141 = vmatmul.mubr.bf16.gmra.mxu0 %v2587
    %v11142 = vpop.f32.mrf.mxu0
    %v11143 = vadd.f32 0.0, %v11142
    %v11144 = vpop.f32.mrf.mxu0
    %v11145 = vpop.f32.mrf.mxu0
    %v11146 = vadd.f32 0.0, %v11145
    %v11147 = vpop.f32.mrf.mxu0
    %11148 = vdwg.mxu0
    %11149 = vmatprep.subr.bf16.mxu0 0
    %11150 = vmatpush1.bf16.msra.mxu0 %v8923
    %11151 = vmatprep.subr.bf16.mxu0 0
    %11152 = vmatpush1.bf16.msra.mxu0 %v8918
    %11153 = vmatprep.subr.bf16.mxu0 0
    %11154 = vmatpush1.bf16.msra.mxu0 %v8913
    %11155 = vmatprep.subr.bf16.mxu0 0
    %11156 = vmatpush1.bf16.msra.mxu0 %v8908
    %11157 = vmatprep.subr.bf16.mxu0 0
    %11158 = vmatpush1.bf16.msra.mxu0 %v8903
    %11159 = vmatprep.subr.bf16.mxu0 0
    %11160 = vmatpush1.bf16.msra.mxu0 %v8898
    %11161 = vmatprep.subr.bf16.mxu0 0
    %11162 = vmatpush1.bf16.msra.mxu0 %v8893
    %11163 = vmatprep.subr.bf16.mxu0 0
    %11164 = vmatpush1.bf16.msra.mxu0 %v8888
    %11165 = vmatprep.subr.bf16.mxu0 0
    %11166 = vmatpush2.bf16.msra.mxu0 %v8963
    %11167 = vmatprep.subr.bf16.mxu0 0
    %11168 = vmatpush2.bf16.msra.mxu0 %v8958
    %11169 = vmatprep.subr.bf16.mxu0 0
    %11170 = vmatpush2.bf16.msra.mxu0 %v8953
    %11171 = vmatprep.subr.bf16.mxu0 0
    %11172 = vmatpush2.bf16.msra.mxu0 %v8948
    %11173 = vmatprep.subr.bf16.mxu0 0
    %11174 = vmatpush2.bf16.msra.mxu0 %v8943
    %11175 = vmatprep.subr.bf16.mxu0 0
    %11176 = vmatpush2.bf16.msra.mxu0 %v8938
    %11177 = vmatprep.subr.bf16.mxu0 0
    %11178 = vmatpush2.bf16.msra.mxu0 %v8933
    %11179 = vmatprep.subr.bf16.mxu0 0
    %11180 = vmatpush2.bf16.msra.mxu0 %v8928
    %11181 = vmatprep.mubr.bf16.mxu0 %v2380
    %11182 = vmatmul.mubr.bf16.gmra.mxu0 %v2379
    %v11183 = vpop.f32.mrf.mxu0
    %v11184 = vadd.f32 %v11023, %v11183
    %v11185 = vpop.f32.mrf.mxu0
    %v11186 = vpop.f32.mrf.mxu0
    %v11187 = vadd.f32 %v11026, %v11186
    %v11188 = vpop.f32.mrf.mxu0
    %11189 = vmatprep.mubr.bf16.mxu0 %v2394
    %11190 = vmatmul.mubr.bf16.gmra.mxu0 %v2393
    %v11191 = vpop.f32.mrf.mxu0
    %v11192 = vadd.f32 %v11031, %v11191
    %v11193 = vpop.f32.mrf.mxu0
    %v11194 = vpop.f32.mrf.mxu0
    %v11195 = vadd.f32 %v11034, %v11194
    %v11196 = vpop.f32.mrf.mxu0
    %11197 = vmatprep.mubr.bf16.mxu0 %v2408
    %11198 = vmatmul.mubr.bf16.gmra.mxu0 %v2407
    %v11199 = vpop.f32.mrf.mxu0
    %v11200 = vadd.f32 %v11039, %v11199
    %v11201 = vpop.f32.mrf.mxu0
    %v11202 = vpop.f32.mrf.mxu0
    %v11203 = vadd.f32 %v11042, %v11202
    %v11204 = vpop.f32.mrf.mxu0
    %11205 = vmatprep.mubr.bf16.mxu0 %v2422
    %11206 = vmatmul.mubr.bf16.gmra.mxu0 %v2421
    %v11207 = vpop.f32.mrf.mxu0
    %v11208 = vadd.f32 %v11047, %v11207
    %v11209 = vpop.f32.mrf.mxu0
    %v11210 = vpop.f32.mrf.mxu0
    %v11211 = vadd.f32 %v11050, %v11210
    %v11212 = vpop.f32.mrf.mxu0
    %11213 = vmatprep.mubr.bf16.mxu0 %v2436
    %11214 = vmatmul.mubr.bf16.gmra.mxu0 %v2435
    %v11215 = vpop.f32.mrf.mxu0
    %v11216 = vadd.f32 %v11055, %v11215
    %v11217 = vpop.f32.mrf.mxu0
    %v11218 = vpop.f32.mrf.mxu0
    %v11219 = vadd.f32 %v11058, %v11218
    %v11220 = vpop.f32.mrf.mxu0
    %11221 = vmatprep.mubr.bf16.mxu0 %v2450
    %11222 = vmatmul.mubr.bf16.gmra.mxu0 %v2449
    %v11223 = vpop.f32.mrf.mxu0
    %v11224 = vadd.f32 %v11063, %v11223
    %v11225 = vpop.f32.mrf.mxu0
    %v11226 = vpop.f32.mrf.mxu0
    %v11227 = vadd.f32 %v11066, %v11226
    %v11228 = vpop.f32.mrf.mxu0
    %11229 = vmatprep.mubr.bf16.mxu0 %v2464
    %11230 = vmatmul.mubr.bf16.gmra.mxu0 %v2463
    %v11231 = vpop.f32.mrf.mxu0
    %v11232 = vadd.f32 %v11071, %v11231
    %v11233 = vpop.f32.mrf.mxu0
    %v11234 = vpop.f32.mrf.mxu0
    %v11235 = vadd.f32 %v11074, %v11234
    %v11236 = vpop.f32.mrf.mxu0
    %11237 = vmatprep.mubr.bf16.mxu0 %v2478
    %11238 = vmatmul.mubr.bf16.gmra.mxu0 %v2477
    %v11239 = vpop.f32.mrf.mxu0
    %v11240 = vadd.f32 %v11079, %v11239
    %v11241 = vpop.f32.mrf.mxu0
    %v11242 = vpop.f32.mrf.mxu0
    %v11243 = vadd.f32 %v11082, %v11242
    %v11244 = vpop.f32.mrf.mxu0
    %11245 = vmatprep.mubr.bf16.mxu0 %v2492
    %11246 = vmatmul.mubr.bf16.gmra.mxu0 %v2491
    %v11247 = vpop.f32.mrf.mxu0
    %v11248 = vadd.f32 %v11087, %v11247
    %v11249 = vpop.f32.mrf.mxu0
    %v11250 = vpop.f32.mrf.mxu0
    %v11251 = vadd.f32 %v11090, %v11250
    %v11252 = vpop.f32.mrf.mxu0
    %11253 = vmatprep.mubr.bf16.mxu0 %v2506
    %11254 = vmatmul.mubr.bf16.gmra.mxu0 %v2505
    %v11255 = vpop.f32.mrf.mxu0
    %v11256 = vadd.f32 %v11095, %v11255
    %v11257 = vpop.f32.mrf.mxu0
    %v11258 = vpop.f32.mrf.mxu0
    %v11259 = vadd.f32 %v11098, %v11258
    %v11260 = vpop.f32.mrf.mxu0
    %11261 = vmatprep.mubr.bf16.mxu0 %v2520
    %11262 = vmatmul.mubr.bf16.gmra.mxu0 %v2519
    %v11263 = vpop.f32.mrf.mxu0
    %v11264 = vadd.f32 %v11103, %v11263
    %v11265 = vpop.f32.mrf.mxu0
    %v11266 = vpop.f32.mrf.mxu0
    %v11267 = vadd.f32 %v11106, %v11266
    %v11268 = vpop.f32.mrf.mxu0
    %11269 = vmatprep.mubr.bf16.mxu0 %v2534
    %11270 = vmatmul.mubr.bf16.gmra.mxu0 %v2533
    %v11271 = vpop.f32.mrf.mxu0
    %v11272 = vadd.f32 %v11111, %v11271
    %v11273 = vpop.f32.mrf.mxu0
    %v11274 = vpop.f32.mrf.mxu0
    %v11275 = vadd.f32 %v11114, %v11274
    %v11276 = vpop.f32.mrf.mxu0
    %11277 = vmatprep.mubr.bf16.mxu0 %v2548
    %11278 = vmatmul.mubr.bf16.gmra.mxu0 %v2547
    %v11279 = vpop.f32.mrf.mxu0
    %v11280 = vadd.f32 %v11119, %v11279
    %v11281 = vpop.f32.mrf.mxu0
    %v11282 = vpop.f32.mrf.mxu0
    %v11283 = vadd.f32 %v11122, %v11282
    %v11284 = vpop.f32.mrf.mxu0
    %11285 = vmatprep.mubr.bf16.mxu0 %v2562
    %11286 = vmatmul.mubr.bf16.gmra.mxu0 %v2561
    %v11287 = vpop.f32.mrf.mxu0
    %v11288 = vadd.f32 %v11127, %v11287
    %v11289 = vpop.f32.mrf.mxu0
    %v11290 = vpop.f32.mrf.mxu0
    %v11291 = vadd.f32 %v11130, %v11290
    %v11292 = vpop.f32.mrf.mxu0
    %11293 = vmatprep.mubr.bf16.mxu0 %v2576
    %11294 = vmatmul.mubr.bf16.gmra.mxu0 %v2575
    %v11295 = vpop.f32.mrf.mxu0
    %v11296 = vadd.f32 %v11135, %v11295
    %v11297 = vpop.f32.mrf.mxu0
    %v11298 = vpop.f32.mrf.mxu0
    %v11299 = vadd.f32 %v11138, %v11298
    %v11300 = vpop.f32.mrf.mxu0
    %11301 = vmatprep.mubr.bf16.mxu0 %v2590
    %11302 = vmatmul.mubr.bf16.gmra.mxu0 %v2589
    %v11303 = vpop.f32.mrf.mxu0
    %v11304 = vadd.f32 %v11143, %v11303
    %v11305 = vpop.f32.mrf.mxu0
    %v11306 = vpop.f32.mrf.mxu0
    %v11307 = vadd.f32 %v11146, %v11306
    %v11308 = vpop.f32.mrf.mxu0
    %11309 = vdwg.mxu0
    %11310 = vmatprep.subr.bf16.mxu0 0
    %11311 = vmatpush1.bf16.msra.mxu0 %v9003
    %11312 = vmatprep.subr.bf16.mxu0 0
    %11313 = vmatpush1.bf16.msra.mxu0 %v8998
    %11314 = vmatprep.subr.bf16.mxu0 0
    %11315 = vmatpush1.bf16.msra.mxu0 %v8993
    %11316 = vmatprep.subr.bf16.mxu0 0
    %11317 = vmatpush1.bf16.msra.mxu0 %v8988
    %11318 = vmatprep.subr.bf16.mxu0 0
    %11319 = vmatpush1.bf16.msra.mxu0 %v8983
    %11320 = vmatprep.subr.bf16.mxu0 0
    %11321 = vmatpush1.bf16.msra.mxu0 %v8978
    %11322 = vmatprep.subr.bf16.mxu0 0
    %11323 = vmatpush1.bf16.msra.mxu0 %v8973
    %11324 = vmatprep.subr.bf16.mxu0 0
    %11325 = vmatpush1.bf16.msra.mxu0 %v8968
    %11326 = vmatprep.subr.bf16.mxu0 0
    %11327 = vmatpush2.bf16.msra.mxu0 %v9043
    %11328 = vmatprep.subr.bf16.mxu0 0
    %11329 = vmatpush2.bf16.msra.mxu0 %v9038
    %11330 = vmatprep.subr.bf16.mxu0 0
    %11331 = vmatpush2.bf16.msra.mxu0 %v9033
    %11332 = vmatprep.subr.bf16.mxu0 0
    %11333 = vmatpush2.bf16.msra.mxu0 %v9028
    %11334 = vmatprep.subr.bf16.mxu0 0
    %11335 = vmatpush2.bf16.msra.mxu0 %v9023
    %11336 = vmatprep.subr.bf16.mxu0 0
    %11337 = vmatpush2.bf16.msra.mxu0 %v9018
    %11338 = vmatprep.subr.bf16.mxu0 0
    %11339 = vmatpush2.bf16.msra.mxu0 %v9013
    %11340 = vmatprep.subr.bf16.mxu0 0
    %11341 = vmatpush2.bf16.msra.mxu0 %v9008
    %11342 = vmatprep.mubr.bf16.mxu0 %v2382
    %11343 = vmatmul.mubr.bf16.gmra.mxu0 %v2381
    %v11344 = vpop.f32.mrf.mxu0
    %v11345 = vadd.f32 %v11184, %v11344
    %v11346 = vpop.f32.mrf.mxu0
    %v11347 = vpop.f32.mrf.mxu0
    %v11348 = vadd.f32 %v11187, %v11347
    %v11349 = vpop.f32.mrf.mxu0
    %11350 = vmatprep.mubr.bf16.mxu0 %v2396
    %11351 = vmatmul.mubr.bf16.gmra.mxu0 %v2395
    %v11352 = vpop.f32.mrf.mxu0
    %v11353 = vadd.f32 %v11192, %v11352
    %v11354 = vpop.f32.mrf.mxu0
    %v11355 = vpop.f32.mrf.mxu0
    %v11356 = vadd.f32 %v11195, %v11355
    %v11357 = vpop.f32.mrf.mxu0
    %11358 = vmatprep.mubr.bf16.mxu0 %v2410
    %11359 = vmatmul.mubr.bf16.gmra.mxu0 %v2409
    %v11360 = vpop.f32.mrf.mxu0
    %v11361 = vadd.f32 %v11200, %v11360
    %v11362 = vpop.f32.mrf.mxu0
    %v11363 = vpop.f32.mrf.mxu0
    %v11364 = vadd.f32 %v11203, %v11363
    %v11365 = vpop.f32.mrf.mxu0
    %11366 = vmatprep.mubr.bf16.mxu0 %v2424
    %11367 = vmatmul.mubr.bf16.gmra.mxu0 %v2423
    %v11368 = vpop.f32.mrf.mxu0
    %v11369 = vadd.f32 %v11208, %v11368
    %v11370 = vpop.f32.mrf.mxu0
    %v11371 = vpop.f32.mrf.mxu0
    %v11372 = vadd.f32 %v11211, %v11371
    %v11373 = vpop.f32.mrf.mxu0
    %11374 = vmatprep.mubr.bf16.mxu0 %v2438
    %11375 = vmatmul.mubr.bf16.gmra.mxu0 %v2437
    %v11376 = vpop.f32.mrf.mxu0
    %v11377 = vadd.f32 %v11216, %v11376
    %v11378 = vpop.f32.mrf.mxu0
    %v11379 = vpop.f32.mrf.mxu0
    %v11380 = vadd.f32 %v11219, %v11379
    %v11381 = vpop.f32.mrf.mxu0
    %11382 = vmatprep.mubr.bf16.mxu0 %v2452
    %11383 = vmatmul.mubr.bf16.gmra.mxu0 %v2451
    %v11384 = vpop.f32.mrf.mxu0
    %v11385 = vadd.f32 %v11224, %v11384
    %v11386 = vpop.f32.mrf.mxu0
    %v11387 = vpop.f32.mrf.mxu0
    %v11388 = vadd.f32 %v11227, %v11387
    %v11389 = vpop.f32.mrf.mxu0
    %11390 = vmatprep.mubr.bf16.mxu0 %v2466
    %11391 = vmatmul.mubr.bf16.gmra.mxu0 %v2465
    %v11392 = vpop.f32.mrf.mxu0
    %v11393 = vadd.f32 %v11232, %v11392
    %v11394 = vpop.f32.mrf.mxu0
    %v11395 = vpop.f32.mrf.mxu0
    %v11396 = vadd.f32 %v11235, %v11395
    %v11397 = vpop.f32.mrf.mxu0
    %11398 = vmatprep.mubr.bf16.mxu0 %v2480
    %11399 = vmatmul.mubr.bf16.gmra.mxu0 %v2479
    %v11400 = vpop.f32.mrf.mxu0
    %v11401 = vadd.f32 %v11240, %v11400
    %v11402 = vpop.f32.mrf.mxu0
    %v11403 = vpop.f32.mrf.mxu0
    %v11404 = vadd.f32 %v11243, %v11403
    %v11405 = vpop.f32.mrf.mxu0
    %11406 = vmatprep.mubr.bf16.mxu0 %v2494
    %11407 = vmatmul.mubr.bf16.gmra.mxu0 %v2493
    %v11408 = vpop.f32.mrf.mxu0
    %v11409 = vadd.f32 %v11248, %v11408
    %v11410 = vpop.f32.mrf.mxu0
    %v11411 = vpop.f32.mrf.mxu0
    %v11412 = vadd.f32 %v11251, %v11411
    %v11413 = vpop.f32.mrf.mxu0
    %11414 = vmatprep.mubr.bf16.mxu0 %v2508
    %11415 = vmatmul.mubr.bf16.gmra.mxu0 %v2507
    %v11416 = vpop.f32.mrf.mxu0
    %v11417 = vadd.f32 %v11256, %v11416
    %v11418 = vpop.f32.mrf.mxu0
    %v11419 = vpop.f32.mrf.mxu0
    %v11420 = vadd.f32 %v11259, %v11419
    %v11421 = vpop.f32.mrf.mxu0
    %11422 = vmatprep.mubr.bf16.mxu0 %v2522
    %11423 = vmatmul.mubr.bf16.gmra.mxu0 %v2521
    %v11424 = vpop.f32.mrf.mxu0
    %v11425 = vadd.f32 %v11264, %v11424
    %v11426 = vpop.f32.mrf.mxu0
    %v11427 = vpop.f32.mrf.mxu0
    %v11428 = vadd.f32 %v11267, %v11427
    %v11429 = vpop.f32.mrf.mxu0
    %11430 = vmatprep.mubr.bf16.mxu0 %v2536
    %11431 = vmatmul.mubr.bf16.gmra.mxu0 %v2535
    %v11432 = vpop.f32.mrf.mxu0
    %v11433 = vadd.f32 %v11272, %v11432
    %v11434 = vpop.f32.mrf.mxu0
    %v11435 = vpop.f32.mrf.mxu0
    %v11436 = vadd.f32 %v11275, %v11435
    %v11437 = vpop.f32.mrf.mxu0
    %11438 = vmatprep.mubr.bf16.mxu0 %v2550
    %11439 = vmatmul.mubr.bf16.gmra.mxu0 %v2549
    %v11440 = vpop.f32.mrf.mxu0
    %v11441 = vadd.f32 %v11280, %v11440
    %v11442 = vpop.f32.mrf.mxu0
    %v11443 = vpop.f32.mrf.mxu0
    %v11444 = vadd.f32 %v11283, %v11443
    %v11445 = vpop.f32.mrf.mxu0
    %11446 = vmatprep.mubr.bf16.mxu0 %v2564
    %11447 = vmatmul.mubr.bf16.gmra.mxu0 %v2563
    %v11448 = vpop.f32.mrf.mxu0
    %v11449 = vadd.f32 %v11288, %v11448
    %v11450 = vpop.f32.mrf.mxu0
    %v11451 = vpop.f32.mrf.mxu0
    %v11452 = vadd.f32 %v11291, %v11451
    %v11453 = vpop.f32.mrf.mxu0
    %11454 = vmatprep.mubr.bf16.mxu0 %v2578
    %11455 = vmatmul.mubr.bf16.gmra.mxu0 %v2577
    %v11456 = vpop.f32.mrf.mxu0
    %v11457 = vadd.f32 %v11296, %v11456
    %v11458 = vpop.f32.mrf.mxu0
    %v11459 = vpop.f32.mrf.mxu0
    %v11460 = vadd.f32 %v11299, %v11459
    %v11461 = vpop.f32.mrf.mxu0
    %11462 = vmatprep.mubr.bf16.mxu0 %v2592
    %11463 = vmatmul.mubr.bf16.gmra.mxu0 %v2591
    %v11464 = vpop.f32.mrf.mxu0
    %v11465 = vadd.f32 %v11304, %v11464
    %v11466 = vpop.f32.mrf.mxu0
    %v11467 = vpop.f32.mrf.mxu0
    %v11468 = vadd.f32 %v11307, %v11467
    %v11469 = vpop.f32.mrf.mxu0
    %11470 = vdwg.mxu0
    %11471 = vmatprep.subr.bf16.mxu0 0
    %11472 = vmatpush1.bf16.msra.mxu0 %v9083
    %11473 = vmatprep.subr.bf16.mxu0 0
    %11474 = vmatpush1.bf16.msra.mxu0 %v9078
    %11475 = vmatprep.subr.bf16.mxu0 0
    %11476 = vmatpush1.bf16.msra.mxu0 %v9073
    %11477 = vmatprep.subr.bf16.mxu0 0
    %11478 = vmatpush1.bf16.msra.mxu0 %v9068
    %11479 = vmatprep.subr.bf16.mxu0 0
    %11480 = vmatpush1.bf16.msra.mxu0 %v9063
    %11481 = vmatprep.subr.bf16.mxu0 0
    %11482 = vmatpush1.bf16.msra.mxu0 %v9058
    %11483 = vmatprep.subr.bf16.mxu0 0
    %11484 = vmatpush1.bf16.msra.mxu0 %v9053
    %11485 = vmatprep.subr.bf16.mxu0 0
    %11486 = vmatpush1.bf16.msra.mxu0 %v9048
    %11487 = vmatprep.subr.bf16.mxu0 0
    %11488 = vmatpush2.bf16.msra.mxu0 %v9123
    %11489 = vmatprep.subr.bf16.mxu0 0
    %11490 = vmatpush2.bf16.msra.mxu0 %v9118
    %11491 = vmatprep.subr.bf16.mxu0 0
    %11492 = vmatpush2.bf16.msra.mxu0 %v9113
    %11493 = vmatprep.subr.bf16.mxu0 0
    %11494 = vmatpush2.bf16.msra.mxu0 %v9108
    %11495 = vmatprep.subr.bf16.mxu0 0
    %11496 = vmatpush2.bf16.msra.mxu0 %v9103
    %11497 = vmatprep.subr.bf16.mxu0 0
    %11498 = vmatpush2.bf16.msra.mxu0 %v9098
    %11499 = vmatprep.subr.bf16.mxu0 0
    %11500 = vmatpush2.bf16.msra.mxu0 %v9093
    %11501 = vmatprep.subr.bf16.mxu0 0
    %11502 = vmatpush2.bf16.msra.mxu0 %v9088
    %11503 = vmatprep.mubr.bf16.mxu0 %v2984
    %11504 = vmatmul.mubr.bf16.gmra.mxu0 %v2383
    %v11505 = vpop.f32.mrf.mxu0
    %v11506 = vadd.f32 %v11345, %v11505
    %v11507 = vpop.f32.mrf.mxu0
    %v11508 = vpop.f32.mrf.mxu0
    %v11509 = vadd.f32 %v11348, %v11508
    %v11510 = vpop.f32.mrf.mxu0
    %11511 = vmatprep.mubr.bf16.mxu0 %v2985
    %11512 = vmatmul.mubr.bf16.gmra.mxu0 %v2397
    %v11513 = vpop.f32.mrf.mxu0
    %v11514 = vadd.f32 %v11353, %v11513
    %v11515 = vpop.f32.mrf.mxu0
    %v11516 = vpop.f32.mrf.mxu0
    %v11517 = vadd.f32 %v11356, %v11516
    %v11518 = vpop.f32.mrf.mxu0
    %11519 = vmatprep.mubr.bf16.mxu0 %v2986
    %11520 = vmatmul.mubr.bf16.gmra.mxu0 %v2411
    %v11521 = vpop.f32.mrf.mxu0
    %v11522 = vadd.f32 %v11361, %v11521
    %v11523 = vpop.f32.mrf.mxu0
    %v11524 = vpop.f32.mrf.mxu0
    %v11525 = vadd.f32 %v11364, %v11524
    %v11526 = vpop.f32.mrf.mxu0
    %11527 = vmatprep.mubr.bf16.mxu0 %v2987
    %11528 = vmatmul.mubr.bf16.gmra.mxu0 %v2425
    %v11529 = vpop.f32.mrf.mxu0
    %v11530 = vadd.f32 %v11369, %v11529
    %v11531 = vpop.f32.mrf.mxu0
    %v11532 = vpop.f32.mrf.mxu0
    %v11533 = vadd.f32 %v11372, %v11532
    %v11534 = vpop.f32.mrf.mxu0
    %11535 = vmatprep.mubr.bf16.mxu0 %v2988
    %11536 = vmatmul.mubr.bf16.gmra.mxu0 %v2439
    %v11537 = vpop.f32.mrf.mxu0
    %v11538 = vadd.f32 %v11377, %v11537
    %v11539 = vpop.f32.mrf.mxu0
    %v11540 = vpop.f32.mrf.mxu0
    %v11541 = vadd.f32 %v11380, %v11540
    %v11542 = vpop.f32.mrf.mxu0
    %11543 = vmatprep.mubr.bf16.mxu0 %v2989
    %11544 = vmatmul.mubr.bf16.gmra.mxu0 %v2453
    %v11545 = vpop.f32.mrf.mxu0
    %v11546 = vadd.f32 %v11385, %v11545
    %v11547 = vpop.f32.mrf.mxu0
    %v11548 = vpop.f32.mrf.mxu0
    %v11549 = vadd.f32 %v11388, %v11548
    %v11550 = vpop.f32.mrf.mxu0
    %11551 = vmatprep.mubr.bf16.mxu0 %v2990
    %11552 = vmatmul.mubr.bf16.gmra.mxu0 %v2467
    %v11553 = vpop.f32.mrf.mxu0
    %v11554 = vadd.f32 %v11393, %v11553
    %v11555 = vpop.f32.mrf.mxu0
    %v11556 = vpop.f32.mrf.mxu0
    %v11557 = vadd.f32 %v11396, %v11556
    %v11558 = vpop.f32.mrf.mxu0
    %11559 = vmatprep.mubr.bf16.mxu0 %v2991
    %11560 = vmatmul.mubr.bf16.gmra.mxu0 %v2481
    %v11561 = vpop.f32.mrf.mxu0
    %v11562 = vadd.f32 %v11401, %v11561
    %v11563 = vpop.f32.mrf.mxu0
    %v11564 = vpop.f32.mrf.mxu0
    %v11565 = vadd.f32 %v11404, %v11564
    %v11566 = vpop.f32.mrf.mxu0
    %11567 = vmatprep.mubr.bf16.mxu0 %v2992
    %11568 = vmatmul.mubr.bf16.gmra.mxu0 %v2495
    %v11569 = vpop.f32.mrf.mxu0
    %v11570 = vadd.f32 %v11409, %v11569
    %v11571 = vpop.f32.mrf.mxu0
    %v11572 = vpop.f32.mrf.mxu0
    %v11573 = vadd.f32 %v11412, %v11572
    %v11574 = vpop.f32.mrf.mxu0
    %11575 = vmatprep.mubr.bf16.mxu0 %v2993
    %11576 = vmatmul.mubr.bf16.gmra.mxu0 %v2509
    %v11577 = vpop.f32.mrf.mxu0
    %v11578 = vadd.f32 %v11417, %v11577
    %v11579 = vpop.f32.mrf.mxu0
    %v11580 = vpop.f32.mrf.mxu0
    %v11581 = vadd.f32 %v11420, %v11580
    %v11582 = vpop.f32.mrf.mxu0
    %11583 = vmatprep.mubr.bf16.mxu0 %v2994
    %11584 = vmatmul.mubr.bf16.gmra.mxu0 %v2523
    %v11585 = vpop.f32.mrf.mxu0
    %v11586 = vadd.f32 %v11425, %v11585
    %v11587 = vpop.f32.mrf.mxu0
    %v11588 = vpop.f32.mrf.mxu0
    %v11589 = vadd.f32 %v11428, %v11588
    %v11590 = vpop.f32.mrf.mxu0
    %11591 = vmatprep.mubr.bf16.mxu0 %v2995
    %11592 = vmatmul.mubr.bf16.gmra.mxu0 %v2537
    %v11593 = vpop.f32.mrf.mxu0
    %v11594 = vadd.f32 %v11433, %v11593
    %v11595 = vpop.f32.mrf.mxu0
    %v11596 = vpop.f32.mrf.mxu0
    %v11597 = vadd.f32 %v11436, %v11596
    %v11598 = vpop.f32.mrf.mxu0
    %11599 = vmatprep.mubr.bf16.mxu0 %v2996
    %11600 = vmatmul.mubr.bf16.gmra.mxu0 %v2551
    %v11601 = vpop.f32.mrf.mxu0
    %v11602 = vadd.f32 %v11441, %v11601
    %v11603 = vpop.f32.mrf.mxu0
    %v11604 = vpop.f32.mrf.mxu0
    %v11605 = vadd.f32 %v11444, %v11604
    %v11606 = vpop.f32.mrf.mxu0
    %11607 = vmatprep.mubr.bf16.mxu0 %v2997
    %11608 = vmatmul.mubr.bf16.gmra.mxu0 %v2565
    %v11609 = vpop.f32.mrf.mxu0
    %v11610 = vadd.f32 %v11449, %v11609
    %v11611 = vpop.f32.mrf.mxu0
    %v11612 = vpop.f32.mrf.mxu0
    %v11613 = vadd.f32 %v11452, %v11612
    %v11614 = vpop.f32.mrf.mxu0
    %11615 = vmatprep.mubr.bf16.mxu0 %v2998
    %11616 = vmatmul.mubr.bf16.gmra.mxu0 %v2579
    %v11617 = vpop.f32.mrf.mxu0
    %v11618 = vadd.f32 %v11457, %v11617
    %v11619 = vpop.f32.mrf.mxu0
    %v11620 = vpop.f32.mrf.mxu0
    %v11621 = vadd.f32 %v11460, %v11620
    %v11622 = vpop.f32.mrf.mxu0
    %11623 = vmatprep.mubr.bf16.mxu0 %v2999
    %11624 = vmatmul.mubr.bf16.gmra.mxu0 %v2593
    %v11625 = vpop.f32.mrf.mxu0
    %v11626 = vadd.f32 %v11465, %v11625
    %v11627 = vpop.f32.mrf.mxu0
    %v11628 = vpop.f32.mrf.mxu0
    %v11629 = vadd.f32 %v11468, %v11628
    %v11630 = vpop.f32.mrf.mxu0
    %11631 = vdwg.mxu0
    %v11632 = vmax.f32 %v10058, 0.0
    %v11633 = vmax.f32 %v10060, 0.0
    %v11634 = vmax.f32 %v10830, 0.0
    %v11635 = vmax.f32 %v10832, 0.0
    %v11636 = vmax.f32 %v11506, 0.0
    %v11637 = vmax.f32 %v10062, 0.0
    %v11638 = vmax.f32 %v10064, 0.0
    %v11639 = vmax.f32 %v10834, 0.0
    %v11640 = vmax.f32 %v10836, 0.0
    %v11641 = vmax.f32 %v11509, 0.0
    %v11642 = vmax.f32 %v10068, 0.0
    %v11643 = vmax.f32 %v10070, 0.0
    %v11644 = vmax.f32 %v10840, 0.0
    %v11645 = vmax.f32 %v10842, 0.0
    %v11646 = vmax.f32 %v11514, 0.0
    %v11647 = vmax.f32 %v10072, 0.0
    %v11648 = vmax.f32 %v10074, 0.0
    %v11649 = vmax.f32 %v10844, 0.0
    %v11650 = vmax.f32 %v10846, 0.0
    %v11651 = vmax.f32 %v11517, 0.0
    %v11652 = vmax.f32 %v10078, 0.0
    %v11653 = vmax.f32 %v10080, 0.0
    %v11654 = vmax.f32 %v10850, 0.0
    %v11655 = vmax.f32 %v10852, 0.0
    %v11656 = vmax.f32 %v11522, 0.0
    %v11657 = vmax.f32 %v10082, 0.0
    %v11658 = vmax.f32 %v10084, 0.0
    %v11659 = vmax.f32 %v10854, 0.0
    %v11660 = vmax.f32 %v10856, 0.0
    %v11661 = vmax.f32 %v11525, 0.0
    %v11662 = vmax.f32 %v10088, 0.0
    %v11663 = vmax.f32 %v10090, 0.0
    %v11664 = vmax.f32 %v10860, 0.0
    %v11665 = vmax.f32 %v10862, 0.0
    %v11666 = vmax.f32 %v11530, 0.0
    %v11667 = vmax.f32 %v10092, 0.0
    %v11668 = vmax.f32 %v10094, 0.0
    %v11669 = vmax.f32 %v10864, 0.0
    %v11670 = vmax.f32 %v10866, 0.0
    %v11671 = vmax.f32 %v11533, 0.0
    %v11672 = vmax.f32 %v10098, 0.0
    %v11673 = vmax.f32 %v10100, 0.0
    %v11674 = vmax.f32 %v10870, 0.0
    %v11675 = vmax.f32 %v10872, 0.0
    %v11676 = vmax.f32 %v11538, 0.0
    %v11677 = vmax.f32 %v10102, 0.0
    %v11678 = vmax.f32 %v10104, 0.0
    %v11679 = vmax.f32 %v10874, 0.0
    %v11680 = vmax.f32 %v10876, 0.0
    %v11681 = vmax.f32 %v11541, 0.0
    %v11682 = vmax.f32 %v10108, 0.0
    %v11683 = vmax.f32 %v10110, 0.0
    %v11684 = vmax.f32 %v10880, 0.0
    %v11685 = vmax.f32 %v10882, 0.0
    %v11686 = vmax.f32 %v11546, 0.0
    %v11687 = vmax.f32 %v10112, 0.0
    %v11688 = vmax.f32 %v10114, 0.0
    %v11689 = vmax.f32 %v10884, 0.0
    %v11690 = vmax.f32 %v10886, 0.0
    %v11691 = vmax.f32 %v11549, 0.0
    %v11692 = vmax.f32 %v10118, 0.0
    %v11693 = vmax.f32 %v10120, 0.0
    %v11694 = vmax.f32 %v10890, 0.0
    %v11695 = vmax.f32 %v10892, 0.0
    %v11696 = vmax.f32 %v11554, 0.0
    %v11697 = vmax.f32 %v10122, 0.0
    %v11698 = vmax.f32 %v10124, 0.0
    %v11699 = vmax.f32 %v10894, 0.0
    %v11700 = vmax.f32 %v10896, 0.0
    %v11701 = vmax.f32 %v11557, 0.0
    %v11702 = vmax.f32 %v10128, 0.0
    %v11703 = vmax.f32 %v10130, 0.0
    %v11704 = vmax.f32 %v10900, 0.0
    %v11705 = vmax.f32 %v10902, 0.0
    %v11706 = vmax.f32 %v11562, 0.0
    %v11707 = vmax.f32 %v10132, 0.0
    %v11708 = vmax.f32 %v10134, 0.0
    %v11709 = vmax.f32 %v10904, 0.0
    %v11710 = vmax.f32 %v10906, 0.0
    %v11711 = vmax.f32 %v11565, 0.0
    %v11712 = vmax.f32 %v10138, 0.0
    %v11713 = vmax.f32 %v10140, 0.0
    %v11714 = vmax.f32 %v10910, 0.0
    %v11715 = vmax.f32 %v10912, 0.0
    %v11716 = vmax.f32 %v11570, 0.0
    %v11717 = vmax.f32 %v10142, 0.0
    %v11718 = vmax.f32 %v10144, 0.0
    %v11719 = vmax.f32 %v10914, 0.0
    %v11720 = vmax.f32 %v10916, 0.0
    %v11721 = vmax.f32 %v11573, 0.0
    %v11722 = vmax.f32 %v10148, 0.0
    %v11723 = vmax.f32 %v10150, 0.0
    %v11724 = vmax.f32 %v10920, 0.0
    %v11725 = vmax.f32 %v10922, 0.0
    %v11726 = vmax.f32 %v11578, 0.0
    %v11727 = vmax.f32 %v10152, 0.0
    %v11728 = vmax.f32 %v10154, 0.0
    %v11729 = vmax.f32 %v10924, 0.0
    %v11730 = vmax.f32 %v10926, 0.0
    %v11731 = vmax.f32 %v11581, 0.0
    %v11732 = vmax.f32 %v10158, 0.0
    %v11733 = vmax.f32 %v10160, 0.0
    %v11734 = vmax.f32 %v10930, 0.0
    %v11735 = vmax.f32 %v10932, 0.0
    %v11736 = vmax.f32 %v11586, 0.0
    %v11737 = vmax.f32 %v10162, 0.0
    %v11738 = vmax.f32 %v10164, 0.0
    %v11739 = vmax.f32 %v10934, 0.0
    %v11740 = vmax.f32 %v10936, 0.0
    %v11741 = vmax.f32 %v11589, 0.0
    %v11742 = vmax.f32 %v10168, 0.0
    %v11743 = vmax.f32 %v10170, 0.0
    %v11744 = vmax.f32 %v10940, 0.0
    %v11745 = vmax.f32 %v10942, 0.0
    %v11746 = vmax.f32 %v11594, 0.0
    %v11747 = vmax.f32 %v10172, 0.0
    %v11748 = vmax.f32 %v10174, 0.0
    %v11749 = vmax.f32 %v10944, 0.0
    %v11750 = vmax.f32 %v10946, 0.0
    %v11751 = vmax.f32 %v11597, 0.0
    %v11752 = vmax.f32 %v10178, 0.0
    %v11753 = vmax.f32 %v10180, 0.0
    %v11754 = vmax.f32 %v10950, 0.0
    %v11755 = vmax.f32 %v10952, 0.0
    %v11756 = vmax.f32 %v11602, 0.0
    %v11757 = vmax.f32 %v10182, 0.0
    %v11758 = vmax.f32 %v10184, 0.0
    %v11759 = vmax.f32 %v10954, 0.0
    %v11760 = vmax.f32 %v10956, 0.0
    %v11761 = vmax.f32 %v11605, 0.0
    %v11762 = vmax.f32 %v10188, 0.0
    %v11763 = vmax.f32 %v10190, 0.0
    %v11764 = vmax.f32 %v10960, 0.0
    %v11765 = vmax.f32 %v10962, 0.0
    %v11766 = vmax.f32 %v11610, 0.0
    %v11767 = vmax.f32 %v10192, 0.0
    %v11768 = vmax.f32 %v10194, 0.0
    %v11769 = vmax.f32 %v10964, 0.0
    %v11770 = vmax.f32 %v10966, 0.0
    %v11771 = vmax.f32 %v11613, 0.0
    %v11772 = vmax.f32 %v10198, 0.0
    %v11773 = vmax.f32 %v10200, 0.0
    %v11774 = vmax.f32 %v10970, 0.0
    %v11775 = vmax.f32 %v10972, 0.0
    %v11776 = vmax.f32 %v11618, 0.0
    %v11777 = vmax.f32 %v10202, 0.0
    %v11778 = vmax.f32 %v10204, 0.0
    %v11779 = vmax.f32 %v10974, 0.0
    %v11780 = vmax.f32 %v10976, 0.0
    %v11781 = vmax.f32 %v11621, 0.0
    %v11782 = vmax.f32 %v10208, 0.0
    %v11783 = vmax.f32 %v10210, 0.0
    %v11784 = vmax.f32 %v10980, 0.0
    %v11785 = vmax.f32 %v10982, 0.0
    %v11786 = vmax.f32 %v11626, 0.0
    %v11787 = vmax.f32 %v10212, 0.0
    %v11788 = vmax.f32 %v10214, 0.0
    %v11789 = vmax.f32 %v10984, 0.0
    %v11790 = vmax.f32 %v10986, 0.0
    %v11791 = vmax.f32 %v11629, 0.0
    %v11792 = vld [vmem:[#allocation9] sm:$0x1f]
    %v11794 = vlaneseq
    %v11795 = vshrl.u32 %v11794, 7
    %v11796 = vsub.s32 0, %v11795
    %v11797 = vrot.slane %v11792, %v11796
    %v11798 = vlaneseq
    %v11799 = vshrl.u32 %v11798, 7
    %v11800 = vsub.s32 1, %v11799
    %v11801 = vrot.slane %v11792, %v11800
    %v11802 = vlaneseq
    %v11803 = vshrl.u32 %v11802, 7
    %v11804 = vsub.s32 2, %v11803
    %v11805 = vrot.slane %v11792, %v11804
    %v11806 = vlaneseq
    %v11807 = vshrl.u32 %v11806, 7
    %v11808 = vsub.s32 3, %v11807
    %v11809 = vrot.slane %v11792, %v11808
    %v11810 = vlaneseq
    %v11811 = vshrl.u32 %v11810, 7
    %v11812 = vsub.s32 4, %v11811
    %v11813 = vrot.slane %v11792, %v11812
    %v11819 = vmul.f32 %v7236, %v11797
    %v11820 = vmul.f32 %v7237, %v11801
    %v11821 = vmul.f32 %v7238, %v11805
    %v11822 = vmul.f32 %v7239, %v11809
    %v11823 = vmul.f32 %v7240, %v11813
    %v11824 = vmul.f32 %v7241, %v11797
    %v11825 = vmul.f32 %v7242, %v11801
    %v11826 = vmul.f32 %v7243, %v11805
    %v11827 = vmul.f32 %v7244, %v11809
    %v11828 = vmul.f32 %v7245, %v11813
    %v11829 = vmul.f32 %v7246, %v11797
    %v11830 = vmul.f32 %v7247, %v11801
    %v11831 = vmul.f32 %v7248, %v11805
    %v11832 = vmul.f32 %v7249, %v11809
    %v11833 = vmul.f32 %v7250, %v11813
    %v11834 = vmul.f32 %v7251, %v11797
    %v11835 = vmul.f32 %v7252, %v11801
    %v11836 = vmul.f32 %v7253, %v11805
    %v11837 = vmul.f32 %v7254, %v11809
    %v11838 = vmul.f32 %v7255, %v11813
    %v11839 = vmul.f32 %v7256, %v11797
    %v11840 = vmul.f32 %v7257, %v11801
    %v11841 = vmul.f32 %v7258, %v11805
    %v11842 = vmul.f32 %v7259, %v11809
    %v11843 = vmul.f32 %v7260, %v11813
    %v11844 = vmul.f32 %v7261, %v11797
    %v11845 = vmul.f32 %v7262, %v11801
    %v11846 = vmul.f32 %v7263, %v11805
    %v11847 = vmul.f32 %v7264, %v11809
    %v11848 = vmul.f32 %v7265, %v11813
    %v11849 = vmul.f32 %v7266, %v11797
    %v11850 = vmul.f32 %v7267, %v11801
    %v11851 = vmul.f32 %v7268, %v11805
    %v11852 = vmul.f32 %v7269, %v11809
    %v11853 = vmul.f32 %v7270, %v11813
    %v11854 = vmul.f32 %v7271, %v11797
    %v11855 = vmul.f32 %v7272, %v11801
    %v11856 = vmul.f32 %v7273, %v11805
    %v11857 = vmul.f32 %v7274, %v11809
    %v11858 = vmul.f32 %v7275, %v11813
    %v11859 = vmul.f32 %v7276, %v11797
    %v11860 = vmul.f32 %v7277, %v11801
    %v11861 = vmul.f32 %v7278, %v11805
    %v11862 = vmul.f32 %v7279, %v11809
    %v11863 = vmul.f32 %v7280, %v11813
    %v11864 = vmul.f32 %v7281, %v11797
    %v11865 = vmul.f32 %v7282, %v11801
    %v11866 = vmul.f32 %v7283, %v11805
    %v11867 = vmul.f32 %v7284, %v11809
    %v11868 = vmul.f32 %v7285, %v11813
    %v11869 = vmul.f32 %v7286, %v11797
    %v11870 = vmul.f32 %v7287, %v11801
    %v11871 = vmul.f32 %v7288, %v11805
    %v11872 = vmul.f32 %v7289, %v11809
    %v11873 = vmul.f32 %v7290, %v11813
    %v11874 = vmul.f32 %v7291, %v11797
    %v11875 = vmul.f32 %v7292, %v11801
    %v11876 = vmul.f32 %v7293, %v11805
    %v11877 = vmul.f32 %v7294, %v11809
    %v11878 = vmul.f32 %v7295, %v11813
    %v11879 = vmul.f32 %v7296, %v11797
    %v11880 = vmul.f32 %v7297, %v11801
    %v11881 = vmul.f32 %v7298, %v11805
    %v11882 = vmul.f32 %v7299, %v11809
    %v11883 = vmul.f32 %v7300, %v11813
    %v11884 = vmul.f32 %v7301, %v11797
    %v11885 = vmul.f32 %v7302, %v11801
    %v11886 = vmul.f32 %v7303, %v11805
    %v11887 = vmul.f32 %v7304, %v11809
    %v11888 = vmul.f32 %v7305, %v11813
    %v11889 = vmul.f32 %v7306, %v11797
    %v11890 = vmul.f32 %v7307, %v11801
    %v11891 = vmul.f32 %v7308, %v11805
    %v11892 = vmul.f32 %v7309, %v11809
    %v11893 = vmul.f32 %v7310, %v11813
    %v11894 = vmul.f32 %v7311, %v11797
    %v11895 = vmul.f32 %v7312, %v11801
    %v11896 = vmul.f32 %v7313, %v11805
    %v11897 = vmul.f32 %v7314, %v11809
    %v11898 = vmul.f32 %v7315, %v11813
    %v11899 = vmul.f32 %v7316, %v11797
    %v11900 = vmul.f32 %v7317, %v11801
    %v11901 = vmul.f32 %v7318, %v11805
    %v11902 = vmul.f32 %v7319, %v11809
    %v11903 = vmul.f32 %v7320, %v11813
    %v11904 = vmul.f32 %v7321, %v11797
    %v11905 = vmul.f32 %v7322, %v11801
    %v11906 = vmul.f32 %v7323, %v11805
    %v11907 = vmul.f32 %v7324, %v11809
    %v11908 = vmul.f32 %v7325, %v11813
    %v11909 = vmul.f32 %v7326, %v11797
    %v11910 = vmul.f32 %v7327, %v11801
    %v11911 = vmul.f32 %v7328, %v11805
    %v11912 = vmul.f32 %v7329, %v11809
    %v11913 = vmul.f32 %v7330, %v11813
    %v11914 = vmul.f32 %v7331, %v11797
    %v11915 = vmul.f32 %v7332, %v11801
    %v11916 = vmul.f32 %v7333, %v11805
    %v11917 = vmul.f32 %v7334, %v11809
    %v11918 = vmul.f32 %v7335, %v11813
    %v11919 = vmul.f32 %v7336, %v11797
    %v11920 = vmul.f32 %v7337, %v11801
    %v11921 = vmul.f32 %v7338, %v11805
    %v11922 = vmul.f32 %v7339, %v11809
    %v11923 = vmul.f32 %v7340, %v11813
    %v11924 = vmul.f32 %v7341, %v11797
    %v11925 = vmul.f32 %v7342, %v11801
    %v11926 = vmul.f32 %v7343, %v11805
    %v11927 = vmul.f32 %v7344, %v11809
    %v11928 = vmul.f32 %v7345, %v11813
    %v11929 = vmul.f32 %v7346, %v11797
    %v11930 = vmul.f32 %v7347, %v11801
    %v11931 = vmul.f32 %v7348, %v11805
    %v11932 = vmul.f32 %v7349, %v11809
    %v11933 = vmul.f32 %v7350, %v11813
    %v11934 = vmul.f32 %v7351, %v11797
    %v11935 = vmul.f32 %v7352, %v11801
    %v11936 = vmul.f32 %v7353, %v11805
    %v11937 = vmul.f32 %v7354, %v11809
    %v11938 = vmul.f32 %v7355, %v11813
    %v11939 = vmul.f32 %v7356, %v11797
    %v11940 = vmul.f32 %v7357, %v11801
    %v11941 = vmul.f32 %v7358, %v11805
    %v11942 = vmul.f32 %v7359, %v11809
    %v11943 = vmul.f32 %v7360, %v11813
    %v11944 = vmul.f32 %v7361, %v11797
    %v11945 = vmul.f32 %v7362, %v11801
    %v11946 = vmul.f32 %v7363, %v11805
    %v11947 = vmul.f32 %v7364, %v11809
    %v11948 = vmul.f32 %v7365, %v11813
    %v11949 = vmul.f32 %v7366, %v11797
    %v11950 = vmul.f32 %v7367, %v11801
    %v11951 = vmul.f32 %v7368, %v11805
    %v11952 = vmul.f32 %v7369, %v11809
    %v11953 = vmul.f32 %v7370, %v11813
    %v11954 = vmul.f32 %v7371, %v11797
    %v11955 = vmul.f32 %v7372, %v11801
    %v11956 = vmul.f32 %v7373, %v11805
    %v11957 = vmul.f32 %v7374, %v11809
    %v11958 = vmul.f32 %v7375, %v11813
    %v11959 = vmul.f32 %v7376, %v11797
    %v11960 = vmul.f32 %v7377, %v11801
    %v11961 = vmul.f32 %v7378, %v11805
    %v11962 = vmul.f32 %v7379, %v11809
    %v11963 = vmul.f32 %v7380, %v11813
    %v11964 = vmul.f32 %v7381, %v11797
    %v11965 = vmul.f32 %v7382, %v11801
    %v11966 = vmul.f32 %v7383, %v11805
    %v11967 = vmul.f32 %v7384, %v11809
    %v11968 = vmul.f32 %v7385, %v11813
    %v11969 = vmul.f32 %v7386, %v11797
    %v11970 = vmul.f32 %v7387, %v11801
    %v11971 = vmul.f32 %v7388, %v11805
    %v11972 = vmul.f32 %v7389, %v11809
    %v11973 = vmul.f32 %v7390, %v11813
    %v11974 = vmul.f32 %v7391, %v11797
    %v11975 = vmul.f32 %v7392, %v11801
    %v11976 = vmul.f32 %v7393, %v11805
    %v11977 = vmul.f32 %v7394, %v11809
    %v11978 = vmul.f32 %v7395, %v11813
    %v11979 = vadd.f32 %v11819, %v11820
    %v11980 = vadd.f32 %v11979, %v11821
    %v11981 = vadd.f32 %v11980, %v11822
    %v11982 = vadd.f32 %v11981, %v11823
    %11983 = vadd.xlane.f32.xlu0 %v11982
    %v11984 = vpop.xlane.xlu0 %11983
    %v11985 = vadd.f32 %v11824, %v11825
    %v11986 = vadd.f32 %v11985, %v11826
    %v11987 = vadd.f32 %v11986, %v11827
    %v11988 = vadd.f32 %v11987, %v11828
    %11989 = vadd.xlane.f32.xlu0 %v11988
    %v11990 = vpop.xlane.xlu0 %11989
    %v11991 = vadd.f32 %v11829, %v11830
    %v11992 = vadd.f32 %v11991, %v11831
    %v11993 = vadd.f32 %v11992, %v11832
    %v11994 = vadd.f32 %v11993, %v11833
    %11995 = vadd.xlane.f32.xlu0 %v11994
    %v11996 = vpop.xlane.xlu0 %11995
    %v11997 = vadd.f32 %v11834, %v11835
    %v11998 = vadd.f32 %v11997, %v11836
    %v11999 = vadd.f32 %v11998, %v11837
    %v12000 = vadd.f32 %v11999, %v11838
    %12001 = vadd.xlane.f32.xlu0 %v12000
    %v12002 = vpop.xlane.xlu0 %12001
    %v12003 = vadd.f32 %v11839, %v11840
    %v12004 = vadd.f32 %v12003, %v11841
    %v12005 = vadd.f32 %v12004, %v11842
    %v12006 = vadd.f32 %v12005, %v11843
    %12007 = vadd.xlane.f32.xlu0 %v12006
    %v12008 = vpop.xlane.xlu0 %12007
    %v12009 = vadd.f32 %v11844, %v11845
    %v12010 = vadd.f32 %v12009, %v11846
    %v12011 = vadd.f32 %v12010, %v11847
    %v12012 = vadd.f32 %v12011, %v11848
    %12013 = vadd.xlane.f32.xlu0 %v12012
    %v12014 = vpop.xlane.xlu0 %12013
    %v12015 = vadd.f32 %v11849, %v11850
    %v12016 = vadd.f32 %v12015, %v11851
    %v12017 = vadd.f32 %v12016, %v11852
    %v12018 = vadd.f32 %v12017, %v11853
    %12019 = vadd.xlane.f32.xlu0 %v12018
    %v12020 = vpop.xlane.xlu0 %12019
    %v12021 = vadd.f32 %v11854, %v11855
    %v12022 = vadd.f32 %v12021, %v11856
    %v12023 = vadd.f32 %v12022, %v11857
    %v12024 = vadd.f32 %v12023, %v11858
    %12025 = vadd.xlane.f32.xlu0 %v12024
    %v12026 = vpop.xlane.xlu0 %12025
    %v12027 = vadd.f32 %v11859, %v11860
    %v12028 = vadd.f32 %v12027, %v11861
    %v12029 = vadd.f32 %v12028, %v11862
    %v12030 = vadd.f32 %v12029, %v11863
    %12031 = vadd.xlane.f32.xlu0 %v12030
    %v12032 = vpop.xlane.xlu0 %12031
    %v12033 = vadd.f32 %v11864, %v11865
    %v12034 = vadd.f32 %v12033, %v11866
    %v12035 = vadd.f32 %v12034, %v11867
    %v12036 = vadd.f32 %v12035, %v11868
    %12037 = vadd.xlane.f32.xlu0 %v12036
    %v12038 = vpop.xlane.xlu0 %12037
    %v12039 = vadd.f32 %v11869, %v11870
    %v12040 = vadd.f32 %v12039, %v11871
    %v12041 = vadd.f32 %v12040, %v11872
    %v12042 = vadd.f32 %v12041, %v11873
    %12043 = vadd.xlane.f32.xlu0 %v12042
    %v12044 = vpop.xlane.xlu0 %12043
    %v12045 = vadd.f32 %v11874, %v11875
    %v12046 = vadd.f32 %v12045, %v11876
    %v12047 = vadd.f32 %v12046, %v11877
    %v12048 = vadd.f32 %v12047, %v11878
    %12049 = vadd.xlane.f32.xlu0 %v12048
    %v12050 = vpop.xlane.xlu0 %12049
    %v12051 = vadd.f32 %v11879, %v11880
    %v12052 = vadd.f32 %v12051, %v11881
    %v12053 = vadd.f32 %v12052, %v11882
    %v12054 = vadd.f32 %v12053, %v11883
    %12055 = vadd.xlane.f32.xlu0 %v12054
    %v12056 = vpop.xlane.xlu0 %12055
    %v12057 = vadd.f32 %v11884, %v11885
    %v12058 = vadd.f32 %v12057, %v11886
    %v12059 = vadd.f32 %v12058, %v11887
    %v12060 = vadd.f32 %v12059, %v11888
    %12061 = vadd.xlane.f32.xlu0 %v12060
    %v12062 = vpop.xlane.xlu0 %12061
    %v12063 = vadd.f32 %v11889, %v11890
    %v12064 = vadd.f32 %v12063, %v11891
    %v12065 = vadd.f32 %v12064, %v11892
    %v12066 = vadd.f32 %v12065, %v11893
    %12067 = vadd.xlane.f32.xlu0 %v12066
    %v12068 = vpop.xlane.xlu0 %12067
    %v12069 = vadd.f32 %v11894, %v11895
    %v12070 = vadd.f32 %v12069, %v11896
    %v12071 = vadd.f32 %v12070, %v11897
    %v12072 = vadd.f32 %v12071, %v11898
    %12073 = vadd.xlane.f32.xlu0 %v12072
    %v12074 = vpop.xlane.xlu0 %12073
    %v12075 = vadd.f32 %v11899, %v11900
    %v12076 = vadd.f32 %v12075, %v11901
    %v12077 = vadd.f32 %v12076, %v11902
    %v12078 = vadd.f32 %v12077, %v11903
    %12079 = vadd.xlane.f32.xlu0 %v12078
    %v12080 = vpop.xlane.xlu0 %12079
    %v12081 = vadd.f32 %v11904, %v11905
    %v12082 = vadd.f32 %v12081, %v11906
    %v12083 = vadd.f32 %v12082, %v11907
    %v12084 = vadd.f32 %v12083, %v11908
    %12085 = vadd.xlane.f32.xlu0 %v12084
    %v12086 = vpop.xlane.xlu0 %12085
    %v12087 = vadd.f32 %v11909, %v11910
    %v12088 = vadd.f32 %v12087, %v11911
    %v12089 = vadd.f32 %v12088, %v11912
    %v12090 = vadd.f32 %v12089, %v11913
    %12091 = vadd.xlane.f32.xlu0 %v12090
    %v12092 = vpop.xlane.xlu0 %12091
    %v12093 = vadd.f32 %v11914, %v11915
    %v12094 = vadd.f32 %v12093, %v11916
    %v12095 = vadd.f32 %v12094, %v11917
    %v12096 = vadd.f32 %v12095, %v11918
    %12097 = vadd.xlane.f32.xlu0 %v12096
    %v12098 = vpop.xlane.xlu0 %12097
    %v12099 = vadd.f32 %v11919, %v11920
    %v12100 = vadd.f32 %v12099, %v11921
    %v12101 = vadd.f32 %v12100, %v11922
    %v12102 = vadd.f32 %v12101, %v11923
    %12103 = vadd.xlane.f32.xlu0 %v12102
    %v12104 = vpop.xlane.xlu0 %12103
    %v12105 = vadd.f32 %v11924, %v11925
    %v12106 = vadd.f32 %v12105, %v11926
    %v12107 = vadd.f32 %v12106, %v11927
    %v12108 = vadd.f32 %v12107, %v11928
    %12109 = vadd.xlane.f32.xlu0 %v12108
    %v12110 = vpop.xlane.xlu0 %12109
    %v12111 = vadd.f32 %v11929, %v11930
    %v12112 = vadd.f32 %v12111, %v11931
    %v12113 = vadd.f32 %v12112, %v11932
    %v12114 = vadd.f32 %v12113, %v11933
    %12115 = vadd.xlane.f32.xlu0 %v12114
    %v12116 = vpop.xlane.xlu0 %12115
    %v12117 = vadd.f32 %v11934, %v11935
    %v12118 = vadd.f32 %v12117, %v11936
    %v12119 = vadd.f32 %v12118, %v11937
    %v12120 = vadd.f32 %v12119, %v11938
    %12121 = vadd.xlane.f32.xlu0 %v12120
    %v12122 = vpop.xlane.xlu0 %12121
    %v12123 = vadd.f32 %v11939, %v11940
    %v12124 = vadd.f32 %v12123, %v11941
    %v12125 = vadd.f32 %v12124, %v11942
    %v12126 = vadd.f32 %v12125, %v11943
    %12127 = vadd.xlane.f32.xlu0 %v12126
    %v12128 = vpop.xlane.xlu0 %12127
    %v12129 = vadd.f32 %v11944, %v11945
    %v12130 = vadd.f32 %v12129, %v11946
    %v12131 = vadd.f32 %v12130, %v11947
    %v12132 = vadd.f32 %v12131, %v11948
    %12133 = vadd.xlane.f32.xlu0 %v12132
    %v12134 = vpop.xlane.xlu0 %12133
    %v12135 = vadd.f32 %v11949, %v11950
    %v12136 = vadd.f32 %v12135, %v11951
    %v12137 = vadd.f32 %v12136, %v11952
    %v12138 = vadd.f32 %v12137, %v11953
    %12139 = vadd.xlane.f32.xlu0 %v12138
    %v12140 = vpop.xlane.xlu0 %12139
    %v12141 = vadd.f32 %v11954, %v11955
    %v12142 = vadd.f32 %v12141, %v11956
    %v12143 = vadd.f32 %v12142, %v11957
    %v12144 = vadd.f32 %v12143, %v11958
    %12145 = vadd.xlane.f32.xlu0 %v12144
    %v12146 = vpop.xlane.xlu0 %12145
    %v12147 = vadd.f32 %v11959, %v11960
    %v12148 = vadd.f32 %v12147, %v11961
    %v12149 = vadd.f32 %v12148, %v11962
    %v12150 = vadd.f32 %v12149, %v11963
    %12151 = vadd.xlane.f32.xlu0 %v12150
    %v12152 = vpop.xlane.xlu0 %12151
    %v12153 = vadd.f32 %v11964, %v11965
    %v12154 = vadd.f32 %v12153, %v11966
    %v12155 = vadd.f32 %v12154, %v11967
    %v12156 = vadd.f32 %v12155, %v11968
    %12157 = vadd.xlane.f32.xlu0 %v12156
    %v12158 = vpop.xlane.xlu0 %12157
    %v12159 = vadd.f32 %v11969, %v11970
    %v12160 = vadd.f32 %v12159, %v11971
    %v12161 = vadd.f32 %v12160, %v11972
    %v12162 = vadd.f32 %v12161, %v11973
    %12163 = vadd.xlane.f32.xlu0 %v12162
    %v12164 = vpop.xlane.xlu0 %12163
    %v12165 = vadd.f32 %v11974, %v11975
    %v12166 = vadd.f32 %v12165, %v11976
    %v12167 = vadd.f32 %v12166, %v11977
    %v12168 = vadd.f32 %v12167, %v11978
    %12169 = vadd.xlane.f32.xlu0 %v12168
    %v12170 = vpop.xlane.xlu0 %12169
    %v12171 = vld [vmem:[#allocation10] sm:$0x1f]
    %v12173 = vlaneseq
    %v12174 = vshrl.u32 %v12173, 7
    %v12175 = vsub.s32 0, %v12174
    %v12176 = vrot.slane %v12171, %v12175
    %v12177 = vlaneseq
    %v12178 = vshrl.u32 %v12177, 7
    %v12179 = vsub.s32 1, %v12178
    %v12180 = vrot.slane %v12171, %v12179
    %v12181 = vlaneseq
    %v12182 = vshrl.u32 %v12181, 7
    %v12183 = vsub.s32 2, %v12182
    %v12184 = vrot.slane %v12171, %v12183
    %v12185 = vlaneseq
    %v12186 = vshrl.u32 %v12185, 7
    %v12187 = vsub.s32 3, %v12186
    %v12188 = vrot.slane %v12171, %v12187
    %v12189 = vlaneseq
    %v12190 = vshrl.u32 %v12189, 7
    %v12191 = vsub.s32 4, %v12190
    %v12192 = vrot.slane %v12171, %v12191
    %v12198 = vmul.f32 %v11632, %v12176
    %v12199 = vmul.f32 %v11633, %v12180
    %v12200 = vmul.f32 %v11634, %v12184
    %v12201 = vmul.f32 %v11635, %v12188
    %v12202 = vmul.f32 %v11636, %v12192
    %v12203 = vmul.f32 %v11637, %v12176
    %v12204 = vmul.f32 %v11638, %v12180
    %v12205 = vmul.f32 %v11639, %v12184
    %v12206 = vmul.f32 %v11640, %v12188
    %v12207 = vmul.f32 %v11641, %v12192
    %v12208 = vmul.f32 %v11642, %v12176
    %v12209 = vmul.f32 %v11643, %v12180
    %v12210 = vmul.f32 %v11644, %v12184
    %v12211 = vmul.f32 %v11645, %v12188
    %v12212 = vmul.f32 %v11646, %v12192
    %v12213 = vmul.f32 %v11647, %v12176
    %v12214 = vmul.f32 %v11648, %v12180
    %v12215 = vmul.f32 %v11649, %v12184
    %v12216 = vmul.f32 %v11650, %v12188
    %v12217 = vmul.f32 %v11651, %v12192
    %v12218 = vmul.f32 %v11652, %v12176
    %v12219 = vmul.f32 %v11653, %v12180
    %v12220 = vmul.f32 %v11654, %v12184
    %v12221 = vmul.f32 %v11655, %v12188
    %v12222 = vmul.f32 %v11656, %v12192
    %v12223 = vmul.f32 %v11657, %v12176
    %v12224 = vmul.f32 %v11658, %v12180
    %v12225 = vmul.f32 %v11659, %v12184
    %v12226 = vmul.f32 %v11660, %v12188
    %v12227 = vmul.f32 %v11661, %v12192
    %v12228 = vmul.f32 %v11662, %v12176
    %v12229 = vmul.f32 %v11663, %v12180
    %v12230 = vmul.f32 %v11664, %v12184
    %v12231 = vmul.f32 %v11665, %v12188
    %v12232 = vmul.f32 %v11666, %v12192
    %v12233 = vmul.f32 %v11667, %v12176
    %v12234 = vmul.f32 %v11668, %v12180
    %v12235 = vmul.f32 %v11669, %v12184
    %v12236 = vmul.f32 %v11670, %v12188
    %v12237 = vmul.f32 %v11671, %v12192
    %v12238 = vmul.f32 %v11672, %v12176
    %v12239 = vmul.f32 %v11673, %v12180
    %v12240 = vmul.f32 %v11674, %v12184
    %v12241 = vmul.f32 %v11675, %v12188
    %v12242 = vmul.f32 %v11676, %v12192
    %v12243 = vmul.f32 %v11677, %v12176
    %v12244 = vmul.f32 %v11678, %v12180
    %v12245 = vmul.f32 %v11679, %v12184
    %v12246 = vmul.f32 %v11680, %v12188
    %v12247 = vmul.f32 %v11681, %v12192
    %v12248 = vmul.f32 %v11682, %v12176
    %v12249 = vmul.f32 %v11683, %v12180
    %v12250 = vmul.f32 %v11684, %v12184
    %v12251 = vmul.f32 %v11685, %v12188
    %v12252 = vmul.f32 %v11686, %v12192
    %v12253 = vmul.f32 %v11687, %v12176
    %v12254 = vmul.f32 %v11688, %v12180
    %v12255 = vmul.f32 %v11689, %v12184
    %v12256 = vmul.f32 %v11690, %v12188
    %v12257 = vmul.f32 %v11691, %v12192
    %v12258 = vmul.f32 %v11692, %v12176
    %v12259 = vmul.f32 %v11693, %v12180
    %v12260 = vmul.f32 %v11694, %v12184
    %v12261 = vmul.f32 %v11695, %v12188
    %v12262 = vmul.f32 %v11696, %v12192
    %v12263 = vmul.f32 %v11697, %v12176
    %v12264 = vmul.f32 %v11698, %v12180
    %v12265 = vmul.f32 %v11699, %v12184
    %v12266 = vmul.f32 %v11700, %v12188
    %v12267 = vmul.f32 %v11701, %v12192
    %v12268 = vmul.f32 %v11702, %v12176
    %v12269 = vmul.f32 %v11703, %v12180
    %v12270 = vmul.f32 %v11704, %v12184
    %v12271 = vmul.f32 %v11705, %v12188
    %v12272 = vmul.f32 %v11706, %v12192
    %v12273 = vmul.f32 %v11707, %v12176
    %v12274 = vmul.f32 %v11708, %v12180
    %v12275 = vmul.f32 %v11709, %v12184
    %v12276 = vmul.f32 %v11710, %v12188
    %v12277 = vmul.f32 %v11711, %v12192
    %v12278 = vmul.f32 %v11712, %v12176
    %v12279 = vmul.f32 %v11713, %v12180
    %v12280 = vmul.f32 %v11714, %v12184
    %v12281 = vmul.f32 %v11715, %v12188
    %v12282 = vmul.f32 %v11716, %v12192
    %v12283 = vmul.f32 %v11717, %v12176
    %v12284 = vmul.f32 %v11718, %v12180
    %v12285 = vmul.f32 %v11719, %v12184
    %v12286 = vmul.f32 %v11720, %v12188
    %v12287 = vmul.f32 %v11721, %v12192
    %v12288 = vmul.f32 %v11722, %v12176
    %v12289 = vmul.f32 %v11723, %v12180
    %v12290 = vmul.f32 %v11724, %v12184
    %v12291 = vmul.f32 %v11725, %v12188
    %v12292 = vmul.f32 %v11726, %v12192
    %v12293 = vmul.f32 %v11727, %v12176
    %v12294 = vmul.f32 %v11728, %v12180
    %v12295 = vmul.f32 %v11729, %v12184
    %v12296 = vmul.f32 %v11730, %v12188
    %v12297 = vmul.f32 %v11731, %v12192
    %v12298 = vmul.f32 %v11732, %v12176
    %v12299 = vmul.f32 %v11733, %v12180
    %v12300 = vmul.f32 %v11734, %v12184
    %v12301 = vmul.f32 %v11735, %v12188
    %v12302 = vmul.f32 %v11736, %v12192
    %v12303 = vmul.f32 %v11737, %v12176
    %v12304 = vmul.f32 %v11738, %v12180
    %v12305 = vmul.f32 %v11739, %v12184
    %v12306 = vmul.f32 %v11740, %v12188
    %v12307 = vmul.f32 %v11741, %v12192
    %v12308 = vmul.f32 %v11742, %v12176
    %v12309 = vmul.f32 %v11743, %v12180
    %v12310 = vmul.f32 %v11744, %v12184
    %v12311 = vmul.f32 %v11745, %v12188
    %v12312 = vmul.f32 %v11746, %v12192
    %v12313 = vmul.f32 %v11747, %v12176
    %v12314 = vmul.f32 %v11748, %v12180
    %v12315 = vmul.f32 %v11749, %v12184
    %v12316 = vmul.f32 %v11750, %v12188
    %v12317 = vmul.f32 %v11751, %v12192
    %v12318 = vmul.f32 %v11752, %v12176
    %v12319 = vmul.f32 %v11753, %v12180
    %v12320 = vmul.f32 %v11754, %v12184
    %v12321 = vmul.f32 %v11755, %v12188
    %v12322 = vmul.f32 %v11756, %v12192
    %v12323 = vmul.f32 %v11757, %v12176
    %v12324 = vmul.f32 %v11758, %v12180
    %v12325 = vmul.f32 %v11759, %v12184
    %v12326 = vmul.f32 %v11760, %v12188
    %v12327 = vmul.f32 %v11761, %v12192
    %v12328 = vmul.f32 %v11762, %v12176
    %v12329 = vmul.f32 %v11763, %v12180
    %v12330 = vmul.f32 %v11764, %v12184
    %v12331 = vmul.f32 %v11765, %v12188
    %v12332 = vmul.f32 %v11766, %v12192
    %v12333 = vmul.f32 %v11767, %v12176
    %v12334 = vmul.f32 %v11768, %v12180
    %v12335 = vmul.f32 %v11769, %v12184
    %v12336 = vmul.f32 %v11770, %v12188
    %v12337 = vmul.f32 %v11771, %v12192
    %v12338 = vmul.f32 %v11772, %v12176
    %v12339 = vmul.f32 %v11773, %v12180
    %v12340 = vmul.f32 %v11774, %v12184
    %v12341 = vmul.f32 %v11775, %v12188
    %v12342 = vmul.f32 %v11776, %v12192
    %v12343 = vmul.f32 %v11777, %v12176
    %v12344 = vmul.f32 %v11778, %v12180
    %v12345 = vmul.f32 %v11779, %v12184
    %v12346 = vmul.f32 %v11780, %v12188
    %v12347 = vmul.f32 %v11781, %v12192
    %v12348 = vmul.f32 %v11782, %v12176
    %v12349 = vmul.f32 %v11783, %v12180
    %v12350 = vmul.f32 %v11784, %v12184
    %v12351 = vmul.f32 %v11785, %v12188
    %v12352 = vmul.f32 %v11786, %v12192
    %v12353 = vmul.f32 %v11787, %v12176
    %v12354 = vmul.f32 %v11788, %v12180
    %v12355 = vmul.f32 %v11789, %v12184
    %v12356 = vmul.f32 %v11790, %v12188
    %v12357 = vmul.f32 %v11791, %v12192
    %v12358 = vadd.f32 %v12198, %v12199
    %v12359 = vadd.f32 %v12358, %v12200
    %v12360 = vadd.f32 %v12359, %v12201
    %v12361 = vadd.f32 %v12360, %v12202
    %12362 = vadd.xlane.f32.xlu0 %v12361
    %v12363 = vpop.xlane.xlu0 %12362
    %v12364 = vadd.f32 %v12203, %v12204
    %v12365 = vadd.f32 %v12364, %v12205
    %v12366 = vadd.f32 %v12365, %v12206
    %v12367 = vadd.f32 %v12366, %v12207
    %12368 = vadd.xlane.f32.xlu0 %v12367
    %v12369 = vpop.xlane.xlu0 %12368
    %v12370 = vadd.f32 %v12208, %v12209
    %v12371 = vadd.f32 %v12370, %v12210
    %v12372 = vadd.f32 %v12371, %v12211
    %v12373 = vadd.f32 %v12372, %v12212
    %12374 = vadd.xlane.f32.xlu0 %v12373
    %v12375 = vpop.xlane.xlu0 %12374
    %v12376 = vadd.f32 %v12213, %v12214
    %v12377 = vadd.f32 %v12376, %v12215
    %v12378 = vadd.f32 %v12377, %v12216
    %v12379 = vadd.f32 %v12378, %v12217
    %12380 = vadd.xlane.f32.xlu0 %v12379
    %v12381 = vpop.xlane.xlu0 %12380
    %v12382 = vadd.f32 %v12218, %v12219
    %v12383 = vadd.f32 %v12382, %v12220
    %v12384 = vadd.f32 %v12383, %v12221
    %v12385 = vadd.f32 %v12384, %v12222
    %12386 = vadd.xlane.f32.xlu0 %v12385
    %v12387 = vpop.xlane.xlu0 %12386
    %v12388 = vadd.f32 %v12223, %v12224
    %v12389 = vadd.f32 %v12388, %v12225
    %v12390 = vadd.f32 %v12389, %v12226
    %v12391 = vadd.f32 %v12390, %v12227
    %12392 = vadd.xlane.f32.xlu0 %v12391
    %v12393 = vpop.xlane.xlu0 %12392
    %v12394 = vadd.f32 %v12228, %v12229
    %v12395 = vadd.f32 %v12394, %v12230
    %v12396 = vadd.f32 %v12395, %v12231
    %v12397 = vadd.f32 %v12396, %v12232
    %12398 = vadd.xlane.f32.xlu0 %v12397
    %v12399 = vpop.xlane.xlu0 %12398
    %v12400 = vadd.f32 %v12233, %v12234
    %v12401 = vadd.f32 %v12400, %v12235
    %v12402 = vadd.f32 %v12401, %v12236
    %v12403 = vadd.f32 %v12402, %v12237
    %12404 = vadd.xlane.f32.xlu0 %v12403
    %v12405 = vpop.xlane.xlu0 %12404
    %v12406 = vadd.f32 %v12238, %v12239
    %v12407 = vadd.f32 %v12406, %v12240
    %v12408 = vadd.f32 %v12407, %v12241
    %v12409 = vadd.f32 %v12408, %v12242
    %12410 = vadd.xlane.f32.xlu0 %v12409
    %v12411 = vpop.xlane.xlu0 %12410
    %v12412 = vadd.f32 %v12243, %v12244
    %v12413 = vadd.f32 %v12412, %v12245
    %v12414 = vadd.f32 %v12413, %v12246
    %v12415 = vadd.f32 %v12414, %v12247
    %12416 = vadd.xlane.f32.xlu0 %v12415
    %v12417 = vpop.xlane.xlu0 %12416
    %v12418 = vadd.f32 %v12248, %v12249
    %v12419 = vadd.f32 %v12418, %v12250
    %v12420 = vadd.f32 %v12419, %v12251
    %v12421 = vadd.f32 %v12420, %v12252
    %12422 = vadd.xlane.f32.xlu0 %v12421
    %v12423 = vpop.xlane.xlu0 %12422
    %v12424 = vadd.f32 %v12253, %v12254
    %v12425 = vadd.f32 %v12424, %v12255
    %v12426 = vadd.f32 %v12425, %v12256
    %v12427 = vadd.f32 %v12426, %v12257
    %12428 = vadd.xlane.f32.xlu0 %v12427
    %v12429 = vpop.xlane.xlu0 %12428
    %v12430 = vadd.f32 %v12258, %v12259
    %v12431 = vadd.f32 %v12430, %v12260
    %v12432 = vadd.f32 %v12431, %v12261
    %v12433 = vadd.f32 %v12432, %v12262
    %12434 = vadd.xlane.f32.xlu0 %v12433
    %v12435 = vpop.xlane.xlu0 %12434
    %v12436 = vadd.f32 %v12263, %v12264
    %v12437 = vadd.f32 %v12436, %v12265
    %v12438 = vadd.f32 %v12437, %v12266
    %v12439 = vadd.f32 %v12438, %v12267
    %12440 = vadd.xlane.f32.xlu0 %v12439
    %v12441 = vpop.xlane.xlu0 %12440
    %v12442 = vadd.f32 %v12268, %v12269
    %v12443 = vadd.f32 %v12442, %v12270
    %v12444 = vadd.f32 %v12443, %v12271
    %v12445 = vadd.f32 %v12444, %v12272
    %12446 = vadd.xlane.f32.xlu0 %v12445
    %v12447 = vpop.xlane.xlu0 %12446
    %v12448 = vadd.f32 %v12273, %v12274
    %v12449 = vadd.f32 %v12448, %v12275
    %v12450 = vadd.f32 %v12449, %v12276
    %v12451 = vadd.f32 %v12450, %v12277
    %12452 = vadd.xlane.f32.xlu0 %v12451
    %v12453 = vpop.xlane.xlu0 %12452
    %v12454 = vadd.f32 %v12278, %v12279
    %v12455 = vadd.f32 %v12454, %v12280
    %v12456 = vadd.f32 %v12455, %v12281
    %v12457 = vadd.f32 %v12456, %v12282
    %12458 = vadd.xlane.f32.xlu0 %v12457
    %v12459 = vpop.xlane.xlu0 %12458
    %v12460 = vadd.f32 %v12283, %v12284
    %v12461 = vadd.f32 %v12460, %v12285
    %v12462 = vadd.f32 %v12461, %v12286
    %v12463 = vadd.f32 %v12462, %v12287
    %12464 = vadd.xlane.f32.xlu0 %v12463
    %v12465 = vpop.xlane.xlu0 %12464
    %v12466 = vadd.f32 %v12288, %v12289
    %v12467 = vadd.f32 %v12466, %v12290
    %v12468 = vadd.f32 %v12467, %v12291
    %v12469 = vadd.f32 %v12468, %v12292
    %12470 = vadd.xlane.f32.xlu0 %v12469
    %v12471 = vpop.xlane.xlu0 %12470
    %v12472 = vadd.f32 %v12293, %v12294
    %v12473 = vadd.f32 %v12472, %v12295
    %v12474 = vadd.f32 %v12473, %v12296
    %v12475 = vadd.f32 %v12474, %v12297
    %12476 = vadd.xlane.f32.xlu0 %v12475
    %v12477 = vpop.xlane.xlu0 %12476
    %v12478 = vadd.f32 %v12298, %v12299
    %v12479 = vadd.f32 %v12478, %v12300
    %v12480 = vadd.f32 %v12479, %v12301
    %v12481 = vadd.f32 %v12480, %v12302
    %12482 = vadd.xlane.f32.xlu0 %v12481
    %v12483 = vpop.xlane.xlu0 %12482
    %v12484 = vadd.f32 %v12303, %v12304
    %v12485 = vadd.f32 %v12484, %v12305
    %v12486 = vadd.f32 %v12485, %v12306
    %v12487 = vadd.f32 %v12486, %v12307
    %12488 = vadd.xlane.f32.xlu0 %v12487
    %v12489 = vpop.xlane.xlu0 %12488
    %v12490 = vadd.f32 %v12308, %v12309
    %v12491 = vadd.f32 %v12490, %v12310
    %v12492 = vadd.f32 %v12491, %v12311
    %v12493 = vadd.f32 %v12492, %v12312
    %12494 = vadd.xlane.f32.xlu0 %v12493
    %v12495 = vpop.xlane.xlu0 %12494
    %v12496 = vadd.f32 %v12313, %v12314
    %v12497 = vadd.f32 %v12496, %v12315
    %v12498 = vadd.f32 %v12497, %v12316
    %v12499 = vadd.f32 %v12498, %v12317
    %12500 = vadd.xlane.f32.xlu0 %v12499
    %v12501 = vpop.xlane.xlu0 %12500
    %v12502 = vadd.f32 %v12318, %v12319
    %v12503 = vadd.f32 %v12502, %v12320
    %v12504 = vadd.f32 %v12503, %v12321
    %v12505 = vadd.f32 %v12504, %v12322
    %12506 = vadd.xlane.f32.xlu0 %v12505
    %v12507 = vpop.xlane.xlu0 %12506
    %v12508 = vadd.f32 %v12323, %v12324
    %v12509 = vadd.f32 %v12508, %v12325
    %v12510 = vadd.f32 %v12509, %v12326
    %v12511 = vadd.f32 %v12510, %v12327
    %12512 = vadd.xlane.f32.xlu0 %v12511
    %v12513 = vpop.xlane.xlu0 %12512
    %v12514 = vadd.f32 %v12328, %v12329
    %v12515 = vadd.f32 %v12514, %v12330
    %v12516 = vadd.f32 %v12515, %v12331
    %v12517 = vadd.f32 %v12516, %v12332
    %12518 = vadd.xlane.f32.xlu0 %v12517
    %v12519 = vpop.xlane.xlu0 %12518
    %v12520 = vadd.f32 %v12333, %v12334
    %v12521 = vadd.f32 %v12520, %v12335
    %v12522 = vadd.f32 %v12521, %v12336
    %v12523 = vadd.f32 %v12522, %v12337
    %12524 = vadd.xlane.f32.xlu0 %v12523
    %v12525 = vpop.xlane.xlu0 %12524
    %v12526 = vadd.f32 %v12338, %v12339
    %v12527 = vadd.f32 %v12526, %v12340
    %v12528 = vadd.f32 %v12527, %v12341
    %v12529 = vadd.f32 %v12528, %v12342
    %12530 = vadd.xlane.f32.xlu0 %v12529
    %v12531 = vpop.xlane.xlu0 %12530
    %v12532 = vadd.f32 %v12343, %v12344
    %v12533 = vadd.f32 %v12532, %v12345
    %v12534 = vadd.f32 %v12533, %v12346
    %v12535 = vadd.f32 %v12534, %v12347
    %12536 = vadd.xlane.f32.xlu0 %v12535
    %v12537 = vpop.xlane.xlu0 %12536
    %v12538 = vadd.f32 %v12348, %v12349
    %v12539 = vadd.f32 %v12538, %v12350
    %v12540 = vadd.f32 %v12539, %v12351
    %v12541 = vadd.f32 %v12540, %v12352
    %12542 = vadd.xlane.f32.xlu0 %v12541
    %v12543 = vpop.xlane.xlu0 %12542
    %v12544 = vadd.f32 %v12353, %v12354
    %v12545 = vadd.f32 %v12544, %v12355
    %v12546 = vadd.f32 %v12545, %v12356
    %v12547 = vadd.f32 %v12546, %v12357
    %12548 = vadd.xlane.f32.xlu0 %v12547
    %v12549 = vpop.xlane.xlu0 %12548
    %vm12550 = vcmask 7168
    %v12551 = vsel %vm12550, %v11984, %v12363
    %v12552 = vsel %vm12550, %v11990, %v12369
    %v12553 = vsel %vm12550, %v11996, %v12375
    %v12554 = vsel %vm12550, %v12002, %v12381
    %v12555 = vsel %vm12550, %v12008, %v12387
    %v12556 = vsel %vm12550, %v12014, %v12393
    %v12557 = vsel %vm12550, %v12020, %v12399
    %v12558 = vsel %vm12550, %v12026, %v12405
    %v12559 = vsel %vm12550, %v12032, %v12411
    %v12560 = vsel %vm12550, %v12038, %v12417
    %v12561 = vsel %vm12550, %v12044, %v12423
    %v12562 = vsel %vm12550, %v12050, %v12429
    %v12563 = vsel %vm12550, %v12056, %v12435
    %v12564 = vsel %vm12550, %v12062, %v12441
    %v12565 = vsel %vm12550, %v12068, %v12447
    %v12566 = vsel %vm12550, %v12074, %v12453
    %v12567 = vsel %vm12550, %v12080, %v12459
    %v12568 = vsel %vm12550, %v12086, %v12465
    %v12569 = vsel %vm12550, %v12092, %v12471
    %v12570 = vsel %vm12550, %v12098, %v12477
    %v12571 = vsel %vm12550, %v12104, %v12483
    %v12572 = vsel %vm12550, %v12110, %v12489
    %v12573 = vsel %vm12550, %v12116, %v12495
    %v12574 = vsel %vm12550, %v12122, %v12501
    %v12575 = vsel %vm12550, %v12128, %v12507
    %v12576 = vsel %vm12550, %v12134, %v12513
    %v12577 = vsel %vm12550, %v12140, %v12519
    %v12578 = vsel %vm12550, %v12146, %v12525
    %v12579 = vsel %vm12550, %v12152, %v12531
    %v12580 = vsel %vm12550, %v12158, %v12537
    %v12581 = vsel %vm12550, %v12164, %v12543
    %v12582 = vsel %vm12550, %v12170, %v12549
    %v12583 = vld [vmem:[#allocation12] sm:$0x1]
    %v12585 = vlaneseq
    %v12586 = vshrl.u32 %v12585, 7
    %v12587 = vsub.s32 0, %v12586
    %v12588 = vrot.slane %v12583, %v12587
    %v12590 = vadd.f32 %v12551, %v12588
    %v12591 = vadd.f32 %v12552, %v12588
    %v12592 = vadd.f32 %v12553, %v12588
    %v12593 = vadd.f32 %v12554, %v12588
    %v12594 = vadd.f32 %v12555, %v12588
    %v12595 = vadd.f32 %v12556, %v12588
    %v12596 = vadd.f32 %v12557, %v12588
    %v12597 = vadd.f32 %v12558, %v12588
    %v12598 = vadd.f32 %v12559, %v12588
    %v12599 = vadd.f32 %v12560, %v12588
    %v12600 = vadd.f32 %v12561, %v12588
    %v12601 = vadd.f32 %v12562, %v12588
    %v12602 = vadd.f32 %v12563, %v12588
    %v12603 = vadd.f32 %v12564, %v12588
    %v12604 = vadd.f32 %v12565, %v12588
    %v12605 = vadd.f32 %v12566, %v12588
    %v12606 = vadd.f32 %v12567, %v12588
    %v12607 = vadd.f32 %v12568, %v12588
    %v12608 = vadd.f32 %v12569, %v12588
    %v12609 = vadd.f32 %v12570, %v12588
    %v12610 = vadd.f32 %v12571, %v12588
    %v12611 = vadd.f32 %v12572, %v12588
    %v12612 = vadd.f32 %v12573, %v12588
    %v12613 = vadd.f32 %v12574, %v12588
    %v12614 = vadd.f32 %v12575, %v12588
    %v12615 = vadd.f32 %v12576, %v12588
    %v12616 = vadd.f32 %v12577, %v12588
    %v12617 = vadd.f32 %v12578, %v12588
    %v12618 = vadd.f32 %v12579, %v12588
    %v12619 = vadd.f32 %v12580, %v12588
    %v12620 = vadd.f32 %v12581, %v12588
    %v12621 = vadd.f32 %v12582, %v12588
    %vm12622 = vcmask 15360
    %12623 = vst.msk [vmem:[%s9] sm:$0xff] %vm12622, %v12590
    %12624 = vst.msk [vmem:[%s9 + $0x8] sm:$0xff] %vm12622, %v12591
    %12625 = vst.msk [vmem:[%s9 + $0x10] sm:$0xff] %vm12622, %v12592
    %12626 = vst.msk [vmem:[%s9 + $0x18] sm:$0xff] %vm12622, %v12593
    %12627 = vst.msk [vmem:[%s9 + $0x20] sm:$0xff] %vm12622, %v12594
    %12628 = vst.msk [vmem:[%s9 + $0x28] sm:$0xff] %vm12622, %v12595
    %12629 = vst.msk [vmem:[%s9 + $0x30] sm:$0xff] %vm12622, %v12596
    %12630 = vst.msk [vmem:[%s9 + $0x38] sm:$0xff] %vm12622, %v12597
    %12631 = vst.msk [vmem:[%s9 + $0x40] sm:$0xff] %vm12622, %v12598
    %12632 = vst.msk [vmem:[%s9 + $0x48] sm:$0xff] %vm12622, %v12599
    %12633 = vst.msk [vmem:[%s9 + $0x50] sm:$0xff] %vm12622, %v12600
    %12634 = vst.msk [vmem:[%s9 + $0x58] sm:$0xff] %vm12622, %v12601
    %12635 = vst.msk [vmem:[%s9 + $0x60] sm:$0xff] %vm12622, %v12602
    %12636 = vst.msk [vmem:[%s9 + $0x68] sm:$0xff] %vm12622, %v12603
    %12637 = vst.msk [vmem:[%s9 + $0x70] sm:$0xff] %vm12622, %v12604
    %12638 = vst.msk [vmem:[%s9 + $0x78] sm:$0xff] %vm12622, %v12605
    %12639 = vst.msk [vmem:[%s9 + $0x80] sm:$0xff] %vm12622, %v12606
    %12640 = vst.msk [vmem:[%s9 + $0x88] sm:$0xff] %vm12622, %v12607
    %12641 = vst.msk [vmem:[%s9 + $0x90] sm:$0xff] %vm12622, %v12608
    %12642 = vst.msk [vmem:[%s9 + $0x98] sm:$0xff] %vm12622, %v12609
    %12643 = vst.msk [vmem:[%s9 + $0xa0] sm:$0xff] %vm12622, %v12610
    %12644 = vst.msk [vmem:[%s9 + $0xa8] sm:$0xff] %vm12622, %v12611
    %12645 = vst.msk [vmem:[%s9 + $0xb0] sm:$0xff] %vm12622, %v12612
    %12646 = vst.msk [vmem:[%s9 + $0xb8] sm:$0xff] %vm12622, %v12613
    %12647 = vst.msk [vmem:[%s9 + $0xc0] sm:$0xff] %vm12622, %v12614
    %12648 = vst.msk [vmem:[%s9 + $0xc8] sm:$0xff] %vm12622, %v12615
    %12649 = vst.msk [vmem:[%s9 + $0xd0] sm:$0xff] %vm12622, %v12616
    %12650 = vst.msk [vmem:[%s9 + $0xd8] sm:$0xff] %vm12622, %v12617
    %12651 = vst.msk [vmem:[%s9 + $0xe0] sm:$0xff] %vm12622, %v12618
    %12652 = vst.msk [vmem:[%s9 + $0xe8] sm:$0xff] %vm12622, %v12619
    %12653 = vst.msk [vmem:[%s9 + $0xf0] sm:$0xff] %vm12622, %v12620
    %12654 = vst.msk [vmem:[%s9 + $0xf8] sm:$0xff] %vm12622, %v12621
    // Predicated region
    $region66: #{tpu_custom_call.1} parent=1 // pred_check
      _
    $region67: #{tpu_custom_call.1} parent=1 // pred_check_branch
      %12656 = sbr.rel (0) target = $region69
    $region68: #{tpu_custom_call.1} parent=1 // pred_region
      _
    $region69: #{tpu_custom_call.1} parent=1 // pred_fallthru
      _
    // Predicated region
    $region70: #{tpu_custom_call.1} parent=1 // pred_check
      _
    $region71: #{tpu_custom_call.1} parent=1 // pred_check_branch
      %12658 = sbr.rel (0) target = $region73
    $region72: #{tpu_custom_call.1} parent=1 // pred_region
      _
    $region73: #{tpu_custom_call.1} parent=1 // pred_fallthru
      _
    %12659 = vsyncpa [#allocation3], 1
    %12660 = vsyncpa [#allocation5], 1
    %12661 = vsyncpa [#allocation8], 1
    %12662 = vsyncpa [#allocation11], 1

</llo_original>
